<compile_context>
chip_gen: v7x
topology: tpu7x:2x2x1
jax: 0.10.0
libtpu: 0.0.40
codegen_flags: <defaults>
</compile_context>

<pallas_src>
import math
import functools

import jax
import jax.numpy as jnp
from jax import lax
from jax.experimental import pallas as pl
from jax.experimental.pallas import tpu as pltpu


_LN_EPS = 1e-5   # PyTorch LayerNorm default


# --------------------------------------------------------------------------
# In-kernel helpers (operate on plain arrays loaded from refs)
# --------------------------------------------------------------------------
def _layer_norm(y, g, b, eps):
    mu = jnp.mean(y, axis=-1, keepdims=True)
    yc = y - mu
    var = jnp.mean(yc * yc, axis=-1, keepdims=True)
    return yc * lax.rsqrt(var + eps) * g + b


def _mha(x_q, x_kv, wq, bq, wkv, bkv, wo, bo, mask, num_heads):
    """Multi-head attention for one batch element.

    x_q: (Lq, D) f32, x_kv: (Lk, D) f32; matmul weights bf16, biases f32.
    Returns (Lq, D) f32 (output projection + bias, no residual / LN).
    """
    Lq, D = x_q.shape
    Dh = D // num_heads
    scale = 1.0 / math.sqrt(Dh)

    xq16 = x_q.astype(jnp.bfloat16)
    xkv16 = xq16 if x_kv is x_q else x_kv.astype(jnp.bfloat16)

    q = jnp.dot(xq16, wq, preferred_element_type=jnp.float32) + bq       # (Lq, D)
    kv = jnp.dot(xkv16, wkv, preferred_element_type=jnp.float32) + bkv   # (Lk, 2D)

    # casts hoisted out of the head loop (done once per block, not per head)
    q16 = (q * scale).astype(jnp.bfloat16)
    k16 = kv[:, :D].astype(jnp.bfloat16)
    v16 = kv[:, D:].astype(jnp.bfloat16)

    out = jnp.zeros((Lq, D), jnp.float32)
    for h in range(num_heads):                       # static unrolled loop
        lo = h * Dh
        q_h = q16[:, lo:lo + Dh]                     # (Lq, Dh)
        k_h = k16[:, lo:lo + Dh]                     # (Lk, Dh)
        v_h = v16[:, lo:lo + Dh]                     # (Lk, Dh)

        s = lax.dot_general(q_h, k_h, (((1,), (1,)), ((), ())),
                            preferred_element_type=jnp.float32)          # (Lq, Lk)
        if mask is not None:                         # compile-time choice
            s = s + mask
        s = s - jnp.max(s, axis=-1, keepdims=True)
        p = jnp.exp(s)
        p = p * pl.reciprocal(jnp.sum(p, axis=-1, keepdims=True))
        ctx = jnp.dot(p.astype(jnp.bfloat16), v_h,
                      preferred_element_type=jnp.float32)                # (Lq, Dh)
        # accumulate the per-head slice of the (bf16) output projection
        out = out + jnp.dot(ctx.astype(jnp.bfloat16), wo[lo:lo + Dh, :],
                            preferred_element_type=jnp.float32)
    return out + bo


def _ffn(y, w1, b1, w2, b2):
    """FF1 + ReLU + FF2 (no residual / LN). Whole 2048-wide hidden in VMEM."""
    h = jnp.dot(y.astype(jnp.bfloat16), w1,
                preferred_element_type=jnp.float32) + b1
    h = jnp.maximum(h, 0.0)
    return jnp.dot(h.astype(jnp.bfloat16), w2,
                   preferred_element_type=jnp.float32) + b2


# --------------------------------------------------------------------------
# Kernel 1: fused encoder stack.
#   grid = (batch, encoder_layer); per-layer weights stacked on a leading axis;
#   activation carried across layers in a VMEM scratch; final encoder
#   LayerNorm applied and memory written only at the last layer.
# --------------------------------------------------------------------------
def _encoder_stack_kernel(x_ref,
                          wq_ref, bq_ref, wkv_ref, bkv_ref, wo_ref, bo_ref,
                          g1_ref, be1_ref, w1_ref, b1_ref, w2_ref, b2_ref,
                          g2_ref, be2_ref, fg_ref, fb_ref,
                          o_ref, x_sc, *, num_heads, eps):
    layer = pl.program_id(1)

    @pl.when(layer == 0)
    def _():
        x_sc[...] = x_ref[...]

    x = x_sc[0]                                            # (Ls, D) f32

    a = _mha(x, x, wq_ref[0], bq_ref[0], wkv_ref[0], bkv_ref[0],
             wo_ref[0], bo_ref[0], None, num_heads)
    y = _layer_norm(a + x, g1_ref[0], be1_ref[0], eps)

    z = _layer_norm(_ffn(y, w1_ref[0], b1_ref[0], w2_ref[0], b2_ref[0]) + y,
                    g2_ref[0], be2_ref[0], eps)
    x_sc[0] = z

    @pl.when(layer == pl.num_programs(1) - 1)
    def _():
        o_ref[0] = _layer_norm(z, fg_ref[...], fb_ref[...], eps).astype(o_ref.dtype)


def encoder_stack_pallas(src, enc, norm_g, norm_b, num_heads):
    B, Ls, D = src.shape
    Le = enc["wq"].shape[0]

    enc_keys = ("wq", "bq", "wkv", "bkv", "wo", "bo", "ln1_g", "ln1_b",
                "w1", "b1", "w2", "b2", "ln2_g", "ln2_b")
    stacked = [enc[k] for k in enc_keys]

    def layer_spec(a):
        return pl.BlockSpec((1,) + a.shape[1:], lambda b, l: (l, 0, 0))

    def const_spec(a):
        return pl.BlockSpec(a.shape, lambda b, l: (0,) * a.ndim)

    in_specs = ([pl.BlockSpec((1, Ls, D), lambda b, l: (b, 0, 0))]
                + [layer_spec(a) for a in stacked]
                + [const_spec(norm_g), const_spec(norm_b)])

    kernel = functools.partial(_encoder_stack_kernel, num_heads=num_heads,
                               eps=_LN_EPS)
    return pl.pallas_call(
        kernel,
        out_shape=jax.ShapeDtypeStruct((B, Ls, D), jnp.float32),
        grid=(B, Le),
        in_specs=in_specs,
        out_specs=pl.BlockSpec((1, Ls, D), lambda b, l: (b, 0, 0)),
        scratch_shapes=[pltpu.VMEM((1, Ls, D), jnp.float32)],
        compiler_params=pltpu.CompilerParams(
            dimension_semantics=("parallel", "arbitrary")),
    )(src, *stacked, norm_g, norm_b)


# --------------------------------------------------------------------------
# Kernel 2: fused decoder stack + final LayerNorm + output Linear.
#   grid = (batch, decoder_layer); self-attn (causal mask) + cross-attn + FFN
#   + norms per layer; logits written once at the last layer.
# --------------------------------------------------------------------------
def _decoder_stack_kernel(x_ref, mem_ref, mask_ref,
                          wq1_ref, bq1_ref, wkv1_ref, bkv1_ref, wo1_ref,
                          bo1_ref, g1_ref, be1_ref,
                          wq2_ref, bq2_ref, wkv2_ref, bkv2_ref, wo2_ref,
                          bo2_ref, g2_ref, be2_ref,
                          w1_ref, b1_ref, w2_ref, b2_ref, g3_ref, be3_ref,
                          fg_ref, fb_ref, ow_ref, ob_ref,
                          o_ref, x_sc, *, num_heads, eps):
    layer = pl.program_id(1)

    @pl.when(layer == 0)
    def _():
        x_sc[...] = x_ref[...]

    x = x_sc[0]                                            # (Lt, D) f32
    mem = mem_ref[0]                                       # (Ls, D) f32
    mask = mask_ref[...]                                   # (Lt, Lt) additive

    # masked self-attention + LN1
    a = _mha(x, x, wq1_ref[0], bq1_ref[0], wkv1_ref[0], bkv1_ref[0],
             wo1_ref[0], bo1_ref[0], mask, num_heads)
    y = _layer_norm(a + x, g1_ref[0], be1_ref[0], eps)

    # cross-attention (no mask) + LN2
    a2 = _mha(y, mem, wq2_ref[0], bq2_ref[0], wkv2_ref[0], bkv2_ref[0],
              wo2_ref[0], bo2_ref[0], None, num_heads)
    y2 = _layer_norm(a2 + y, g2_ref[0], be2_ref[0], eps)

    # feed-forward + LN3
    z = _layer_norm(_ffn(y2, w1_ref[0], b1_ref[0], w2_ref[0], b2_ref[0]) + y2,
                    g3_ref[0], be3_ref[0], eps)
    x_sc[0] = z

    @pl.when(layer == pl.num_programs(1) - 1)
    def _():
        yf = _layer_norm(z, fg_ref[...], fb_ref[...], eps)
        logits = jnp.dot(yf.astype(jnp.bfloat16), ow_ref[...],
                         preferred_element_type=jnp.float32) + ob_ref[...]
        o_ref[0] = logits.astype(o_ref.dtype)


def decoder_stack_pallas(tgt, mem, tgt_mask, dec, norm_g, norm_b,
                         out_w, out_b, num_heads):
    B, Lt, D = tgt.shape
    Ls = mem.shape[1]
    V = out_w.shape[1]
    Ld = dec["wq_s"].shape[0]

    dec_keys = ("wq_s", "bq_s", "wkv_s", "bkv_s", "wo_s", "bo_s",
                "ln1_g", "ln1_b",
                "wq_c", "bq_c", "wkv_c", "bkv_c", "wo_c", "bo_c",
                "ln2_g", "ln2_b",
                "w1", "b1", "w2", "b2", "ln3_g", "ln3_b")
    stacked = [dec[k] for k in dec_keys]

    def layer_spec(a):
        return pl.BlockSpec((1,) + a.shape[1:], lambda b, l: (l, 0, 0))

    def const_spec(a):
        return pl.BlockSpec(a.shape, lambda b, l: (0,) * a.ndim)

    in_specs = ([pl.BlockSpec((1, Lt, D), lambda b, l: (b, 0, 0)),
                 pl.BlockSpec((1, Ls, D), lambda b, l: (b, 0, 0)),
                 const_spec(tgt_mask)]
                + [layer_spec(a) for a in stacked]
                + [const_spec(norm_g), const_spec(norm_b),
                   const_spec(out_w), const_spec(out_b)])

    kernel = functools.partial(_decoder_stack_kernel, num_heads=num_heads,
                               eps=_LN_EPS)
    return pl.pallas_call(
        kernel,
        out_shape=jax.ShapeDtypeStruct((B, Lt, V), jnp.float32),
        grid=(B, Ld),
        in_specs=in_specs,
        out_specs=pl.BlockSpec((1, Lt, V), lambda b, l: (b, 0, 0)),
        scratch_shapes=[pltpu.VMEM((1, Lt, D), jnp.float32)],
        compiler_params=pltpu.CompilerParams(
            dimension_semantics=("parallel", "arbitrary")),
    )(tgt, mem, tgt_mask, *stacked, norm_g, norm_b, out_w, out_b)


# ------------------------------ model pieces ------------------------------

def make_pos_encoding(max_len, dim):
    pos = jnp.arange(max_len, dtype=jnp.float32)[:, None]
    div = jnp.exp(jnp.arange(0, dim, 2, dtype=jnp.float32)
                  * (-math.log(10000.0) / dim))
    pe = jnp.zeros((max_len, dim), jnp.float32)
    pe = pe.at[:, 0::2].set(jnp.sin(pos * div))
    pe = pe.at[:, 1::2].set(jnp.cos(pos * div))
    return pe


def get_tgt_mask(size):
    tril = jnp.tril(jnp.ones((size, size), jnp.float32))
    return jnp.where(tril == 0.0, -jnp.inf, 0.0).astype(jnp.float32)


def transformer_forward(params, src_tokens, tgt_tokens, tgt_mask, *, num_heads):
    emb = params["embedding"]
    D = emb.shape[1]
    B, _ = src_tokens.shape
    Lt = tgt_tokens.shape[1]

    # TODO(synk): embedding lookup (data-dependent gather) stays in plain JAX;
    # the matmul / attention / LN hot path is all inside two Pallas kernels.
    src = emb[src_tokens] * math.sqrt(D)     # (B, Ls, D)
    tgt = emb[tgt_tokens] * math.sqrt(D)     # (B, Lt, D)

    # PositionalEncoding: reproduces the reference indexing exactly
    # (pos_encoding[:token_embedding.size(0)] with batch-first embeddings,
    #  i.e. indexed by the *batch* dim).  Dropout = identity (eval mode).
    pe = params["pos_encoding"]
    src = src + pe[:B][:, None, :]
    tgt = tgt + pe[:B][:, None, :]

    if tgt_mask is None:
        tgt_mask = jnp.zeros((Lt, Lt), jnp.float32)

    mem = encoder_stack_pallas(src, params["enc"], params["enc_norm_g"],
                               params["enc_norm_b"], num_heads)
    logits = decoder_stack_pallas(tgt, mem, tgt_mask, params["dec"],
                                  params["dec_norm_g"], params["dec_norm_b"],
                                  params["out_w"], params["out_b"], num_heads)
    # match the reference output layout: (Lt, B, num_tokens)
    return logits.transpose(1, 0, 2)


# --------------------------- deterministic params ---------------------------

def init_params(key, num_tokens, dim_model, num_heads,
                num_encoder_layers, num_decoder_layers, dim_feedforward):
    D, F, V = dim_model, dim_feedforward, num_tokens
    Le, Ld = num_encoder_layers, num_decoder_layers
    keys = iter(jax.random.split(key, 32))

    def w(shape, dtype=jnp.bfloat16):
        return (0.02 * jax.random.normal(next(keys), shape,
                                         jnp.float32)).astype(dtype)

    def zeros(shape):
        return jnp.zeros(shape, jnp.float32)

    def ones(shape):
        return jnp.ones(shape, jnp.float32)

    enc = dict(
        wq=w((Le, D, D)), bq=zeros((Le, 1, D)),
        wkv=w((Le, D, 2 * D)), bkv=zeros((Le, 1, 2 * D)),
        wo=w((Le, D, D)), bo=zeros((Le, 1, D)),
        ln1_g=ones((Le, 1, D)), ln1_b=zeros((Le, 1, D)),
        w1=w((Le, D, F)), b1=zeros((Le, 1, F)),
        w2=w((Le, F, D)), b2=zeros((Le, 1, D)),
        ln2_g=ones((Le, 1, D)), ln2_b=zeros((Le, 1, D)))

    dec = dict(
        wq_s=w((Ld, D, D)), bq_s=zeros((Ld, 1, D)),
        wkv_s=w((Ld, D, 2 * D)), bkv_s=zeros((Ld, 1, 2 * D)),
        wo_s=w((Ld, D, D)), bo_s=zeros((Ld, 1, D)),
        ln1_g=ones((Ld, 1, D)), ln1_b=zeros((Ld, 1, D)),
        wq_c=w((Ld, D, D)), bq_c=zeros((Ld, 1, D)),
        wkv_c=w((Ld, D, 2 * D)), bkv_c=zeros((Ld, 1, 2 * D)),
        wo_c=w((Ld, D, D)), bo_c=zeros((Ld, 1, D)),
        ln2_g=ones((Ld, 1, D)), ln2_b=zeros((Ld, 1, D)),
        w1=w((Ld, D, F)), b1=zeros((Ld, 1, F)),
        w2=w((Ld, F, D)), b2=zeros((Ld, 1, D)),
        ln3_g=ones((Ld, 1, D)), ln3_b=zeros((Ld, 1, D)))

    return dict(
        embedding=jax.random.normal(next(keys), (V, D), jnp.float32),
        pos_encoding=make_pos_encoding(5000, D),
        enc=enc, dec=dec,
        enc_norm_g=ones((1, D)), enc_norm_b=zeros((1, D)),
        dec_norm_g=ones((1, D)), dec_norm_b=zeros((1, D)),
        out_w=w((D, V)), out_b=zeros((1, V)))


# ---------------------------------- main ----------------------------------

if __name__ == "__main__":
    num_tokens = 32
    dim_model = 32
    num_heads = 4
    num_encoder_layers = 2
    num_decoder_layers = 2
    dim_feedforward = 2048     # PyTorch nn.Transformer default
    batch = 2
    src_len = 8
    tgt_len = 6

    root = jax.random.PRNGKey(0)
    k_param, k_src, k_tgt = jax.random.split(root, 3)

    params = init_params(k_param, num_tokens, dim_model, num_heads,
                         num_encoder_layers, num_decoder_layers,
                         dim_feedforward)

    src = jax.random.randint(k_src, (batch, src_len), 0, num_tokens,
                             dtype=jnp.int32)
    tgt = jax.random.randint(k_tgt, (batch, tgt_len), 0, num_tokens,
                             dtype=jnp.int32)
    tgt_mask = get_tgt_mask(tgt_len)   # causal, additive -inf

    fwd = jax.jit(functools.partial(transformer_forward, num_heads=num_heads))
    out = fwd(params, src, tgt, tgt_mask)
    jax.block_until_ready(out)
    assert out.shape == (tgt_len, batch, num_tokens)
    print("KERNEL_OK")
</pallas_src>

<mosaic_0001>
module attributes {stable_mosaic.version = 11 : i64} {
  func.func @_encoder_stack_kernel(%arg0: i32, %arg1: i32, %arg2: memref<1x8x32xf32, #tpu.memory_space<vmem>>, %arg3: memref<1x32x32xbf16, #tpu.memory_space<vmem>>, %arg4: memref<1x1x32xf32, #tpu.memory_space<vmem>>, %arg5: memref<1x32x64xbf16, #tpu.memory_space<vmem>>, %arg6: memref<1x1x64xf32, #tpu.memory_space<vmem>>, %arg7: memref<1x32x32xbf16, #tpu.memory_space<vmem>>, %arg8: memref<1x1x32xf32, #tpu.memory_space<vmem>>, %arg9: memref<1x1x32xf32, #tpu.memory_space<vmem>>, %arg10: memref<1x1x32xf32, #tpu.memory_space<vmem>>, %arg11: memref<1x32x2048xbf16, #tpu.memory_space<vmem>>, %arg12: memref<1x1x2048xf32, #tpu.memory_space<vmem>>, %arg13: memref<1x2048x32xbf16, #tpu.memory_space<vmem>>, %arg14: memref<1x1x32xf32, #tpu.memory_space<vmem>>, %arg15: memref<1x1x32xf32, #tpu.memory_space<vmem>>, %arg16: memref<1x1x32xf32, #tpu.memory_space<vmem>>, %arg17: memref<1x32xf32, #tpu.memory_space<vmem>>, %arg18: memref<1x32xf32, #tpu.memory_space<vmem>>, %arg19: memref<1x8x32xf32, #tpu.memory_space<vmem>>, %arg20: memref<1x8x32xf32, #tpu.memory_space<vmem>>) attributes {dimension_semantics = [#tpu.dimension_semantics<parallel>, #tpu.dimension_semantics<arbitrary>], iteration_bounds = array<i64: 2, 2>, scalar_prefetch = 0 : i64, scratch_operands = 1 : i64, tpu.core_type = #tpu.core_type<tc>, window_params = [{transform_indices = @transform_0, window_bounds = array<i64: 1, 8, 32>}, {transform_indices = @transform_1, window_bounds = array<i64: 1, 32, 32>}, {transform_indices = @transform_2, window_bounds = array<i64: 1, 1, 32>}, {transform_indices = @transform_3, window_bounds = array<i64: 1, 32, 64>}, {transform_indices = @transform_4, window_bounds = array<i64: 1, 1, 64>}, {transform_indices = @transform_5, window_bounds = array<i64: 1, 32, 32>}, {transform_indices = @transform_6, window_bounds = array<i64: 1, 1, 32>}, {transform_indices = @transform_7, window_bounds = array<i64: 1, 1, 32>}, {transform_indices = @transform_8, window_bounds = array<i64: 1, 1, 32>}, {transform_indices = @transform_9, window_bounds = array<i64: 1, 32, 2048>}, {transform_indices = @transform_10, window_bounds = array<i64: 1, 1, 2048>}, {transform_indices = @transform_11, window_bounds = array<i64: 1, 2048, 32>}, {transform_indices = @transform_12, window_bounds = array<i64: 1, 1, 32>}, {transform_indices = @transform_13, window_bounds = array<i64: 1, 1, 32>}, {transform_indices = @transform_14, window_bounds = array<i64: 1, 1, 32>}, {pipeline_mode = #tpu.pipeline_mode<synchronous>, transform_indices = @transform_15, window_bounds = array<i64: 1, 32>}, {pipeline_mode = #tpu.pipeline_mode<synchronous>, transform_indices = @transform_16, window_bounds = array<i64: 1, 32>}, {transform_indices = @transform_17, window_bounds = array<i64: 1, 8, 32>}]} {
    %c0_i32 = arith.constant 0 : i32
    %0 = arith.cmpi eq, %arg1, %c0_i32 : i32
    %1 = arith.extui %0 : i1 to i32
    %c0_i32_0 = arith.constant 0 : i32
    %2 = arith.cmpi ne, %1, %c0_i32_0 : i32
    scf.if %2 {
      %c0_85 = arith.constant 0 : index
      %c0_86 = arith.constant 0 : index
      %c0_87 = arith.constant 0 : index
      %188 = vector.load %arg2[%c0_85, %c0_86, %c0_87] : memref<1x8x32xf32, #tpu.memory_space<vmem>>, vector<1x8x32xf32>
      %c0_88 = arith.constant 0 : index
      %c0_89 = arith.constant 0 : index
      %c0_90 = arith.constant 0 : index
      %189 = vector.load %arg20[%c0_88, %c0_89, %c0_90] : memref<1x8x32xf32, #tpu.memory_space<vmem>>, vector<1x8x32xf32>
      tpu.vector_store %arg20[%c0_88, %c0_89, %c0_90], %188 {strides = array<i32>} : memref<1x8x32xf32, #tpu.memory_space<vmem>>, vector<1x8x32xf32>,
    } else {
    }
    %c0 = arith.constant 0 : index
    %c0_1 = arith.constant 0 : index
    %c0_2 = arith.constant 0 : index
    %3 = vector.load %arg20[%c0, %c0_1, %c0_2] : memref<1x8x32xf32, #tpu.memory_space<vmem>>, vector<1x8x32xf32>
    %4 = vector.shape_cast %3 : vector<1x8x32xf32> to vector<8x32xf32>
    %c0_3 = arith.constant 0 : index
    %c0_4 = arith.constant 0 : index
    %c0_5 = arith.constant 0 : index
    %5 = vector.load %arg3[%c0_3, %c0_4, %c0_5] : memref<1x32x32xbf16, #tpu.memory_space<vmem>>, vector<1x32x32xbf16>
    %6 = vector.shape_cast %5 : vector<1x32x32xbf16> to vector<32x32xbf16>
    %c0_6 = arith.constant 0 : index
    %c0_7 = arith.constant 0 : index
    %c0_8 = arith.constant 0 : index
    %7 = vector.load %arg4[%c0_6, %c0_7, %c0_8] : memref<1x1x32xf32, #tpu.memory_space<vmem>>, vector<1x1x32xf32>
    %8 = vector.shape_cast %7 : vector<1x1x32xf32> to vector<1x32xf32>
    %c0_9 = arith.constant 0 : index
    %c0_10 = arith.constant 0 : index
    %c0_11 = arith.constant 0 : index
    %9 = vector.load %arg5[%c0_9, %c0_10, %c0_11] : memref<1x32x64xbf16, #tpu.memory_space<vmem>>, vector<1x32x64xbf16>
    %10 = vector.shape_cast %9 : vector<1x32x64xbf16> to vector<32x64xbf16>
    %c0_12 = arith.constant 0 : index
    %c0_13 = arith.constant 0 : index
    %c0_14 = arith.constant 0 : index
    %11 = vector.load %arg6[%c0_12, %c0_13, %c0_14] : memref<1x1x64xf32, #tpu.memory_space<vmem>>, vector<1x1x64xf32>
    %12 = vector.shape_cast %11 : vector<1x1x64xf32> to vector<1x64xf32>
    %c0_15 = arith.constant 0 : index
    %c0_16 = arith.constant 0 : index
    %c0_17 = arith.constant 0 : index
    %13 = vector.load %arg7[%c0_15, %c0_16, %c0_17] : memref<1x32x32xbf16, #tpu.memory_space<vmem>>, vector<1x32x32xbf16>
    %14 = vector.shape_cast %13 : vector<1x32x32xbf16> to vector<32x32xbf16>
    %c0_18 = arith.constant 0 : index
    %c0_19 = arith.constant 0 : index
    %c0_20 = arith.constant 0 : index
    %15 = vector.load %arg8[%c0_18, %c0_19, %c0_20] : memref<1x1x32xf32, #tpu.memory_space<vmem>>, vector<1x1x32xf32>
    %16 = vector.shape_cast %15 : vector<1x1x32xf32> to vector<1x32xf32>
    %17 = arith.truncf %4 : vector<8x32xf32> to vector<8x32xbf16>
    %cst = arith.constant dense<0.000000e+00> : vector<8x32xf32>
    %18 = tpu.matmul %17, %6, %cst {dimension_numbers = #tpu.dot_dimension_numbers<[1], [0], [0], [1], [0, 0, 1, 1], [], []>} : vector<8x32xbf16>, vector<32x32xbf16>, vector<8x32xf32> -> vector<8x32xf32>
    %19 = vector.broadcast %8 : vector<1x32xf32> to vector<8x32xf32>
    %20 = arith.addf %18, %19 : vector<8x32xf32>
    %cst_21 = arith.constant dense<0.000000e+00> : vector<8x64xf32>
    %21 = tpu.matmul %17, %10, %cst_21 {dimension_numbers = #tpu.dot_dimension_numbers<[1], [0], [0], [1], [0, 0, 1, 1], [], []>} : vector<8x32xbf16>, vector<32x64xbf16>, vector<8x64xf32> -> vector<8x64xf32>
    %22 = vector.broadcast %12 : vector<1x64xf32> to vector<8x64xf32>
    %23 = arith.addf %21, %22 : vector<8x64xf32>
    %cst_22 = arith.constant 0.353553385 : f32
    %24 = vector.broadcast %cst_22 : f32 to vector<8x32xf32>
    %25 = arith.mulf %20, %24 : vector<8x32xf32>
    %26 = arith.truncf %25 : vector<8x32xf32> to vector<8x32xbf16>
    %27 = vector.extract_strided_slice %23 {offsets = [0, 0], sizes = [8, 32], strides = [1, 1]} : vector<8x64xf32> to vector<8x32xf32>
    %28 = arith.truncf %27 : vector<8x32xf32> to vector<8x32xbf16>
    %29 = vector.extract_strided_slice %23 {offsets = [0, 32], sizes = [8, 32], strides = [1, 1]} : vector<8x64xf32> to vector<8x32xf32>
    %30 = arith.truncf %29 : vector<8x32xf32> to vector<8x32xbf16>
    %cst_23 = arith.constant 0.000000e+00 : f32
    %31 = vector.broadcast %cst_23 : f32 to vector<8x32xf32>
    %32 = vector.extract_strided_slice %26 {offsets = [0, 0], sizes = [8, 8], strides = [1, 1]} : vector<8x32xbf16> to vector<8x8xbf16>
    %33 = vector.extract_strided_slice %28 {offsets = [0, 0], sizes = [8, 8], strides = [1, 1]} : vector<8x32xbf16> to vector<8x8xbf16>
    %34 = vector.extract_strided_slice %30 {offsets = [0, 0], sizes = [8, 8], strides = [1, 1]} : vector<8x32xbf16> to vector<8x8xbf16>
    %cst_24 = arith.constant dense<0.000000e+00> : vector<8x8xf32>
    %35 = tpu.matmul %32, %33, %cst_24 {dimension_numbers = #tpu.dot_dimension_numbers<[1], [1], [0], [0], [0, 0, 1, 0], [], []>} : vector<8x8xbf16>, vector<8x8xbf16>, vector<8x8xf32> -> vector<8x8xf32>
    %cst_25 = arith.constant dense<0xFF800000> : vector<8xf32>
    %36 = vector.multi_reduction <maximumf>, %35, %cst_25 [1] : vector<8x8xf32> to vector<8xf32>
    %37 = vector.shape_cast %36 : vector<8xf32> to vector<8x1xf32>
    %38 = vector.broadcast %37 : vector<8x1xf32> to vector<8x8xf32>
    %39 = arith.subf %35, %38 : vector<8x8xf32>
    %40 = math.exp %39 : vector<8x8xf32>
    %cst_26 = arith.constant dense<0.000000e+00> : vector<8xf32>
    %41 = vector.multi_reduction <add>, %40, %cst_26 [1] : vector<8x8xf32> to vector<8xf32>
    %42 = vector.shape_cast %41 : vector<8xf32> to vector<8x1xf32>
    %43 = tpu.reciprocal %42 : vector<8x1xf32> -> vector<8x1xf32>
    %44 = vector.broadcast %43 : vector<8x1xf32> to vector<8x8xf32>
    %45 = arith.mulf %40, %44 : vector<8x8xf32>
    %46 = arith.truncf %45 : vector<8x8xf32> to vector<8x8xbf16>
    %cst_27 = arith.constant dense<0.000000e+00> : vector<8x8xf32>
    %47 = tpu.matmul %46, %34, %cst_27 {dimension_numbers = #tpu.dot_dimension_numbers<[1], [0], [0], [1], [0, 0, 1, 1], [], []>} : vector<8x8xbf16>, vector<8x8xbf16>, vector<8x8xf32> -> vector<8x8xf32>
    %48 = arith.truncf %47 : vector<8x8xf32> to vector<8x8xbf16>
    %49 = vector.extract_strided_slice %14 {offsets = [0, 0], sizes = [8, 32], strides = [1, 1]} : vector<32x32xbf16> to vector<8x32xbf16>
    %cst_28 = arith.constant dense<0.000000e+00> : vector<8x32xf32>
    %50 = tpu.matmul %48, %49, %cst_28 {dimension_numbers = #tpu.dot_dimension_numbers<[1], [0], [0], [1], [0, 0, 1, 1], [], []>} : vector<8x8xbf16>, vector<8x32xbf16>, vector<8x32xf32> -> vector<8x32xf32>
    %51 = arith.addf %31, %50 : vector<8x32xf32>
    %52 = vector.extract_strided_slice %26 {offsets = [0, 8], sizes = [8, 8], strides = [1, 1]} : vector<8x32xbf16> to vector<8x8xbf16>
    %53 = vector.extract_strided_slice %28 {offsets = [0, 8], sizes = [8, 8], strides = [1, 1]} : vector<8x32xbf16> to vector<8x8xbf16>
    %54 = vector.extract_strided_slice %30 {offsets = [0, 8], sizes = [8, 8], strides = [1, 1]} : vector<8x32xbf16> to vector<8x8xbf16>
    %cst_29 = arith.constant dense<0.000000e+00> : vector<8x8xf32>
    %55 = tpu.matmul %52, %53, %cst_29 {dimension_numbers = #tpu.dot_dimension_numbers<[1], [1], [0], [0], [0, 0, 1, 0], [], []>} : vector<8x8xbf16>, vector<8x8xbf16>, vector<8x8xf32> -> vector<8x8xf32>
    %cst_30 = arith.constant dense<0xFF800000> : vector<8xf32>
    %56 = vector.multi_reduction <maximumf>, %55, %cst_30 [1] : vector<8x8xf32> to vector<8xf32>
    %57 = vector.shape_cast %56 : vector<8xf32> to vector<8x1xf32>
    %58 = vector.broadcast %57 : vector<8x1xf32> to vector<8x8xf32>
    %59 = arith.subf %55, %58 : vector<8x8xf32>
    %60 = math.exp %59 : vector<8x8xf32>
    %cst_31 = arith.constant dense<0.000000e+00> : vector<8xf32>
    %61 = vector.multi_reduction <add>, %60, %cst_31 [1] : vector<8x8xf32> to vector<8xf32>
    %62 = vector.shape_cast %61 : vector<8xf32> to vector<8x1xf32>
    %63 = tpu.reciprocal %62 : vector<8x1xf32> -> vector<8x1xf32>
    %64 = vector.broadcast %63 : vector<8x1xf32> to vector<8x8xf32>
    %65 = arith.mulf %60, %64 : vector<8x8xf32>
    %66 = arith.truncf %65 : vector<8x8xf32> to vector<8x8xbf16>
    %cst_32 = arith.constant dense<0.000000e+00> : vector<8x8xf32>
    %67 = tpu.matmul %66, %54, %cst_32 {dimension_numbers = #tpu.dot_dimension_numbers<[1], [0], [0], [1], [0, 0, 1, 1], [], []>} : vector<8x8xbf16>, vector<8x8xbf16>, vector<8x8xf32> -> vector<8x8xf32>
    %68 = arith.truncf %67 : vector<8x8xf32> to vector<8x8xbf16>
    %69 = vector.extract_strided_slice %14 {offsets = [8, 0], sizes = [8, 32], strides = [1, 1]} : vector<32x32xbf16> to vector<8x32xbf16>
    %cst_33 = arith.constant dense<0.000000e+00> : vector<8x32xf32>
    %70 = tpu.matmul %68, %69, %cst_33 {dimension_numbers = #tpu.dot_dimension_numbers<[1], [0], [0], [1], [0, 0, 1, 1], [], []>} : vector<8x8xbf16>, vector<8x32xbf16>, vector<8x32xf32> -> vector<8x32xf32>
    %71 = arith.addf %51, %70 : vector<8x32xf32>
    %72 = vector.extract_strided_slice %26 {offsets = [0, 16], sizes = [8, 8], strides = [1, 1]} : vector<8x32xbf16> to vector<8x8xbf16>
    %73 = vector.extract_strided_slice %28 {offsets = [0, 16], sizes = [8, 8], strides = [1, 1]} : vector<8x32xbf16> to vector<8x8xbf16>
    %74 = vector.extract_strided_slice %30 {offsets = [0, 16], sizes = [8, 8], strides = [1, 1]} : vector<8x32xbf16> to vector<8x8xbf16>
    %cst_34 = arith.constant dense<0.000000e+00> : vector<8x8xf32>
    %75 = tpu.matmul %72, %73, %cst_34 {dimension_numbers = #tpu.dot_dimension_numbers<[1], [1], [0], [0], [0, 0, 1, 0], [], []>} : vector<8x8xbf16>, vector<8x8xbf16>, vector<8x8xf32> -> vector<8x8xf32>
    %cst_35 = arith.constant dense<0xFF800000> : vector<8xf32>
    %76 = vector.multi_reduction <maximumf>, %75, %cst_35 [1] : vector<8x8xf32> to vector<8xf32>
    %77 = vector.shape_cast %76 : vector<8xf32> to vector<8x1xf32>
    %78 = vector.broadcast %77 : vector<8x1xf32> to vector<8x8xf32>
    %79 = arith.subf %75, %78 : vector<8x8xf32>
    %80 = math.exp %79 : vector<8x8xf32>
    %cst_36 = arith.constant dense<0.000000e+00> : vector<8xf32>
    %81 = vector.multi_reduction <add>, %80, %cst_36 [1] : vector<8x8xf32> to vector<8xf32>
    %82 = vector.shape_cast %81 : vector<8xf32> to vector<8x1xf32>
    %83 = tpu.reciprocal %82 : vector<8x1xf32> -> vector<8x1xf32>
    %84 = vector.broadcast %83 : vector<8x1xf32> to vector<8x8xf32>
    %85 = arith.mulf %80, %84 : vector<8x8xf32>
    %86 = arith.truncf %85 : vector<8x8xf32> to vector<8x8xbf16>
    %cst_37 = arith.constant dense<0.000000e+00> : vector<8x8xf32>
    %87 = tpu.matmul %86, %74, %cst_37 {dimension_numbers = #tpu.dot_dimension_numbers<[1], [0], [0], [1], [0, 0, 1, 1], [], []>} : vector<8x8xbf16>, vector<8x8xbf16>, vector<8x8xf32> -> vector<8x8xf32>
    %88 = arith.truncf %87 : vector<8x8xf32> to vector<8x8xbf16>
    %89 = vector.extract_strided_slice %14 {offsets = [16, 0], sizes = [8, 32], strides = [1, 1]} : vector<32x32xbf16> to vector<8x32xbf16>
    %cst_38 = arith.constant dense<0.000000e+00> : vector<8x32xf32>
    %90 = tpu.matmul %88, %89, %cst_38 {dimension_numbers = #tpu.dot_dimension_numbers<[1], [0], [0], [1], [0, 0, 1, 1], [], []>} : vector<8x8xbf16>, vector<8x32xbf16>, vector<8x32xf32> -> vector<8x32xf32>
    %91 = arith.addf %71, %90 : vector<8x32xf32>
    %92 = vector.extract_strided_slice %26 {offsets = [0, 24], sizes = [8, 8], strides = [1, 1]} : vector<8x32xbf16> to vector<8x8xbf16>
    %93 = vector.extract_strided_slice %28 {offsets = [0, 24], sizes = [8, 8], strides = [1, 1]} : vector<8x32xbf16> to vector<8x8xbf16>
    %94 = vector.extract_strided_slice %30 {offsets = [0, 24], sizes = [8, 8], strides = [1, 1]} : vector<8x32xbf16> to vector<8x8xbf16>
    %cst_39 = arith.constant dense<0.000000e+00> : vector<8x8xf32>
    %95 = tpu.matmul %92, %93, %cst_39 {dimension_numbers = #tpu.dot_dimension_numbers<[1], [1], [0], [0], [0, 0, 1, 0], [], []>} : vector<8x8xbf16>, vector<8x8xbf16>, vector<8x8xf32> -> vector<8x8xf32>
    %cst_40 = arith.constant dense<0xFF800000> : vector<8xf32>
    %96 = vector.multi_reduction <maximumf>, %95, %cst_40 [1] : vector<8x8xf32> to vector<8xf32>
    %97 = vector.shape_cast %96 : vector<8xf32> to vector<8x1xf32>
    %98 = vector.broadcast %97 : vector<8x1xf32> to vector<8x8xf32>
    %99 = arith.subf %95, %98 : vector<8x8xf32>
    %100 = math.exp %99 : vector<8x8xf32>
    %cst_41 = arith.constant dense<0.000000e+00> : vector<8xf32>
    %101 = vector.multi_reduction <add>, %100, %cst_41 [1] : vector<8x8xf32> to vector<8xf32>
    %102 = vector.shape_cast %101 : vector<8xf32> to vector<8x1xf32>
    %103 = tpu.reciprocal %102 : vector<8x1xf32> -> vector<8x1xf32>
    %104 = vector.broadcast %103 : vector<8x1xf32> to vector<8x8xf32>
    %105 = arith.mulf %100, %104 : vector<8x8xf32>
    %106 = arith.truncf %105 : vector<8x8xf32> to vector<8x8xbf16>
    %cst_42 = arith.constant dense<0.000000e+00> : vector<8x8xf32>
    %107 = tpu.matmul %106, %94, %cst_42 {dimension_numbers = #tpu.dot_dimension_numbers<[1], [0], [0], [1], [0, 0, 1, 1], [], []>} : vector<8x8xbf16>, vector<8x8xbf16>, vector<8x8xf32> -> vector<8x8xf32>
    %108 = arith.truncf %107 : vector<8x8xf32> to vector<8x8xbf16>
    %109 = vector.extract_strided_slice %14 {offsets = [24, 0], sizes = [8, 32], strides = [1, 1]} : vector<32x32xbf16> to vector<8x32xbf16>
    %cst_43 = arith.constant dense<0.000000e+00> : vector<8x32xf32>
    %110 = tpu.matmul %108, %109, %cst_43 {dimension_numbers = #tpu.dot_dimension_numbers<[1], [0], [0], [1], [0, 0, 1, 1], [], []>} : vector<8x8xbf16>, vector<8x32xbf16>, vector<8x32xf32> -> vector<8x32xf32>
    %111 = arith.addf %91, %110 : vector<8x32xf32>
    %112 = vector.broadcast %16 : vector<1x32xf32> to vector<8x32xf32>
    %113 = arith.addf %111, %112 : vector<8x32xf32>
    %114 = arith.addf %113, %4 : vector<8x32xf32>
    %c0_44 = arith.constant 0 : index
    %c0_45 = arith.constant 0 : index
    %c0_46 = arith.constant 0 : index
    %115 = vector.load %arg9[%c0_44, %c0_45, %c0_46] : memref<1x1x32xf32, #tpu.memory_space<vmem>>, vector<1x1x32xf32>
    %116 = vector.shape_cast %115 : vector<1x1x32xf32> to vector<1x32xf32>
    %c0_47 = arith.constant 0 : index
    %c0_48 = arith.constant 0 : index
    %c0_49 = arith.constant 0 : index
    %117 = vector.load %arg10[%c0_47, %c0_48, %c0_49] : memref<1x1x32xf32, #tpu.memory_space<vmem>>, vector<1x1x32xf32>
    %118 = vector.shape_cast %117 : vector<1x1x32xf32> to vector<1x32xf32>
    %cst_50 = arith.constant dense<0.000000e+00> : vector<8xf32>
    %119 = vector.multi_reduction <add>, %114, %cst_50 [1] : vector<8x32xf32> to vector<8xf32>
    %120 = vector.shape_cast %119 : vector<8xf32> to vector<8x1xf32>
    %cst_51 = arith.constant 3.200000e+01 : f32
    %121 = vector.broadcast %cst_51 : f32 to vector<8x1xf32>
    %122 = arith.divf %120, %121 : vector<8x1xf32>
    %123 = vector.broadcast %122 : vector<8x1xf32> to vector<8x32xf32>
    %124 = arith.subf %114, %123 : vector<8x32xf32>
    %125 = arith.mulf %124, %124 : vector<8x32xf32>
    %cst_52 = arith.constant dense<0.000000e+00> : vector<8xf32>
    %126 = vector.multi_reduction <add>, %125, %cst_52 [1] : vector<8x32xf32> to vector<8xf32>
    %127 = vector.shape_cast %126 : vector<8xf32> to vector<8x1xf32>
    %cst_53 = arith.constant 3.200000e+01 : f32
    %128 = vector.broadcast %cst_53 : f32 to vector<8x1xf32>
    %129 = arith.divf %127, %128 : vector<8x1xf32>
    %cst_54 = arith.constant 9.99999974E-6 : f32
    %130 = vector.broadcast %cst_54 : f32 to vector<8x1xf32>
    %131 = arith.addf %129, %130 : vector<8x1xf32>
    %132 = math.rsqrt %131 : vector<8x1xf32>
    %133 = vector.broadcast %132 : vector<8x1xf32> to vector<8x32xf32>
    %134 = arith.mulf %124, %133 : vector<8x32xf32>
    %135 = vector.broadcast %116 : vector<1x32xf32> to vector<8x32xf32>
    %136 = arith.mulf %134, %135 : vector<8x32xf32>
    %137 = vector.broadcast %118 : vector<1x32xf32> to vector<8x32xf32>
    %138 = arith.addf %136, %137 : vector<8x32xf32>
    %c0_55 = arith.constant 0 : index
    %c0_56 = arith.constant 0 : index
    %c0_57 = arith.constant 0 : index
    %139 = vector.load %arg11[%c0_55, %c0_56, %c0_57] : memref<1x32x2048xbf16, #tpu.memory_space<vmem>>, vector<1x32x2048xbf16>
    %140 = vector.shape_cast %139 : vector<1x32x2048xbf16> to vector<32x2048xbf16>
    %c0_58 = arith.constant 0 : index
    %c0_59 = arith.constant 0 : index
    %c0_60 = arith.constant 0 : index
    %141 = vector.load %arg12[%c0_58, %c0_59, %c0_60] : memref<1x1x2048xf32, #tpu.memory_space<vmem>>, vector<1x1x2048xf32>
    %142 = vector.shape_cast %141 : vector<1x1x2048xf32> to vector<1x2048xf32>
    %c0_61 = arith.constant 0 : index
    %c0_62 = arith.constant 0 : index
    %c0_63 = arith.constant 0 : index
    %143 = vector.load %arg13[%c0_61, %c0_62, %c0_63] : memref<1x2048x32xbf16, #tpu.memory_space<vmem>>, vector<1x2048x32xbf16>
    %144 = vector.shape_cast %143 : vector<1x2048x32xbf16> to vector<2048x32xbf16>
    %c0_64 = arith.constant 0 : index
    %c0_65 = arith.constant 0 : index
    %c0_66 = arith.constant 0 : index
    %145 = vector.load %arg14[%c0_64, %c0_65, %c0_66] : memref<1x1x32xf32, #tpu.memory_space<vmem>>, vector<1x1x32xf32>
    %146 = vector.shape_cast %145 : vector<1x1x32xf32> to vector<1x32xf32>
    %147 = arith.truncf %138 : vector<8x32xf32> to vector<8x32xbf16>
    %cst_67 = arith.constant dense<0.000000e+00> : vector<8x2048xf32>
    %148 = tpu.matmul %147, %140, %cst_67 {dimension_numbers = #tpu.dot_dimension_numbers<[1], [0], [0], [1], [0, 0, 1, 1], [], []>} : vector<8x32xbf16>, vector<32x2048xbf16>, vector<8x2048xf32> -> vector<8x2048xf32>
    %149 = vector.broadcast %142 : vector<1x2048xf32> to vector<8x2048xf32>
    %150 = arith.addf %148, %149 : vector<8x2048xf32>
    %cst_68 = arith.constant 0.000000e+00 : f32
    %151 = vector.broadcast %cst_68 : f32 to vector<8x2048xf32>
    %152 = arith.maximumf %150, %151 : vector<8x2048xf32>
    %153 = arith.truncf %152 : vector<8x2048xf32> to vector<8x2048xbf16>
    %cst_69 = arith.constant dense<0.000000e+00> : vector<8x32xf32>
    %154 = tpu.matmul %153, %144, %cst_69 {dimension_numbers = #tpu.dot_dimension_numbers<[1], [0], [0], [1], [0, 0, 1, 1], [], []>} : vector<8x2048xbf16>, vector<2048x32xbf16>, vector<8x32xf32> -> vector<8x32xf32>
    %155 = vector.broadcast %146 : vector<1x32xf32> to vector<8x32xf32>
    %156 = arith.addf %154, %155 : vector<8x32xf32>
    %157 = arith.addf %156, %138 : vector<8x32xf32>
    %c0_70 = arith.constant 0 : index
    %c0_71 = arith.constant 0 : index
    %c0_72 = arith.constant 0 : index
    %158 = vector.load %arg15[%c0_70, %c0_71, %c0_72] : memref<1x1x32xf32, #tpu.memory_space<vmem>>, vector<1x1x32xf32>
    %159 = vector.shape_cast %158 : vector<1x1x32xf32> to vector<1x32xf32>
    %c0_73 = arith.constant 0 : index
    %c0_74 = arith.constant 0 : index
    %c0_75 = arith.constant 0 : index
    %160 = vector.load %arg16[%c0_73, %c0_74, %c0_75] : memref<1x1x32xf32, #tpu.memory_space<vmem>>, vector<1x1x32xf32>
    %161 = vector.shape_cast %160 : vector<1x1x32xf32> to vector<1x32xf32>
    %cst_76 = arith.constant dense<0.000000e+00> : vector<8xf32>
    %162 = vector.multi_reduction <add>, %157, %cst_76 [1] : vector<8x32xf32> to vector<8xf32>
    %163 = vector.shape_cast %162 : vector<8xf32> to vector<8x1xf32>
    %cst_77 = arith.constant 3.200000e+01 : f32
    %164 = vector.broadcast %cst_77 : f32 to vector<8x1xf32>
    %165 = arith.divf %163, %164 : vector<8x1xf32>
    %166 = vector.broadcast %165 : vector<8x1xf32> to vector<8x32xf32>
    %167 = arith.subf %157, %166 : vector<8x32xf32>
    %168 = arith.mulf %167, %167 : vector<8x32xf32>
    %cst_78 = arith.constant dense<0.000000e+00> : vector<8xf32>
    %169 = vector.multi_reduction <add>, %168, %cst_78 [1] : vector<8x32xf32> to vector<8xf32>
    %170 = vector.shape_cast %169 : vector<8xf32> to vector<8x1xf32>
    %cst_79 = arith.constant 3.200000e+01 : f32
    %171 = vector.broadcast %cst_79 : f32 to vector<8x1xf32>
    %172 = arith.divf %170, %171 : vector<8x1xf32>
    %cst_80 = arith.constant 9.99999974E-6 : f32
    %173 = vector.broadcast %cst_80 : f32 to vector<8x1xf32>
    %174 = arith.addf %172, %173 : vector<8x1xf32>
    %175 = math.rsqrt %174 : vector<8x1xf32>
    %176 = vector.broadcast %175 : vector<8x1xf32> to vector<8x32xf32>
    %177 = arith.mulf %167, %176 : vector<8x32xf32>
    %178 = vector.broadcast %159 : vector<1x32xf32> to vector<8x32xf32>
    %179 = arith.mulf %177, %178 : vector<8x32xf32>
    %180 = vector.broadcast %161 : vector<1x32xf32> to vector<8x32xf32>
    %181 = arith.addf %179, %180 : vector<8x32xf32>
    %c0_81 = arith.constant 0 : index
    %c0_82 = arith.constant 0 : index
    %c0_83 = arith.constant 0 : index
    %182 = vector.load %arg20[%c0_81, %c0_82, %c0_83] : memref<1x8x32xf32, #tpu.memory_space<vmem>>, vector<1x8x32xf32>
    %183 = vector.shape_cast %182 : vector<1x8x32xf32> to vector<8x32xf32>
    %184 = vector.shape_cast %181 : vector<8x32xf32> to vector<1x8x32xf32>
    tpu.vector_store %arg20[%c0_81, %c0_82, %c0_83], %184 {strides = array<i32>} : memref<1x8x32xf32, #tpu.memory_space<vmem>>, vector<1x8x32xf32>,
    %c1_i32 = arith.constant 1 : i32
    %185 = arith.cmpi eq, %arg1, %c1_i32 : i32
    %186 = arith.extui %185 : i1 to i32
    %c0_i32_84 = arith.constant 0 : i32
    %187 = arith.cmpi ne, %186, %c0_i32_84 : i32
    scf.if %187 {
      %c0_85 = arith.constant 0 : index
      %c0_86 = arith.constant 0 : index
      %188 = vector.load %arg17[%c0_85, %c0_86] : memref<1x32xf32, #tpu.memory_space<vmem>>, vector<1x32xf32>
      %c0_87 = arith.constant 0 : index
      %c0_88 = arith.constant 0 : index
      %189 = vector.load %arg18[%c0_87, %c0_88] : memref<1x32xf32, #tpu.memory_space<vmem>>, vector<1x32xf32>
      %cst_89 = arith.constant dense<0.000000e+00> : vector<8xf32>
      %190 = vector.multi_reduction <add>, %181, %cst_89 [1] : vector<8x32xf32> to vector<8xf32>
      %191 = vector.shape_cast %190 : vector<8xf32> to vector<8x1xf32>
      %cst_90 = arith.constant 3.200000e+01 : f32
      %192 = vector.broadcast %cst_90 : f32 to vector<8x1xf32>
      %193 = arith.divf %191, %192 : vector<8x1xf32>
      %194 = vector.broadcast %193 : vector<8x1xf32> to vector<8x32xf32>
      %195 = arith.subf %181, %194 : vector<8x32xf32>
      %196 = arith.mulf %195, %195 : vector<8x32xf32>
      %cst_91 = arith.constant dense<0.000000e+00> : vector<8xf32>
      %197 = vector.multi_reduction <add>, %196, %cst_91 [1] : vector<8x32xf32> to vector<8xf32>
      %198 = vector.shape_cast %197 : vector<8xf32> to vector<8x1xf32>
      %cst_92 = arith.constant 3.200000e+01 : f32
      %199 = vector.broadcast %cst_92 : f32 to vector<8x1xf32>
      %200 = arith.divf %198, %199 : vector<8x1xf32>
      %cst_93 = arith.constant 9.99999974E-6 : f32
      %201 = vector.broadcast %cst_93 : f32 to vector<8x1xf32>
      %202 = arith.addf %200, %201 : vector<8x1xf32>
      %203 = math.rsqrt %202 : vector<8x1xf32>
      %204 = vector.broadcast %203 : vector<8x1xf32> to vector<8x32xf32>
      %205 = arith.mulf %195, %204 : vector<8x32xf32>
      %206 = vector.broadcast %188 : vector<1x32xf32> to vector<8x32xf32>
      %207 = arith.mulf %205, %206 : vector<8x32xf32>
      %208 = vector.broadcast %189 : vector<1x32xf32> to vector<8x32xf32>
      %209 = arith.addf %207, %208 : vector<8x32xf32>
      %c0_94 = arith.constant 0 : index
      %c0_95 = arith.constant 0 : index
      %c0_96 = arith.constant 0 : index
      %210 = vector.load %arg19[%c0_94, %c0_95, %c0_96] : memref<1x8x32xf32, #tpu.memory_space<vmem>>, vector<1x8x32xf32>
      %211 = vector.shape_cast %210 : vector<1x8x32xf32> to vector<8x32xf32>
      %212 = vector.shape_cast %209 : vector<8x32xf32> to vector<1x8x32xf32>
      tpu.vector_store %arg19[%c0_94, %c0_95, %c0_96], %212 {strides = array<i32>} : memref<1x8x32xf32, #tpu.memory_space<vmem>>, vector<1x8x32xf32>,
    } else {
    }
    return
  }
  func.func @transform_0(%arg0: i32, %arg1: i32) -> (i32, i32, i32) {
    %c0_i32 = arith.constant 0 : i32
    %c0_i32_0 = arith.constant 0 : i32
    %c0_i32_1 = arith.constant 0 : i32
    return %arg0, %c0_i32, %c0_i32_0 : i32, i32, i32
  }
  func.func @transform_1(%arg0: i32, %arg1: i32) -> (i32, i32, i32) {
    %c0_i32 = arith.constant 0 : i32
    %c0_i32_0 = arith.constant 0 : i32
    %c0_i32_1 = arith.constant 0 : i32
    return %arg1, %c0_i32, %c0_i32_0 : i32, i32, i32
  }
  func.func @transform_2(%arg0: i32, %arg1: i32) -> (i32, i32, i32) {
    %c0_i32 = arith.constant 0 : i32
    %c0_i32_0 = arith.constant 0 : i32
    %c0_i32_1 = arith.constant 0 : i32
    return %arg1, %c0_i32, %c0_i32_0 : i32, i32, i32
  }
  func.func @transform_3(%arg0: i32, %arg1: i32) -> (i32, i32, i32) {
    %c0_i32 = arith.constant 0 : i32
    %c0_i32_0 = arith.constant 0 : i32
    %c0_i32_1 = arith.constant 0 : i32
    return %arg1, %c0_i32, %c0_i32_0 : i32, i32, i32
  }
  func.func @transform_4(%arg0: i32, %arg1: i32) -> (i32, i32, i32) {
    %c0_i32 = arith.constant 0 : i32
    %c0_i32_0 = arith.constant 0 : i32
    %c0_i32_1 = arith.constant 0 : i32
    return %arg1, %c0_i32, %c0_i32_0 : i32, i32, i32
  }
  func.func @transform_5(%arg0: i32, %arg1: i32) -> (i32, i32, i32) {
    %c0_i32 = arith.constant 0 : i32
    %c0_i32_0 = arith.constant 0 : i32
    %c0_i32_1 = arith.constant 0 : i32
    return %arg1, %c0_i32, %c0_i32_0 : i32, i32, i32
  }
  func.func @transform_6(%arg0: i32, %arg1: i32) -> (i32, i32, i32) {
    %c0_i32 = arith.constant 0 : i32
    %c0_i32_0 = arith.constant 0 : i32
    %c0_i32_1 = arith.constant 0 : i32
    return %arg1, %c0_i32, %c0_i32_0 : i32, i32, i32
  }
  func.func @transform_7(%arg0: i32, %arg1: i32) -> (i32, i32, i32) {
    %c0_i32 = arith.constant 0 : i32
    %c0_i32_0 = arith.constant 0 : i32
    %c0_i32_1 = arith.constant 0 : i32
    return %arg1, %c0_i32, %c0_i32_0 : i32, i32, i32
  }
  func.func @transform_8(%arg0: i32, %arg1: i32) -> (i32, i32, i32) {
    %c0_i32 = arith.constant 0 : i32
    %c0_i32_0 = arith.constant 0 : i32
    %c0_i32_1 = arith.constant 0 : i32
    return %arg1, %c0_i32, %c0_i32_0 : i32, i32, i32
  }
  func.func @transform_9(%arg0: i32, %arg1: i32) -> (i32, i32, i32) {
    %c0_i32 = arith.constant 0 : i32
    %c0_i32_0 = arith.constant 0 : i32
    %c0_i32_1 = arith.constant 0 : i32
    return %arg1, %c0_i32, %c0_i32_0 : i32, i32, i32
  }
  func.func @transform_10(%arg0: i32, %arg1: i32) -> (i32, i32, i32) {
    %c0_i32 = arith.constant 0 : i32
    %c0_i32_0 = arith.constant 0 : i32
    %c0_i32_1 = arith.constant 0 : i32
    return %arg1, %c0_i32, %c0_i32_0 : i32, i32, i32
  }
  func.func @transform_11(%arg0: i32, %arg1: i32) -> (i32, i32, i32) {
    %c0_i32 = arith.constant 0 : i32
    %c0_i32_0 = arith.constant 0 : i32
    %c0_i32_1 = arith.constant 0 : i32
    return %arg1, %c0_i32, %c0_i32_0 : i32, i32, i32
  }
  func.func @transform_12(%arg0: i32, %arg1: i32) -> (i32, i32, i32) {
    %c0_i32 = arith.constant 0 : i32
    %c0_i32_0 = arith.constant 0 : i32
    %c0_i32_1 = arith.constant 0 : i32
    return %arg1, %c0_i32, %c0_i32_0 : i32, i32, i32
  }
  func.func @transform_13(%arg0: i32, %arg1: i32) -> (i32, i32, i32) {
    %c0_i32 = arith.constant 0 : i32
    %c0_i32_0 = arith.constant 0 : i32
    %c0_i32_1 = arith.constant 0 : i32
    return %arg1, %c0_i32, %c0_i32_0 : i32, i32, i32
  }
  func.func @transform_14(%arg0: i32, %arg1: i32) -> (i32, i32, i32) {
    %c0_i32 = arith.constant 0 : i32
    %c0_i32_0 = arith.constant 0 : i32
    %c0_i32_1 = arith.constant 0 : i32
    return %arg1, %c0_i32, %c0_i32_0 : i32, i32, i32
  }
  func.func @transform_15(%arg0: i32, %arg1: i32) -> (i32, i32) {
    %c0_i32 = arith.constant 0 : i32
    %c0_i32_0 = arith.constant 0 : i32
    %c0_i32_1 = arith.constant 0 : i32
    return %c0_i32, %c0_i32_0 : i32, i32
  }
  func.func @transform_16(%arg0: i32, %arg1: i32) -> (i32, i32) {
    %c0_i32 = arith.constant 0 : i32
    %c0_i32_0 = arith.constant 0 : i32
    %c0_i32_1 = arith.constant 0 : i32
    return %c0_i32, %c0_i32_0 : i32, i32
  }
  func.func @transform_17(%arg0: i32, %arg1: i32) -> (i32, i32, i32) {
    %c0_i32 = arith.constant 0 : i32
    %c0_i32_0 = arith.constant 0 : i32
    %c0_i32_1 = arith.constant 0 : i32
    return %arg0, %c0_i32, %c0_i32_0 : i32, i32, i32
  }
}

module attributes {stable_mosaic.version = 11 : i64} {
  func.func @_decoder_stack_kernel(%arg0: i32, %arg1: i32, %arg2: memref<1x6x32xf32, #tpu.memory_space<vmem>>, %arg3: memref<1x8x32xf32, #tpu.memory_space<vmem>>, %arg4: memref<6x6xf32, #tpu.memory_space<vmem>>, %arg5: memref<1x32x32xbf16, #tpu.memory_space<vmem>>, %arg6: memref<1x1x32xf32, #tpu.memory_space<vmem>>, %arg7: memref<1x32x64xbf16, #tpu.memory_space<vmem>>, %arg8: memref<1x1x64xf32, #tpu.memory_space<vmem>>, %arg9: memref<1x32x32xbf16, #tpu.memory_space<vmem>>, %arg10: memref<1x1x32xf32, #tpu.memory_space<vmem>>, %arg11: memref<1x1x32xf32, #tpu.memory_space<vmem>>, %arg12: memref<1x1x32xf32, #tpu.memory_space<vmem>>, %arg13: memref<1x32x32xbf16, #tpu.memory_space<vmem>>, %arg14: memref<1x1x32xf32, #tpu.memory_space<vmem>>, %arg15: memref<1x32x64xbf16, #tpu.memory_space<vmem>>, %arg16: memref<1x1x64xf32, #tpu.memory_space<vmem>>, %arg17: memref<1x32x32xbf16, #tpu.memory_space<vmem>>, %arg18: memref<1x1x32xf32, #tpu.memory_space<vmem>>, %arg19: memref<1x1x32xf32, #tpu.memory_space<vmem>>, %arg20: memref<1x1x32xf32, #tpu.memory_space<vmem>>, %arg21: memref<1x32x2048xbf16, #tpu.memory_space<vmem>>, %arg22: memref<1x1x2048xf32, #tpu.memory_space<vmem>>, %arg23: memref<1x2048x32xbf16, #tpu.memory_space<vmem>>, %arg24: memref<1x1x32xf32, #tpu.memory_space<vmem>>, %arg25: memref<1x1x32xf32, #tpu.memory_space<vmem>>, %arg26: memref<1x1x32xf32, #tpu.memory_space<vmem>>, %arg27: memref<1x32xf32, #tpu.memory_space<vmem>>, %arg28: memref<1x32xf32, #tpu.memory_space<vmem>>, %arg29: memref<32x32xbf16, #tpu.memory_space<vmem>>, %arg30: memref<1x32xf32, #tpu.memory_space<vmem>>, %arg31: memref<1x6x32xf32, #tpu.memory_space<vmem>>, %arg32: memref<1x6x32xf32, #tpu.memory_space<vmem>>) attributes {dimension_semantics = [#tpu.dimension_semantics<parallel>, #tpu.dimension_semantics<arbitrary>], iteration_bounds = array<i64: 2, 2>, scalar_prefetch = 0 : i64, scratch_operands = 1 : i64, tpu.core_type = #tpu.core_type<tc>, window_params = [{transform_indices = @transform_0, window_bounds = array<i64: 1, 6, 32>}, {transform_indices = @transform_1, window_bounds = array<i64: 1, 8, 32>}, {pipeline_mode = #tpu.pipeline_mode<synchronous>, transform_indices = @transform_2, window_bounds = array<i64: 6, 6>}, {transform_indices = @transform_3, window_bounds = array<i64: 1, 32, 32>}, {transform_indices = @transform_4, window_bounds = array<i64: 1, 1, 32>}, {transform_indices = @transform_5, window_bounds = array<i64: 1, 32, 64>}, {transform_indices = @transform_6, window_bounds = array<i64: 1, 1, 64>}, {transform_indices = @transform_7, window_bounds = array<i64: 1, 32, 32>}, {transform_indices = @transform_8, window_bounds = array<i64: 1, 1, 32>}, {transform_indices = @transform_9, window_bounds = array<i64: 1, 1, 32>}, {transform_indices = @transform_10, window_bounds = array<i64: 1, 1, 32>}, {transform_indices = @transform_11, window_bounds = array<i64: 1, 32, 32>}, {transform_indices = @transform_12, window_bounds = array<i64: 1, 1, 32>}, {transform_indices = @transform_13, window_bounds = array<i64: 1, 32, 64>}, {transform_indices = @transform_14, window_bounds = array<i64: 1, 1, 64>}, {transform_indices = @transform_15, window_bounds = array<i64: 1, 32, 32>}, {transform_indices = @transform_16, window_bounds = array<i64: 1, 1, 32>}, {transform_indices = @transform_17, window_bounds = array<i64: 1, 1, 32>}, {transform_indices = @transform_18, window_bounds = array<i64: 1, 1, 32>}, {transform_indices = @transform_19, window_bounds = array<i64: 1, 32, 2048>}, {transform_indices = @transform_20, window_bounds = array<i64: 1, 1, 2048>}, {transform_indices = @transform_21, window_bounds = array<i64: 1, 2048, 32>}, {transform_indices = @transform_22, window_bounds = array<i64: 1, 1, 32>}, {transform_indices = @transform_23, window_bounds = array<i64: 1, 1, 32>}, {transform_indices = @transform_24, window_bounds = array<i64: 1, 1, 32>}, {pipeline_mode = #tpu.pipeline_mode<synchronous>, transform_indices = @transform_25, window_bounds = array<i64: 1, 32>}, {pipeline_mode = #tpu.pipeline_mode<synchronous>, transform_indices = @transform_26, window_bounds = array<i64: 1, 32>}, {pipeline_mode = #tpu.pipeline_mode<synchronous>, transform_indices = @transform_27, window_bounds = array<i64: 32, 32>}, {pipeline_mode = #tpu.pipeline_mode<synchronous>, transform_indices = @transform_28, window_bounds = array<i64: 1, 32>}, {transform_indices = @transform_29, window_bounds = array<i64: 1, 6, 32>}]} {
    %c0_i32 = arith.constant 0 : i32
    %0 = arith.cmpi eq, %arg1, %c0_i32 : i32
    %1 = arith.extui %0 : i1 to i32
    %c0_i32_0 = arith.constant 0 : i32
    %2 = arith.cmpi ne, %1, %c0_i32_0 : i32
    scf.if %2 {
      %c0_143 = arith.constant 0 : index
      %c0_144 = arith.constant 0 : index
      %c0_145 = arith.constant 0 : index
      %330 = vector.load %arg2[%c0_143, %c0_144, %c0_145] : memref<1x6x32xf32, #tpu.memory_space<vmem>>, vector<1x6x32xf32>
      %c0_146 = arith.constant 0 : index
      %c0_147 = arith.constant 0 : index
      %c0_148 = arith.constant 0 : index
      %331 = vector.load %arg32[%c0_146, %c0_147, %c0_148] : memref<1x6x32xf32, #tpu.memory_space<vmem>>, vector<1x6x32xf32>
      tpu.vector_store %arg32[%c0_146, %c0_147, %c0_148], %330 {strides = array<i32>} : memref<1x6x32xf32, #tpu.memory_space<vmem>>, vector<1x6x32xf32>,
    } else {
    }
    %c0 = arith.constant 0 : index
    %c0_1 = arith.constant 0 : index
    %c0_2 = arith.constant 0 : index
    %3 = vector.load %arg32[%c0, %c0_1, %c0_2] : memref<1x6x32xf32, #tpu.memory_space<vmem>>, vector<1x6x32xf32>
    %4 = vector.shape_cast %3 : vector<1x6x32xf32> to vector<6x32xf32>
    %c0_3 = arith.constant 0 : index
    %c0_4 = arith.constant 0 : index
    %c0_5 = arith.constant 0 : index
    %5 = vector.load %arg3[%c0_3, %c0_4, %c0_5] : memref<1x8x32xf32, #tpu.memory_space<vmem>>, vector<1x8x32xf32>
    %6 = vector.shape_cast %5 : vector<1x8x32xf32> to vector<8x32xf32>
    %c0_6 = arith.constant 0 : index
    %c0_7 = arith.constant 0 : index
    %7 = vector.load %arg4[%c0_6, %c0_7] : memref<6x6xf32, #tpu.memory_space<vmem>>, vector<6x6xf32>
    %c0_8 = arith.constant 0 : index
    %c0_9 = arith.constant 0 : index
    %c0_10 = arith.constant 0 : index
    %8 = vector.load %arg5[%c0_8, %c0_9, %c0_10] : memref<1x32x32xbf16, #tpu.memory_space<vmem>>, vector<1x32x32xbf16>
    %9 = vector.shape_cast %8 : vector<1x32x32xbf16> to vector<32x32xbf16>
    %c0_11 = arith.constant 0 : index
    %c0_12 = arith.constant 0 : index
    %c0_13 = arith.constant 0 : index
    %10 = vector.load %arg6[%c0_11, %c0_12, %c0_13] : memref<1x1x32xf32, #tpu.memory_space<vmem>>, vector<1x1x32xf32>
    %11 = vector.shape_cast %10 : vector<1x1x32xf32> to vector<1x32xf32>
    %c0_14 = arith.constant 0 : index
    %c0_15 = arith.constant 0 : index
    %c0_16 = arith.constant 0 : index
    %12 = vector.load %arg7[%c0_14, %c0_15, %c0_16] : memref<1x32x64xbf16, #tpu.memory_space<vmem>>, vector<1x32x64xbf16>
    %13 = vector.shape_cast %12 : vector<1x32x64xbf16> to vector<32x64xbf16>
    %c0_17 = arith.constant 0 : index
    %c0_18 = arith.constant 0 : index
    %c0_19 = arith.constant 0 : index
    %14 = vector.load %arg8[%c0_17, %c0_18, %c0_19] : memref<1x1x64xf32, #tpu.memory_space<vmem>>, vector<1x1x64xf32>
    %15 = vector.shape_cast %14 : vector<1x1x64xf32> to vector<1x64xf32>
    %c0_20 = arith.constant 0 : index
    %c0_21 = arith.constant 0 : index
    %c0_22 = arith.constant 0 : index
    %16 = vector.load %arg9[%c0_20, %c0_21, %c0_22] : memref<1x32x32xbf16, #tpu.memory_space<vmem>>, vector<1x32x32xbf16>
    %17 = vector.shape_cast %16 : vector<1x32x32xbf16> to vector<32x32xbf16>
    %c0_23 = arith.constant 0 : index
    %c0_24 = arith.constant 0 : index
    %c0_25 = arith.constant 0 : index
    %18 = vector.load %arg10[%c0_23, %c0_24, %c0_25] : memref<1x1x32xf32, #tpu.memory_space<vmem>>, vector<1x1x32xf32>
    %19 = vector.shape_cast %18 : vector<1x1x32xf32> to vector<1x32xf32>
    %20 = arith.truncf %4 : vector<6x32xf32> to vector<6x32xbf16>
    %cst = arith.constant dense<0.000000e+00> : vector<6x32xf32>
    %21 = tpu.matmul %20, %9, %cst {dimension_numbers = #tpu.dot_dimension_numbers<[1], [0], [0], [1], [0, 0, 1, 1], [], []>} : vector<6x32xbf16>, vector<32x32xbf16>, vector<6x32xf32> -> vector<6x32xf32>
    %22 = vector.broadcast %11 : vector<1x32xf32> to vector<6x32xf32>
    %23 = arith.addf %21, %22 : vector<6x32xf32>
    %cst_26 = arith.constant dense<0.000000e+00> : vector<6x64xf32>
    %24 = tpu.matmul %20, %13, %cst_26 {dimension_numbers = #tpu.dot_dimension_numbers<[1], [0], [0], [1], [0, 0, 1, 1], [], []>} : vector<6x32xbf16>, vector<32x64xbf16>, vector<6x64xf32> -> vector<6x64xf32>
    %25 = vector.broadcast %15 : vector<1x64xf32> to vector<6x64xf32>
    %26 = arith.addf %24, %25 : vector<6x64xf32>
    %cst_27 = arith.constant 0.353553385 : f32
    %27 = vector.broadcast %cst_27 : f32 to vector<6x32xf32>
    %28 = arith.mulf %23, %27 : vector<6x32xf32>
    %29 = arith.truncf %28 : vector<6x32xf32> to vector<6x32xbf16>
    %30 = vector.extract_strided_slice %26 {offsets = [0, 0], sizes = [6, 32], strides = [1, 1]} : vector<6x64xf32> to vector<6x32xf32>
    %31 = arith.truncf %30 : vector<6x32xf32> to vector<6x32xbf16>
    %32 = vector.extract_strided_slice %26 {offsets = [0, 32], sizes = [6, 32], strides = [1, 1]} : vector<6x64xf32> to vector<6x32xf32>
    %33 = arith.truncf %32 : vector<6x32xf32> to vector<6x32xbf16>
    %cst_28 = arith.constant 0.000000e+00 : f32
    %34 = vector.broadcast %cst_28 : f32 to vector<6x32xf32>
    %35 = vector.extract_strided_slice %29 {offsets = [0, 0], sizes = [6, 8], strides = [1, 1]} : vector<6x32xbf16> to vector<6x8xbf16>
    %36 = vector.extract_strided_slice %31 {offsets = [0, 0], sizes = [6, 8], strides = [1, 1]} : vector<6x32xbf16> to vector<6x8xbf16>
    %37 = vector.extract_strided_slice %33 {offsets = [0, 0], sizes = [6, 8], strides = [1, 1]} : vector<6x32xbf16> to vector<6x8xbf16>
    %cst_29 = arith.constant dense<0.000000e+00> : vector<6x6xf32>
    %38 = tpu.matmul %35, %36, %cst_29 {dimension_numbers = #tpu.dot_dimension_numbers<[1], [1], [0], [0], [0, 0, 1, 0], [], []>} : vector<6x8xbf16>, vector<6x8xbf16>, vector<6x6xf32> -> vector<6x6xf32>
    %39 = arith.addf %38, %7 : vector<6x6xf32>
    %cst_30 = arith.constant dense<0xFF800000> : vector<6xf32>
    %40 = vector.multi_reduction <maximumf>, %39, %cst_30 [1] : vector<6x6xf32> to vector<6xf32>
    %41 = vector.shape_cast %40 : vector<6xf32> to vector<6x1xf32>
    %42 = vector.broadcast %41 : vector<6x1xf32> to vector<6x6xf32>
    %43 = arith.subf %39, %42 : vector<6x6xf32>
    %44 = math.exp %43 : vector<6x6xf32>
    %cst_31 = arith.constant dense<0.000000e+00> : vector<6xf32>
    %45 = vector.multi_reduction <add>, %44, %cst_31 [1] : vector<6x6xf32> to vector<6xf32>
    %46 = vector.shape_cast %45 : vector<6xf32> to vector<6x1xf32>
    %47 = tpu.reciprocal %46 : vector<6x1xf32> -> vector<6x1xf32>
    %48 = vector.broadcast %47 : vector<6x1xf32> to vector<6x6xf32>
    %49 = arith.mulf %44, %48 : vector<6x6xf32>
    %50 = arith.truncf %49 : vector<6x6xf32> to vector<6x6xbf16>
    %cst_32 = arith.constant dense<0.000000e+00> : vector<6x8xf32>
    %51 = tpu.matmul %50, %37, %cst_32 {dimension_numbers = #tpu.dot_dimension_numbers<[1], [0], [0], [1], [0, 0, 1, 1], [], []>} : vector<6x6xbf16>, vector<6x8xbf16>, vector<6x8xf32> -> vector<6x8xf32>
    %52 = arith.truncf %51 : vector<6x8xf32> to vector<6x8xbf16>
    %53 = vector.extract_strided_slice %17 {offsets = [0, 0], sizes = [8, 32], strides = [1, 1]} : vector<32x32xbf16> to vector<8x32xbf16>
    %cst_33 = arith.constant dense<0.000000e+00> : vector<6x32xf32>
    %54 = tpu.matmul %52, %53, %cst_33 {dimension_numbers = #tpu.dot_dimension_numbers<[1], [0], [0], [1], [0, 0, 1, 1], [], []>} : vector<6x8xbf16>, vector<8x32xbf16>, vector<6x32xf32> -> vector<6x32xf32>
    %55 = arith.addf %34, %54 : vector<6x32xf32>
    %56 = vector.extract_strided_slice %29 {offsets = [0, 8], sizes = [6, 8], strides = [1, 1]} : vector<6x32xbf16> to vector<6x8xbf16>
    %57 = vector.extract_strided_slice %31 {offsets = [0, 8], sizes = [6, 8], strides = [1, 1]} : vector<6x32xbf16> to vector<6x8xbf16>
    %58 = vector.extract_strided_slice %33 {offsets = [0, 8], sizes = [6, 8], strides = [1, 1]} : vector<6x32xbf16> to vector<6x8xbf16>
    %cst_34 = arith.constant dense<0.000000e+00> : vector<6x6xf32>
    %59 = tpu.matmul %56, %57, %cst_34 {dimension_numbers = #tpu.dot_dimension_numbers<[1], [1], [0], [0], [0, 0, 1, 0], [], []>} : vector<6x8xbf16>, vector<6x8xbf16>, vector<6x6xf32> -> vector<6x6xf32>
    %60 = arith.addf %59, %7 : vector<6x6xf32>
    %cst_35 = arith.constant dense<0xFF800000> : vector<6xf32>
    %61 = vector.multi_reduction <maximumf>, %60, %cst_35 [1] : vector<6x6xf32> to vector<6xf32>
    %62 = vector.shape_cast %61 : vector<6xf32> to vector<6x1xf32>
    %63 = vector.broadcast %62 : vector<6x1xf32> to vector<6x6xf32>
    %64 = arith.subf %60, %63 : vector<6x6xf32>
    %65 = math.exp %64 : vector<6x6xf32>
    %cst_36 = arith.constant dense<0.000000e+00> : vector<6xf32>
    %66 = vector.multi_reduction <add>, %65, %cst_36 [1] : vector<6x6xf32> to vector<6xf32>
    %67 = vector.shape_cast %66 : vector<6xf32> to vector<6x1xf32>
    %68 = tpu.reciprocal %67 : vector<6x1xf32> -> vector<6x1xf32>
    %69 = vector.broadcast %68 : vector<6x1xf32> to vector<6x6xf32>
    %70 = arith.mulf %65, %69 : vector<6x6xf32>
    %71 = arith.truncf %70 : vector<6x6xf32> to vector<6x6xbf16>
    %cst_37 = arith.constant dense<0.000000e+00> : vector<6x8xf32>
    %72 = tpu.matmul %71, %58, %cst_37 {dimension_numbers = #tpu.dot_dimension_numbers<[1], [0], [0], [1], [0, 0, 1, 1], [], []>} : vector<6x6xbf16>, vector<6x8xbf16>, vector<6x8xf32> -> vector<6x8xf32>
    %73 = arith.truncf %72 : vector<6x8xf32> to vector<6x8xbf16>
    %74 = vector.extract_strided_slice %17 {offsets = [8, 0], sizes = [8, 32], strides = [1, 1]} : vector<32x32xbf16> to vector<8x32xbf16>
    %cst_38 = arith.constant dense<0.000000e+00> : vector<6x32xf32>
    %75 = tpu.matmul %73, %74, %cst_38 {dimension_numbers = #tpu.dot_dimension_numbers<[1], [0], [0], [1], [0, 0, 1, 1], [], []>} : vector<6x8xbf16>, vector<8x32xbf16>, vector<6x32xf32> -> vector<6x32xf32>
    %76 = arith.addf %55, %75 : vector<6x32xf32>
    %77 = vector.extract_strided_slice %29 {offsets = [0, 16], sizes = [6, 8], strides = [1, 1]} : vector<6x32xbf16> to vector<6x8xbf16>
    %78 = vector.extract_strided_slice %31 {offsets = [0, 16], sizes = [6, 8], strides = [1, 1]} : vector<6x32xbf16> to vector<6x8xbf16>
    %79 = vector.extract_strided_slice %33 {offsets = [0, 16], sizes = [6, 8], strides = [1, 1]} : vector<6x32xbf16> to vector<6x8xbf16>
    %cst_39 = arith.constant dense<0.000000e+00> : vector<6x6xf32>
    %80 = tpu.matmul %77, %78, %cst_39 {dimension_numbers = #tpu.dot_dimension_numbers<[1], [1], [0], [0], [0, 0, 1, 0], [], []>} : vector<6x8xbf16>, vector<6x8xbf16>, vector<6x6xf32> -> vector<6x6xf32>
    %81 = arith.addf %80, %7 : vector<6x6xf32>
    %cst_40 = arith.constant dense<0xFF800000> : vector<6xf32>
    %82 = vector.multi_reduction <maximumf>, %81, %cst_40 [1] : vector<6x6xf32> to vector<6xf32>
    %83 = vector.shape_cast %82 : vector<6xf32> to vector<6x1xf32>
    %84 = vector.broadcast %83 : vector<6x1xf32> to vector<6x6xf32>
    %85 = arith.subf %81, %84 : vector<6x6xf32>
    %86 = math.exp %85 : vector<6x6xf32>
    %cst_41 = arith.constant dense<0.000000e+00> : vector<6xf32>
    %87 = vector.multi_reduction <add>, %86, %cst_41 [1] : vector<6x6xf32> to vector<6xf32>
    %88 = vector.shape_cast %87 : vector<6xf32> to vector<6x1xf32>
    %89 = tpu.reciprocal %88 : vector<6x1xf32> -> vector<6x1xf32>
    %90 = vector.broadcast %89 : vector<6x1xf32> to vector<6x6xf32>
    %91 = arith.mulf %86, %90 : vector<6x6xf32>
    %92 = arith.truncf %91 : vector<6x6xf32> to vector<6x6xbf16>
    %cst_42 = arith.constant dense<0.000000e+00> : vector<6x8xf32>
    %93 = tpu.matmul %92, %79, %cst_42 {dimension_numbers = #tpu.dot_dimension_numbers<[1], [0], [0], [1], [0, 0, 1, 1], [], []>} : vector<6x6xbf16>, vector<6x8xbf16>, vector<6x8xf32> -> vector<6x8xf32>
    %94 = arith.truncf %93 : vector<6x8xf32> to vector<6x8xbf16>
    %95 = vector.extract_strided_slice %17 {offsets = [16, 0], sizes = [8, 32], strides = [1, 1]} : vector<32x32xbf16> to vector<8x32xbf16>
    %cst_43 = arith.constant dense<0.000000e+00> : vector<6x32xf32>
    %96 = tpu.matmul %94, %95, %cst_43 {dimension_numbers = #tpu.dot_dimension_numbers<[1], [0], [0], [1], [0, 0, 1, 1], [], []>} : vector<6x8xbf16>, vector<8x32xbf16>, vector<6x32xf32> -> vector<6x32xf32>
    %97 = arith.addf %76, %96 : vector<6x32xf32>
    %98 = vector.extract_strided_slice %29 {offsets = [0, 24], sizes = [6, 8], strides = [1, 1]} : vector<6x32xbf16> to vector<6x8xbf16>
    %99 = vector.extract_strided_slice %31 {offsets = [0, 24], sizes = [6, 8], strides = [1, 1]} : vector<6x32xbf16> to vector<6x8xbf16>
    %100 = vector.extract_strided_slice %33 {offsets = [0, 24], sizes = [6, 8], strides = [1, 1]} : vector<6x32xbf16> to vector<6x8xbf16>
    %cst_44 = arith.constant dense<0.000000e+00> : vector<6x6xf32>
    %101 = tpu.matmul %98, %99, %cst_44 {dimension_numbers = #tpu.dot_dimension_numbers<[1], [1], [0], [0], [0, 0, 1, 0], [], []>} : vector<6x8xbf16>, vector<6x8xbf16>, vector<6x6xf32> -> vector<6x6xf32>
    %102 = arith.addf %101, %7 : vector<6x6xf32>
    %cst_45 = arith.constant dense<0xFF800000> : vector<6xf32>
    %103 = vector.multi_reduction <maximumf>, %102, %cst_45 [1] : vector<6x6xf32> to vector<6xf32>
    %104 = vector.shape_cast %103 : vector<6xf32> to vector<6x1xf32>
    %105 = vector.broadcast %104 : vector<6x1xf32> to vector<6x6xf32>
    %106 = arith.subf %102, %105 : vector<6x6xf32>
    %107 = math.exp %106 : vector<6x6xf32>
    %cst_46 = arith.constant dense<0.000000e+00> : vector<6xf32>
    %108 = vector.multi_reduction <add>, %107, %cst_46 [1] : vector<6x6xf32> to vector<6xf32>
    %109 = vector.shape_cast %108 : vector<6xf32> to vector<6x1xf32>
    %110 = tpu.reciprocal %109 : vector<6x1xf32> -> vector<6x1xf32>
    %111 = vector.broadcast %110 : vector<6x1xf32> to vector<6x6xf32>
    %112 = arith.mulf %107, %111 : vector<6x6xf32>
    %113 = arith.truncf %112 : vector<6x6xf32> to vector<6x6xbf16>
    %cst_47 = arith.constant dense<0.000000e+00> : vector<6x8xf32>
    %114 = tpu.matmul %113, %100, %cst_47 {dimension_numbers = #tpu.dot_dimension_numbers<[1], [0], [0], [1], [0, 0, 1, 1], [], []>} : vector<6x6xbf16>, vector<6x8xbf16>, vector<6x8xf32> -> vector<6x8xf32>
    %115 = arith.truncf %114 : vector<6x8xf32> to vector<6x8xbf16>
    %116 = vector.extract_strided_slice %17 {offsets = [24, 0], sizes = [8, 32], strides = [1, 1]} : vector<32x32xbf16> to vector<8x32xbf16>
    %cst_48 = arith.constant dense<0.000000e+00> : vector<6x32xf32>
    %117 = tpu.matmul %115, %116, %cst_48 {dimension_numbers = #tpu.dot_dimension_numbers<[1], [0], [0], [1], [0, 0, 1, 1], [], []>} : vector<6x8xbf16>, vector<8x32xbf16>, vector<6x32xf32> -> vector<6x32xf32>
    %118 = arith.addf %97, %117 : vector<6x32xf32>
    %119 = vector.broadcast %19 : vector<1x32xf32> to vector<6x32xf32>
    %120 = arith.addf %118, %119 : vector<6x32xf32>
    %121 = arith.addf %120, %4 : vector<6x32xf32>
    %c0_49 = arith.constant 0 : index
    %c0_50 = arith.constant 0 : index
    %c0_51 = arith.constant 0 : index
    %122 = vector.load %arg11[%c0_49, %c0_50, %c0_51] : memref<1x1x32xf32, #tpu.memory_space<vmem>>, vector<1x1x32xf32>
    %123 = vector.shape_cast %122 : vector<1x1x32xf32> to vector<1x32xf32>
    %c0_52 = arith.constant 0 : index
    %c0_53 = arith.constant 0 : index
    %c0_54 = arith.constant 0 : index
    %124 = vector.load %arg12[%c0_52, %c0_53, %c0_54] : memref<1x1x32xf32, #tpu.memory_space<vmem>>, vector<1x1x32xf32>
    %125 = vector.shape_cast %124 : vector<1x1x32xf32> to vector<1x32xf32>
    %cst_55 = arith.constant dense<0.000000e+00> : vector<6xf32>
    %126 = vector.multi_reduction <add>, %121, %cst_55 [1] : vector<6x32xf32> to vector<6xf32>
    %127 = vector.shape_cast %126 : vector<6xf32> to vector<6x1xf32>
    %cst_56 = arith.constant 3.200000e+01 : f32
    %128 = vector.broadcast %cst_56 : f32 to vector<6x1xf32>
    %129 = arith.divf %127, %128 : vector<6x1xf32>
    %130 = vector.broadcast %129 : vector<6x1xf32> to vector<6x32xf32>
    %131 = arith.subf %121, %130 : vector<6x32xf32>
    %132 = arith.mulf %131, %131 : vector<6x32xf32>
    %cst_57 = arith.constant dense<0.000000e+00> : vector<6xf32>
    %133 = vector.multi_reduction <add>, %132, %cst_57 [1] : vector<6x32xf32> to vector<6xf32>
    %134 = vector.shape_cast %133 : vector<6xf32> to vector<6x1xf32>
    %cst_58 = arith.constant 3.200000e+01 : f32
    %135 = vector.broadcast %cst_58 : f32 to vector<6x1xf32>
    %136 = arith.divf %134, %135 : vector<6x1xf32>
    %cst_59 = arith.constant 9.99999974E-6 : f32
    %137 = vector.broadcast %cst_59 : f32 to vector<6x1xf32>
    %138 = arith.addf %136, %137 : vector<6x1xf32>
    %139 = math.rsqrt %138 : vector<6x1xf32>
    %140 = vector.broadcast %139 : vector<6x1xf32> to vector<6x32xf32>
    %141 = arith.mulf %131, %140 : vector<6x32xf32>
    %142 = vector.broadcast %123 : vector<1x32xf32> to vector<6x32xf32>
    %143 = arith.mulf %141, %142 : vector<6x32xf32>
    %144 = vector.broadcast %125 : vector<1x32xf32> to vector<6x32xf32>
    %145 = arith.addf %143, %144 : vector<6x32xf32>
    %c0_60 = arith.constant 0 : index
    %c0_61 = arith.constant 0 : index
    %c0_62 = arith.constant 0 : index
    %146 = vector.load %arg13[%c0_60, %c0_61, %c0_62] : memref<1x32x32xbf16, #tpu.memory_space<vmem>>, vector<1x32x32xbf16>
    %147 = vector.shape_cast %146 : vector<1x32x32xbf16> to vector<32x32xbf16>
    %c0_63 = arith.constant 0 : index
    %c0_64 = arith.constant 0 : index
    %c0_65 = arith.constant 0 : index
    %148 = vector.load %arg14[%c0_63, %c0_64, %c0_65] : memref<1x1x32xf32, #tpu.memory_space<vmem>>, vector<1x1x32xf32>
    %149 = vector.shape_cast %148 : vector<1x1x32xf32> to vector<1x32xf32>
    %c0_66 = arith.constant 0 : index
    %c0_67 = arith.constant 0 : index
    %c0_68 = arith.constant 0 : index
    %150 = vector.load %arg15[%c0_66, %c0_67, %c0_68] : memref<1x32x64xbf16, #tpu.memory_space<vmem>>, vector<1x32x64xbf16>
    %151 = vector.shape_cast %150 : vector<1x32x64xbf16> to vector<32x64xbf16>
    %c0_69 = arith.constant 0 : index
    %c0_70 = arith.constant 0 : index
    %c0_71 = arith.constant 0 : index
    %152 = vector.load %arg16[%c0_69, %c0_70, %c0_71] : memref<1x1x64xf32, #tpu.memory_space<vmem>>, vector<1x1x64xf32>
    %153 = vector.shape_cast %152 : vector<1x1x64xf32> to vector<1x64xf32>
    %c0_72 = arith.constant 0 : index
    %c0_73 = arith.constant 0 : index
    %c0_74 = arith.constant 0 : index
    %154 = vector.load %arg17[%c0_72, %c0_73, %c0_74] : memref<1x32x32xbf16, #tpu.memory_space<vmem>>, vector<1x32x32xbf16>
    %155 = vector.shape_cast %154 : vector<1x32x32xbf16> to vector<32x32xbf16>
    %c0_75 = arith.constant 0 : index
    %c0_76 = arith.constant 0 : index
    %c0_77 = arith.constant 0 : index
    %156 = vector.load %arg18[%c0_75, %c0_76, %c0_77] : memref<1x1x32xf32, #tpu.memory_space<vmem>>, vector<1x1x32xf32>
    %157 = vector.shape_cast %156 : vector<1x1x32xf32> to vector<1x32xf32>
    %158 = arith.truncf %145 : vector<6x32xf32> to vector<6x32xbf16>
    %159 = arith.truncf %6 : vector<8x32xf32> to vector<8x32xbf16>
    %cst_78 = arith.constant dense<0.000000e+00> : vector<6x32xf32>
    %160 = tpu.matmul %158, %147, %cst_78 {dimension_numbers = #tpu.dot_dimension_numbers<[1], [0], [0], [1], [0, 0, 1, 1], [], []>} : vector<6x32xbf16>, vector<32x32xbf16>, vector<6x32xf32> -> vector<6x32xf32>
    %161 = vector.broadcast %149 : vector<1x32xf32> to vector<6x32xf32>
    %162 = arith.addf %160, %161 : vector<6x32xf32>
    %cst_79 = arith.constant dense<0.000000e+00> : vector<8x64xf32>
    %163 = tpu.matmul %159, %151, %cst_79 {dimension_numbers = #tpu.dot_dimension_numbers<[1], [0], [0], [1], [0, 0, 1, 1], [], []>} : vector<8x32xbf16>, vector<32x64xbf16>, vector<8x64xf32> -> vector<8x64xf32>
    %164 = vector.broadcast %153 : vector<1x64xf32> to vector<8x64xf32>
    %165 = arith.addf %163, %164 : vector<8x64xf32>
    %cst_80 = arith.constant 0.353553385 : f32
    %166 = vector.broadcast %cst_80 : f32 to vector<6x32xf32>
    %167 = arith.mulf %162, %166 : vector<6x32xf32>
    %168 = arith.truncf %167 : vector<6x32xf32> to vector<6x32xbf16>
    %169 = vector.extract_strided_slice %165 {offsets = [0, 0], sizes = [8, 32], strides = [1, 1]} : vector<8x64xf32> to vector<8x32xf32>
    %170 = arith.truncf %169 : vector<8x32xf32> to vector<8x32xbf16>
    %171 = vector.extract_strided_slice %165 {offsets = [0, 32], sizes = [8, 32], strides = [1, 1]} : vector<8x64xf32> to vector<8x32xf32>
    %172 = arith.truncf %171 : vector<8x32xf32> to vector<8x32xbf16>
    %cst_81 = arith.constant 0.000000e+00 : f32
    %173 = vector.broadcast %cst_81 : f32 to vector<6x32xf32>
    %174 = vector.extract_strided_slice %168 {offsets = [0, 0], sizes = [6, 8], strides = [1, 1]} : vector<6x32xbf16> to vector<6x8xbf16>
    %175 = vector.extract_strided_slice %170 {offsets = [0, 0], sizes = [8, 8], strides = [1, 1]} : vector<8x32xbf16> to vector<8x8xbf16>
    %176 = vector.extract_strided_slice %172 {offsets = [0, 0], sizes = [8, 8], strides = [1, 1]} : vector<8x32xbf16> to vector<8x8xbf16>
    %cst_82 = arith.constant dense<0.000000e+00> : vector<6x8xf32>
    %177 = tpu.matmul %174, %175, %cst_82 {dimension_numbers = #tpu.dot_dimension_numbers<[1], [1], [0], [0], [0, 0, 1, 0], [], []>} : vector<6x8xbf16>, vector<8x8xbf16>, vector<6x8xf32> -> vector<6x8xf32>
    %cst_83 = arith.constant dense<0xFF800000> : vector<6xf32>
    %178 = vector.multi_reduction <maximumf>, %177, %cst_83 [1] : vector<6x8xf32> to vector<6xf32>
    %179 = vector.shape_cast %178 : vector<6xf32> to vector<6x1xf32>
    %180 = vector.broadcast %179 : vector<6x1xf32> to vector<6x8xf32>
    %181 = arith.subf %177, %180 : vector<6x8xf32>
    %182 = math.exp %181 : vector<6x8xf32>
    %cst_84 = arith.constant dense<0.000000e+00> : vector<6xf32>
    %183 = vector.multi_reduction <add>, %182, %cst_84 [1] : vector<6x8xf32> to vector<6xf32>
    %184 = vector.shape_cast %183 : vector<6xf32> to vector<6x1xf32>
    %185 = tpu.reciprocal %184 : vector<6x1xf32> -> vector<6x1xf32>
    %186 = vector.broadcast %185 : vector<6x1xf32> to vector<6x8xf32>
    %187 = arith.mulf %182, %186 : vector<6x8xf32>
    %188 = arith.truncf %187 : vector<6x8xf32> to vector<6x8xbf16>
    %cst_85 = arith.constant dense<0.000000e+00> : vector<6x8xf32>
    %189 = tpu.matmul %188, %176, %cst_85 {dimension_numbers = #tpu.dot_dimension_numbers<[1], [0], [0], [1], [0, 0, 1, 1], [], []>} : vector<6x8xbf16>, vector<8x8xbf16>, vector<6x8xf32> -> vector<6x8xf32>
    %190 = arith.truncf %189 : vector<6x8xf32> to vector<6x8xbf16>
    %191 = vector.extract_strided_slice %155 {offsets = [0, 0], sizes = [8, 32], strides = [1, 1]} : vector<32x32xbf16> to vector<8x32xbf16>
    %cst_86 = arith.constant dense<0.000000e+00> : vector<6x32xf32>
    %192 = tpu.matmul %190, %191, %cst_86 {dimension_numbers = #tpu.dot_dimension_numbers<[1], [0], [0], [1], [0, 0, 1, 1], [], []>} : vector<6x8xbf16>, vector<8x32xbf16>, vector<6x32xf32> -> vector<6x32xf32>
    %193 = arith.addf %173, %192 : vector<6x32xf32>
    %194 = vector.extract_strided_slice %168 {offsets = [0, 8], sizes = [6, 8], strides = [1, 1]} : vector<6x32xbf16> to vector<6x8xbf16>
    %195 = vector.extract_strided_slice %170 {offsets = [0, 8], sizes = [8, 8], strides = [1, 1]} : vector<8x32xbf16> to vector<8x8xbf16>
    %196 = vector.extract_strided_slice %172 {offsets = [0, 8], sizes = [8, 8], strides = [1, 1]} : vector<8x32xbf16> to vector<8x8xbf16>
    %cst_87 = arith.constant dense<0.000000e+00> : vector<6x8xf32>
    %197 = tpu.matmul %194, %195, %cst_87 {dimension_numbers = #tpu.dot_dimension_numbers<[1], [1], [0], [0], [0, 0, 1, 0], [], []>} : vector<6x8xbf16>, vector<8x8xbf16>, vector<6x8xf32> -> vector<6x8xf32>
    %cst_88 = arith.constant dense<0xFF800000> : vector<6xf32>
    %198 = vector.multi_reduction <maximumf>, %197, %cst_88 [1] : vector<6x8xf32> to vector<6xf32>
    %199 = vector.shape_cast %198 : vector<6xf32> to vector<6x1xf32>
    %200 = vector.broadcast %199 : vector<6x1xf32> to vector<6x8xf32>
    %201 = arith.subf %197, %200 : vector<6x8xf32>
    %202 = math.exp %201 : vector<6x8xf32>
    %cst_89 = arith.constant dense<0.000000e+00> : vector<6xf32>
    %203 = vector.multi_reduction <add>, %202, %cst_89 [1] : vector<6x8xf32> to vector<6xf32>
    %204 = vector.shape_cast %203 : vector<6xf32> to vector<6x1xf32>
    %205 = tpu.reciprocal %204 : vector<6x1xf32> -> vector<6x1xf32>
    %206 = vector.broadcast %205 : vector<6x1xf32> to vector<6x8xf32>
    %207 = arith.mulf %202, %206 : vector<6x8xf32>
    %208 = arith.truncf %207 : vector<6x8xf32> to vector<6x8xbf16>
    %cst_90 = arith.constant dense<0.000000e+00> : vector<6x8xf32>
    %209 = tpu.matmul %208, %196, %cst_90 {dimension_numbers = #tpu.dot_dimension_numbers<[1], [0], [0], [1], [0, 0, 1, 1], [], []>} : vector<6x8xbf16>, vector<8x8xbf16>, vector<6x8xf32> -> vector<6x8xf32>
    %210 = arith.truncf %209 : vector<6x8xf32> to vector<6x8xbf16>
    %211 = vector.extract_strided_slice %155 {offsets = [8, 0], sizes = [8, 32], strides = [1, 1]} : vector<32x32xbf16> to vector<8x32xbf16>
    %cst_91 = arith.constant dense<0.000000e+00> : vector<6x32xf32>
    %212 = tpu.matmul %210, %211, %cst_91 {dimension_numbers = #tpu.dot_dimension_numbers<[1], [0], [0], [1], [0, 0, 1, 1], [], []>} : vector<6x8xbf16>, vector<8x32xbf16>, vector<6x32xf32> -> vector<6x32xf32>
    %213 = arith.addf %193, %212 : vector<6x32xf32>
    %214 = vector.extract_strided_slice %168 {offsets = [0, 16], sizes = [6, 8], strides = [1, 1]} : vector<6x32xbf16> to vector<6x8xbf16>
    %215 = vector.extract_strided_slice %170 {offsets = [0, 16], sizes = [8, 8], strides = [1, 1]} : vector<8x32xbf16> to vector<8x8xbf16>
    %216 = vector.extract_strided_slice %172 {offsets = [0, 16], sizes = [8, 8], strides = [1, 1]} : vector<8x32xbf16> to vector<8x8xbf16>
    %cst_92 = arith.constant dense<0.000000e+00> : vector<6x8xf32>
    %217 = tpu.matmul %214, %215, %cst_92 {dimension_numbers = #tpu.dot_dimension_numbers<[1], [1], [0], [0], [0, 0, 1, 0], [], []>} : vector<6x8xbf16>, vector<8x8xbf16>, vector<6x8xf32> -> vector<6x8xf32>
    %cst_93 = arith.constant dense<0xFF800000> : vector<6xf32>
    %218 = vector.multi_reduction <maximumf>, %217, %cst_93 [1] : vector<6x8xf32> to vector<6xf32>
    %219 = vector.shape_cast %218 : vector<6xf32> to vector<6x1xf32>
    %220 = vector.broadcast %219 : vector<6x1xf32> to vector<6x8xf32>
    %221 = arith.subf %217, %220 : vector<6x8xf32>
    %222 = math.exp %221 : vector<6x8xf32>
    %cst_94 = arith.constant dense<0.000000e+00> : vector<6xf32>
    %223 = vector.multi_reduction <add>, %222, %cst_94 [1] : vector<6x8xf32> to vector<6xf32>
    %224 = vector.shape_cast %223 : vector<6xf32> to vector<6x1xf32>
    %225 = tpu.reciprocal %224 : vector<6x1xf32> -> vector<6x1xf32>
    %226 = vector.broadcast %225 : vector<6x1xf32> to vector<6x8xf32>
    %227 = arith.mulf %222, %226 : vector<6x8xf32>
    %228 = arith.truncf %227 : vector<6x8xf32> to vector<6x8xbf16>
    %cst_95 = arith.constant dense<0.000000e+00> : vector<6x8xf32>
    %229 = tpu.matmul %228, %216, %cst_95 {dimension_numbers = #tpu.dot_dimension_numbers<[1], [0], [0], [1], [0, 0, 1, 1], [], []>} : vector<6x8xbf16>, vector<8x8xbf16>, vector<6x8xf32> -> vector<6x8xf32>
    %230 = arith.truncf %229 : vector<6x8xf32> to vector<6x8xbf16>
    %231 = vector.extract_strided_slice %155 {offsets = [16, 0], sizes = [8, 32], strides = [1, 1]} : vector<32x32xbf16> to vector<8x32xbf16>
    %cst_96 = arith.constant dense<0.000000e+00> : vector<6x32xf32>
    %232 = tpu.matmul %230, %231, %cst_96 {dimension_numbers = #tpu.dot_dimension_numbers<[1], [0], [0], [1], [0, 0, 1, 1], [], []>} : vector<6x8xbf16>, vector<8x32xbf16>, vector<6x32xf32> -> vector<6x32xf32>
    %233 = arith.addf %213, %232 : vector<6x32xf32>
    %234 = vector.extract_strided_slice %168 {offsets = [0, 24], sizes = [6, 8], strides = [1, 1]} : vector<6x32xbf16> to vector<6x8xbf16>
    %235 = vector.extract_strided_slice %170 {offsets = [0, 24], sizes = [8, 8], strides = [1, 1]} : vector<8x32xbf16> to vector<8x8xbf16>
    %236 = vector.extract_strided_slice %172 {offsets = [0, 24], sizes = [8, 8], strides = [1, 1]} : vector<8x32xbf16> to vector<8x8xbf16>
    %cst_97 = arith.constant dense<0.000000e+00> : vector<6x8xf32>
    %237 = tpu.matmul %234, %235, %cst_97 {dimension_numbers = #tpu.dot_dimension_numbers<[1], [1], [0], [0], [0, 0, 1, 0], [], []>} : vector<6x8xbf16>, vector<8x8xbf16>, vector<6x8xf32> -> vector<6x8xf32>
    %cst_98 = arith.constant dense<0xFF800000> : vector<6xf32>
    %238 = vector.multi_reduction <maximumf>, %237, %cst_98 [1] : vector<6x8xf32> to vector<6xf32>
    %239 = vector.shape_cast %238 : vector<6xf32> to vector<6x1xf32>
    %240 = vector.broadcast %239 : vector<6x1xf32> to vector<6x8xf32>
    %241 = arith.subf %237, %240 : vector<6x8xf32>
    %242 = math.exp %241 : vector<6x8xf32>
    %cst_99 = arith.constant dense<0.000000e+00> : vector<6xf32>
    %243 = vector.multi_reduction <add>, %242, %cst_99 [1] : vector<6x8xf32> to vector<6xf32>
    %244 = vector.shape_cast %243 : vector<6xf32> to vector<6x1xf32>
    %245 = tpu.reciprocal %244 : vector<6x1xf32> -> vector<6x1xf32>
    %246 = vector.broadcast %245 : vector<6x1xf32> to vector<6x8xf32>
    %247 = arith.mulf %242, %246 : vector<6x8xf32>
    %248 = arith.truncf %247 : vector<6x8xf32> to vector<6x8xbf16>
    %cst_100 = arith.constant dense<0.000000e+00> : vector<6x8xf32>
    %249 = tpu.matmul %248, %236, %cst_100 {dimension_numbers = #tpu.dot_dimension_numbers<[1], [0], [0], [1], [0, 0, 1, 1], [], []>} : vector<6x8xbf16>, vector<8x8xbf16>, vector<6x8xf32> -> vector<6x8xf32>
    %250 = arith.truncf %249 : vector<6x8xf32> to vector<6x8xbf16>
    %251 = vector.extract_strided_slice %155 {offsets = [24, 0], sizes = [8, 32], strides = [1, 1]} : vector<32x32xbf16> to vector<8x32xbf16>
    %cst_101 = arith.constant dense<0.000000e+00> : vector<6x32xf32>
    %252 = tpu.matmul %250, %251, %cst_101 {dimension_numbers = #tpu.dot_dimension_numbers<[1], [0], [0], [1], [0, 0, 1, 1], [], []>} : vector<6x8xbf16>, vector<8x32xbf16>, vector<6x32xf32> -> vector<6x32xf32>
    %253 = arith.addf %233, %252 : vector<6x32xf32>
    %254 = vector.broadcast %157 : vector<1x32xf32> to vector<6x32xf32>
    %255 = arith.addf %253, %254 : vector<6x32xf32>
    %256 = arith.addf %255, %145 : vector<6x32xf32>
    %c0_102 = arith.constant 0 : index
    %c0_103 = arith.constant 0 : index
    %c0_104 = arith.constant 0 : index
    %257 = vector.load %arg19[%c0_102, %c0_103, %c0_104] : memref<1x1x32xf32, #tpu.memory_space<vmem>>, vector<1x1x32xf32>
    %258 = vector.shape_cast %257 : vector<1x1x32xf32> to vector<1x32xf32>
    %c0_105 = arith.constant 0 : index
    %c0_106 = arith.constant 0 : index
    %c0_107 = arith.constant 0 : index
    %259 = vector.load %arg20[%c0_105, %c0_106, %c0_107] : memref<1x1x32xf32, #tpu.memory_space<vmem>>, vector<1x1x32xf32>
    %260 = vector.shape_cast %259 : vector<1x1x32xf32> to vector<1x32xf32>
    %cst_108 = arith.constant dense<0.000000e+00> : vector<6xf32>
    %261 = vector.multi_reduction <add>, %256, %cst_108 [1] : vector<6x32xf32> to vector<6xf32>
    %262 = vector.shape_cast %261 : vector<6xf32> to vector<6x1xf32>
    %cst_109 = arith.constant 3.200000e+01 : f32
    %263 = vector.broadcast %cst_109 : f32 to vector<6x1xf32>
    %264 = arith.divf %262, %263 : vector<6x1xf32>
    %265 = vector.broadcast %264 : vector<6x1xf32> to vector<6x32xf32>
    %266 = arith.subf %256, %265 : vector<6x32xf32>
    %267 = arith.mulf %266, %266 : vector<6x32xf32>
    %cst_110 = arith.constant dense<0.000000e+00> : vector<6xf32>
    %268 = vector.multi_reduction <add>, %267, %cst_110 [1] : vector<6x32xf32> to vector<6xf32>
    %269 = vector.shape_cast %268 : vector<6xf32> to vector<6x1xf32>
    %cst_111 = arith.constant 3.200000e+01 : f32
    %270 = vector.broadcast %cst_111 : f32 to vector<6x1xf32>
    %271 = arith.divf %269, %270 : vector<6x1xf32>
    %cst_112 = arith.constant 9.99999974E-6 : f32
    %272 = vector.broadcast %cst_112 : f32 to vector<6x1xf32>
    %273 = arith.addf %271, %272 : vector<6x1xf32>
    %274 = math.rsqrt %273 : vector<6x1xf32>
    %275 = vector.broadcast %274 : vector<6x1xf32> to vector<6x32xf32>
    %276 = arith.mulf %266, %275 : vector<6x32xf32>
    %277 = vector.broadcast %258 : vector<1x32xf32> to vector<6x32xf32>
    %278 = arith.mulf %276, %277 : vector<6x32xf32>
    %279 = vector.broadcast %260 : vector<1x32xf32> to vector<6x32xf32>
    %280 = arith.addf %278, %279 : vector<6x32xf32>
    %c0_113 = arith.constant 0 : index
    %c0_114 = arith.constant 0 : index
    %c0_115 = arith.constant 0 : index
    %281 = vector.load %arg21[%c0_113, %c0_114, %c0_115] : memref<1x32x2048xbf16, #tpu.memory_space<vmem>>, vector<1x32x2048xbf16>
    %282 = vector.shape_cast %281 : vector<1x32x2048xbf16> to vector<32x2048xbf16>
    %c0_116 = arith.constant 0 : index
    %c0_117 = arith.constant 0 : index
    %c0_118 = arith.constant 0 : index
    %283 = vector.load %arg22[%c0_116, %c0_117, %c0_118] : memref<1x1x2048xf32, #tpu.memory_space<vmem>>, vector<1x1x2048xf32>
    %284 = vector.shape_cast %283 : vector<1x1x2048xf32> to vector<1x2048xf32>
    %c0_119 = arith.constant 0 : index
    %c0_120 = arith.constant 0 : index
    %c0_121 = arith.constant 0 : index
    %285 = vector.load %arg23[%c0_119, %c0_120, %c0_121] : memref<1x2048x32xbf16, #tpu.memory_space<vmem>>, vector<1x2048x32xbf16>
    %286 = vector.shape_cast %285 : vector<1x2048x32xbf16> to vector<2048x32xbf16>
    %c0_122 = arith.constant 0 : index
    %c0_123 = arith.constant 0 : index
    %c0_124 = arith.constant 0 : index
    %287 = vector.load %arg24[%c0_122, %c0_123, %c0_124] : memref<1x1x32xf32, #tpu.memory_space<vmem>>, vector<1x1x32xf32>
    %288 = vector.shape_cast %287 : vector<1x1x32xf32> to vector<1x32xf32>
    %289 = arith.truncf %280 : vector<6x32xf32> to vector<6x32xbf16>
    %cst_125 = arith.constant dense<0.000000e+00> : vector<6x2048xf32>
    %290 = tpu.matmul %289, %282, %cst_125 {dimension_numbers = #tpu.dot_dimension_numbers<[1], [0], [0], [1], [0, 0, 1, 1], [], []>} : vector<6x32xbf16>, vector<32x2048xbf16>, vector<6x2048xf32> -> vector<6x2048xf32>
    %291 = vector.broadcast %284 : vector<1x2048xf32> to vector<6x2048xf32>
    %292 = arith.addf %290, %291 : vector<6x2048xf32>
    %cst_126 = arith.constant 0.000000e+00 : f32
    %293 = vector.broadcast %cst_126 : f32 to vector<6x2048xf32>
    %294 = arith.maximumf %292, %293 : vector<6x2048xf32>
    %295 = arith.truncf %294 : vector<6x2048xf32> to vector<6x2048xbf16>
    %cst_127 = arith.constant dense<0.000000e+00> : vector<6x32xf32>
    %296 = tpu.matmul %295, %286, %cst_127 {dimension_numbers = #tpu.dot_dimension_numbers<[1], [0], [0], [1], [0, 0, 1, 1], [], []>} : vector<6x2048xbf16>, vector<2048x32xbf16>, vector<6x32xf32> -> vector<6x32xf32>
    %297 = vector.broadcast %288 : vector<1x32xf32> to vector<6x32xf32>
    %298 = arith.addf %296, %297 : vector<6x32xf32>
    %299 = arith.addf %298, %280 : vector<6x32xf32>
    %c0_128 = arith.constant 0 : index
    %c0_129 = arith.constant 0 : index
    %c0_130 = arith.constant 0 : index
    %300 = vector.load %arg25[%c0_128, %c0_129, %c0_130] : memref<1x1x32xf32, #tpu.memory_space<vmem>>, vector<1x1x32xf32>
    %301 = vector.shape_cast %300 : vector<1x1x32xf32> to vector<1x32xf32>
    %c0_131 = arith.constant 0 : index
    %c0_132 = arith.constant 0 : index
    %c0_133 = arith.constant 0 : index
    %302 = vector.load %arg26[%c0_131, %c0_132, %c0_133] : memref<1x1x32xf32, #tpu.memory_space<vmem>>, vector<1x1x32xf32>
    %303 = vector.shape_cast %302 : vector<1x1x32xf32> to vector<1x32xf32>
    %cst_134 = arith.constant dense<0.000000e+00> : vector<6xf32>
    %304 = vector.multi_reduction <add>, %299, %cst_134 [1] : vector<6x32xf32> to vector<6xf32>
    %305 = vector.shape_cast %304 : vector<6xf32> to vector<6x1xf32>
    %cst_135 = arith.constant 3.200000e+01 : f32
    %306 = vector.broadcast %cst_135 : f32 to vector<6x1xf32>
    %307 = arith.divf %305, %306 : vector<6x1xf32>
    %308 = vector.broadcast %307 : vector<6x1xf32> to vector<6x32xf32>
    %309 = arith.subf %299, %308 : vector<6x32xf32>
    %310 = arith.mulf %309, %309 : vector<6x32xf32>
    %cst_136 = arith.constant dense<0.000000e+00> : vector<6xf32>
    %311 = vector.multi_reduction <add>, %310, %cst_136 [1] : vector<6x32xf32> to vector<6xf32>
    %312 = vector.shape_cast %311 : vector<6xf32> to vector<6x1xf32>
    %cst_137 = arith.constant 3.200000e+01 : f32
    %313 = vector.broadcast %cst_137 : f32 to vector<6x1xf32>
    %314 = arith.divf %312, %313 : vector<6x1xf32>
    %cst_138 = arith.constant 9.99999974E-6 : f32
    %315 = vector.broadcast %cst_138 : f32 to vector<6x1xf32>
    %316 = arith.addf %314, %315 : vector<6x1xf32>
    %317 = math.rsqrt %316 : vector<6x1xf32>
    %318 = vector.broadcast %317 : vector<6x1xf32> to vector<6x32xf32>
    %319 = arith.mulf %309, %318 : vector<6x32xf32>
    %320 = vector.broadcast %301 : vector<1x32xf32> to vector<6x32xf32>
    %321 = arith.mulf %319, %320 : vector<6x32xf32>
    %322 = vector.broadcast %303 : vector<1x32xf32> to vector<6x32xf32>
    %323 = arith.addf %321, %322 : vector<6x32xf32>
    %c0_139 = arith.constant 0 : index
    %c0_140 = arith.constant 0 : index
    %c0_141 = arith.constant 0 : index
    %324 = vector.load %arg32[%c0_139, %c0_140, %c0_141] : memref<1x6x32xf32, #tpu.memory_space<vmem>>, vector<1x6x32xf32>
    %325 = vector.shape_cast %324 : vector<1x6x32xf32> to vector<6x32xf32>
    %326 = vector.shape_cast %323 : vector<6x32xf32> to vector<1x6x32xf32>
    tpu.vector_store %arg32[%c0_139, %c0_140, %c0_141], %326 {strides = array<i32>} : memref<1x6x32xf32, #tpu.memory_space<vmem>>, vector<1x6x32xf32>,
    %c1_i32 = arith.constant 1 : i32
    %327 = arith.cmpi eq, %arg1, %c1_i32 : i32
    %328 = arith.extui %327 : i1 to i32
    %c0_i32_142 = arith.constant 0 : i32
    %329 = arith.cmpi ne, %328, %c0_i32_142 : i32
    scf.if %329 {
      %c0_143 = arith.constant 0 : index
      %c0_144 = arith.constant 0 : index
      %330 = vector.load %arg27[%c0_143, %c0_144] : memref<1x32xf32, #tpu.memory_space<vmem>>, vector<1x32xf32>
      %c0_145 = arith.constant 0 : index
      %c0_146 = arith.constant 0 : index
      %331 = vector.load %arg28[%c0_145, %c0_146] : memref<1x32xf32, #tpu.memory_space<vmem>>, vector<1x32xf32>
      %cst_147 = arith.constant dense<0.000000e+00> : vector<6xf32>
      %332 = vector.multi_reduction <add>, %323, %cst_147 [1] : vector<6x32xf32> to vector<6xf32>
      %333 = vector.shape_cast %332 : vector<6xf32> to vector<6x1xf32>
      %cst_148 = arith.constant 3.200000e+01 : f32
      %334 = vector.broadcast %cst_148 : f32 to vector<6x1xf32>
      %335 = arith.divf %333, %334 : vector<6x1xf32>
      %336 = vector.broadcast %335 : vector<6x1xf32> to vector<6x32xf32>
      %337 = arith.subf %323, %336 : vector<6x32xf32>
      %338 = arith.mulf %337, %337 : vector<6x32xf32>
      %cst_149 = arith.constant dense<0.000000e+00> : vector<6xf32>
      %339 = vector.multi_reduction <add>, %338, %cst_149 [1] : vector<6x32xf32> to vector<6xf32>
      %340 = vector.shape_cast %339 : vector<6xf32> to vector<6x1xf32>
      %cst_150 = arith.constant 3.200000e+01 : f32
      %341 = vector.broadcast %cst_150 : f32 to vector<6x1xf32>
      %342 = arith.divf %340, %341 : vector<6x1xf32>
      %cst_151 = arith.constant 9.99999974E-6 : f32
      %343 = vector.broadcast %cst_151 : f32 to vector<6x1xf32>
      %344 = arith.addf %342, %343 : vector<6x1xf32>
      %345 = math.rsqrt %344 : vector<6x1xf32>
      %346 = vector.broadcast %345 : vector<6x1xf32> to vector<6x32xf32>
      %347 = arith.mulf %337, %346 : vector<6x32xf32>
      %348 = vector.broadcast %330 : vector<1x32xf32> to vector<6x32xf32>
      %349 = arith.mulf %347, %348 : vector<6x32xf32>
      %350 = vector.broadcast %331 : vector<1x32xf32> to vector<6x32xf32>
      %351 = arith.addf %349, %350 : vector<6x32xf32>
      %352 = arith.truncf %351 : vector<6x32xf32> to vector<6x32xbf16>
      %c0_152 = arith.constant 0 : index
      %c0_153 = arith.constant 0 : index
      %353 = vector.load %arg29[%c0_152, %c0_153] : memref<32x32xbf16, #tpu.memory_space<vmem>>, vector<32x32xbf16>
      %cst_154 = arith.constant dense<0.000000e+00> : vector<6x32xf32>
      %354 = tpu.matmul %352, %353, %cst_154 {dimension_numbers = #tpu.dot_dimension_numbers<[1], [0], [0], [1], [0, 0, 1, 1], [], []>} : vector<6x32xbf16>, vector<32x32xbf16>, vector<6x32xf32> -> vector<6x32xf32>
      %c0_155 = arith.constant 0 : index
      %c0_156 = arith.constant 0 : index
      %355 = vector.load %arg30[%c0_155, %c0_156] : memref<1x32xf32, #tpu.memory_space<vmem>>, vector<1x32xf32>
      %356 = vector.broadcast %355 : vector<1x32xf32> to vector<6x32xf32>
      %357 = arith.addf %354, %356 : vector<6x32xf32>
      %c0_157 = arith.constant 0 : index
      %c0_158 = arith.constant 0 : index
      %c0_159 = arith.constant 0 : index
      %358 = vector.load %arg31[%c0_157, %c0_158, %c0_159] : memref<1x6x32xf32, #tpu.memory_space<vmem>>, vector<1x6x32xf32>
      %359 = vector.shape_cast %358 : vector<1x6x32xf32> to vector<6x32xf32>
      %360 = vector.shape_cast %357 : vector<6x32xf32> to vector<1x6x32xf32>
      tpu.vector_store %arg31[%c0_157, %c0_158, %c0_159], %360 {strides = array<i32>} : memref<1x6x32xf32, #tpu.memory_space<vmem>>, vector<1x6x32xf32>,
    } else {
    }
    return
  }
  func.func @transform_0(%arg0: i32, %arg1: i32) -> (i32, i32, i32) {
    %c0_i32 = arith.constant 0 : i32
    %c0_i32_0 = arith.constant 0 : i32
    %c0_i32_1 = arith.constant 0 : i32
    return %arg0, %c0_i32, %c0_i32_0 : i32, i32, i32
  }
  func.func @transform_1(%arg0: i32, %arg1: i32) -> (i32, i32, i32) {
    %c0_i32 = arith.constant 0 : i32
    %c0_i32_0 = arith.constant 0 : i32
    %c0_i32_1 = arith.constant 0 : i32
    return %arg0, %c0_i32, %c0_i32_0 : i32, i32, i32
  }
  func.func @transform_2(%arg0: i32, %arg1: i32) -> (i32, i32) {
    %c0_i32 = arith.constant 0 : i32
    %c0_i32_0 = arith.constant 0 : i32
    %c0_i32_1 = arith.constant 0 : i32
    return %c0_i32, %c0_i32_0 : i32, i32
  }
  func.func @transform_3(%arg0: i32, %arg1: i32) -> (i32, i32, i32) {
    %c0_i32 = arith.constant 0 : i32
    %c0_i32_0 = arith.constant 0 : i32
    %c0_i32_1 = arith.constant 0 : i32
    return %arg1, %c0_i32, %c0_i32_0 : i32, i32, i32
  }
  func.func @transform_4(%arg0: i32, %arg1: i32) -> (i32, i32, i32) {
    %c0_i32 = arith.constant 0 : i32
    %c0_i32_0 = arith.constant 0 : i32
    %c0_i32_1 = arith.constant 0 : i32
    return %arg1, %c0_i32, %c0_i32_0 : i32, i32, i32
  }
  func.func @transform_5(%arg0: i32, %arg1: i32) -> (i32, i32, i32) {
    %c0_i32 = arith.constant 0 : i32
    %c0_i32_0 = arith.constant 0 : i32
    %c0_i32_1 = arith.constant 0 : i32
    return %arg1, %c0_i32, %c0_i32_0 : i32, i32, i32
  }
  func.func @transform_6(%arg0: i32, %arg1: i32) -> (i32, i32, i32) {
    %c0_i32 = arith.constant 0 : i32
    %c0_i32_0 = arith.constant 0 : i32
    %c0_i32_1 = arith.constant 0 : i32
    return %arg1, %c0_i32, %c0_i32_0 : i32, i32, i32
  }
  func.func @transform_7(%arg0: i32, %arg1: i32) -> (i32, i32, i32) {
    %c0_i32 = arith.constant 0 : i32
    %c0_i32_0 = arith.constant 0 : i32
    %c0_i32_1 = arith.constant 0 : i32
    return %arg1, %c0_i32, %c0_i32_0 : i32, i32, i32
  }
  func.func @transform_8(%arg0: i32, %arg1: i32) -> (i32, i32, i32) {
    %c0_i32 = arith.constant 0 : i32
    %c0_i32_0 = arith.constant 0 : i32
    %c0_i32_1 = arith.constant 0 : i32
    return %arg1, %c0_i32, %c0_i32_0 : i32, i32, i32
  }
  func.func @transform_9(%arg0: i32, %arg1: i32) -> (i32, i32, i32) {
    %c0_i32 = arith.constant 0 : i32
    %c0_i32_0 = arith.constant 0 : i32
    %c0_i32_1 = arith.constant 0 : i32
    return %arg1, %c0_i32, %c0_i32_0 : i32, i32, i32
  }
  func.func @transform_10(%arg0: i32, %arg1: i32) -> (i32, i32, i32) {
    %c0_i32 = arith.constant 0 : i32
    %c0_i32_0 = arith.constant 0 : i32
    %c0_i32_1 = arith.constant 0 : i32
    return %arg1, %c0_i32, %c0_i32_0 : i32, i32, i32
  }
  func.func @transform_11(%arg0: i32, %arg1: i32) -> (i32, i32, i32) {
    %c0_i32 = arith.constant 0 : i32
    %c0_i32_0 = arith.constant 0 : i32
    %c0_i32_1 = arith.constant 0 : i32
    return %arg1, %c0_i32, %c0_i32_0 : i32, i32, i32
  }
  func.func @transform_12(%arg0: i32, %arg1: i32) -> (i32, i32, i32) {
    %c0_i32 = arith.constant 0 : i32
    %c0_i32_0 = arith.constant 0 : i32
    %c0_i32_1 = arith.constant 0 : i32
    return %arg1, %c0_i32, %c0_i32_0 : i32, i32, i32
  }
  func.func @transform_13(%arg0: i32, %arg1: i32) -> (i32, i32, i32) {
    %c0_i32 = arith.constant 0 : i32
    %c0_i32_0 = arith.constant 0 : i32
    %c0_i32_1 = arith.constant 0 : i32
    return %arg1, %c0_i32, %c0_i32_0 : i32, i32, i32
  }
  func.func @transform_14(%arg0: i32, %arg1: i32) -> (i32, i32, i32) {
    %c0_i32 = arith.constant 0 : i32
    %c0_i32_0 = arith.constant 0 : i32
    %c0_i32_1 = arith.constant 0 : i32
    return %arg1, %c0_i32, %c0_i32_0 : i32, i32, i32
  }
  func.func @transform_15(%arg0: i32, %arg1: i32) -> (i32, i32, i32) {
    %c0_i32 = arith.constant 0 : i32
    %c0_i32_0 = arith.constant 0 : i32
    %c0_i32_1 = arith.constant 0 : i32
    return %arg1, %c0_i32, %c0_i32_0 : i32, i32, i32
  }
  func.func @transform_16(%arg0: i32, %arg1: i32) -> (i32, i32, i32) {
    %c0_i32 = arith.constant 0 : i32
    %c0_i32_0 = arith.constant 0 : i32
    %c0_i32_1 = arith.constant 0 : i32
    return %arg1, %c0_i32, %c0_i32_0 : i32, i32, i32
  }
  func.func @transform_17(%arg0: i32, %arg1: i32) -> (i32, i32, i32) {
    %c0_i32 = arith.constant 0 : i32
    %c0_i32_0 = arith.constant 0 : i32
    %c0_i32_1 = arith.constant 0 : i32
    return %arg1, %c0_i32, %c0_i32_0 : i32, i32, i32
  }
  func.func @transform_18(%arg0: i32, %arg1: i32) -> (i32, i32, i32) {
    %c0_i32 = arith.constant 0 : i32
    %c0_i32_0 = arith.constant 0 : i32
    %c0_i32_1 = arith.constant 0 : i32
    return %arg1, %c0_i32, %c0_i32_0 : i32, i32, i32
  }
  func.func @transform_19(%arg0: i32, %arg1: i32) -> (i32, i32, i32) {
    %c0_i32 = arith.constant 0 : i32
    %c0_i32_0 = arith.constant 0 : i32
    %c0_i32_1 = arith.constant 0 : i32
    return %arg1, %c0_i32, %c0_i32_0 : i32, i32, i32
  }
  func.func @transform_20(%arg0: i32, %arg1: i32) -> (i32, i32, i32) {
    %c0_i32 = arith.constant 0 : i32
    %c0_i32_0 = arith.constant 0 : i32
    %c0_i32_1 = arith.constant 0 : i32
    return %arg1, %c0_i32, %c0_i32_0 : i32, i32, i32
  }
  func.func @transform_21(%arg0: i32, %arg1: i32) -> (i32, i32, i32) {
    %c0_i32 = arith.constant 0 : i32
    %c0_i32_0 = arith.constant 0 : i32
    %c0_i32_1 = arith.constant 0 : i32
    return %arg1, %c0_i32, %c0_i32_0 : i32, i32, i32
  }
  func.func @transform_22(%arg0: i32, %arg1: i32) -> (i32, i32, i32) {
    %c0_i32 = arith.constant 0 : i32
    %c0_i32_0 = arith.constant 0 : i32
    %c0_i32_1 = arith.constant 0 : i32
    return %arg1, %c0_i32, %c0_i32_0 : i32, i32, i32
  }
  func.func @transform_23(%arg0: i32, %arg1: i32) -> (i32, i32, i32) {
    %c0_i32 = arith.constant 0 : i32
    %c0_i32_0 = arith.constant 0 : i32
    %c0_i32_1 = arith.constant 0 : i32
    return %arg1, %c0_i32, %c0_i32_0 : i32, i32, i32
  }
  func.func @transform_24(%arg0: i32, %arg1: i32) -> (i32, i32, i32) {
    %c0_i32 = arith.constant 0 : i32
    %c0_i32_0 = arith.constant 0 : i32
    %c0_i32_1 = arith.constant 0 : i32
    return %arg1, %c0_i32, %c0_i32_0 : i32, i32, i32
  }
  func.func @transform_25(%arg0: i32, %arg1: i32) -> (i32, i32) {
    %c0_i32 = arith.constant 0 : i32
    %c0_i32_0 = arith.constant 0 : i32
    %c0_i32_1 = arith.constant 0 : i32
    return %c0_i32, %c0_i32_0 : i32, i32
  }
  func.func @transform_26(%arg0: i32, %arg1: i32) -> (i32, i32) {
    %c0_i32 = arith.constant 0 : i32
    %c0_i32_0 = arith.constant 0 : i32
    %c0_i32_1 = arith.constant 0 : i32
    return %c0_i32, %c0_i32_0 : i32, i32
  }
  func.func @transform_27(%arg0: i32, %arg1: i32) -> (i32, i32) {
    %c0_i32 = arith.constant 0 : i32
    %c0_i32_0 = arith.constant 0 : i32
    %c0_i32_1 = arith.constant 0 : i32
    return %c0_i32, %c0_i32_0 : i32, i32
  }
  func.func @transform_28(%arg0: i32, %arg1: i32) -> (i32, i32) {
    %c0_i32 = arith.constant 0 : i32
    %c0_i32_0 = arith.constant 0 : i32
    %c0_i32_1 = arith.constant 0 : i32
    return %c0_i32, %c0_i32_0 : i32, i32
  }
  func.func @transform_29(%arg0: i32, %arg1: i32) -> (i32, i32, i32) {
    %c0_i32 = arith.constant 0 : i32
    %c0_i32_0 = arith.constant 0 : i32
    %c0_i32_1 = arith.constant 0 : i32
    return %arg0, %c0_i32, %c0_i32_0 : i32, i32, i32
  }
}

</mosaic_0001>

<llo_original>
// kernel: transformer_forward.3
$region0: #{transformer_forward.3}
  #allocation0 [shape = 'u32[]', space=smem, size = 0x4, offset = 0x4, fixed_abs, tag = 'smem constant byte address 0x4 - core index']
  #allocation1 [shape = 'u32[144,128]{1,0:T(1,128)}', space=vmem, size = 0x12000, scoped, tag = 'internal scratch']
  #allocation2 [shape = 'f32[1,6,32]{2,1,0:T(8,128)}', space=vmem, size = 0x1000, scoped, tag = 'scratch operand']
  %s0 = inlined_call_operand.smem [shape: u32[30], index: -1, kind: input, shape index: {}]
  %s1 = sld [smem:[%s0]]
  %s2 = scalar_lea.smem %s0, 1
  %s3 = sld [smem:[%s2]]
  %s4 = scalar_lea.smem %s0, 2
  %s5 = sld [smem:[%s4]]
  %s6 = scalar_lea.smem %s0, 3
  %s7 = sld [smem:[%s6]]
  %s8 = scalar_lea.smem %s0, 4
  %s9 = sld [smem:[%s8]]
  %s10 = scalar_lea.smem %s0, 5
  %s11 = sld [smem:[%s10]]
  %s12 = scalar_lea.smem %s0, 6
  %s13 = sld [smem:[%s12]]
  %s14 = scalar_lea.smem %s0, 7
  %s15 = sld [smem:[%s14]]
  %s16 = scalar_lea.smem %s0, 8
  %s17 = sld [smem:[%s16]]
  %s18 = scalar_lea.smem %s0, 9
  %s19 = sld [smem:[%s18]]
  %s20 = scalar_lea.smem %s0, 10
  %s21 = sld [smem:[%s20]]
  %s22 = scalar_lea.smem %s0, 11
  %s23 = sld [smem:[%s22]]
  %s24 = scalar_lea.smem %s0, 12
  %s25 = sld [smem:[%s24]]
  %s26 = scalar_lea.smem %s0, 13
  %s27 = sld [smem:[%s26]]
  %s28 = scalar_lea.smem %s0, 14
  %s29 = sld [smem:[%s28]]
  %s30 = scalar_lea.smem %s0, 15
  %s31 = sld [smem:[%s30]]
  %s32 = scalar_lea.smem %s0, 16
  %s33 = sld [smem:[%s32]]
  %s34 = scalar_lea.smem %s0, 17
  %s35 = sld [smem:[%s34]]
  %s36 = scalar_lea.smem %s0, 18
  %s37 = sld [smem:[%s36]]
  %s38 = scalar_lea.smem %s0, 19
  %s39 = sld [smem:[%s38]]
  %s40 = scalar_lea.smem %s0, 20
  %s41 = sld [smem:[%s40]]
  %s42 = scalar_lea.smem %s0, 21
  %s43 = sld [smem:[%s42]]
  %s44 = scalar_lea.smem %s0, 22
  %s45 = sld [smem:[%s44]]
  %s46 = scalar_lea.smem %s0, 23
  %s47 = sld [smem:[%s46]]
  %s48 = scalar_lea.smem %s0, 24
  %s49 = sld [smem:[%s48]]
  %s50 = scalar_lea.smem %s0, 25
  %s51 = sld [smem:[%s50]]
  %s52 = scalar_lea.smem %s0, 26
  %s53 = sld [smem:[%s52]]
  %s54 = scalar_lea.smem %s0, 27
  %s55 = sld [smem:[%s54]]
  %s56 = scalar_lea.smem %s0, 28
  %s57 = sld [smem:[%s56]]
  %s58 = scalar_lea.smem %s0, 29
  %s59 = sld [smem:[%s58]]
  %s60 = sld [smem:[#allocation0]]
  $region157: #{transformer_forward.3} parent=0
    _
  %s62 = ssub.s32 1, %s60
  %s63 = scalar_select 0, %s62, %s60
  loop: start=0, step=1, limit=6
  $region2: #{transformer_forward.3} parent=0 // loop_pre_header
    _
  $region3: #{transformer_forward.3} parent=0 // loop_header
    %s65 = sphi 0, %s69
    %p66 = scmp.ge.s32.totalorder %s65, 6
    %s72 = sphi 0, %s84
    %s73 = sphi 0, %s80
    %s74 = sphi 0, %s72
    %s75 = sphi 0, %s73
    %s76 = sphi 0, %s74
    %s77 = sphi 0, %s75
    %s87 = sphi 0, %s89
    %s90 = sphi 0, %s87
    %s91 = sphi 0, %s90
    %s107 = sphi 0, %s91
    %s113 = sphi 0, %s115
    %s116 = sphi 0, %s113
    %s117 = sphi 0, %s116
    %s133 = sphi 0, %s117
    %s137 = sphi 0, %s137
    %s139 = sphi 0, %s137
    %s140 = sphi 0, %s139
    %s154 = sphi 0, %s140
    %s160 = sphi 0, %s162
    %s163 = sphi 0, %s160
    %s164 = sphi 0, %s163
    %s180 = sphi 0, %s164
    %s186 = sphi 0, %s188
    %s189 = sphi 0, %s186
    %s190 = sphi 0, %s189
    %s206 = sphi 0, %s190
    %s212 = sphi 0, %s214
    %s215 = sphi 0, %s212
    %s216 = sphi 0, %s215
    %s232 = sphi 0, %s216
    %s238 = sphi 0, %s240
    %s241 = sphi 0, %s238
    %s242 = sphi 0, %s241
    %s258 = sphi 0, %s242
    %s264 = sphi 0, %s266
    %s267 = sphi 0, %s264
    %s268 = sphi 0, %s267
    %s284 = sphi 0, %s268
    %s290 = sphi 0, %s292
    %s293 = sphi 0, %s290
    %s294 = sphi 0, %s293
    %s310 = sphi 0, %s294
    %s316 = sphi 0, %s318
    %s319 = sphi 0, %s316
    %s320 = sphi 0, %s319
    %s336 = sphi 0, %s320
    %s342 = sphi 0, %s344
    %s345 = sphi 0, %s342
    %s346 = sphi 0, %s345
    %s362 = sphi 0, %s346
    %s368 = sphi 0, %s370
    %s371 = sphi 0, %s368
    %s372 = sphi 0, %s371
    %s388 = sphi 0, %s372
    %s394 = sphi 0, %s396
    %s397 = sphi 0, %s394
    %s398 = sphi 0, %s397
    %s414 = sphi 0, %s398
    %s420 = sphi 0, %s422
    %s423 = sphi 0, %s420
    %s424 = sphi 0, %s423
    %s440 = sphi 0, %s424
    %s446 = sphi 0, %s448
    %s449 = sphi 0, %s446
    %s450 = sphi 0, %s449
    %s466 = sphi 0, %s450
    %s472 = sphi 0, %s474
    %s475 = sphi 0, %s472
    %s476 = sphi 0, %s475
    %s492 = sphi 0, %s476
    %s498 = sphi 0, %s500
    %s501 = sphi 0, %s498
    %s502 = sphi 0, %s501
    %s518 = sphi 0, %s502
    %s524 = sphi 0, %s526
    %s527 = sphi 0, %s524
    %s528 = sphi 0, %s527
    %s544 = sphi 0, %s528
    %s550 = sphi 0, %s552
    %s553 = sphi 0, %s550
    %s554 = sphi 0, %s553
    %s570 = sphi 0, %s554
    %s576 = sphi 0, %s578
    %s579 = sphi 0, %s576
    %s580 = sphi 0, %s579
    %s596 = sphi 0, %s580
    %s602 = sphi 0, %s604
    %s605 = sphi 0, %s602
    %s606 = sphi 0, %s605
    %s622 = sphi 0, %s606
    %s628 = sphi 0, %s630
    %s631 = sphi 0, %s628
    %s632 = sphi 0, %s631
    %s648 = sphi 0, %s632
    %s654 = sphi 0, %s656
    %s657 = sphi 0, %s654
    %s658 = sphi 0, %s657
    %s674 = sphi 0, %s658
    %s680 = sphi 0, %s682
    %s683 = sphi 0, %s680
    %s684 = sphi 0, %s683
    %s700 = sphi 0, %s684
    %s706 = sphi 0, %s708
    %s709 = sphi 0, %s706
    %s710 = sphi 0, %s709
    %s726 = sphi 0, %s710
    %s730 = sphi 0, %s730
    %s732 = sphi 0, %s730
    %s733 = sphi 0, %s732
    %s747 = sphi 0, %s733
    %s751 = sphi 0, %s751
    %s753 = sphi 0, %s751
    %s754 = sphi 0, %s753
    %s768 = sphi 0, %s754
    %s772 = sphi 0, %s772
    %s774 = sphi 0, %s772
    %s775 = sphi 0, %s774
    %s789 = sphi 0, %s775
    %s793 = sphi 0, %s793
    %s795 = sphi 0, %s793
    %s796 = sphi 0, %s795
    %s810 = sphi 0, %s796
    %s816 = sphi 0, %s818
    %s819 = sphi 0, %s816
    %s820 = sphi 0, %s819
    %s836 = sphi 0, %s820
  $region4: #{transformer_forward.3} parent=0 // loop_header_branch
    %68 = sbr.rel (%p66) target = $region8
  $region5: #{transformer_forward.3} parent=0 // loop_body
    %s70 = ssub.s32 %s65, 1
    %s71 = ssub.s32 %s65, 2
    %s78 = sadd.s32 1, %s73
    %p79 = scmp.ge.s32.totalorder %s78, 2
    %s80 = scalar_select %p79, 0, %s78
    %s81 = sadd.s32 1, %s72
    %s82 = scalar_select %p79, %s81, %s72
    %p83 = scmp.ge.s32.totalorder %s82, 2
    %s84 = scalar_select %p83, 0, %s82
    %s85 = ssub.s32 %s72, %s84
    %p86 = scmp.eq.s32.totalorder %s85, 0
    %s88 = sadd.s32 %s87, 1
    %s89 = scalar_select %p86, %s87, %s88
    %p92 = pneg %p86
    %p93 = scmp.eq.s32.totalorder %s65, 3
    %p94 = por %p92, %p93
    %p95 = scmp.ne.s32.totalorder %s87, %s90
    %p96 = scmp.eq.s32.totalorder %s65, 0
    %p97 = por %p95, %p96
    %p98 = scmp.ne.s32.totalorder %s87, %s90
    %p99 = scmp.eq.s32.totalorder %s70, 3
    %p100 = por %p98, %p99
    %p101 = scmp.ne.s32.totalorder %s90, %s91
    %p102 = scmp.eq.s32.totalorder %s70, 0
    %p103 = por %p101, %p102
    %p104 = scmp.ne.s32.totalorder %s90, %s91
    %p105 = scmp.eq.s32.totalorder %s71, 3
    %p106 = por %p104, %p105
    %p108 = scmp.ne.s32.totalorder %s91, %s107
    %p109 = scmp.eq.s32.totalorder %s71, 0
    %p110 = por %p108, %p109
    %s111 = ssub.s32 %s72, %s84
    %p112 = scmp.eq.s32.totalorder %s111, 0
    %s114 = sadd.s32 %s113, 1
    %s115 = scalar_select %p112, %s113, %s114
    %p118 = pneg %p112
    %p119 = scmp.eq.s32.totalorder %s65, 3
    %p120 = por %p118, %p119
    %p121 = scmp.ne.s32.totalorder %s113, %s116
    %p122 = scmp.eq.s32.totalorder %s65, 0
    %p123 = por %p121, %p122
    %p124 = scmp.ne.s32.totalorder %s113, %s116
    %p125 = scmp.eq.s32.totalorder %s70, 3
    %p126 = por %p124, %p125
    %p127 = scmp.ne.s32.totalorder %s116, %s117
    %p128 = scmp.eq.s32.totalorder %s70, 0
    %p129 = por %p127, %p128
    %p130 = scmp.ne.s32.totalorder %s116, %s117
    %p131 = scmp.eq.s32.totalorder %s71, 3
    %p132 = por %p130, %p131
    %p134 = scmp.ne.s32.totalorder %s117, %s133
    %p135 = scmp.eq.s32.totalorder %s71, 0
    %p136 = por %p134, %p135
    %s138 = sadd.s32 %s137, 1
    %p141 = scmp.eq.s32.totalorder %s65, 3
    %p142 = scmp.ne.s32.totalorder %s137, %s139
    %p143 = scmp.eq.s32.totalorder %s65, 0
    %p144 = por %p142, %p143
    %p145 = scmp.ne.s32.totalorder %s137, %s139
    %p146 = scmp.eq.s32.totalorder %s70, 3
    %p147 = por %p145, %p146
    %p148 = scmp.ne.s32.totalorder %s139, %s140
    %p149 = scmp.eq.s32.totalorder %s70, 0
    %p150 = por %p148, %p149
    %p151 = scmp.ne.s32.totalorder %s139, %s140
    %p152 = scmp.eq.s32.totalorder %s71, 3
    %p153 = por %p151, %p152
    %p155 = scmp.ne.s32.totalorder %s140, %s154
    %p156 = scmp.eq.s32.totalorder %s71, 0
    %p157 = por %p155, %p156
    %s158 = ssub.s32 %s73, %s80
    %p159 = scmp.eq.s32.totalorder %s158, 0
    %s161 = sadd.s32 %s160, 1
    %s162 = scalar_select %p159, %s160, %s161
    %p165 = pneg %p159
    %p166 = scmp.eq.s32.totalorder %s65, 3
    %p167 = por %p165, %p166
    %p168 = scmp.ne.s32.totalorder %s160, %s163
    %p169 = scmp.eq.s32.totalorder %s65, 0
    %p170 = por %p168, %p169
    %p171 = scmp.ne.s32.totalorder %s160, %s163
    %p172 = scmp.eq.s32.totalorder %s70, 3
    %p173 = por %p171, %p172
    %p174 = scmp.ne.s32.totalorder %s163, %s164
    %p175 = scmp.eq.s32.totalorder %s70, 0
    %p176 = por %p174, %p175
    %p177 = scmp.ne.s32.totalorder %s163, %s164
    %p178 = scmp.eq.s32.totalorder %s71, 3
    %p179 = por %p177, %p178
    %p181 = scmp.ne.s32.totalorder %s164, %s180
    %p182 = scmp.eq.s32.totalorder %s71, 0
    %p183 = por %p181, %p182
    %s184 = ssub.s32 %s73, %s80
    %p185 = scmp.eq.s32.totalorder %s184, 0
    %s187 = sadd.s32 %s186, 1
    %s188 = scalar_select %p185, %s186, %s187
    %p191 = pneg %p185
    %p192 = scmp.eq.s32.totalorder %s65, 3
    %p193 = por %p191, %p192
    %p194 = scmp.ne.s32.totalorder %s186, %s189
    %p195 = scmp.eq.s32.totalorder %s65, 0
    %p196 = por %p194, %p195
    %p197 = scmp.ne.s32.totalorder %s186, %s189
    %p198 = scmp.eq.s32.totalorder %s70, 3
    %p199 = por %p197, %p198
    %p200 = scmp.ne.s32.totalorder %s189, %s190
    %p201 = scmp.eq.s32.totalorder %s70, 0
    %p202 = por %p200, %p201
    %p203 = scmp.ne.s32.totalorder %s189, %s190
    %p204 = scmp.eq.s32.totalorder %s71, 3
    %p205 = por %p203, %p204
    %p207 = scmp.ne.s32.totalorder %s190, %s206
    %p208 = scmp.eq.s32.totalorder %s71, 0
    %p209 = por %p207, %p208
    %s210 = ssub.s32 %s73, %s80
    %p211 = scmp.eq.s32.totalorder %s210, 0
    %s213 = sadd.s32 %s212, 1
    %s214 = scalar_select %p211, %s212, %s213
    %p217 = pneg %p211
    %p218 = scmp.eq.s32.totalorder %s65, 3
    %p219 = por %p217, %p218
    %p220 = scmp.ne.s32.totalorder %s212, %s215
    %p221 = scmp.eq.s32.totalorder %s65, 0
    %p222 = por %p220, %p221
    %p223 = scmp.ne.s32.totalorder %s212, %s215
    %p224 = scmp.eq.s32.totalorder %s70, 3
    %p225 = por %p223, %p224
    %p226 = scmp.ne.s32.totalorder %s215, %s216
    %p227 = scmp.eq.s32.totalorder %s70, 0
    %p228 = por %p226, %p227
    %p229 = scmp.ne.s32.totalorder %s215, %s216
    %p230 = scmp.eq.s32.totalorder %s71, 3
    %p231 = por %p229, %p230
    %p233 = scmp.ne.s32.totalorder %s216, %s232
    %p234 = scmp.eq.s32.totalorder %s71, 0
    %p235 = por %p233, %p234
    %s236 = ssub.s32 %s73, %s80
    %p237 = scmp.eq.s32.totalorder %s236, 0
    %s239 = sadd.s32 %s238, 1
    %s240 = scalar_select %p237, %s238, %s239
    %p243 = pneg %p237
    %p244 = scmp.eq.s32.totalorder %s65, 3
    %p245 = por %p243, %p244
    %p246 = scmp.ne.s32.totalorder %s238, %s241
    %p247 = scmp.eq.s32.totalorder %s65, 0
    %p248 = por %p246, %p247
    %p249 = scmp.ne.s32.totalorder %s238, %s241
    %p250 = scmp.eq.s32.totalorder %s70, 3
    %p251 = por %p249, %p250
    %p252 = scmp.ne.s32.totalorder %s241, %s242
    %p253 = scmp.eq.s32.totalorder %s70, 0
    %p254 = por %p252, %p253
    %p255 = scmp.ne.s32.totalorder %s241, %s242
    %p256 = scmp.eq.s32.totalorder %s71, 3
    %p257 = por %p255, %p256
    %p259 = scmp.ne.s32.totalorder %s242, %s258
    %p260 = scmp.eq.s32.totalorder %s71, 0
    %p261 = por %p259, %p260
    %s262 = ssub.s32 %s73, %s80
    %p263 = scmp.eq.s32.totalorder %s262, 0
    %s265 = sadd.s32 %s264, 1
    %s266 = scalar_select %p263, %s264, %s265
    %p269 = pneg %p263
    %p270 = scmp.eq.s32.totalorder %s65, 3
    %p271 = por %p269, %p270
    %p272 = scmp.ne.s32.totalorder %s264, %s267
    %p273 = scmp.eq.s32.totalorder %s65, 0
    %p274 = por %p272, %p273
    %p275 = scmp.ne.s32.totalorder %s264, %s267
    %p276 = scmp.eq.s32.totalorder %s70, 3
    %p277 = por %p275, %p276
    %p278 = scmp.ne.s32.totalorder %s267, %s268
    %p279 = scmp.eq.s32.totalorder %s70, 0
    %p280 = por %p278, %p279
    %p281 = scmp.ne.s32.totalorder %s267, %s268
    %p282 = scmp.eq.s32.totalorder %s71, 3
    %p283 = por %p281, %p282
    %p285 = scmp.ne.s32.totalorder %s268, %s284
    %p286 = scmp.eq.s32.totalorder %s71, 0
    %p287 = por %p285, %p286
    %s288 = ssub.s32 %s73, %s80
    %p289 = scmp.eq.s32.totalorder %s288, 0
    %s291 = sadd.s32 %s290, 1
    %s292 = scalar_select %p289, %s290, %s291
    %p295 = pneg %p289
    %p296 = scmp.eq.s32.totalorder %s65, 3
    %p297 = por %p295, %p296
    %p298 = scmp.ne.s32.totalorder %s290, %s293
    %p299 = scmp.eq.s32.totalorder %s65, 0
    %p300 = por %p298, %p299
    %p301 = scmp.ne.s32.totalorder %s290, %s293
    %p302 = scmp.eq.s32.totalorder %s70, 3
    %p303 = por %p301, %p302
    %p304 = scmp.ne.s32.totalorder %s293, %s294
    %p305 = scmp.eq.s32.totalorder %s70, 0
    %p306 = por %p304, %p305
    %p307 = scmp.ne.s32.totalorder %s293, %s294
    %p308 = scmp.eq.s32.totalorder %s71, 3
    %p309 = por %p307, %p308
    %p311 = scmp.ne.s32.totalorder %s294, %s310
    %p312 = scmp.eq.s32.totalorder %s71, 0
    %p313 = por %p311, %p312
    %s314 = ssub.s32 %s73, %s80
    %p315 = scmp.eq.s32.totalorder %s314, 0
    %s317 = sadd.s32 %s316, 1
    %s318 = scalar_select %p315, %s316, %s317
    %p321 = pneg %p315
    %p322 = scmp.eq.s32.totalorder %s65, 3
    %p323 = por %p321, %p322
    %p324 = scmp.ne.s32.totalorder %s316, %s319
    %p325 = scmp.eq.s32.totalorder %s65, 0
    %p326 = por %p324, %p325
    %p327 = scmp.ne.s32.totalorder %s316, %s319
    %p328 = scmp.eq.s32.totalorder %s70, 3
    %p329 = por %p327, %p328
    %p330 = scmp.ne.s32.totalorder %s319, %s320
    %p331 = scmp.eq.s32.totalorder %s70, 0
    %p332 = por %p330, %p331
    %p333 = scmp.ne.s32.totalorder %s319, %s320
    %p334 = scmp.eq.s32.totalorder %s71, 3
    %p335 = por %p333, %p334
    %p337 = scmp.ne.s32.totalorder %s320, %s336
    %p338 = scmp.eq.s32.totalorder %s71, 0
    %p339 = por %p337, %p338
    %s340 = ssub.s32 %s73, %s80
    %p341 = scmp.eq.s32.totalorder %s340, 0
    %s343 = sadd.s32 %s342, 1
    %s344 = scalar_select %p341, %s342, %s343
    %p347 = pneg %p341
    %p348 = scmp.eq.s32.totalorder %s65, 3
    %p349 = por %p347, %p348
    %p350 = scmp.ne.s32.totalorder %s342, %s345
    %p351 = scmp.eq.s32.totalorder %s65, 0
    %p352 = por %p350, %p351
    %p353 = scmp.ne.s32.totalorder %s342, %s345
    %p354 = scmp.eq.s32.totalorder %s70, 3
    %p355 = por %p353, %p354
    %p356 = scmp.ne.s32.totalorder %s345, %s346
    %p357 = scmp.eq.s32.totalorder %s70, 0
    %p358 = por %p356, %p357
    %p359 = scmp.ne.s32.totalorder %s345, %s346
    %p360 = scmp.eq.s32.totalorder %s71, 3
    %p361 = por %p359, %p360
    %p363 = scmp.ne.s32.totalorder %s346, %s362
    %p364 = scmp.eq.s32.totalorder %s71, 0
    %p365 = por %p363, %p364
    %s366 = ssub.s32 %s73, %s80
    %p367 = scmp.eq.s32.totalorder %s366, 0
    %s369 = sadd.s32 %s368, 1
    %s370 = scalar_select %p367, %s368, %s369
    %p373 = pneg %p367
    %p374 = scmp.eq.s32.totalorder %s65, 3
    %p375 = por %p373, %p374
    %p376 = scmp.ne.s32.totalorder %s368, %s371
    %p377 = scmp.eq.s32.totalorder %s65, 0
    %p378 = por %p376, %p377
    %p379 = scmp.ne.s32.totalorder %s368, %s371
    %p380 = scmp.eq.s32.totalorder %s70, 3
    %p381 = por %p379, %p380
    %p382 = scmp.ne.s32.totalorder %s371, %s372
    %p383 = scmp.eq.s32.totalorder %s70, 0
    %p384 = por %p382, %p383
    %p385 = scmp.ne.s32.totalorder %s371, %s372
    %p386 = scmp.eq.s32.totalorder %s71, 3
    %p387 = por %p385, %p386
    %p389 = scmp.ne.s32.totalorder %s372, %s388
    %p390 = scmp.eq.s32.totalorder %s71, 0
    %p391 = por %p389, %p390
    %s392 = ssub.s32 %s73, %s80
    %p393 = scmp.eq.s32.totalorder %s392, 0
    %s395 = sadd.s32 %s394, 1
    %s396 = scalar_select %p393, %s394, %s395
    %p399 = pneg %p393
    %p400 = scmp.eq.s32.totalorder %s65, 3
    %p401 = por %p399, %p400
    %p402 = scmp.ne.s32.totalorder %s394, %s397
    %p403 = scmp.eq.s32.totalorder %s65, 0
    %p404 = por %p402, %p403
    %p405 = scmp.ne.s32.totalorder %s394, %s397
    %p406 = scmp.eq.s32.totalorder %s70, 3
    %p407 = por %p405, %p406
    %p408 = scmp.ne.s32.totalorder %s397, %s398
    %p409 = scmp.eq.s32.totalorder %s70, 0
    %p410 = por %p408, %p409
    %p411 = scmp.ne.s32.totalorder %s397, %s398
    %p412 = scmp.eq.s32.totalorder %s71, 3
    %p413 = por %p411, %p412
    %p415 = scmp.ne.s32.totalorder %s398, %s414
    %p416 = scmp.eq.s32.totalorder %s71, 0
    %p417 = por %p415, %p416
    %s418 = ssub.s32 %s73, %s80
    %p419 = scmp.eq.s32.totalorder %s418, 0
    %s421 = sadd.s32 %s420, 1
    %s422 = scalar_select %p419, %s420, %s421
    %p425 = pneg %p419
    %p426 = scmp.eq.s32.totalorder %s65, 3
    %p427 = por %p425, %p426
    %p428 = scmp.ne.s32.totalorder %s420, %s423
    %p429 = scmp.eq.s32.totalorder %s65, 0
    %p430 = por %p428, %p429
    %p431 = scmp.ne.s32.totalorder %s420, %s423
    %p432 = scmp.eq.s32.totalorder %s70, 3
    %p433 = por %p431, %p432
    %p434 = scmp.ne.s32.totalorder %s423, %s424
    %p435 = scmp.eq.s32.totalorder %s70, 0
    %p436 = por %p434, %p435
    %p437 = scmp.ne.s32.totalorder %s423, %s424
    %p438 = scmp.eq.s32.totalorder %s71, 3
    %p439 = por %p437, %p438
    %p441 = scmp.ne.s32.totalorder %s424, %s440
    %p442 = scmp.eq.s32.totalorder %s71, 0
    %p443 = por %p441, %p442
    %s444 = ssub.s32 %s73, %s80
    %p445 = scmp.eq.s32.totalorder %s444, 0
    %s447 = sadd.s32 %s446, 1
    %s448 = scalar_select %p445, %s446, %s447
    %p451 = pneg %p445
    %p452 = scmp.eq.s32.totalorder %s65, 3
    %p453 = por %p451, %p452
    %p454 = scmp.ne.s32.totalorder %s446, %s449
    %p455 = scmp.eq.s32.totalorder %s65, 0
    %p456 = por %p454, %p455
    %p457 = scmp.ne.s32.totalorder %s446, %s449
    %p458 = scmp.eq.s32.totalorder %s70, 3
    %p459 = por %p457, %p458
    %p460 = scmp.ne.s32.totalorder %s449, %s450
    %p461 = scmp.eq.s32.totalorder %s70, 0
    %p462 = por %p460, %p461
    %p463 = scmp.ne.s32.totalorder %s449, %s450
    %p464 = scmp.eq.s32.totalorder %s71, 3
    %p465 = por %p463, %p464
    %p467 = scmp.ne.s32.totalorder %s450, %s466
    %p468 = scmp.eq.s32.totalorder %s71, 0
    %p469 = por %p467, %p468
    %s470 = ssub.s32 %s73, %s80
    %p471 = scmp.eq.s32.totalorder %s470, 0
    %s473 = sadd.s32 %s472, 1
    %s474 = scalar_select %p471, %s472, %s473
    %p477 = pneg %p471
    %p478 = scmp.eq.s32.totalorder %s65, 3
    %p479 = por %p477, %p478
    %p480 = scmp.ne.s32.totalorder %s472, %s475
    %p481 = scmp.eq.s32.totalorder %s65, 0
    %p482 = por %p480, %p481
    %p483 = scmp.ne.s32.totalorder %s472, %s475
    %p484 = scmp.eq.s32.totalorder %s70, 3
    %p485 = por %p483, %p484
    %p486 = scmp.ne.s32.totalorder %s475, %s476
    %p487 = scmp.eq.s32.totalorder %s70, 0
    %p488 = por %p486, %p487
    %p489 = scmp.ne.s32.totalorder %s475, %s476
    %p490 = scmp.eq.s32.totalorder %s71, 3
    %p491 = por %p489, %p490
    %p493 = scmp.ne.s32.totalorder %s476, %s492
    %p494 = scmp.eq.s32.totalorder %s71, 0
    %p495 = por %p493, %p494
    %s496 = ssub.s32 %s73, %s80
    %p497 = scmp.eq.s32.totalorder %s496, 0
    %s499 = sadd.s32 %s498, 1
    %s500 = scalar_select %p497, %s498, %s499
    %p503 = pneg %p497
    %p504 = scmp.eq.s32.totalorder %s65, 3
    %p505 = por %p503, %p504
    %p506 = scmp.ne.s32.totalorder %s498, %s501
    %p507 = scmp.eq.s32.totalorder %s65, 0
    %p508 = por %p506, %p507
    %p509 = scmp.ne.s32.totalorder %s498, %s501
    %p510 = scmp.eq.s32.totalorder %s70, 3
    %p511 = por %p509, %p510
    %p512 = scmp.ne.s32.totalorder %s501, %s502
    %p513 = scmp.eq.s32.totalorder %s70, 0
    %p514 = por %p512, %p513
    %p515 = scmp.ne.s32.totalorder %s501, %s502
    %p516 = scmp.eq.s32.totalorder %s71, 3
    %p517 = por %p515, %p516
    %p519 = scmp.ne.s32.totalorder %s502, %s518
    %p520 = scmp.eq.s32.totalorder %s71, 0
    %p521 = por %p519, %p520
    %s522 = ssub.s32 %s73, %s80
    %p523 = scmp.eq.s32.totalorder %s522, 0
    %s525 = sadd.s32 %s524, 1
    %s526 = scalar_select %p523, %s524, %s525
    %p529 = pneg %p523
    %p530 = scmp.eq.s32.totalorder %s65, 3
    %p531 = por %p529, %p530
    %p532 = scmp.ne.s32.totalorder %s524, %s527
    %p533 = scmp.eq.s32.totalorder %s65, 0
    %p534 = por %p532, %p533
    %p535 = scmp.ne.s32.totalorder %s524, %s527
    %p536 = scmp.eq.s32.totalorder %s70, 3
    %p537 = por %p535, %p536
    %p538 = scmp.ne.s32.totalorder %s527, %s528
    %p539 = scmp.eq.s32.totalorder %s70, 0
    %p540 = por %p538, %p539
    %p541 = scmp.ne.s32.totalorder %s527, %s528
    %p542 = scmp.eq.s32.totalorder %s71, 3
    %p543 = por %p541, %p542
    %p545 = scmp.ne.s32.totalorder %s528, %s544
    %p546 = scmp.eq.s32.totalorder %s71, 0
    %p547 = por %p545, %p546
    %s548 = ssub.s32 %s73, %s80
    %p549 = scmp.eq.s32.totalorder %s548, 0
    %s551 = sadd.s32 %s550, 1
    %s552 = scalar_select %p549, %s550, %s551
    %p555 = pneg %p549
    %p556 = scmp.eq.s32.totalorder %s65, 3
    %p557 = por %p555, %p556
    %p558 = scmp.ne.s32.totalorder %s550, %s553
    %p559 = scmp.eq.s32.totalorder %s65, 0
    %p560 = por %p558, %p559
    %p561 = scmp.ne.s32.totalorder %s550, %s553
    %p562 = scmp.eq.s32.totalorder %s70, 3
    %p563 = por %p561, %p562
    %p564 = scmp.ne.s32.totalorder %s553, %s554
    %p565 = scmp.eq.s32.totalorder %s70, 0
    %p566 = por %p564, %p565
    %p567 = scmp.ne.s32.totalorder %s553, %s554
    %p568 = scmp.eq.s32.totalorder %s71, 3
    %p569 = por %p567, %p568
    %p571 = scmp.ne.s32.totalorder %s554, %s570
    %p572 = scmp.eq.s32.totalorder %s71, 0
    %p573 = por %p571, %p572
    %s574 = ssub.s32 %s73, %s80
    %p575 = scmp.eq.s32.totalorder %s574, 0
    %s577 = sadd.s32 %s576, 1
    %s578 = scalar_select %p575, %s576, %s577
    %p581 = pneg %p575
    %p582 = scmp.eq.s32.totalorder %s65, 3
    %p583 = por %p581, %p582
    %p584 = scmp.ne.s32.totalorder %s576, %s579
    %p585 = scmp.eq.s32.totalorder %s65, 0
    %p586 = por %p584, %p585
    %p587 = scmp.ne.s32.totalorder %s576, %s579
    %p588 = scmp.eq.s32.totalorder %s70, 3
    %p589 = por %p587, %p588
    %p590 = scmp.ne.s32.totalorder %s579, %s580
    %p591 = scmp.eq.s32.totalorder %s70, 0
    %p592 = por %p590, %p591
    %p593 = scmp.ne.s32.totalorder %s579, %s580
    %p594 = scmp.eq.s32.totalorder %s71, 3
    %p595 = por %p593, %p594
    %p597 = scmp.ne.s32.totalorder %s580, %s596
    %p598 = scmp.eq.s32.totalorder %s71, 0
    %p599 = por %p597, %p598
    %s600 = ssub.s32 %s73, %s80
    %p601 = scmp.eq.s32.totalorder %s600, 0
    %s603 = sadd.s32 %s602, 1
    %s604 = scalar_select %p601, %s602, %s603
    %p607 = pneg %p601
    %p608 = scmp.eq.s32.totalorder %s65, 3
    %p609 = por %p607, %p608
    %p610 = scmp.ne.s32.totalorder %s602, %s605
    %p611 = scmp.eq.s32.totalorder %s65, 0
    %p612 = por %p610, %p611
    %p613 = scmp.ne.s32.totalorder %s602, %s605
    %p614 = scmp.eq.s32.totalorder %s70, 3
    %p615 = por %p613, %p614
    %p616 = scmp.ne.s32.totalorder %s605, %s606
    %p617 = scmp.eq.s32.totalorder %s70, 0
    %p618 = por %p616, %p617
    %p619 = scmp.ne.s32.totalorder %s605, %s606
    %p620 = scmp.eq.s32.totalorder %s71, 3
    %p621 = por %p619, %p620
    %p623 = scmp.ne.s32.totalorder %s606, %s622
    %p624 = scmp.eq.s32.totalorder %s71, 0
    %p625 = por %p623, %p624
    %s626 = ssub.s32 %s73, %s80
    %p627 = scmp.eq.s32.totalorder %s626, 0
    %s629 = sadd.s32 %s628, 1
    %s630 = scalar_select %p627, %s628, %s629
    %p633 = pneg %p627
    %p634 = scmp.eq.s32.totalorder %s65, 3
    %p635 = por %p633, %p634
    %p636 = scmp.ne.s32.totalorder %s628, %s631
    %p637 = scmp.eq.s32.totalorder %s65, 0
    %p638 = por %p636, %p637
    %p639 = scmp.ne.s32.totalorder %s628, %s631
    %p640 = scmp.eq.s32.totalorder %s70, 3
    %p641 = por %p639, %p640
    %p642 = scmp.ne.s32.totalorder %s631, %s632
    %p643 = scmp.eq.s32.totalorder %s70, 0
    %p644 = por %p642, %p643
    %p645 = scmp.ne.s32.totalorder %s631, %s632
    %p646 = scmp.eq.s32.totalorder %s71, 3
    %p647 = por %p645, %p646
    %p649 = scmp.ne.s32.totalorder %s632, %s648
    %p650 = scmp.eq.s32.totalorder %s71, 0
    %p651 = por %p649, %p650
    %s652 = ssub.s32 %s73, %s80
    %p653 = scmp.eq.s32.totalorder %s652, 0
    %s655 = sadd.s32 %s654, 1
    %s656 = scalar_select %p653, %s654, %s655
    %p659 = pneg %p653
    %p660 = scmp.eq.s32.totalorder %s65, 3
    %p661 = por %p659, %p660
    %p662 = scmp.ne.s32.totalorder %s654, %s657
    %p663 = scmp.eq.s32.totalorder %s65, 0
    %p664 = por %p662, %p663
    %p665 = scmp.ne.s32.totalorder %s654, %s657
    %p666 = scmp.eq.s32.totalorder %s70, 3
    %p667 = por %p665, %p666
    %p668 = scmp.ne.s32.totalorder %s657, %s658
    %p669 = scmp.eq.s32.totalorder %s70, 0
    %p670 = por %p668, %p669
    %p671 = scmp.ne.s32.totalorder %s657, %s658
    %p672 = scmp.eq.s32.totalorder %s71, 3
    %p673 = por %p671, %p672
    %p675 = scmp.ne.s32.totalorder %s658, %s674
    %p676 = scmp.eq.s32.totalorder %s71, 0
    %p677 = por %p675, %p676
    %s678 = ssub.s32 %s73, %s80
    %p679 = scmp.eq.s32.totalorder %s678, 0
    %s681 = sadd.s32 %s680, 1
    %s682 = scalar_select %p679, %s680, %s681
    %p685 = pneg %p679
    %p686 = scmp.eq.s32.totalorder %s65, 3
    %p687 = por %p685, %p686
    %p688 = scmp.ne.s32.totalorder %s680, %s683
    %p689 = scmp.eq.s32.totalorder %s65, 0
    %p690 = por %p688, %p689
    %p691 = scmp.ne.s32.totalorder %s680, %s683
    %p692 = scmp.eq.s32.totalorder %s70, 3
    %p693 = por %p691, %p692
    %p694 = scmp.ne.s32.totalorder %s683, %s684
    %p695 = scmp.eq.s32.totalorder %s70, 0
    %p696 = por %p694, %p695
    %p697 = scmp.ne.s32.totalorder %s683, %s684
    %p698 = scmp.eq.s32.totalorder %s71, 3
    %p699 = por %p697, %p698
    %p701 = scmp.ne.s32.totalorder %s684, %s700
    %p702 = scmp.eq.s32.totalorder %s71, 0
    %p703 = por %p701, %p702
    %s704 = ssub.s32 %s73, %s80
    %p705 = scmp.eq.s32.totalorder %s704, 0
    %s707 = sadd.s32 %s706, 1
    %s708 = scalar_select %p705, %s706, %s707
    %p711 = pneg %p705
    %p712 = scmp.eq.s32.totalorder %s65, 3
    %p713 = por %p711, %p712
    %p714 = scmp.ne.s32.totalorder %s706, %s709
    %p715 = scmp.eq.s32.totalorder %s65, 0
    %p716 = por %p714, %p715
    %p717 = scmp.ne.s32.totalorder %s706, %s709
    %p718 = scmp.eq.s32.totalorder %s70, 3
    %p719 = por %p717, %p718
    %p720 = scmp.ne.s32.totalorder %s709, %s710
    %p721 = scmp.eq.s32.totalorder %s70, 0
    %p722 = por %p720, %p721
    %p723 = scmp.ne.s32.totalorder %s709, %s710
    %p724 = scmp.eq.s32.totalorder %s71, 3
    %p725 = por %p723, %p724
    %p727 = scmp.ne.s32.totalorder %s710, %s726
    %p728 = scmp.eq.s32.totalorder %s71, 0
    %p729 = por %p727, %p728
    %s731 = sadd.s32 %s730, 1
    %p734 = scmp.eq.s32.totalorder %s65, 3
    %p735 = scmp.ne.s32.totalorder %s730, %s732
    %p736 = scmp.eq.s32.totalorder %s65, 0
    %p737 = por %p735, %p736
    %p738 = scmp.ne.s32.totalorder %s730, %s732
    %p739 = scmp.eq.s32.totalorder %s70, 3
    %p740 = por %p738, %p739
    %p741 = scmp.ne.s32.totalorder %s732, %s733
    %p742 = scmp.eq.s32.totalorder %s70, 0
    %p743 = por %p741, %p742
    %p744 = scmp.ne.s32.totalorder %s732, %s733
    %p745 = scmp.eq.s32.totalorder %s71, 3
    %p746 = por %p744, %p745
    %p748 = scmp.ne.s32.totalorder %s733, %s747
    %p749 = scmp.eq.s32.totalorder %s71, 0
    %p750 = por %p748, %p749
    %s752 = sadd.s32 %s751, 1
    %p755 = scmp.eq.s32.totalorder %s65, 3
    %p756 = scmp.ne.s32.totalorder %s751, %s753
    %p757 = scmp.eq.s32.totalorder %s65, 0
    %p758 = por %p756, %p757
    %p759 = scmp.ne.s32.totalorder %s751, %s753
    %p760 = scmp.eq.s32.totalorder %s70, 3
    %p761 = por %p759, %p760
    %p762 = scmp.ne.s32.totalorder %s753, %s754
    %p763 = scmp.eq.s32.totalorder %s70, 0
    %p764 = por %p762, %p763
    %p765 = scmp.ne.s32.totalorder %s753, %s754
    %p766 = scmp.eq.s32.totalorder %s71, 3
    %p767 = por %p765, %p766
    %p769 = scmp.ne.s32.totalorder %s754, %s768
    %p770 = scmp.eq.s32.totalorder %s71, 0
    %p771 = por %p769, %p770
    %s773 = sadd.s32 %s772, 1
    %p776 = scmp.eq.s32.totalorder %s65, 3
    %p777 = scmp.ne.s32.totalorder %s772, %s774
    %p778 = scmp.eq.s32.totalorder %s65, 0
    %p779 = por %p777, %p778
    %p780 = scmp.ne.s32.totalorder %s772, %s774
    %p781 = scmp.eq.s32.totalorder %s70, 3
    %p782 = por %p780, %p781
    %p783 = scmp.ne.s32.totalorder %s774, %s775
    %p784 = scmp.eq.s32.totalorder %s70, 0
    %p785 = por %p783, %p784
    %p786 = scmp.ne.s32.totalorder %s774, %s775
    %p787 = scmp.eq.s32.totalorder %s71, 3
    %p788 = por %p786, %p787
    %p790 = scmp.ne.s32.totalorder %s775, %s789
    %p791 = scmp.eq.s32.totalorder %s71, 0
    %p792 = por %p790, %p791
    %s794 = sadd.s32 %s793, 1
    %p797 = scmp.eq.s32.totalorder %s65, 3
    %p798 = scmp.ne.s32.totalorder %s793, %s795
    %p799 = scmp.eq.s32.totalorder %s65, 0
    %p800 = por %p798, %p799
    %p801 = scmp.ne.s32.totalorder %s793, %s795
    %p802 = scmp.eq.s32.totalorder %s70, 3
    %p803 = por %p801, %p802
    %p804 = scmp.ne.s32.totalorder %s795, %s796
    %p805 = scmp.eq.s32.totalorder %s70, 0
    %p806 = por %p804, %p805
    %p807 = scmp.ne.s32.totalorder %s795, %s796
    %p808 = scmp.eq.s32.totalorder %s71, 3
    %p809 = por %p807, %p808
    %p811 = scmp.ne.s32.totalorder %s796, %s810
    %p812 = scmp.eq.s32.totalorder %s71, 0
    %p813 = por %p811, %p812
    %s814 = ssub.s32 %s72, %s84
    %p815 = scmp.eq.s32.totalorder %s814, 0
    %s817 = sadd.s32 %s816, 1
    %s818 = scalar_select %p815, %s816, %s817
    %p821 = pneg %p815
    %p822 = scmp.eq.s32.totalorder %s65, 3
    %p823 = por %p821, %p822
    %p824 = scmp.ne.s32.totalorder %s816, %s819
    %p825 = scmp.eq.s32.totalorder %s65, 0
    %p826 = por %p824, %p825
    %p827 = scmp.ne.s32.totalorder %s816, %s819
    %p828 = scmp.eq.s32.totalorder %s70, 3
    %p829 = por %p827, %p828
    %p830 = scmp.ne.s32.totalorder %s819, %s820
    %p831 = scmp.eq.s32.totalorder %s70, 0
    %p832 = por %p830, %p831
    %p833 = scmp.ne.s32.totalorder %s819, %s820
    %p834 = scmp.eq.s32.totalorder %s71, 3
    %p835 = por %p833, %p834
    %p837 = scmp.ne.s32.totalorder %s820, %s836
    %p838 = scmp.eq.s32.totalorder %s71, 0
    %p839 = por %p837, %p838
    %p840 = scmp.le.s32.totalorder 1, %s65
    %p841 = scmp.lt.s32.totalorder %s65, 5
    %p842 = pnand %p840, %p841
    %p843 = pneg %p842
    // Predicated region
    $region9: #{transformer_forward.3} parent=5 // pred_check
      _
    $region10: #{transformer_forward.3} parent=5 // pred_check_branch
      %845 = sbr.rel (%p842) target = $region12
    $region11: #{transformer_forward.3} parent=5 // pred_region
      %s846 = ssub.s32 %s65, 1
      // Predicated region
      $region13: #{transformer_forward.3} parent=11 // pred_check
        %p847 = pneg %p150
      $region14: #{transformer_forward.3} parent=11 // pred_check_branch
        %849 = sbr.rel (%p847) target = $region16
      $region15: #{transformer_forward.3} parent=11 // pred_region
        _
      $region16: #{transformer_forward.3} parent=11 // pred_fallthru
        _
      // Predicated region
      $region17: #{transformer_forward.3} parent=11 // pred_check
        %p850 = pneg %p743
      $region18: #{transformer_forward.3} parent=11 // pred_check_branch
        %852 = sbr.rel (%p850) target = $region20
      $region19: #{transformer_forward.3} parent=11 // pred_region
        _
      $region20: #{transformer_forward.3} parent=11 // pred_fallthru
        _
      // Predicated region
      $region21: #{transformer_forward.3} parent=11 // pred_check
        %p853 = pneg %p764
      $region22: #{transformer_forward.3} parent=11 // pred_check_branch
        %855 = sbr.rel (%p853) target = $region24
      $region23: #{transformer_forward.3} parent=11 // pred_region
        _
      $region24: #{transformer_forward.3} parent=11 // pred_fallthru
        _
      // Predicated region
      $region25: #{transformer_forward.3} parent=11 // pred_check
        %p856 = pneg %p785
      $region26: #{transformer_forward.3} parent=11 // pred_check_branch
        %858 = sbr.rel (%p856) target = $region28
      $region27: #{transformer_forward.3} parent=11 // pred_region
        _
      $region28: #{transformer_forward.3} parent=11 // pred_fallthru
        _
      // Predicated region
      $region29: #{transformer_forward.3} parent=11 // pred_check
        %p859 = pneg %p806
      $region30: #{transformer_forward.3} parent=11 // pred_check_branch
        %861 = sbr.rel (%p859) target = $region32
      $region31: #{transformer_forward.3} parent=11 // pred_region
        _
      $region32: #{transformer_forward.3} parent=11 // pred_fallthru
        _
    $region12: #{transformer_forward.3} parent=5 // pred_fallthru
      _
    %p862 = scmp.lt.s32.totalorder %s65, 4
    // Predicated region
    $region33: #{transformer_forward.3} parent=5 // pred_check
      %p863 = pneg %p862
    $region34: #{transformer_forward.3} parent=5 // pred_check_branch
      %865 = sbr.rel (%p863) target = $region36
    $region35: #{transformer_forward.3} parent=5 // pred_region
      // Predicated region
      $region37: #{transformer_forward.3} parent=35 // pred_check
        %p866 = pneg %p97
      $region38: #{transformer_forward.3} parent=35 // pred_check_branch
        %868 = sbr.rel (%p866) target = $region40
      $region39: #{transformer_forward.3} parent=35 // pred_region
        %p869 = scmp.lt.s32.totalorder %s72, 1
        %s870 = scalar_select %p869, %s72, 1
        %s871 = smul.addr %s870, 8
        %s872 = scalar_lea.vmem %s1, %s871
      $region40: #{transformer_forward.3} parent=35 // pred_fallthru
        _
      // Predicated region
      $region41: #{transformer_forward.3} parent=35 // pred_check
        %p873 = pneg %p123
      $region42: #{transformer_forward.3} parent=35 // pred_check_branch
        %875 = sbr.rel (%p873) target = $region44
      $region43: #{transformer_forward.3} parent=35 // pred_region
        %p876 = scmp.lt.s32.totalorder %s72, 1
        %s877 = scalar_select %p876, %s72, 1
        %s878 = smul.addr %s877, 8
        %s879 = scalar_lea.vmem %s3, %s878
      $region44: #{transformer_forward.3} parent=35 // pred_fallthru
        _
      // Predicated region
      $region45: #{transformer_forward.3} parent=35 // pred_check
        %p880 = pneg %p170
      $region46: #{transformer_forward.3} parent=35 // pred_check_branch
        %882 = sbr.rel (%p880) target = $region48
      $region47: #{transformer_forward.3} parent=35 // pred_region
        %p883 = scmp.lt.s32.totalorder %s73, 1
        %s884 = scalar_select %p883, %s73, 1
        %s885 = smul.addr %s884, 4
        %s886 = smul.addr %s885, 4
        %s887 = scalar_lea.vmem %s7, %s886
      $region48: #{transformer_forward.3} parent=35 // pred_fallthru
        _
      // Predicated region
      $region49: #{transformer_forward.3} parent=35 // pred_check
        %p888 = pneg %p196
      $region50: #{transformer_forward.3} parent=35 // pred_check_branch
        %890 = sbr.rel (%p888) target = $region52
      $region51: #{transformer_forward.3} parent=35 // pred_region
        %p891 = scmp.lt.s32.totalorder %s73, 1
        %s892 = scalar_select %p891, %s73, 1
        %s893 = scalar_lea.vmem %s9, %s892
      $region52: #{transformer_forward.3} parent=35 // pred_fallthru
        _
      // Predicated region
      $region53: #{transformer_forward.3} parent=35 // pred_check
        %p894 = pneg %p222
      $region54: #{transformer_forward.3} parent=35 // pred_check_branch
        %896 = sbr.rel (%p894) target = $region56
      $region55: #{transformer_forward.3} parent=35 // pred_region
        %p897 = scmp.lt.s32.totalorder %s73, 1
        %s898 = scalar_select %p897, %s73, 1
        %s899 = smul.addr %s898, 4
        %s900 = smul.addr %s899, 4
        %s901 = scalar_lea.vmem %s11, %s900
      $region56: #{transformer_forward.3} parent=35 // pred_fallthru
        _
      // Predicated region
      $region57: #{transformer_forward.3} parent=35 // pred_check
        %p902 = pneg %p248
      $region58: #{transformer_forward.3} parent=35 // pred_check_branch
        %904 = sbr.rel (%p902) target = $region60
      $region59: #{transformer_forward.3} parent=35 // pred_region
        %p905 = scmp.lt.s32.totalorder %s73, 1
        %s906 = scalar_select %p905, %s73, 1
        %s907 = scalar_lea.vmem %s13, %s906
      $region60: #{transformer_forward.3} parent=35 // pred_fallthru
        _
      // Predicated region
      $region61: #{transformer_forward.3} parent=35 // pred_check
        %p908 = pneg %p274
      $region62: #{transformer_forward.3} parent=35 // pred_check_branch
        %910 = sbr.rel (%p908) target = $region64
      $region63: #{transformer_forward.3} parent=35 // pred_region
        %p911 = scmp.lt.s32.totalorder %s73, 1
        %s912 = scalar_select %p911, %s73, 1
        %s913 = smul.addr %s912, 4
        %s914 = smul.addr %s913, 4
        %s915 = scalar_lea.vmem %s15, %s914
      $region64: #{transformer_forward.3} parent=35 // pred_fallthru
        _
      // Predicated region
      $region65: #{transformer_forward.3} parent=35 // pred_check
        %p916 = pneg %p300
      $region66: #{transformer_forward.3} parent=35 // pred_check_branch
        %918 = sbr.rel (%p916) target = $region68
      $region67: #{transformer_forward.3} parent=35 // pred_region
        %p919 = scmp.lt.s32.totalorder %s73, 1
        %s920 = scalar_select %p919, %s73, 1
        %s921 = scalar_lea.vmem %s17, %s920
      $region68: #{transformer_forward.3} parent=35 // pred_fallthru
        _
      // Predicated region
      $region69: #{transformer_forward.3} parent=35 // pred_check
        %p922 = pneg %p326
      $region70: #{transformer_forward.3} parent=35 // pred_check_branch
        %924 = sbr.rel (%p922) target = $region72
      $region71: #{transformer_forward.3} parent=35 // pred_region
        %p925 = scmp.lt.s32.totalorder %s73, 1
        %s926 = scalar_select %p925, %s73, 1
        %s927 = scalar_lea.vmem %s19, %s926
      $region72: #{transformer_forward.3} parent=35 // pred_fallthru
        _
      // Predicated region
      $region73: #{transformer_forward.3} parent=35 // pred_check
        %p928 = pneg %p352
      $region74: #{transformer_forward.3} parent=35 // pred_check_branch
        %930 = sbr.rel (%p928) target = $region76
      $region75: #{transformer_forward.3} parent=35 // pred_region
        %p931 = scmp.lt.s32.totalorder %s73, 1
        %s932 = scalar_select %p931, %s73, 1
        %s933 = scalar_lea.vmem %s21, %s932
      $region76: #{transformer_forward.3} parent=35 // pred_fallthru
        _
      // Predicated region
      $region77: #{transformer_forward.3} parent=35 // pred_check
        %p934 = pneg %p378
      $region78: #{transformer_forward.3} parent=35 // pred_check_branch
        %936 = sbr.rel (%p934) target = $region80
      $region79: #{transformer_forward.3} parent=35 // pred_region
        %p937 = scmp.lt.s32.totalorder %s73, 1
        %s938 = scalar_select %p937, %s73, 1
        %s939 = smul.addr %s938, 4
        %s940 = smul.addr %s939, 4
        %s941 = scalar_lea.vmem %s23, %s940
      $region80: #{transformer_forward.3} parent=35 // pred_fallthru
        _
      // Predicated region
      $region81: #{transformer_forward.3} parent=35 // pred_check
        %p942 = pneg %p404
      $region82: #{transformer_forward.3} parent=35 // pred_check_branch
        %944 = sbr.rel (%p942) target = $region84
      $region83: #{transformer_forward.3} parent=35 // pred_region
        %p945 = scmp.lt.s32.totalorder %s73, 1
        %s946 = scalar_select %p945, %s73, 1
        %s947 = scalar_lea.vmem %s25, %s946
      $region84: #{transformer_forward.3} parent=35 // pred_fallthru
        _
      // Predicated region
      $region85: #{transformer_forward.3} parent=35 // pred_check
        %p948 = pneg %p430
      $region86: #{transformer_forward.3} parent=35 // pred_check_branch
        %950 = sbr.rel (%p948) target = $region88
      $region87: #{transformer_forward.3} parent=35 // pred_region
        %p951 = scmp.lt.s32.totalorder %s73, 1
        %s952 = scalar_select %p951, %s73, 1
        %s953 = smul.addr %s952, 4
        %s954 = smul.addr %s953, 4
        %s955 = scalar_lea.vmem %s27, %s954
      $region88: #{transformer_forward.3} parent=35 // pred_fallthru
        _
      // Predicated region
      $region89: #{transformer_forward.3} parent=35 // pred_check
        %p956 = pneg %p456
      $region90: #{transformer_forward.3} parent=35 // pred_check_branch
        %958 = sbr.rel (%p956) target = $region92
      $region91: #{transformer_forward.3} parent=35 // pred_region
        %p959 = scmp.lt.s32.totalorder %s73, 1
        %s960 = scalar_select %p959, %s73, 1
        %s961 = scalar_lea.vmem %s29, %s960
      $region92: #{transformer_forward.3} parent=35 // pred_fallthru
        _
      // Predicated region
      $region93: #{transformer_forward.3} parent=35 // pred_check
        %p962 = pneg %p482
      $region94: #{transformer_forward.3} parent=35 // pred_check_branch
        %964 = sbr.rel (%p962) target = $region96
      $region95: #{transformer_forward.3} parent=35 // pred_region
        %p965 = scmp.lt.s32.totalorder %s73, 1
        %s966 = scalar_select %p965, %s73, 1
        %s967 = smul.addr %s966, 4
        %s968 = smul.addr %s967, 4
        %s969 = scalar_lea.vmem %s31, %s968
      $region96: #{transformer_forward.3} parent=35 // pred_fallthru
        _
      // Predicated region
      $region97: #{transformer_forward.3} parent=35 // pred_check
        %p970 = pneg %p508
      $region98: #{transformer_forward.3} parent=35 // pred_check_branch
        %972 = sbr.rel (%p970) target = $region100
      $region99: #{transformer_forward.3} parent=35 // pred_region
        %p973 = scmp.lt.s32.totalorder %s73, 1
        %s974 = scalar_select %p973, %s73, 1
        %s975 = scalar_lea.vmem %s33, %s974
      $region100: #{transformer_forward.3} parent=35 // pred_fallthru
        _
      // Predicated region
      $region101: #{transformer_forward.3} parent=35 // pred_check
        %p976 = pneg %p534
      $region102: #{transformer_forward.3} parent=35 // pred_check_branch
        %978 = sbr.rel (%p976) target = $region104
      $region103: #{transformer_forward.3} parent=35 // pred_region
        %p979 = scmp.lt.s32.totalorder %s73, 1
        %s980 = scalar_select %p979, %s73, 1
        %s981 = scalar_lea.vmem %s35, %s980
      $region104: #{transformer_forward.3} parent=35 // pred_fallthru
        _
      // Predicated region
      $region105: #{transformer_forward.3} parent=35 // pred_check
        %p982 = pneg %p560
      $region106: #{transformer_forward.3} parent=35 // pred_check_branch
        %984 = sbr.rel (%p982) target = $region108
      $region107: #{transformer_forward.3} parent=35 // pred_region
        %p985 = scmp.lt.s32.totalorder %s73, 1
        %s986 = scalar_select %p985, %s73, 1
        %s987 = scalar_lea.vmem %s37, %s986
      $region108: #{transformer_forward.3} parent=35 // pred_fallthru
        _
      // Predicated region
      $region109: #{transformer_forward.3} parent=35 // pred_check
        %p988 = pneg %p586
      $region110: #{transformer_forward.3} parent=35 // pred_check_branch
        %990 = sbr.rel (%p988) target = $region112
      $region111: #{transformer_forward.3} parent=35 // pred_region
        %p991 = scmp.lt.s32.totalorder %s73, 1
        %s992 = scalar_select %p991, %s73, 1
        %s993 = smul.addr %s992, 64
        %s994 = smul.addr %s993, 4
        %s995 = scalar_lea.vmem %s39, %s994
      $region112: #{transformer_forward.3} parent=35 // pred_fallthru
        _
      // Predicated region
      $region113: #{transformer_forward.3} parent=35 // pred_check
        %p996 = pneg %p612
      $region114: #{transformer_forward.3} parent=35 // pred_check_branch
        %998 = sbr.rel (%p996) target = $region116
      $region115: #{transformer_forward.3} parent=35 // pred_region
        %p999 = scmp.lt.s32.totalorder %s73, 1
        %s1000 = scalar_select %p999, %s73, 1
        %s1001 = smul.addr %s1000, 16
        %s1002 = scalar_lea.vmem %s41, %s1001
      $region116: #{transformer_forward.3} parent=35 // pred_fallthru
        _
      // Predicated region
      $region117: #{transformer_forward.3} parent=35 // pred_check
        %p1003 = pneg %p638
      $region118: #{transformer_forward.3} parent=35 // pred_check_branch
        %1005 = sbr.rel (%p1003) target = $region120
      $region119: #{transformer_forward.3} parent=35 // pred_region
        %p1006 = scmp.lt.s32.totalorder %s73, 1
        %s1007 = scalar_select %p1006, %s73, 1
        %s1008 = smul.addr %s1007, 256
        %s1009 = smul.addr %s1008, 4
        %s1010 = scalar_lea.vmem %s43, %s1009
      $region120: #{transformer_forward.3} parent=35 // pred_fallthru
        _
      // Predicated region
      $region121: #{transformer_forward.3} parent=35 // pred_check
        %p1011 = pneg %p664
      $region122: #{transformer_forward.3} parent=35 // pred_check_branch
        %1013 = sbr.rel (%p1011) target = $region124
      $region123: #{transformer_forward.3} parent=35 // pred_region
        %p1014 = scmp.lt.s32.totalorder %s73, 1
        %s1015 = scalar_select %p1014, %s73, 1
        %s1016 = scalar_lea.vmem %s45, %s1015
      $region124: #{transformer_forward.3} parent=35 // pred_fallthru
        _
      // Predicated region
      $region125: #{transformer_forward.3} parent=35 // pred_check
        %p1017 = pneg %p690
      $region126: #{transformer_forward.3} parent=35 // pred_check_branch
        %1019 = sbr.rel (%p1017) target = $region128
      $region127: #{transformer_forward.3} parent=35 // pred_region
        %p1020 = scmp.lt.s32.totalorder %s73, 1
        %s1021 = scalar_select %p1020, %s73, 1
        %s1022 = scalar_lea.vmem %s47, %s1021
      $region128: #{transformer_forward.3} parent=35 // pred_fallthru
        _
      // Predicated region
      $region129: #{transformer_forward.3} parent=35 // pred_check
        %p1023 = pneg %p716
      $region130: #{transformer_forward.3} parent=35 // pred_check_branch
        %1025 = sbr.rel (%p1023) target = $region132
      $region131: #{transformer_forward.3} parent=35 // pred_region
        %p1026 = scmp.lt.s32.totalorder %s73, 1
        %s1027 = scalar_select %p1026, %s73, 1
        %s1028 = scalar_lea.vmem %s49, %s1027
      $region132: #{transformer_forward.3} parent=35 // pred_fallthru
        _
    $region36: #{transformer_forward.3} parent=5 // pred_fallthru
      _
    %p1029 = scmp.le.s32.totalorder 1, %s65
    %p1030 = scmp.lt.s32.totalorder %s65, 5
    %p1031 = pnand %p1029, %p1030
    %p1032 = pneg %p1031
    // Predicated region
    $region133: #{transformer_forward.3} parent=5 // pred_check
      _
    $region134: #{transformer_forward.3} parent=5 // pred_check_branch
      %1034 = sbr.rel (%p1031) target = $region136
    $region135: #{transformer_forward.3} parent=5 // pred_region
      %s1035 = ssub.s32 %s65, 1
      %p1036 = scmp.lt.s32.totalorder %s74, 1
      %s1037 = scalar_select %p1036, %s74, 1
      %s1038 = smul.addr %s1037, 8
      %s1039 = scalar_lea.vmem %s1, %s1038
      %p1040 = pneg %p103
      %p1041 = pneg %p100
      %p1042 = scmp.lt.s32.totalorder %s74, 1
      %s1043 = scalar_select %p1042, %s74, 1
      %s1044 = smul.addr %s1043, 8
      %s1045 = scalar_lea.vmem %s3, %s1044
      %p1046 = pneg %p129
      %p1047 = pneg %p126
      %p1048 = pneg %p150
      %p1049 = pneg %p147
      %p1050 = scmp.lt.s32.totalorder %s75, 1
      %s1051 = scalar_select %p1050, %s75, 1
      %s1052 = smul.addr %s1051, 4
      %s1053 = smul.addr %s1052, 4
      %s1054 = scalar_lea.vmem %s7, %s1053
      %p1055 = pneg %p176
      %p1056 = pneg %p173
      %p1057 = scmp.lt.s32.totalorder %s75, 1
      %s1058 = scalar_select %p1057, %s75, 1
      %s1059 = scalar_lea.vmem %s9, %s1058
      %p1060 = pneg %p202
      %p1061 = pneg %p199
      %p1062 = scmp.lt.s32.totalorder %s75, 1
      %s1063 = scalar_select %p1062, %s75, 1
      %s1064 = smul.addr %s1063, 4
      %s1065 = smul.addr %s1064, 4
      %s1066 = scalar_lea.vmem %s11, %s1065
      %p1067 = pneg %p228
      %p1068 = pneg %p225
      %p1069 = scmp.lt.s32.totalorder %s75, 1
      %s1070 = scalar_select %p1069, %s75, 1
      %s1071 = scalar_lea.vmem %s13, %s1070
      %p1072 = pneg %p254
      %p1073 = pneg %p251
      %p1074 = scmp.lt.s32.totalorder %s75, 1
      %s1075 = scalar_select %p1074, %s75, 1
      %s1076 = smul.addr %s1075, 4
      %s1077 = smul.addr %s1076, 4
      %s1078 = scalar_lea.vmem %s15, %s1077
      %p1079 = pneg %p280
      %p1080 = pneg %p277
      %p1081 = scmp.lt.s32.totalorder %s75, 1
      %s1082 = scalar_select %p1081, %s75, 1
      %s1083 = scalar_lea.vmem %s17, %s1082
      %p1084 = pneg %p306
      %p1085 = pneg %p303
      %p1086 = scmp.lt.s32.totalorder %s75, 1
      %s1087 = scalar_select %p1086, %s75, 1
      %s1088 = scalar_lea.vmem %s19, %s1087
      %p1089 = pneg %p332
      %p1090 = pneg %p329
      %p1091 = scmp.lt.s32.totalorder %s75, 1
      %s1092 = scalar_select %p1091, %s75, 1
      %s1093 = scalar_lea.vmem %s21, %s1092
      %p1094 = pneg %p358
      %p1095 = pneg %p355
      %p1096 = scmp.lt.s32.totalorder %s75, 1
      %s1097 = scalar_select %p1096, %s75, 1
      %s1098 = smul.addr %s1097, 4
      %s1099 = smul.addr %s1098, 4
      %s1100 = scalar_lea.vmem %s23, %s1099
      %p1101 = pneg %p384
      %p1102 = pneg %p381
      %p1103 = scmp.lt.s32.totalorder %s75, 1
      %s1104 = scalar_select %p1103, %s75, 1
      %s1105 = scalar_lea.vmem %s25, %s1104
      %p1106 = pneg %p410
      %p1107 = pneg %p407
      %p1108 = scmp.lt.s32.totalorder %s75, 1
      %s1109 = scalar_select %p1108, %s75, 1
      %s1110 = smul.addr %s1109, 4
      %s1111 = smul.addr %s1110, 4
      %s1112 = scalar_lea.vmem %s27, %s1111
      %p1113 = pneg %p436
      %p1114 = pneg %p433
      %p1115 = scmp.lt.s32.totalorder %s75, 1
      %s1116 = scalar_select %p1115, %s75, 1
      %s1117 = scalar_lea.vmem %s29, %s1116
      %p1118 = pneg %p462
      %p1119 = pneg %p459
      %p1120 = scmp.lt.s32.totalorder %s75, 1
      %s1121 = scalar_select %p1120, %s75, 1
      %s1122 = smul.addr %s1121, 4
      %s1123 = smul.addr %s1122, 4
      %s1124 = scalar_lea.vmem %s31, %s1123
      %p1125 = pneg %p488
      %p1126 = pneg %p485
      %p1127 = scmp.lt.s32.totalorder %s75, 1
      %s1128 = scalar_select %p1127, %s75, 1
      %s1129 = scalar_lea.vmem %s33, %s1128
      %p1130 = pneg %p514
      %p1131 = pneg %p511
      %p1132 = scmp.lt.s32.totalorder %s75, 1
      %s1133 = scalar_select %p1132, %s75, 1
      %s1134 = scalar_lea.vmem %s35, %s1133
      %p1135 = pneg %p540
      %p1136 = pneg %p537
      %p1137 = scmp.lt.s32.totalorder %s75, 1
      %s1138 = scalar_select %p1137, %s75, 1
      %s1139 = scalar_lea.vmem %s37, %s1138
      %p1140 = pneg %p566
      %p1141 = pneg %p563
      %p1142 = scmp.lt.s32.totalorder %s75, 1
      %s1143 = scalar_select %p1142, %s75, 1
      %s1144 = smul.addr %s1143, 64
      %s1145 = smul.addr %s1144, 4
      %s1146 = scalar_lea.vmem %s39, %s1145
      %p1147 = pneg %p592
      %p1148 = pneg %p589
      %p1149 = scmp.lt.s32.totalorder %s75, 1
      %s1150 = scalar_select %p1149, %s75, 1
      %s1151 = smul.addr %s1150, 16
      %s1152 = scalar_lea.vmem %s41, %s1151
      %p1153 = pneg %p618
      %p1154 = pneg %p615
      %p1155 = scmp.lt.s32.totalorder %s75, 1
      %s1156 = scalar_select %p1155, %s75, 1
      %s1157 = smul.addr %s1156, 256
      %s1158 = smul.addr %s1157, 4
      %s1159 = scalar_lea.vmem %s43, %s1158
      %p1160 = pneg %p644
      %p1161 = pneg %p641
      %p1162 = scmp.lt.s32.totalorder %s75, 1
      %s1163 = scalar_select %p1162, %s75, 1
      %s1164 = scalar_lea.vmem %s45, %s1163
      %p1165 = pneg %p670
      %p1166 = pneg %p667
      %p1167 = scmp.lt.s32.totalorder %s75, 1
      %s1168 = scalar_select %p1167, %s75, 1
      %s1169 = scalar_lea.vmem %s47, %s1168
      %p1170 = pneg %p696
      %p1171 = pneg %p693
      %p1172 = scmp.lt.s32.totalorder %s75, 1
      %s1173 = scalar_select %p1172, %s75, 1
      %s1174 = scalar_lea.vmem %s49, %s1173
      %p1175 = pneg %p722
      %p1176 = pneg %p719
      %p1177 = pneg %p743
      %p1178 = pneg %p740
      %p1179 = pneg %p764
      %p1180 = pneg %p761
      %p1181 = pneg %p785
      %p1182 = pneg %p782
      %p1183 = pneg %p806
      %p1184 = pneg %p803
      %p1185 = pneg %p832
      %p1186 = pneg %p829
      %p1187 = scmp.lt.s32.totalorder %s74, 1
      %s1188 = scalar_select %p1187, %s74, 1
      %s1189 = smul.addr %s1188, 8
      %s1190 = scalar_lea.vmem %s59, %s1189
      %p1191 = scmp.lt.s32.totalorder %s74, 1
      %s1192 = scalar_select %p1191, %s74, 1
      %s1193 = smul.addr %s1192, 8
      %s1194 = scalar_lea.vmem %s1, %s1193
      %p1195 = scmp.lt.s32.totalorder %s74, 1
      %s1196 = scalar_select %p1195, %s74, 1
      %s1197 = smul.addr %s1196, 8
      %s1198 = scalar_lea.vmem %s3, %s1197
      %p1199 = scmp.lt.s32.totalorder %s75, 1
      %s1200 = scalar_select %p1199, %s75, 1
      %s1201 = smul.addr %s1200, 4
      %s1202 = smul.addr %s1201, 4
      %s1203 = scalar_lea.vmem %s7, %s1202
      %p1204 = scmp.lt.s32.totalorder %s75, 1
      %s1205 = scalar_select %p1204, %s75, 1
      %s1206 = scalar_lea.vmem %s9, %s1205
      %p1207 = scmp.lt.s32.totalorder %s75, 1
      %s1208 = scalar_select %p1207, %s75, 1
      %s1209 = smul.addr %s1208, 4
      %s1210 = smul.addr %s1209, 4
      %s1211 = scalar_lea.vmem %s11, %s1210
      %p1212 = scmp.lt.s32.totalorder %s75, 1
      %s1213 = scalar_select %p1212, %s75, 1
      %s1214 = scalar_lea.vmem %s13, %s1213
      %p1215 = scmp.lt.s32.totalorder %s75, 1
      %s1216 = scalar_select %p1215, %s75, 1
      %s1217 = smul.addr %s1216, 4
      %s1218 = smul.addr %s1217, 4
      %s1219 = scalar_lea.vmem %s15, %s1218
      %p1220 = scmp.lt.s32.totalorder %s75, 1
      %s1221 = scalar_select %p1220, %s75, 1
      %s1222 = scalar_lea.vmem %s17, %s1221
      %p1223 = scmp.lt.s32.totalorder %s75, 1
      %s1224 = scalar_select %p1223, %s75, 1
      %s1225 = scalar_lea.vmem %s19, %s1224
      %p1226 = scmp.lt.s32.totalorder %s75, 1
      %s1227 = scalar_select %p1226, %s75, 1
      %s1228 = scalar_lea.vmem %s21, %s1227
      %p1229 = scmp.lt.s32.totalorder %s75, 1
      %s1230 = scalar_select %p1229, %s75, 1
      %s1231 = smul.addr %s1230, 4
      %s1232 = smul.addr %s1231, 4
      %s1233 = scalar_lea.vmem %s23, %s1232
      %p1234 = scmp.lt.s32.totalorder %s75, 1
      %s1235 = scalar_select %p1234, %s75, 1
      %s1236 = scalar_lea.vmem %s25, %s1235
      %p1237 = scmp.lt.s32.totalorder %s75, 1
      %s1238 = scalar_select %p1237, %s75, 1
      %s1239 = smul.addr %s1238, 4
      %s1240 = smul.addr %s1239, 4
      %s1241 = scalar_lea.vmem %s27, %s1240
      %p1242 = scmp.lt.s32.totalorder %s75, 1
      %s1243 = scalar_select %p1242, %s75, 1
      %s1244 = scalar_lea.vmem %s29, %s1243
      %p1245 = scmp.lt.s32.totalorder %s75, 1
      %s1246 = scalar_select %p1245, %s75, 1
      %s1247 = smul.addr %s1246, 4
      %s1248 = smul.addr %s1247, 4
      %s1249 = scalar_lea.vmem %s31, %s1248
      %p1250 = scmp.lt.s32.totalorder %s75, 1
      %s1251 = scalar_select %p1250, %s75, 1
      %s1252 = scalar_lea.vmem %s33, %s1251
      %p1253 = scmp.lt.s32.totalorder %s75, 1
      %s1254 = scalar_select %p1253, %s75, 1
      %s1255 = scalar_lea.vmem %s35, %s1254
      %p1256 = scmp.lt.s32.totalorder %s75, 1
      %s1257 = scalar_select %p1256, %s75, 1
      %s1258 = scalar_lea.vmem %s37, %s1257
      %p1259 = scmp.lt.s32.totalorder %s75, 1
      %s1260 = scalar_select %p1259, %s75, 1
      %s1261 = smul.addr %s1260, 64
      %s1262 = smul.addr %s1261, 4
      %s1263 = scalar_lea.vmem %s39, %s1262
      %p1264 = scmp.lt.s32.totalorder %s75, 1
      %s1265 = scalar_select %p1264, %s75, 1
      %s1266 = smul.addr %s1265, 16
      %s1267 = scalar_lea.vmem %s41, %s1266
      %p1268 = scmp.lt.s32.totalorder %s75, 1
      %s1269 = scalar_select %p1268, %s75, 1
      %s1270 = smul.addr %s1269, 256
      %s1271 = smul.addr %s1270, 4
      %s1272 = scalar_lea.vmem %s43, %s1271
      %p1273 = scmp.lt.s32.totalorder %s75, 1
      %s1274 = scalar_select %p1273, %s75, 1
      %s1275 = scalar_lea.vmem %s45, %s1274
      %p1276 = scmp.lt.s32.totalorder %s75, 1
      %s1277 = scalar_select %p1276, %s75, 1
      %s1278 = scalar_lea.vmem %s47, %s1277
      %p1279 = scmp.lt.s32.totalorder %s75, 1
      %s1280 = scalar_select %p1279, %s75, 1
      %s1281 = scalar_lea.vmem %s49, %s1280
      %p1282 = scmp.lt.s32.totalorder %s74, 1
      %s1283 = scalar_select %p1282, %s74, 1
      %s1284 = smul.addr %s1283, 8
      %s1285 = scalar_lea.vmem %s59, %s1284
      %p1287 = scmp.eq.s32.totalorder %s75, 0
      // Predicated region
      $region137: #{transformer_forward.3} parent=135 // pred_check
        %p1288 = pneg %p1287
      $region138: #{transformer_forward.3} parent=135 // pred_check_branch
        %1290 = sbr.rel (%p1288) target = $region140
      $region139: #{transformer_forward.3} parent=135 // pred_region
        %v1291 = vld [vmem:[%s1194] sm:$0x3f]
        %vm1292 = vcmask 259072
        %1293 = vst.msk [vmem:[#allocation2] sm:$0x3f] %vm1292, %v1291
      $region140: #{transformer_forward.3} parent=135 // pred_fallthru
        _
      %v1294 = vld [vmem:[#allocation2] sm:$0x3f]
      %v1295 = vld [vmem:[%s1198] sm:$0xff]
      %v1296 = vld [vmem:[%s5] sm:$0x3f]
      %v1297 = vld [vmem:[%s1203] sm:$0xf]
      %v1298 = vld [vmem:[%s1203 + $0x4] sm:$0xf]
      %v1299 = vld [vmem:[%s1203 + $0x8] sm:$0xf]
      %v1300 = vld [vmem:[%s1203 + $0xc] sm:$0xf]
      %v1301 = vld [vmem:[%s1206] sm:$0x1]
      %v1302 = vld [vmem:[%s1211] sm:$0xf]
      %v1303 = vld [vmem:[%s1211 + $0x4] sm:$0xf]
      %v1304 = vld [vmem:[%s1211 + $0x8] sm:$0xf]
      %v1305 = vld [vmem:[%s1211 + $0xc] sm:$0xf]
      %v1306 = vld [vmem:[%s1214] sm:$0x1]
      %v1307 = vld [vmem:[%s1219] sm:$0xf]
      %v1308 = vld [vmem:[%s1219 + $0x4] sm:$0xf]
      %v1309 = vld [vmem:[%s1219 + $0x8] sm:$0xf]
      %v1310 = vld [vmem:[%s1219 + $0xc] sm:$0xf]
      %v1311 = vld [vmem:[%s1222] sm:$0x1]
      %v1312 = vpack.c.bf16 %v1294, %v1294
      %v1314 = vlaneseq
      %v1315 = vshrl.u32 %v1314, 7
      %v1316 = vsub.s32 0, %v1315
      %v1317 = vrot.slane %v1301, %v1316
      %v1323 = vunpack.c.l.b16 %v1297
      %v1324 = vunpack.c.l.b16 %v1298
      %v1325 = vunpack.c.l.b16 %v1299
      %v1326 = vunpack.c.l.b16 %v1300
      %v1327 = vpack.c.b16 %v1324, %v1323
      %v1328 = vpack.c.b16 %v1326, %v1325
      %vm1331 = vcmask 261120
      %v1333 = vsel %vm1331, %v1312, 0
      %1335 = vmatprep.subr.bf16.mxu0 0
      %1336 = vmatpush1.bf16.msra.mxu0 %v1327
      %1337 = vmatprep.subr.bf16.mxu0 0
      %1338 = vmatpush1.bf16.msra.mxu0 %v1328
      %1339 = vmatprep.subr.bf16.mxu0 0
      %1340 = vmatpush1.bf16.msra.mxu0 0
      %1341 = vmatprep.subr.bf16.mxu0 0
      %1342 = vmatpush1.bf16.msra.mxu0 0
      %1343 = vmatprep.subr.bf16.mxu0 0
      %1344 = vmatpush1.bf16.msra.mxu0 0
      %1345 = vmatprep.subr.bf16.mxu0 0
      %1346 = vmatpush1.bf16.msra.mxu0 0
      %1347 = vmatprep.subr.bf16.mxu0 0
      %1348 = vmatpush1.bf16.msra.mxu0 0
      %1349 = vmatprep.subr.bf16.mxu0 0
      %1350 = vmatpush1.bf16.msra.mxu0 0
      %1351 = vmatprep.subr.bf16.mxu0 0
      %1352 = vmatpush1.bf16.msra.mxu0 0
      %1353 = vmatprep.subr.bf16.mxu0 0
      %1354 = vmatpush1.bf16.msra.mxu0 0
      %1355 = vmatprep.subr.bf16.mxu0 0
      %1356 = vmatpush1.bf16.msra.mxu0 0
      %1357 = vmatprep.subr.bf16.mxu0 0
      %1358 = vmatpush1.bf16.msra.mxu0 0
      %1359 = vmatprep.subr.bf16.mxu0 0
      %1360 = vmatpush1.bf16.msra.mxu0 0
      %1361 = vmatprep.subr.bf16.mxu0 0
      %1362 = vmatpush1.bf16.msra.mxu0 0
      %1363 = vmatprep.subr.bf16.mxu0 0
      %1364 = vmatpush1.bf16.msra.mxu0 0
      %1365 = vmatprep.subr.bf16.mxu0 0
      %1366 = vmatpush1.bf16.msra.mxu0 0
      %1367 = vmatprep.mubr.bf16.mxu0 0
      %1368 = vmatmul.mubr.bf16.gmra.mrb[0].mxu0 %v1333
      %v1369 = vpop.f32.mrb[0].mxu0
      %v1370 = vadd.f32 %v1317, %v1369
      %v1371 = vpop.f32.mrb[0].mxu0
      %v1372 = vpop.f32.mrb[0].mxu0
      %v1373 = vpop.f32.mrb[0].mxu0
      %1374 = vdwg.mxu0
      %v1376 = vlaneseq
      %v1377 = vshrl.u32 %v1376, 7
      %v1378 = vsub.s32 0, %v1377
      %v1379 = vrot.slane %v1306, %v1378
      %v1385 = vunpack.c.l.b16 %v1302
      %v1386 = vunpack.c.l.b16 %v1303
      %v1387 = vunpack.c.l.b16 %v1304
      %v1388 = vunpack.c.l.b16 %v1305
      %v1389 = vpack.c.b16 %v1386, %v1385
      %v1390 = vpack.c.b16 %v1388, %v1387
      %1393 = vmatprep.subr.bf16.mxu0 0
      %1394 = vmatpush1.bf16.msra.mxu0 %v1389
      %1395 = vmatprep.subr.bf16.mxu0 0
      %1396 = vmatpush1.bf16.msra.mxu0 %v1390
      %1397 = vmatprep.subr.bf16.mxu0 0
      %1398 = vmatpush1.bf16.msra.mxu0 0
      %1399 = vmatprep.subr.bf16.mxu0 0
      %1400 = vmatpush1.bf16.msra.mxu0 0
      %1401 = vmatprep.subr.bf16.mxu0 0
      %1402 = vmatpush1.bf16.msra.mxu0 0
      %1403 = vmatprep.subr.bf16.mxu0 0
      %1404 = vmatpush1.bf16.msra.mxu0 0
      %1405 = vmatprep.subr.bf16.mxu0 0
      %1406 = vmatpush1.bf16.msra.mxu0 0
      %1407 = vmatprep.subr.bf16.mxu0 0
      %1408 = vmatpush1.bf16.msra.mxu0 0
      %1409 = vmatprep.subr.bf16.mxu0 0
      %1410 = vmatpush1.bf16.msra.mxu0 0
      %1411 = vmatprep.subr.bf16.mxu0 0
      %1412 = vmatpush1.bf16.msra.mxu0 0
      %1413 = vmatprep.subr.bf16.mxu0 0
      %1414 = vmatpush1.bf16.msra.mxu0 0
      %1415 = vmatprep.subr.bf16.mxu0 0
      %1416 = vmatpush1.bf16.msra.mxu0 0
      %1417 = vmatprep.subr.bf16.mxu0 0
      %1418 = vmatpush1.bf16.msra.mxu0 0
      %1419 = vmatprep.subr.bf16.mxu0 0
      %1420 = vmatpush1.bf16.msra.mxu0 0
      %1421 = vmatprep.subr.bf16.mxu0 0
      %1422 = vmatpush1.bf16.msra.mxu0 0
      %1423 = vmatprep.subr.bf16.mxu0 0
      %1424 = vmatpush1.bf16.msra.mxu0 0
      %1425 = vmatprep.mubr.bf16.mxu0 0
      %1426 = vmatmul.mubr.bf16.gmra.mrb[0].mxu0 %v1333
      %v1427 = vpop.f32.mrb[0].mxu0
      %v1428 = vadd.f32 %v1379, %v1427
      %v1429 = vpop.f32.mrb[0].mxu0
      %v1430 = vpop.f32.mrb[0].mxu0
      %v1431 = vpop.f32.mrb[0].mxu0
      %1432 = vdwg.mxu0
      %v1433 = vmul.f32 %v1370, 0.35355338
      %v1434 = vpack.c.bf16 %v1433, %v1433
      %v1435 = vpack.c.bf16 %v1428, %v1428
      %vm1436 = vcmask 64512
      %v1438 = vsel %vm1436, %v1434, 0
      %v1441 = vsel %vm1436, %v1435, 0
      %1443 = vmatprep.subr.bf16.mxu0 0
      %1444 = vmatpush1.bf16.xpose.msra.mxu0 %v1441
      %1445 = vmatprep.subr.bf16.mxu0 0
      %1446 = vmatpush1.bf16.xpose.msra.mxu0 0
      %1447 = vmatprep.subr.bf16.mxu0 0
      %1448 = vmatpush1.bf16.xpose.msra.mxu0 0
      %1449 = vmatprep.subr.bf16.mxu0 0
      %1450 = vmatpush1.bf16.xpose.msra.mxu0 0
      %1451 = vmatprep.subr.bf16.mxu0 0
      %1452 = vmatpush1.bf16.xpose.msra.mxu0 0
      %1453 = vmatprep.subr.bf16.mxu0 0
      %1454 = vmatpush1.bf16.xpose.msra.mxu0 0
      %1455 = vmatprep.subr.bf16.mxu0 0
      %1456 = vmatpush1.bf16.xpose.msra.mxu0 0
      %1457 = vmatprep.subr.bf16.mxu0 0
      %1458 = vmatpush1.bf16.xpose.msra.mxu0 0
      %1459 = vmatprep.subr.bf16.mxu0 0
      %1460 = vmatpush1.bf16.xpose.msra.mxu0 0
      %1461 = vmatprep.subr.bf16.mxu0 0
      %1462 = vmatpush1.bf16.xpose.msra.mxu0 0
      %1463 = vmatprep.subr.bf16.mxu0 0
      %1464 = vmatpush1.bf16.xpose.msra.mxu0 0
      %1465 = vmatprep.subr.bf16.mxu0 0
      %1466 = vmatpush1.bf16.xpose.msra.mxu0 0
      %1467 = vmatprep.subr.bf16.mxu0 0
      %1468 = vmatpush1.bf16.xpose.msra.mxu0 0
      %1469 = vmatprep.subr.bf16.mxu0 0
      %1470 = vmatpush1.bf16.xpose.msra.mxu0 0
      %1471 = vmatprep.subr.bf16.mxu0 0
      %1472 = vmatpush1.bf16.xpose.msra.mxu0 0
      %1473 = vmatprep.subr.bf16.mxu0 0
      %1474 = vmatpush1.bf16.xpose.msra.mxu0 0
      %1475 = vmatprep.mubr.bf16.mxu0 0
      %1476 = vmatmul.mubr.bf16.gmra.mrb[0].mxu0 %v1438
      %v1477 = vpop.f32.mrb[0].mxu0
      %v1478 = vadd.f32 %v1296, %v1477
      %v1479 = vpop.f32.mrb[0].mxu0
      %v1480 = vpop.f32.mrb[0].mxu0
      %v1481 = vpop.f32.mrb[0].mxu0
      %1482 = vdwg.mxu0
      %vm1483 = vcmask 46080
      %v1484 = vsel %vm1483, %v1478, -inf
      %1485 = vmax.xlane.f32.xlu0 %v1484
      %v1486 = vpop.xlane.xlu0 %1485
      %v1487 = vsub.f32 %v1478, %v1486
      %v1488 = vmul.f32 %v1487, 1.442695
      %v1489 = vpow.pop %v1488
      %v1490 = vsel %vm1483, %v1489, 0.0
      %1491 = vadd.xlane.f32.xlu0 %v1490
      %v1492 = vpop.xlane.xlu0 %1491
      %v1493 = vrcp.pop %v1492
      %v1494 = vmul.f32 %v1489, %v1493
      %v1495 = vpack.c.bf16 %v1494, %v1494
      %1497 = vrot.lane.b32.xlu0 %v1435, 96
      %v1498 = vpop.permute.xlu0 %1497
      %vm1499 = vcmask 48128
      %v1501 = vsel %vm1499, %v1495, 0
      %vm1503 = vcmask 1042432
      %v1505 = vsel %vm1503, %v1498, 0
      %1507 = vmatprep.subr.bf16.mxu0 0
      %1508 = vmatpush1.bf16.msra.mxu0 %v1505
      %1509 = vmatprep.subr.bf16.mxu0 0
      %1510 = vmatpush1.bf16.msra.mxu0 0
      %1511 = vmatprep.subr.bf16.mxu0 0
      %1512 = vmatpush1.bf16.msra.mxu0 0
      %1513 = vmatprep.subr.bf16.mxu0 0
      %1514 = vmatpush1.bf16.msra.mxu0 0
      %1515 = vmatprep.subr.bf16.mxu0 0
      %1516 = vmatpush1.bf16.msra.mxu0 0
      %1517 = vmatprep.subr.bf16.mxu0 0
      %1518 = vmatpush1.bf16.msra.mxu0 0
      %1519 = vmatprep.subr.bf16.mxu0 0
      %1520 = vmatpush1.bf16.msra.mxu0 0
      %1521 = vmatprep.subr.bf16.mxu0 0
      %1522 = vmatpush1.bf16.msra.mxu0 0
      %1523 = vmatprep.subr.bf16.mxu0 0
      %1524 = vmatpush1.bf16.msra.mxu0 0
      %1525 = vmatprep.subr.bf16.mxu0 0
      %1526 = vmatpush1.bf16.msra.mxu0 0
      %1527 = vmatprep.subr.bf16.mxu0 0
      %1528 = vmatpush1.bf16.msra.mxu0 0
      %1529 = vmatprep.subr.bf16.mxu0 0
      %1530 = vmatpush1.bf16.msra.mxu0 0
      %1531 = vmatprep.subr.bf16.mxu0 0
      %1532 = vmatpush1.bf16.msra.mxu0 0
      %1533 = vmatprep.subr.bf16.mxu0 0
      %1534 = vmatpush1.bf16.msra.mxu0 0
      %1535 = vmatprep.subr.bf16.mxu0 0
      %1536 = vmatpush1.bf16.msra.mxu0 0
      %1537 = vmatprep.subr.bf16.mxu0 0
      %1538 = vmatpush1.bf16.msra.mxu0 0
      %1539 = vmatprep.mubr.bf16.mxu0 0
      %1540 = vmatmul.mubr.bf16.gmra.mrb[0].mxu0 %v1501
      %v1541 = vpop.f32.mrb[0].mxu0
      %v1542 = vadd.f32 0.0, %v1541
      %v1543 = vpop.f32.mrb[0].mxu0
      %v1544 = vpop.f32.mrb[0].mxu0
      %v1545 = vpop.f32.mrb[0].mxu0
      %1546 = vdwg.mxu0
      %v1547 = vpack.c.bf16 %v1542, %v1542
      %1549 = vrot.lane.b32.xlu0 %v1434, 120
      %v1550 = vpop.permute.xlu0 %1549
      %1551 = vrot.lane.b32.xlu0 %v1435, 120
      %v1552 = vpop.permute.xlu0 %1551
      %v1554 = vsel %vm1436, %v1550, 0
      %v1557 = vsel %vm1436, %v1552, 0
      %1559 = vmatprep.subr.bf16.mxu0 0
      %1560 = vmatpush1.bf16.xpose.msra.mxu0 %v1557
      %1561 = vmatprep.subr.bf16.mxu0 0
      %1562 = vmatpush1.bf16.xpose.msra.mxu0 0
      %1563 = vmatprep.subr.bf16.mxu0 0
      %1564 = vmatpush1.bf16.xpose.msra.mxu0 0
      %1565 = vmatprep.subr.bf16.mxu0 0
      %1566 = vmatpush1.bf16.xpose.msra.mxu0 0
      %1567 = vmatprep.subr.bf16.mxu0 0
      %1568 = vmatpush1.bf16.xpose.msra.mxu0 0
      %1569 = vmatprep.subr.bf16.mxu0 0
      %1570 = vmatpush1.bf16.xpose.msra.mxu0 0
      %1571 = vmatprep.subr.bf16.mxu0 0
      %1572 = vmatpush1.bf16.xpose.msra.mxu0 0
      %1573 = vmatprep.subr.bf16.mxu0 0
      %1574 = vmatpush1.bf16.xpose.msra.mxu0 0
      %1575 = vmatprep.subr.bf16.mxu0 0
      %1576 = vmatpush1.bf16.xpose.msra.mxu0 0
      %1577 = vmatprep.subr.bf16.mxu0 0
      %1578 = vmatpush1.bf16.xpose.msra.mxu0 0
      %1579 = vmatprep.subr.bf16.mxu0 0
      %1580 = vmatpush1.bf16.xpose.msra.mxu0 0
      %1581 = vmatprep.subr.bf16.mxu0 0
      %1582 = vmatpush1.bf16.xpose.msra.mxu0 0
      %1583 = vmatprep.subr.bf16.mxu0 0
      %1584 = vmatpush1.bf16.xpose.msra.mxu0 0
      %1585 = vmatprep.subr.bf16.mxu0 0
      %1586 = vmatpush1.bf16.xpose.msra.mxu0 0
      %1587 = vmatprep.subr.bf16.mxu0 0
      %1588 = vmatpush1.bf16.xpose.msra.mxu0 0
      %1589 = vmatprep.subr.bf16.mxu0 0
      %1590 = vmatpush1.bf16.xpose.msra.mxu0 0
      %1591 = vmatprep.mubr.bf16.mxu0 0
      %1592 = vmatmul.mubr.bf16.gmra.mrb[0].mxu0 %v1554
      %v1593 = vpop.f32.mrb[0].mxu0
      %v1594 = vadd.f32 %v1296, %v1593
      %v1595 = vpop.f32.mrb[0].mxu0
      %v1596 = vpop.f32.mrb[0].mxu0
      %v1597 = vpop.f32.mrb[0].mxu0
      %1598 = vdwg.mxu0
      %v1599 = vsel %vm1483, %v1594, -inf
      %1600 = vmax.xlane.f32.xlu0 %v1599
      %v1601 = vpop.xlane.xlu0 %1600
      %v1602 = vsub.f32 %v1594, %v1601
      %v1603 = vmul.f32 %v1602, 1.442695
      %v1604 = vpow.pop %v1603
      %v1605 = vsel %vm1483, %v1604, 0.0
      %1606 = vadd.xlane.f32.xlu0 %v1605
      %v1607 = vpop.xlane.xlu0 %1606
      %v1608 = vrcp.pop %v1607
      %v1609 = vmul.f32 %v1604, %v1608
      %v1610 = vpack.c.bf16 %v1609, %v1609
      %1611 = vrot.lane.b32.xlu0 %v1435, 88
      %v1612 = vpop.permute.xlu0 %1611
      %v1614 = vsel %vm1499, %v1610, 0
      %v1617 = vsel %vm1503, %v1612, 0
      %1619 = vmatprep.subr.bf16.mxu0 0
      %1620 = vmatpush1.bf16.msra.mxu0 %v1617
      %1621 = vmatprep.subr.bf16.mxu0 0
      %1622 = vmatpush1.bf16.msra.mxu0 0
      %1623 = vmatprep.subr.bf16.mxu0 0
      %1624 = vmatpush1.bf16.msra.mxu0 0
      %1625 = vmatprep.subr.bf16.mxu0 0
      %1626 = vmatpush1.bf16.msra.mxu0 0
      %1627 = vmatprep.subr.bf16.mxu0 0
      %1628 = vmatpush1.bf16.msra.mxu0 0
      %1629 = vmatprep.subr.bf16.mxu0 0
      %1630 = vmatpush1.bf16.msra.mxu0 0
      %1631 = vmatprep.subr.bf16.mxu0 0
      %1632 = vmatpush1.bf16.msra.mxu0 0
      %1633 = vmatprep.subr.bf16.mxu0 0
      %1634 = vmatpush1.bf16.msra.mxu0 0
      %1635 = vmatprep.subr.bf16.mxu0 0
      %1636 = vmatpush1.bf16.msra.mxu0 0
      %1637 = vmatprep.subr.bf16.mxu0 0
      %1638 = vmatpush1.bf16.msra.mxu0 0
      %1639 = vmatprep.subr.bf16.mxu0 0
      %1640 = vmatpush1.bf16.msra.mxu0 0
      %1641 = vmatprep.subr.bf16.mxu0 0
      %1642 = vmatpush1.bf16.msra.mxu0 0
      %1643 = vmatprep.subr.bf16.mxu0 0
      %1644 = vmatpush1.bf16.msra.mxu0 0
      %1645 = vmatprep.subr.bf16.mxu0 0
      %1646 = vmatpush1.bf16.msra.mxu0 0
      %1647 = vmatprep.subr.bf16.mxu0 0
      %1648 = vmatpush1.bf16.msra.mxu0 0
      %1649 = vmatprep.subr.bf16.mxu0 0
      %1650 = vmatpush1.bf16.msra.mxu0 0
      %1651 = vmatprep.mubr.bf16.mxu0 0
      %1652 = vmatmul.mubr.bf16.gmra.mrb[0].mxu0 %v1614
      %v1653 = vpop.f32.mrb[0].mxu0
      %v1654 = vadd.f32 0.0, %v1653
      %v1655 = vpop.f32.mrb[0].mxu0
      %v1656 = vpop.f32.mrb[0].mxu0
      %v1657 = vpop.f32.mrb[0].mxu0
      %1658 = vdwg.mxu0
      %v1659 = vpack.c.bf16 %v1654, %v1654
      %v1661 = vsel %vm1436, %v1659, 0
      %vm1663 = vcmask 1043456
      %v1665 = vsel %vm1663, %v1308, 0
      %1667 = vmatprep.subr.bf16.mxu0 0
      %1668 = vmatpush1.bf16.msra.mxu0 %v1665
      %1669 = vmatprep.subr.bf16.mxu0 0
      %1670 = vmatpush1.bf16.msra.mxu0 0
      %1671 = vmatprep.subr.bf16.mxu0 0
      %1672 = vmatpush1.bf16.msra.mxu0 0
      %1673 = vmatprep.subr.bf16.mxu0 0
      %1674 = vmatpush1.bf16.msra.mxu0 0
      %1675 = vmatprep.subr.bf16.mxu0 0
      %1676 = vmatpush1.bf16.msra.mxu0 0
      %1677 = vmatprep.subr.bf16.mxu0 0
      %1678 = vmatpush1.bf16.msra.mxu0 0
      %1679 = vmatprep.subr.bf16.mxu0 0
      %1680 = vmatpush1.bf16.msra.mxu0 0
      %1681 = vmatprep.subr.bf16.mxu0 0
      %1682 = vmatpush1.bf16.msra.mxu0 0
      %1683 = vmatprep.subr.bf16.mxu0 0
      %1684 = vmatpush1.bf16.msra.mxu0 0
      %1685 = vmatprep.subr.bf16.mxu0 0
      %1686 = vmatpush1.bf16.msra.mxu0 0
      %1687 = vmatprep.subr.bf16.mxu0 0
      %1688 = vmatpush1.bf16.msra.mxu0 0
      %1689 = vmatprep.subr.bf16.mxu0 0
      %1690 = vmatpush1.bf16.msra.mxu0 0
      %1691 = vmatprep.subr.bf16.mxu0 0
      %1692 = vmatpush1.bf16.msra.mxu0 0
      %1693 = vmatprep.subr.bf16.mxu0 0
      %1694 = vmatpush1.bf16.msra.mxu0 0
      %1695 = vmatprep.subr.bf16.mxu0 0
      %1696 = vmatpush1.bf16.msra.mxu0 0
      %1697 = vmatprep.subr.bf16.mxu0 0
      %1698 = vmatpush1.bf16.msra.mxu0 0
      %1699 = vmatprep.mubr.bf16.mxu0 0
      %1700 = vmatmul.mubr.bf16.gmra.mrb[0].mxu0 %v1661
      %v1701 = vpop.f32.mrb[0].mxu0
      %v1702 = vadd.f32 0.0, %v1701
      %v1703 = vpop.f32.mrb[0].mxu0
      %v1704 = vpop.f32.mrb[0].mxu0
      %v1705 = vpop.f32.mrb[0].mxu0
      %1706 = vdwg.mxu0
      %v1708 = vsel %vm1436, %v1547, 0
      %v1711 = vsel %vm1663, %v1307, 0
      %1713 = vmatprep.subr.bf16.mxu0 0
      %1714 = vmatpush1.bf16.msra.mxu0 %v1711
      %1715 = vmatprep.subr.bf16.mxu0 0
      %1716 = vmatpush1.bf16.msra.mxu0 0
      %1717 = vmatprep.subr.bf16.mxu0 0
      %1718 = vmatpush1.bf16.msra.mxu0 0
      %1719 = vmatprep.subr.bf16.mxu0 0
      %1720 = vmatpush1.bf16.msra.mxu0 0
      %1721 = vmatprep.subr.bf16.mxu0 0
      %1722 = vmatpush1.bf16.msra.mxu0 0
      %1723 = vmatprep.subr.bf16.mxu0 0
      %1724 = vmatpush1.bf16.msra.mxu0 0
      %1725 = vmatprep.subr.bf16.mxu0 0
      %1726 = vmatpush1.bf16.msra.mxu0 0
      %1727 = vmatprep.subr.bf16.mxu0 0
      %1728 = vmatpush1.bf16.msra.mxu0 0
      %1729 = vmatprep.subr.bf16.mxu0 0
      %1730 = vmatpush1.bf16.msra.mxu0 0
      %1731 = vmatprep.subr.bf16.mxu0 0
      %1732 = vmatpush1.bf16.msra.mxu0 0
      %1733 = vmatprep.subr.bf16.mxu0 0
      %1734 = vmatpush1.bf16.msra.mxu0 0
      %1735 = vmatprep.subr.bf16.mxu0 0
      %1736 = vmatpush1.bf16.msra.mxu0 0
      %1737 = vmatprep.subr.bf16.mxu0 0
      %1738 = vmatpush1.bf16.msra.mxu0 0
      %1739 = vmatprep.subr.bf16.mxu0 0
      %1740 = vmatpush1.bf16.msra.mxu0 0
      %1741 = vmatprep.subr.bf16.mxu0 0
      %1742 = vmatpush1.bf16.msra.mxu0 0
      %1743 = vmatprep.subr.bf16.mxu0 0
      %1744 = vmatpush1.bf16.msra.mxu0 0
      %1745 = vmatprep.mubr.bf16.mxu0 0
      %1746 = vmatmul.mubr.bf16.gmra.mrb[0].mxu0 %v1708
      %v1747 = vpop.f32.mrb[0].mxu0
      %v1748 = vadd.f32 %v1702, %v1747
      %v1749 = vpop.f32.mrb[0].mxu0
      %v1750 = vpop.f32.mrb[0].mxu0
      %v1751 = vpop.f32.mrb[0].mxu0
      %1752 = vdwg.mxu0
      %1753 = vrot.lane.b32.xlu0 %v1434, 112
      %v1754 = vpop.permute.xlu0 %1753
      %1755 = vrot.lane.b32.xlu0 %v1435, 112
      %v1756 = vpop.permute.xlu0 %1755
      %v1758 = vsel %vm1436, %v1754, 0
      %v1761 = vsel %vm1436, %v1756, 0
      %1763 = vmatprep.subr.bf16.mxu0 0
      %1764 = vmatpush1.bf16.xpose.msra.mxu0 %v1761
      %1765 = vmatprep.subr.bf16.mxu0 0
      %1766 = vmatpush1.bf16.xpose.msra.mxu0 0
      %1767 = vmatprep.subr.bf16.mxu0 0
      %1768 = vmatpush1.bf16.xpose.msra.mxu0 0
      %1769 = vmatprep.subr.bf16.mxu0 0
      %1770 = vmatpush1.bf16.xpose.msra.mxu0 0
      %1771 = vmatprep.subr.bf16.mxu0 0
      %1772 = vmatpush1.bf16.xpose.msra.mxu0 0
      %1773 = vmatprep.subr.bf16.mxu0 0
      %1774 = vmatpush1.bf16.xpose.msra.mxu0 0
      %1775 = vmatprep.subr.bf16.mxu0 0
      %1776 = vmatpush1.bf16.xpose.msra.mxu0 0
      %1777 = vmatprep.subr.bf16.mxu0 0
      %1778 = vmatpush1.bf16.xpose.msra.mxu0 0
      %1779 = vmatprep.subr.bf16.mxu0 0
      %1780 = vmatpush1.bf16.xpose.msra.mxu0 0
      %1781 = vmatprep.subr.bf16.mxu0 0
      %1782 = vmatpush1.bf16.xpose.msra.mxu0 0
      %1783 = vmatprep.subr.bf16.mxu0 0
      %1784 = vmatpush1.bf16.xpose.msra.mxu0 0
      %1785 = vmatprep.subr.bf16.mxu0 0
      %1786 = vmatpush1.bf16.xpose.msra.mxu0 0
      %1787 = vmatprep.subr.bf16.mxu0 0
      %1788 = vmatpush1.bf16.xpose.msra.mxu0 0
      %1789 = vmatprep.subr.bf16.mxu0 0
      %1790 = vmatpush1.bf16.xpose.msra.mxu0 0
      %1791 = vmatprep.subr.bf16.mxu0 0
      %1792 = vmatpush1.bf16.xpose.msra.mxu0 0
      %1793 = vmatprep.subr.bf16.mxu0 0
      %1794 = vmatpush1.bf16.xpose.msra.mxu0 0
      %1795 = vmatprep.mubr.bf16.mxu0 0
      %1796 = vmatmul.mubr.bf16.gmra.mrb[0].mxu0 %v1758
      %v1797 = vpop.f32.mrb[0].mxu0
      %v1798 = vadd.f32 %v1296, %v1797
      %v1799 = vpop.f32.mrb[0].mxu0
      %v1800 = vpop.f32.mrb[0].mxu0
      %v1801 = vpop.f32.mrb[0].mxu0
      %1802 = vdwg.mxu0
      %v1803 = vsel %vm1483, %v1798, -inf
      %1804 = vmax.xlane.f32.xlu0 %v1803
      %v1805 = vpop.xlane.xlu0 %1804
      %v1806 = vsub.f32 %v1798, %v1805
      %v1807 = vmul.f32 %v1806, 1.442695
      %v1808 = vpow.pop %v1807
      %v1809 = vsel %vm1483, %v1808, 0.0
      %1810 = vadd.xlane.f32.xlu0 %v1809
      %v1811 = vpop.xlane.xlu0 %1810
      %v1812 = vrcp.pop %v1811
      %v1813 = vmul.f32 %v1808, %v1812
      %v1814 = vpack.c.bf16 %v1813, %v1813
      %1815 = vrot.lane.b32.xlu0 %v1435, 80
      %v1816 = vpop.permute.xlu0 %1815
      %v1818 = vsel %vm1499, %v1814, 0
      %v1821 = vsel %vm1503, %v1816, 0
      %1823 = vmatprep.subr.bf16.mxu0 0
      %1824 = vmatpush1.bf16.msra.mxu0 %v1821
      %1825 = vmatprep.subr.bf16.mxu0 0
      %1826 = vmatpush1.bf16.msra.mxu0 0
      %1827 = vmatprep.subr.bf16.mxu0 0
      %1828 = vmatpush1.bf16.msra.mxu0 0
      %1829 = vmatprep.subr.bf16.mxu0 0
      %1830 = vmatpush1.bf16.msra.mxu0 0
      %1831 = vmatprep.subr.bf16.mxu0 0
      %1832 = vmatpush1.bf16.msra.mxu0 0
      %1833 = vmatprep.subr.bf16.mxu0 0
      %1834 = vmatpush1.bf16.msra.mxu0 0
      %1835 = vmatprep.subr.bf16.mxu0 0
      %1836 = vmatpush1.bf16.msra.mxu0 0
      %1837 = vmatprep.subr.bf16.mxu0 0
      %1838 = vmatpush1.bf16.msra.mxu0 0
      %1839 = vmatprep.subr.bf16.mxu0 0
      %1840 = vmatpush1.bf16.msra.mxu0 0
      %1841 = vmatprep.subr.bf16.mxu0 0
      %1842 = vmatpush1.bf16.msra.mxu0 0
      %1843 = vmatprep.subr.bf16.mxu0 0
      %1844 = vmatpush1.bf16.msra.mxu0 0
      %1845 = vmatprep.subr.bf16.mxu0 0
      %1846 = vmatpush1.bf16.msra.mxu0 0
      %1847 = vmatprep.subr.bf16.mxu0 0
      %1848 = vmatpush1.bf16.msra.mxu0 0
      %1849 = vmatprep.subr.bf16.mxu0 0
      %1850 = vmatpush1.bf16.msra.mxu0 0
      %1851 = vmatprep.subr.bf16.mxu0 0
      %1852 = vmatpush1.bf16.msra.mxu0 0
      %1853 = vmatprep.subr.bf16.mxu0 0
      %1854 = vmatpush1.bf16.msra.mxu0 0
      %1855 = vmatprep.mubr.bf16.mxu0 0
      %1856 = vmatmul.mubr.bf16.gmra.mrb[0].mxu0 %v1818
      %v1857 = vpop.f32.mrb[0].mxu0
      %v1858 = vadd.f32 0.0, %v1857
      %v1859 = vpop.f32.mrb[0].mxu0
      %v1860 = vpop.f32.mrb[0].mxu0
      %v1861 = vpop.f32.mrb[0].mxu0
      %1862 = vdwg.mxu0
      %v1863 = vpack.c.bf16 %v1858, %v1858
      %v1865 = vsel %vm1436, %v1863, 0
      %v1868 = vsel %vm1663, %v1309, 0
      %1870 = vmatprep.subr.bf16.mxu0 0
      %1871 = vmatpush1.bf16.msra.mxu0 %v1868
      %1872 = vmatprep.subr.bf16.mxu0 0
      %1873 = vmatpush1.bf16.msra.mxu0 0
      %1874 = vmatprep.subr.bf16.mxu0 0
      %1875 = vmatpush1.bf16.msra.mxu0 0
      %1876 = vmatprep.subr.bf16.mxu0 0
      %1877 = vmatpush1.bf16.msra.mxu0 0
      %1878 = vmatprep.subr.bf16.mxu0 0
      %1879 = vmatpush1.bf16.msra.mxu0 0
      %1880 = vmatprep.subr.bf16.mxu0 0
      %1881 = vmatpush1.bf16.msra.mxu0 0
      %1882 = vmatprep.subr.bf16.mxu0 0
      %1883 = vmatpush1.bf16.msra.mxu0 0
      %1884 = vmatprep.subr.bf16.mxu0 0
      %1885 = vmatpush1.bf16.msra.mxu0 0
      %1886 = vmatprep.subr.bf16.mxu0 0
      %1887 = vmatpush1.bf16.msra.mxu0 0
      %1888 = vmatprep.subr.bf16.mxu0 0
      %1889 = vmatpush1.bf16.msra.mxu0 0
      %1890 = vmatprep.subr.bf16.mxu0 0
      %1891 = vmatpush1.bf16.msra.mxu0 0
      %1892 = vmatprep.subr.bf16.mxu0 0
      %1893 = vmatpush1.bf16.msra.mxu0 0
      %1894 = vmatprep.subr.bf16.mxu0 0
      %1895 = vmatpush1.bf16.msra.mxu0 0
      %1896 = vmatprep.subr.bf16.mxu0 0
      %1897 = vmatpush1.bf16.msra.mxu0 0
      %1898 = vmatprep.subr.bf16.mxu0 0
      %1899 = vmatpush1.bf16.msra.mxu0 0
      %1900 = vmatprep.subr.bf16.mxu0 0
      %1901 = vmatpush1.bf16.msra.mxu0 0
      %1902 = vmatprep.mubr.bf16.mxu0 0
      %1903 = vmatmul.mubr.bf16.gmra.mrb[0].mxu0 %v1865
      %v1904 = vpop.f32.mrb[0].mxu0
      %v1905 = vadd.f32 0.0, %v1904
      %v1906 = vpop.f32.mrb[0].mxu0
      %v1907 = vpop.f32.mrb[0].mxu0
      %v1908 = vpop.f32.mrb[0].mxu0
      %1909 = vdwg.mxu0
      %v1910 = vadd.f32 %v1748, %v1905
      %1911 = vrot.lane.b32.xlu0 %v1434, 104
      %v1912 = vpop.permute.xlu0 %1911
      %1913 = vrot.lane.b32.xlu0 %v1435, 104
      %v1914 = vpop.permute.xlu0 %1913
      %v1916 = vsel %vm1436, %v1912, 0
      %v1919 = vsel %vm1436, %v1914, 0
      %1921 = vmatprep.subr.bf16.mxu0 0
      %1922 = vmatpush1.bf16.xpose.msra.mxu0 %v1919
      %1923 = vmatprep.subr.bf16.mxu0 0
      %1924 = vmatpush1.bf16.xpose.msra.mxu0 0
      %1925 = vmatprep.subr.bf16.mxu0 0
      %1926 = vmatpush1.bf16.xpose.msra.mxu0 0
      %1927 = vmatprep.subr.bf16.mxu0 0
      %1928 = vmatpush1.bf16.xpose.msra.mxu0 0
      %1929 = vmatprep.subr.bf16.mxu0 0
      %1930 = vmatpush1.bf16.xpose.msra.mxu0 0
      %1931 = vmatprep.subr.bf16.mxu0 0
      %1932 = vmatpush1.bf16.xpose.msra.mxu0 0
      %1933 = vmatprep.subr.bf16.mxu0 0
      %1934 = vmatpush1.bf16.xpose.msra.mxu0 0
      %1935 = vmatprep.subr.bf16.mxu0 0
      %1936 = vmatpush1.bf16.xpose.msra.mxu0 0
      %1937 = vmatprep.subr.bf16.mxu0 0
      %1938 = vmatpush1.bf16.xpose.msra.mxu0 0
      %1939 = vmatprep.subr.bf16.mxu0 0
      %1940 = vmatpush1.bf16.xpose.msra.mxu0 0
      %1941 = vmatprep.subr.bf16.mxu0 0
      %1942 = vmatpush1.bf16.xpose.msra.mxu0 0
      %1943 = vmatprep.subr.bf16.mxu0 0
      %1944 = vmatpush1.bf16.xpose.msra.mxu0 0
      %1945 = vmatprep.subr.bf16.mxu0 0
      %1946 = vmatpush1.bf16.xpose.msra.mxu0 0
      %1947 = vmatprep.subr.bf16.mxu0 0
      %1948 = vmatpush1.bf16.xpose.msra.mxu0 0
      %1949 = vmatprep.subr.bf16.mxu0 0
      %1950 = vmatpush1.bf16.xpose.msra.mxu0 0
      %1951 = vmatprep.subr.bf16.mxu0 0
      %1952 = vmatpush1.bf16.xpose.msra.mxu0 0
      %1953 = vmatprep.mubr.bf16.mxu0 0
      %1954 = vmatmul.mubr.bf16.gmra.mrb[0].mxu0 %v1916
      %v1955 = vpop.f32.mrb[0].mxu0
      %v1956 = vadd.f32 %v1296, %v1955
      %v1957 = vpop.f32.mrb[0].mxu0
      %v1958 = vpop.f32.mrb[0].mxu0
      %v1959 = vpop.f32.mrb[0].mxu0
      %1960 = vdwg.mxu0
      %v1961 = vsel %vm1483, %v1956, -inf
      %1962 = vmax.xlane.f32.xlu0 %v1961
      %v1963 = vpop.xlane.xlu0 %1962
      %v1964 = vsub.f32 %v1956, %v1963
      %v1965 = vmul.f32 %v1964, 1.442695
      %v1966 = vpow.pop %v1965
      %v1967 = vsel %vm1483, %v1966, 0.0
      %1968 = vadd.xlane.f32.xlu0 %v1967
      %v1969 = vpop.xlane.xlu0 %1968
      %v1970 = vrcp.pop %v1969
      %v1971 = vmul.f32 %v1966, %v1970
      %v1972 = vpack.c.bf16 %v1971, %v1971
      %1973 = vrot.lane.b32.xlu0 %v1435, 72
      %v1974 = vpop.permute.xlu0 %1973
      %v1976 = vsel %vm1499, %v1972, 0
      %v1979 = vsel %vm1503, %v1974, 0
      %1981 = vmatprep.subr.bf16.mxu0 0
      %1982 = vmatpush1.bf16.msra.mxu0 %v1979
      %1983 = vmatprep.subr.bf16.mxu0 0
      %1984 = vmatpush1.bf16.msra.mxu0 0
      %1985 = vmatprep.subr.bf16.mxu0 0
      %1986 = vmatpush1.bf16.msra.mxu0 0
      %1987 = vmatprep.subr.bf16.mxu0 0
      %1988 = vmatpush1.bf16.msra.mxu0 0
      %1989 = vmatprep.subr.bf16.mxu0 0
      %1990 = vmatpush1.bf16.msra.mxu0 0
      %1991 = vmatprep.subr.bf16.mxu0 0
      %1992 = vmatpush1.bf16.msra.mxu0 0
      %1993 = vmatprep.subr.bf16.mxu0 0
      %1994 = vmatpush1.bf16.msra.mxu0 0
      %1995 = vmatprep.subr.bf16.mxu0 0
      %1996 = vmatpush1.bf16.msra.mxu0 0
      %1997 = vmatprep.subr.bf16.mxu0 0
      %1998 = vmatpush1.bf16.msra.mxu0 0
      %1999 = vmatprep.subr.bf16.mxu0 0
      %2000 = vmatpush1.bf16.msra.mxu0 0
      %2001 = vmatprep.subr.bf16.mxu0 0
      %2002 = vmatpush1.bf16.msra.mxu0 0
      %2003 = vmatprep.subr.bf16.mxu0 0
      %2004 = vmatpush1.bf16.msra.mxu0 0
      %2005 = vmatprep.subr.bf16.mxu0 0
      %2006 = vmatpush1.bf16.msra.mxu0 0
      %2007 = vmatprep.subr.bf16.mxu0 0
      %2008 = vmatpush1.bf16.msra.mxu0 0
      %2009 = vmatprep.subr.bf16.mxu0 0
      %2010 = vmatpush1.bf16.msra.mxu0 0
      %2011 = vmatprep.subr.bf16.mxu0 0
      %2012 = vmatpush1.bf16.msra.mxu0 0
      %2013 = vmatprep.mubr.bf16.mxu0 0
      %2014 = vmatmul.mubr.bf16.gmra.mrb[0].mxu0 %v1976
      %v2015 = vpop.f32.mrb[0].mxu0
      %v2016 = vadd.f32 0.0, %v2015
      %v2017 = vpop.f32.mrb[0].mxu0
      %v2018 = vpop.f32.mrb[0].mxu0
      %v2019 = vpop.f32.mrb[0].mxu0
      %2020 = vdwg.mxu0
      %v2021 = vpack.c.bf16 %v2016, %v2016
      %v2023 = vsel %vm1436, %v2021, 0
      %v2026 = vsel %vm1663, %v1310, 0
      %2028 = vmatprep.subr.bf16.mxu0 0
      %2029 = vmatpush1.bf16.msra.mxu0 %v2026
      %2030 = vmatprep.subr.bf16.mxu0 0
      %2031 = vmatpush1.bf16.msra.mxu0 0
      %2032 = vmatprep.subr.bf16.mxu0 0
      %2033 = vmatpush1.bf16.msra.mxu0 0
      %2034 = vmatprep.subr.bf16.mxu0 0
      %2035 = vmatpush1.bf16.msra.mxu0 0
      %2036 = vmatprep.subr.bf16.mxu0 0
      %2037 = vmatpush1.bf16.msra.mxu0 0
      %2038 = vmatprep.subr.bf16.mxu0 0
      %2039 = vmatpush1.bf16.msra.mxu0 0
      %2040 = vmatprep.subr.bf16.mxu0 0
      %2041 = vmatpush1.bf16.msra.mxu0 0
      %2042 = vmatprep.subr.bf16.mxu0 0
      %2043 = vmatpush1.bf16.msra.mxu0 0
      %2044 = vmatprep.subr.bf16.mxu0 0
      %2045 = vmatpush1.bf16.msra.mxu0 0
      %2046 = vmatprep.subr.bf16.mxu0 0
      %2047 = vmatpush1.bf16.msra.mxu0 0
      %2048 = vmatprep.subr.bf16.mxu0 0
      %2049 = vmatpush1.bf16.msra.mxu0 0
      %2050 = vmatprep.subr.bf16.mxu0 0
      %2051 = vmatpush1.bf16.msra.mxu0 0
      %2052 = vmatprep.subr.bf16.mxu0 0
      %2053 = vmatpush1.bf16.msra.mxu0 0
      %2054 = vmatprep.subr.bf16.mxu0 0
      %2055 = vmatpush1.bf16.msra.mxu0 0
      %2056 = vmatprep.subr.bf16.mxu0 0
      %2057 = vmatpush1.bf16.msra.mxu0 0
      %2058 = vmatprep.subr.bf16.mxu0 0
      %2059 = vmatpush1.bf16.msra.mxu0 0
      %2060 = vmatprep.mubr.bf16.mxu0 0
      %2061 = vmatmul.mubr.bf16.gmra.mrb[0].mxu0 %v2023
      %v2062 = vpop.f32.mrb[0].mxu0
      %v2063 = vadd.f32 0.0, %v2062
      %v2064 = vpop.f32.mrb[0].mxu0
      %v2065 = vpop.f32.mrb[0].mxu0
      %v2066 = vpop.f32.mrb[0].mxu0
      %2067 = vdwg.mxu0
      %v2068 = vadd.f32 %v1910, %v2063
      %v2070 = vlaneseq
      %v2071 = vshrl.u32 %v2070, 7
      %v2072 = vsub.s32 0, %v2071
      %v2073 = vrot.slane %v1311, %v2072
      %v2075 = vadd.f32 %v2068, %v2073
      %v2076 = vadd.f32 %v2075, %v1294
      %v2077 = vld [vmem:[%s1225] sm:$0x1]
      %v2078 = vld [vmem:[%s1228] sm:$0x1]
      %vm2079 = vcmask 259072
      %v2080 = vsel %vm2079, %v2076, 0.0
      %2081 = vadd.xlane.f32.xlu0 %v2080
      %v2082 = vpop.xlane.xlu0 %2081
      %v2083 = vrcp.pop 32.0
      %v2084 = vmul.f32 %v2082, %v2083
      %v2085 = vsub.f32 %v2076, %v2084
      %v2086 = vmul.f32 %v2085, %v2085
      %v2087 = vsel %vm2079, %v2086, 0.0
      %2088 = vadd.xlane.f32.xlu0 %v2087
      %v2089 = vpop.xlane.xlu0 %2088
      %v2090 = vmul.f32 %v2089, %v2083
      %v2091 = vadd.f32 %v2090, 1e-05
      %v2092 = vrsqrt.pop %v2091
      %v2093 = vmul.f32 %v2085, %v2092
      %v2095 = vlaneseq
      %v2096 = vshrl.u32 %v2095, 7
      %v2097 = vsub.s32 0, %v2096
      %v2098 = vrot.slane %v2077, %v2097
      %v2100 = vmul.f32 %v2093, %v2098
      %v2102 = vlaneseq
      %v2103 = vshrl.u32 %v2102, 7
      %v2104 = vsub.s32 0, %v2103
      %v2105 = vrot.slane %v2078, %v2104
      %v2107 = vadd.f32 %v2100, %v2105
      %v2108 = vld [vmem:[%s1233] sm:$0xf]
      %v2109 = vld [vmem:[%s1233 + $0x4] sm:$0xf]
      %v2110 = vld [vmem:[%s1233 + $0x8] sm:$0xf]
      %v2111 = vld [vmem:[%s1233 + $0xc] sm:$0xf]
      %v2112 = vld [vmem:[%s1236] sm:$0x1]
      %v2113 = vld [vmem:[%s1241] sm:$0xf]
      %v2114 = vld [vmem:[%s1241 + $0x4] sm:$0xf]
      %v2115 = vld [vmem:[%s1241 + $0x8] sm:$0xf]
      %v2116 = vld [vmem:[%s1241 + $0xc] sm:$0xf]
      %v2117 = vld [vmem:[%s1244] sm:$0x1]
      %v2118 = vld [vmem:[%s1249] sm:$0xf]
      %v2119 = vld [vmem:[%s1249 + $0x4] sm:$0xf]
      %v2120 = vld [vmem:[%s1249 + $0x8] sm:$0xf]
      %v2121 = vld [vmem:[%s1249 + $0xc] sm:$0xf]
      %v2122 = vld [vmem:[%s1252] sm:$0x1]
      %v2123 = vpack.c.bf16 %v2107, %v2107
      %v2124 = vpack.c.bf16 %v1295, %v1295
      %v2126 = vlaneseq
      %v2127 = vshrl.u32 %v2126, 7
      %v2128 = vsub.s32 0, %v2127
      %v2129 = vrot.slane %v2112, %v2128
      %v2135 = vunpack.c.l.b16 %v2108
      %v2136 = vunpack.c.l.b16 %v2109
      %v2137 = vunpack.c.l.b16 %v2110
      %v2138 = vunpack.c.l.b16 %v2111
      %v2139 = vpack.c.b16 %v2136, %v2135
      %v2140 = vpack.c.b16 %v2138, %v2137
      %v2144 = vsel %vm1331, %v2123, 0
      %2146 = vmatprep.subr.bf16.mxu0 0
      %2147 = vmatpush1.bf16.msra.mxu0 %v2139
      %2148 = vmatprep.subr.bf16.mxu0 0
      %2149 = vmatpush1.bf16.msra.mxu0 %v2140
      %2150 = vmatprep.subr.bf16.mxu0 0
      %2151 = vmatpush1.bf16.msra.mxu0 0
      %2152 = vmatprep.subr.bf16.mxu0 0
      %2153 = vmatpush1.bf16.msra.mxu0 0
      %2154 = vmatprep.subr.bf16.mxu0 0
      %2155 = vmatpush1.bf16.msra.mxu0 0
      %2156 = vmatprep.subr.bf16.mxu0 0
      %2157 = vmatpush1.bf16.msra.mxu0 0
      %2158 = vmatprep.subr.bf16.mxu0 0
      %2159 = vmatpush1.bf16.msra.mxu0 0
      %2160 = vmatprep.subr.bf16.mxu0 0
      %2161 = vmatpush1.bf16.msra.mxu0 0
      %2162 = vmatprep.subr.bf16.mxu0 0
      %2163 = vmatpush1.bf16.msra.mxu0 0
      %2164 = vmatprep.subr.bf16.mxu0 0
      %2165 = vmatpush1.bf16.msra.mxu0 0
      %2166 = vmatprep.subr.bf16.mxu0 0
      %2167 = vmatpush1.bf16.msra.mxu0 0
      %2168 = vmatprep.subr.bf16.mxu0 0
      %2169 = vmatpush1.bf16.msra.mxu0 0
      %2170 = vmatprep.subr.bf16.mxu0 0
      %2171 = vmatpush1.bf16.msra.mxu0 0
      %2172 = vmatprep.subr.bf16.mxu0 0
      %2173 = vmatpush1.bf16.msra.mxu0 0
      %2174 = vmatprep.subr.bf16.mxu0 0
      %2175 = vmatpush1.bf16.msra.mxu0 0
      %2176 = vmatprep.subr.bf16.mxu0 0
      %2177 = vmatpush1.bf16.msra.mxu0 0
      %2178 = vmatprep.mubr.bf16.mxu0 0
      %2179 = vmatmul.mubr.bf16.gmra.mrb[0].mxu0 %v2144
      %v2180 = vpop.f32.mrb[0].mxu0
      %v2181 = vadd.f32 %v2129, %v2180
      %v2182 = vpop.f32.mrb[0].mxu0
      %v2183 = vpop.f32.mrb[0].mxu0
      %v2184 = vpop.f32.mrb[0].mxu0
      %2185 = vdwg.mxu0
      %v2187 = vlaneseq
      %v2188 = vshrl.u32 %v2187, 7
      %v2189 = vsub.s32 0, %v2188
      %v2190 = vrot.slane %v2117, %v2189
      %v2196 = vunpack.c.l.b16 %v2113
      %v2197 = vunpack.c.l.b16 %v2114
      %v2198 = vunpack.c.l.b16 %v2115
      %v2199 = vunpack.c.l.b16 %v2116
      %v2200 = vpack.c.b16 %v2197, %v2196
      %v2201 = vpack.c.b16 %v2199, %v2198
      %v2205 = vsel %vm1331, %v2124, 0
      %2207 = vmatprep.subr.bf16.mxu0 0
      %2208 = vmatpush1.bf16.msra.mxu0 %v2200
      %2209 = vmatprep.subr.bf16.mxu0 0
      %2210 = vmatpush1.bf16.msra.mxu0 %v2201
      %2211 = vmatprep.subr.bf16.mxu0 0
      %2212 = vmatpush1.bf16.msra.mxu0 0
      %2213 = vmatprep.subr.bf16.mxu0 0
      %2214 = vmatpush1.bf16.msra.mxu0 0
      %2215 = vmatprep.subr.bf16.mxu0 0
      %2216 = vmatpush1.bf16.msra.mxu0 0
      %2217 = vmatprep.subr.bf16.mxu0 0
      %2218 = vmatpush1.bf16.msra.mxu0 0
      %2219 = vmatprep.subr.bf16.mxu0 0
      %2220 = vmatpush1.bf16.msra.mxu0 0
      %2221 = vmatprep.subr.bf16.mxu0 0
      %2222 = vmatpush1.bf16.msra.mxu0 0
      %2223 = vmatprep.subr.bf16.mxu0 0
      %2224 = vmatpush1.bf16.msra.mxu0 0
      %2225 = vmatprep.subr.bf16.mxu0 0
      %2226 = vmatpush1.bf16.msra.mxu0 0
      %2227 = vmatprep.subr.bf16.mxu0 0
      %2228 = vmatpush1.bf16.msra.mxu0 0
      %2229 = vmatprep.subr.bf16.mxu0 0
      %2230 = vmatpush1.bf16.msra.mxu0 0
      %2231 = vmatprep.subr.bf16.mxu0 0
      %2232 = vmatpush1.bf16.msra.mxu0 0
      %2233 = vmatprep.subr.bf16.mxu0 0
      %2234 = vmatpush1.bf16.msra.mxu0 0
      %2235 = vmatprep.subr.bf16.mxu0 0
      %2236 = vmatpush1.bf16.msra.mxu0 0
      %2237 = vmatprep.subr.bf16.mxu0 0
      %2238 = vmatpush1.bf16.msra.mxu0 0
      %2239 = vmatprep.mubr.bf16.mxu0 0
      %2240 = vmatmul.mubr.bf16.gmra.mrb[0].mxu0 %v2205
      %v2241 = vpop.f32.mrb[0].mxu0
      %v2242 = vadd.f32 %v2190, %v2241
      %v2243 = vpop.f32.mrb[0].mxu0
      %v2244 = vpop.f32.mrb[0].mxu0
      %v2245 = vpop.f32.mrb[0].mxu0
      %2246 = vdwg.mxu0
      %v2247 = vmul.f32 %v2181, 0.35355338
      %v2248 = vpack.c.bf16 %v2247, %v2247
      %v2249 = vpack.c.bf16 %v2242, %v2242
      %v2251 = vsel %vm1436, %v2248, 0
      %v2254 = vsel %vm1436, %v2249, 0
      %2256 = vmatprep.subr.bf16.mxu0 0
      %2257 = vmatpush1.bf16.xpose.msra.mxu0 %v2254
      %2258 = vmatprep.subr.bf16.mxu0 0
      %2259 = vmatpush1.bf16.xpose.msra.mxu0 0
      %2260 = vmatprep.subr.bf16.mxu0 0
      %2261 = vmatpush1.bf16.xpose.msra.mxu0 0
      %2262 = vmatprep.subr.bf16.mxu0 0
      %2263 = vmatpush1.bf16.xpose.msra.mxu0 0
      %2264 = vmatprep.subr.bf16.mxu0 0
      %2265 = vmatpush1.bf16.xpose.msra.mxu0 0
      %2266 = vmatprep.subr.bf16.mxu0 0
      %2267 = vmatpush1.bf16.xpose.msra.mxu0 0
      %2268 = vmatprep.subr.bf16.mxu0 0
      %2269 = vmatpush1.bf16.xpose.msra.mxu0 0
      %2270 = vmatprep.subr.bf16.mxu0 0
      %2271 = vmatpush1.bf16.xpose.msra.mxu0 0
      %2272 = vmatprep.subr.bf16.mxu0 0
      %2273 = vmatpush1.bf16.xpose.msra.mxu0 0
      %2274 = vmatprep.subr.bf16.mxu0 0
      %2275 = vmatpush1.bf16.xpose.msra.mxu0 0
      %2276 = vmatprep.subr.bf16.mxu0 0
      %2277 = vmatpush1.bf16.xpose.msra.mxu0 0
      %2278 = vmatprep.subr.bf16.mxu0 0
      %2279 = vmatpush1.bf16.xpose.msra.mxu0 0
      %2280 = vmatprep.subr.bf16.mxu0 0
      %2281 = vmatpush1.bf16.xpose.msra.mxu0 0
      %2282 = vmatprep.subr.bf16.mxu0 0
      %2283 = vmatpush1.bf16.xpose.msra.mxu0 0
      %2284 = vmatprep.subr.bf16.mxu0 0
      %2285 = vmatpush1.bf16.xpose.msra.mxu0 0
      %2286 = vmatprep.subr.bf16.mxu0 0
      %2287 = vmatpush1.bf16.xpose.msra.mxu0 0
      %2288 = vmatprep.mubr.bf16.mxu0 0
      %2289 = vmatmul.mubr.bf16.gmra.mrb[0].mxu0 %v2251
      %v2290 = vpop.f32.mrb[0].mxu0
      %v2291 = vadd.f32 0.0, %v2290
      %v2292 = vpop.f32.mrb[0].mxu0
      %v2293 = vpop.f32.mrb[0].mxu0
      %v2294 = vpop.f32.mrb[0].mxu0
      %2295 = vdwg.mxu0
      %vm2296 = vcmask 62464
      %v2297 = vsel %vm2296, %v2291, -inf
      %2298 = vmax.xlane.f32.xlu0 %v2297
      %v2299 = vpop.xlane.xlu0 %2298
      %v2300 = vsub.f32 %v2291, %v2299
      %v2301 = vmul.f32 %v2300, 1.442695
      %v2302 = vpow.pop %v2301
      %v2303 = vsel %vm2296, %v2302, 0.0
      %2304 = vadd.xlane.f32.xlu0 %v2303
      %v2305 = vpop.xlane.xlu0 %2304
      %v2306 = vrcp.pop %v2305
      %v2307 = vmul.f32 %v2302, %v2306
      %v2308 = vpack.c.bf16 %v2307, %v2307
      %2310 = vrot.lane.b32.xlu0 %v2249, 96
      %v2311 = vpop.permute.xlu0 %2310
      %v2313 = vsel %vm1436, %v2308, 0
      %v2316 = vsel %vm1663, %v2311, 0
      %2318 = vmatprep.subr.bf16.mxu0 0
      %2319 = vmatpush1.bf16.msra.mxu0 %v2316
      %2320 = vmatprep.subr.bf16.mxu0 0
      %2321 = vmatpush1.bf16.msra.mxu0 0
      %2322 = vmatprep.subr.bf16.mxu0 0
      %2323 = vmatpush1.bf16.msra.mxu0 0
      %2324 = vmatprep.subr.bf16.mxu0 0
      %2325 = vmatpush1.bf16.msra.mxu0 0
      %2326 = vmatprep.subr.bf16.mxu0 0
      %2327 = vmatpush1.bf16.msra.mxu0 0
      %2328 = vmatprep.subr.bf16.mxu0 0
      %2329 = vmatpush1.bf16.msra.mxu0 0
      %2330 = vmatprep.subr.bf16.mxu0 0
      %2331 = vmatpush1.bf16.msra.mxu0 0
      %2332 = vmatprep.subr.bf16.mxu0 0
      %2333 = vmatpush1.bf16.msra.mxu0 0
      %2334 = vmatprep.subr.bf16.mxu0 0
      %2335 = vmatpush1.bf16.msra.mxu0 0
      %2336 = vmatprep.subr.bf16.mxu0 0
      %2337 = vmatpush1.bf16.msra.mxu0 0
      %2338 = vmatprep.subr.bf16.mxu0 0
      %2339 = vmatpush1.bf16.msra.mxu0 0
      %2340 = vmatprep.subr.bf16.mxu0 0
      %2341 = vmatpush1.bf16.msra.mxu0 0
      %2342 = vmatprep.subr.bf16.mxu0 0
      %2343 = vmatpush1.bf16.msra.mxu0 0
      %2344 = vmatprep.subr.bf16.mxu0 0
      %2345 = vmatpush1.bf16.msra.mxu0 0
      %2346 = vmatprep.subr.bf16.mxu0 0
      %2347 = vmatpush1.bf16.msra.mxu0 0
      %2348 = vmatprep.subr.bf16.mxu0 0
      %2349 = vmatpush1.bf16.msra.mxu0 0
      %2350 = vmatprep.mubr.bf16.mxu0 0
      %2351 = vmatmul.mubr.bf16.gmra.mrb[0].mxu0 %v2313
      %v2352 = vpop.f32.mrb[0].mxu0
      %v2353 = vadd.f32 0.0, %v2352
      %v2354 = vpop.f32.mrb[0].mxu0
      %v2355 = vpop.f32.mrb[0].mxu0
      %v2356 = vpop.f32.mrb[0].mxu0
      %2357 = vdwg.mxu0
      %v2358 = vpack.c.bf16 %v2353, %v2353
      %2360 = vrot.lane.b32.xlu0 %v2248, 120
      %v2361 = vpop.permute.xlu0 %2360
      %2362 = vrot.lane.b32.xlu0 %v2249, 120
      %v2363 = vpop.permute.xlu0 %2362
      %v2365 = vsel %vm1436, %v2361, 0
      %v2368 = vsel %vm1436, %v2363, 0
      %2370 = vmatprep.subr.bf16.mxu0 0
      %2371 = vmatpush1.bf16.xpose.msra.mxu0 %v2368
      %2372 = vmatprep.subr.bf16.mxu0 0
      %2373 = vmatpush1.bf16.xpose.msra.mxu0 0
      %2374 = vmatprep.subr.bf16.mxu0 0
      %2375 = vmatpush1.bf16.xpose.msra.mxu0 0
      %2376 = vmatprep.subr.bf16.mxu0 0
      %2377 = vmatpush1.bf16.xpose.msra.mxu0 0
      %2378 = vmatprep.subr.bf16.mxu0 0
      %2379 = vmatpush1.bf16.xpose.msra.mxu0 0
      %2380 = vmatprep.subr.bf16.mxu0 0
      %2381 = vmatpush1.bf16.xpose.msra.mxu0 0
      %2382 = vmatprep.subr.bf16.mxu0 0
      %2383 = vmatpush1.bf16.xpose.msra.mxu0 0
      %2384 = vmatprep.subr.bf16.mxu0 0
      %2385 = vmatpush1.bf16.xpose.msra.mxu0 0
      %2386 = vmatprep.subr.bf16.mxu0 0
      %2387 = vmatpush1.bf16.xpose.msra.mxu0 0
      %2388 = vmatprep.subr.bf16.mxu0 0
      %2389 = vmatpush1.bf16.xpose.msra.mxu0 0
      %2390 = vmatprep.subr.bf16.mxu0 0
      %2391 = vmatpush1.bf16.xpose.msra.mxu0 0
      %2392 = vmatprep.subr.bf16.mxu0 0
      %2393 = vmatpush1.bf16.xpose.msra.mxu0 0
      %2394 = vmatprep.subr.bf16.mxu0 0
      %2395 = vmatpush1.bf16.xpose.msra.mxu0 0
      %2396 = vmatprep.subr.bf16.mxu0 0
      %2397 = vmatpush1.bf16.xpose.msra.mxu0 0
      %2398 = vmatprep.subr.bf16.mxu0 0
      %2399 = vmatpush1.bf16.xpose.msra.mxu0 0
      %2400 = vmatprep.subr.bf16.mxu0 0
      %2401 = vmatpush1.bf16.xpose.msra.mxu0 0
      %2402 = vmatprep.mubr.bf16.mxu0 0
      %2403 = vmatmul.mubr.bf16.gmra.mrb[0].mxu0 %v2365
      %v2404 = vpop.f32.mrb[0].mxu0
      %v2405 = vadd.f32 0.0, %v2404
      %v2406 = vpop.f32.mrb[0].mxu0
      %v2407 = vpop.f32.mrb[0].mxu0
      %v2408 = vpop.f32.mrb[0].mxu0
      %2409 = vdwg.mxu0
      %v2410 = vsel %vm2296, %v2405, -inf
      %2411 = vmax.xlane.f32.xlu0 %v2410
      %v2412 = vpop.xlane.xlu0 %2411
      %v2413 = vsub.f32 %v2405, %v2412
      %v2414 = vmul.f32 %v2413, 1.442695
      %v2415 = vpow.pop %v2414
      %v2416 = vsel %vm2296, %v2415, 0.0
      %2417 = vadd.xlane.f32.xlu0 %v2416
      %v2418 = vpop.xlane.xlu0 %2417
      %v2419 = vrcp.pop %v2418
      %v2420 = vmul.f32 %v2415, %v2419
      %v2421 = vpack.c.bf16 %v2420, %v2420
      %2422 = vrot.lane.b32.xlu0 %v2249, 88
      %v2423 = vpop.permute.xlu0 %2422
      %v2425 = vsel %vm1436, %v2421, 0
      %v2428 = vsel %vm1663, %v2423, 0
      %2430 = vmatprep.subr.bf16.mxu0 0
      %2431 = vmatpush1.bf16.msra.mxu0 %v2428
      %2432 = vmatprep.subr.bf16.mxu0 0
      %2433 = vmatpush1.bf16.msra.mxu0 0
      %2434 = vmatprep.subr.bf16.mxu0 0
      %2435 = vmatpush1.bf16.msra.mxu0 0
      %2436 = vmatprep.subr.bf16.mxu0 0
      %2437 = vmatpush1.bf16.msra.mxu0 0
      %2438 = vmatprep.subr.bf16.mxu0 0
      %2439 = vmatpush1.bf16.msra.mxu0 0
      %2440 = vmatprep.subr.bf16.mxu0 0
      %2441 = vmatpush1.bf16.msra.mxu0 0
      %2442 = vmatprep.subr.bf16.mxu0 0
      %2443 = vmatpush1.bf16.msra.mxu0 0
      %2444 = vmatprep.subr.bf16.mxu0 0
      %2445 = vmatpush1.bf16.msra.mxu0 0
      %2446 = vmatprep.subr.bf16.mxu0 0
      %2447 = vmatpush1.bf16.msra.mxu0 0
      %2448 = vmatprep.subr.bf16.mxu0 0
      %2449 = vmatpush1.bf16.msra.mxu0 0
      %2450 = vmatprep.subr.bf16.mxu0 0
      %2451 = vmatpush1.bf16.msra.mxu0 0
      %2452 = vmatprep.subr.bf16.mxu0 0
      %2453 = vmatpush1.bf16.msra.mxu0 0
      %2454 = vmatprep.subr.bf16.mxu0 0
      %2455 = vmatpush1.bf16.msra.mxu0 0
      %2456 = vmatprep.subr.bf16.mxu0 0
      %2457 = vmatpush1.bf16.msra.mxu0 0
      %2458 = vmatprep.subr.bf16.mxu0 0
      %2459 = vmatpush1.bf16.msra.mxu0 0
      %2460 = vmatprep.subr.bf16.mxu0 0
      %2461 = vmatpush1.bf16.msra.mxu0 0
      %2462 = vmatprep.mubr.bf16.mxu0 0
      %2463 = vmatmul.mubr.bf16.gmra.mrb[0].mxu0 %v2425
      %v2464 = vpop.f32.mrb[0].mxu0
      %v2465 = vadd.f32 0.0, %v2464
      %v2466 = vpop.f32.mrb[0].mxu0
      %v2467 = vpop.f32.mrb[0].mxu0
      %v2468 = vpop.f32.mrb[0].mxu0
      %2469 = vdwg.mxu0
      %v2470 = vpack.c.bf16 %v2465, %v2465
      %v2472 = vsel %vm1436, %v2470, 0
      %v2475 = vsel %vm1663, %v2119, 0
      %2477 = vmatprep.subr.bf16.mxu0 0
      %2478 = vmatpush1.bf16.msra.mxu0 %v2475
      %2479 = vmatprep.subr.bf16.mxu0 0
      %2480 = vmatpush1.bf16.msra.mxu0 0
      %2481 = vmatprep.subr.bf16.mxu0 0
      %2482 = vmatpush1.bf16.msra.mxu0 0
      %2483 = vmatprep.subr.bf16.mxu0 0
      %2484 = vmatpush1.bf16.msra.mxu0 0
      %2485 = vmatprep.subr.bf16.mxu0 0
      %2486 = vmatpush1.bf16.msra.mxu0 0
      %2487 = vmatprep.subr.bf16.mxu0 0
      %2488 = vmatpush1.bf16.msra.mxu0 0
      %2489 = vmatprep.subr.bf16.mxu0 0
      %2490 = vmatpush1.bf16.msra.mxu0 0
      %2491 = vmatprep.subr.bf16.mxu0 0
      %2492 = vmatpush1.bf16.msra.mxu0 0
      %2493 = vmatprep.subr.bf16.mxu0 0
      %2494 = vmatpush1.bf16.msra.mxu0 0
      %2495 = vmatprep.subr.bf16.mxu0 0
      %2496 = vmatpush1.bf16.msra.mxu0 0
      %2497 = vmatprep.subr.bf16.mxu0 0
      %2498 = vmatpush1.bf16.msra.mxu0 0
      %2499 = vmatprep.subr.bf16.mxu0 0
      %2500 = vmatpush1.bf16.msra.mxu0 0
      %2501 = vmatprep.subr.bf16.mxu0 0
      %2502 = vmatpush1.bf16.msra.mxu0 0
      %2503 = vmatprep.subr.bf16.mxu0 0
      %2504 = vmatpush1.bf16.msra.mxu0 0
      %2505 = vmatprep.subr.bf16.mxu0 0
      %2506 = vmatpush1.bf16.msra.mxu0 0
      %2507 = vmatprep.subr.bf16.mxu0 0
      %2508 = vmatpush1.bf16.msra.mxu0 0
      %2509 = vmatprep.mubr.bf16.mxu0 0
      %2510 = vmatmul.mubr.bf16.gmra.mrb[0].mxu0 %v2472
      %v2511 = vpop.f32.mrb[0].mxu0
      %v2512 = vadd.f32 0.0, %v2511
      %v2513 = vpop.f32.mrb[0].mxu0
      %v2514 = vpop.f32.mrb[0].mxu0
      %v2515 = vpop.f32.mrb[0].mxu0
      %2516 = vdwg.mxu0
      %v2518 = vsel %vm1436, %v2358, 0
      %v2521 = vsel %vm1663, %v2118, 0
      %2523 = vmatprep.subr.bf16.mxu0 0
      %2524 = vmatpush1.bf16.msra.mxu0 %v2521
      %2525 = vmatprep.subr.bf16.mxu0 0
      %2526 = vmatpush1.bf16.msra.mxu0 0
      %2527 = vmatprep.subr.bf16.mxu0 0
      %2528 = vmatpush1.bf16.msra.mxu0 0
      %2529 = vmatprep.subr.bf16.mxu0 0
      %2530 = vmatpush1.bf16.msra.mxu0 0
      %2531 = vmatprep.subr.bf16.mxu0 0
      %2532 = vmatpush1.bf16.msra.mxu0 0
      %2533 = vmatprep.subr.bf16.mxu0 0
      %2534 = vmatpush1.bf16.msra.mxu0 0
      %2535 = vmatprep.subr.bf16.mxu0 0
      %2536 = vmatpush1.bf16.msra.mxu0 0
      %2537 = vmatprep.subr.bf16.mxu0 0
      %2538 = vmatpush1.bf16.msra.mxu0 0
      %2539 = vmatprep.subr.bf16.mxu0 0
      %2540 = vmatpush1.bf16.msra.mxu0 0
      %2541 = vmatprep.subr.bf16.mxu0 0
      %2542 = vmatpush1.bf16.msra.mxu0 0
      %2543 = vmatprep.subr.bf16.mxu0 0
      %2544 = vmatpush1.bf16.msra.mxu0 0
      %2545 = vmatprep.subr.bf16.mxu0 0
      %2546 = vmatpush1.bf16.msra.mxu0 0
      %2547 = vmatprep.subr.bf16.mxu0 0
      %2548 = vmatpush1.bf16.msra.mxu0 0
      %2549 = vmatprep.subr.bf16.mxu0 0
      %2550 = vmatpush1.bf16.msra.mxu0 0
      %2551 = vmatprep.subr.bf16.mxu0 0
      %2552 = vmatpush1.bf16.msra.mxu0 0
      %2553 = vmatprep.subr.bf16.mxu0 0
      %2554 = vmatpush1.bf16.msra.mxu0 0
      %2555 = vmatprep.mubr.bf16.mxu0 0
      %2556 = vmatmul.mubr.bf16.gmra.mrb[0].mxu0 %v2518
      %v2557 = vpop.f32.mrb[0].mxu0
      %v2558 = vadd.f32 %v2512, %v2557
      %v2559 = vpop.f32.mrb[0].mxu0
      %v2560 = vpop.f32.mrb[0].mxu0
      %v2561 = vpop.f32.mrb[0].mxu0
      %2562 = vdwg.mxu0
      %2563 = vrot.lane.b32.xlu0 %v2248, 112
      %v2564 = vpop.permute.xlu0 %2563
      %2565 = vrot.lane.b32.xlu0 %v2249, 112
      %v2566 = vpop.permute.xlu0 %2565
      %v2568 = vsel %vm1436, %v2564, 0
      %v2571 = vsel %vm1436, %v2566, 0
      %2573 = vmatprep.subr.bf16.mxu0 0
      %2574 = vmatpush1.bf16.xpose.msra.mxu0 %v2571
      %2575 = vmatprep.subr.bf16.mxu0 0
      %2576 = vmatpush1.bf16.xpose.msra.mxu0 0
      %2577 = vmatprep.subr.bf16.mxu0 0
      %2578 = vmatpush1.bf16.xpose.msra.mxu0 0
      %2579 = vmatprep.subr.bf16.mxu0 0
      %2580 = vmatpush1.bf16.xpose.msra.mxu0 0
      %2581 = vmatprep.subr.bf16.mxu0 0
      %2582 = vmatpush1.bf16.xpose.msra.mxu0 0
      %2583 = vmatprep.subr.bf16.mxu0 0
      %2584 = vmatpush1.bf16.xpose.msra.mxu0 0
      %2585 = vmatprep.subr.bf16.mxu0 0
      %2586 = vmatpush1.bf16.xpose.msra.mxu0 0
      %2587 = vmatprep.subr.bf16.mxu0 0
      %2588 = vmatpush1.bf16.xpose.msra.mxu0 0
      %2589 = vmatprep.subr.bf16.mxu0 0
      %2590 = vmatpush1.bf16.xpose.msra.mxu0 0
      %2591 = vmatprep.subr.bf16.mxu0 0
      %2592 = vmatpush1.bf16.xpose.msra.mxu0 0
      %2593 = vmatprep.subr.bf16.mxu0 0
      %2594 = vmatpush1.bf16.xpose.msra.mxu0 0
      %2595 = vmatprep.subr.bf16.mxu0 0
      %2596 = vmatpush1.bf16.xpose.msra.mxu0 0
      %2597 = vmatprep.subr.bf16.mxu0 0
      %2598 = vmatpush1.bf16.xpose.msra.mxu0 0
      %2599 = vmatprep.subr.bf16.mxu0 0
      %2600 = vmatpush1.bf16.xpose.msra.mxu0 0
      %2601 = vmatprep.subr.bf16.mxu0 0
      %2602 = vmatpush1.bf16.xpose.msra.mxu0 0
      %2603 = vmatprep.subr.bf16.mxu0 0
      %2604 = vmatpush1.bf16.xpose.msra.mxu0 0
      %2605 = vmatprep.mubr.bf16.mxu0 0
      %2606 = vmatmul.mubr.bf16.gmra.mrb[0].mxu0 %v2568
      %v2607 = vpop.f32.mrb[0].mxu0
      %v2608 = vadd.f32 0.0, %v2607
      %v2609 = vpop.f32.mrb[0].mxu0
      %v2610 = vpop.f32.mrb[0].mxu0
      %v2611 = vpop.f32.mrb[0].mxu0
      %2612 = vdwg.mxu0
      %v2613 = vsel %vm2296, %v2608, -inf
      %2614 = vmax.xlane.f32.xlu0 %v2613
      %v2615 = vpop.xlane.xlu0 %2614
      %v2616 = vsub.f32 %v2608, %v2615
      %v2617 = vmul.f32 %v2616, 1.442695
      %v2618 = vpow.pop %v2617
      %v2619 = vsel %vm2296, %v2618, 0.0
      %2620 = vadd.xlane.f32.xlu0 %v2619
      %v2621 = vpop.xlane.xlu0 %2620
      %v2622 = vrcp.pop %v2621
      %v2623 = vmul.f32 %v2618, %v2622
      %v2624 = vpack.c.bf16 %v2623, %v2623
      %2625 = vrot.lane.b32.xlu0 %v2249, 80
      %v2626 = vpop.permute.xlu0 %2625
      %v2628 = vsel %vm1436, %v2624, 0
      %v2631 = vsel %vm1663, %v2626, 0
      %2633 = vmatprep.subr.bf16.mxu0 0
      %2634 = vmatpush1.bf16.msra.mxu0 %v2631
      %2635 = vmatprep.subr.bf16.mxu0 0
      %2636 = vmatpush1.bf16.msra.mxu0 0
      %2637 = vmatprep.subr.bf16.mxu0 0
      %2638 = vmatpush1.bf16.msra.mxu0 0
      %2639 = vmatprep.subr.bf16.mxu0 0
      %2640 = vmatpush1.bf16.msra.mxu0 0
      %2641 = vmatprep.subr.bf16.mxu0 0
      %2642 = vmatpush1.bf16.msra.mxu0 0
      %2643 = vmatprep.subr.bf16.mxu0 0
      %2644 = vmatpush1.bf16.msra.mxu0 0
      %2645 = vmatprep.subr.bf16.mxu0 0
      %2646 = vmatpush1.bf16.msra.mxu0 0
      %2647 = vmatprep.subr.bf16.mxu0 0
      %2648 = vmatpush1.bf16.msra.mxu0 0
      %2649 = vmatprep.subr.bf16.mxu0 0
      %2650 = vmatpush1.bf16.msra.mxu0 0
      %2651 = vmatprep.subr.bf16.mxu0 0
      %2652 = vmatpush1.bf16.msra.mxu0 0
      %2653 = vmatprep.subr.bf16.mxu0 0
      %2654 = vmatpush1.bf16.msra.mxu0 0
      %2655 = vmatprep.subr.bf16.mxu0 0
      %2656 = vmatpush1.bf16.msra.mxu0 0
      %2657 = vmatprep.subr.bf16.mxu0 0
      %2658 = vmatpush1.bf16.msra.mxu0 0
      %2659 = vmatprep.subr.bf16.mxu0 0
      %2660 = vmatpush1.bf16.msra.mxu0 0
      %2661 = vmatprep.subr.bf16.mxu0 0
      %2662 = vmatpush1.bf16.msra.mxu0 0
      %2663 = vmatprep.subr.bf16.mxu0 0
      %2664 = vmatpush1.bf16.msra.mxu0 0
      %2665 = vmatprep.mubr.bf16.mxu0 0
      %2666 = vmatmul.mubr.bf16.gmra.mrb[0].mxu0 %v2628
      %v2667 = vpop.f32.mrb[0].mxu0
      %v2668 = vadd.f32 0.0, %v2667
      %v2669 = vpop.f32.mrb[0].mxu0
      %v2670 = vpop.f32.mrb[0].mxu0
      %v2671 = vpop.f32.mrb[0].mxu0
      %2672 = vdwg.mxu0
      %v2673 = vpack.c.bf16 %v2668, %v2668
      %v2675 = vsel %vm1436, %v2673, 0
      %v2678 = vsel %vm1663, %v2120, 0
      %2680 = vmatprep.subr.bf16.mxu0 0
      %2681 = vmatpush1.bf16.msra.mxu0 %v2678
      %2682 = vmatprep.subr.bf16.mxu0 0
      %2683 = vmatpush1.bf16.msra.mxu0 0
      %2684 = vmatprep.subr.bf16.mxu0 0
      %2685 = vmatpush1.bf16.msra.mxu0 0
      %2686 = vmatprep.subr.bf16.mxu0 0
      %2687 = vmatpush1.bf16.msra.mxu0 0
      %2688 = vmatprep.subr.bf16.mxu0 0
      %2689 = vmatpush1.bf16.msra.mxu0 0
      %2690 = vmatprep.subr.bf16.mxu0 0
      %2691 = vmatpush1.bf16.msra.mxu0 0
      %2692 = vmatprep.subr.bf16.mxu0 0
      %2693 = vmatpush1.bf16.msra.mxu0 0
      %2694 = vmatprep.subr.bf16.mxu0 0
      %2695 = vmatpush1.bf16.msra.mxu0 0
      %2696 = vmatprep.subr.bf16.mxu0 0
      %2697 = vmatpush1.bf16.msra.mxu0 0
      %2698 = vmatprep.subr.bf16.mxu0 0
      %2699 = vmatpush1.bf16.msra.mxu0 0
      %2700 = vmatprep.subr.bf16.mxu0 0
      %2701 = vmatpush1.bf16.msra.mxu0 0
      %2702 = vmatprep.subr.bf16.mxu0 0
      %2703 = vmatpush1.bf16.msra.mxu0 0
      %2704 = vmatprep.subr.bf16.mxu0 0
      %2705 = vmatpush1.bf16.msra.mxu0 0
      %2706 = vmatprep.subr.bf16.mxu0 0
      %2707 = vmatpush1.bf16.msra.mxu0 0
      %2708 = vmatprep.subr.bf16.mxu0 0
      %2709 = vmatpush1.bf16.msra.mxu0 0
      %2710 = vmatprep.subr.bf16.mxu0 0
      %2711 = vmatpush1.bf16.msra.mxu0 0
      %2712 = vmatprep.mubr.bf16.mxu0 0
      %2713 = vmatmul.mubr.bf16.gmra.mrb[0].mxu0 %v2675
      %v2714 = vpop.f32.mrb[0].mxu0
      %v2715 = vadd.f32 0.0, %v2714
      %v2716 = vpop.f32.mrb[0].mxu0
      %v2717 = vpop.f32.mrb[0].mxu0
      %v2718 = vpop.f32.mrb[0].mxu0
      %2719 = vdwg.mxu0
      %v2720 = vadd.f32 %v2558, %v2715
      %2721 = vrot.lane.b32.xlu0 %v2248, 104
      %v2722 = vpop.permute.xlu0 %2721
      %2723 = vrot.lane.b32.xlu0 %v2249, 104
      %v2724 = vpop.permute.xlu0 %2723
      %v2726 = vsel %vm1436, %v2722, 0
      %v2729 = vsel %vm1436, %v2724, 0
      %2731 = vmatprep.subr.bf16.mxu0 0
      %2732 = vmatpush1.bf16.xpose.msra.mxu0 %v2729
      %2733 = vmatprep.subr.bf16.mxu0 0
      %2734 = vmatpush1.bf16.xpose.msra.mxu0 0
      %2735 = vmatprep.subr.bf16.mxu0 0
      %2736 = vmatpush1.bf16.xpose.msra.mxu0 0
      %2737 = vmatprep.subr.bf16.mxu0 0
      %2738 = vmatpush1.bf16.xpose.msra.mxu0 0
      %2739 = vmatprep.subr.bf16.mxu0 0
      %2740 = vmatpush1.bf16.xpose.msra.mxu0 0
      %2741 = vmatprep.subr.bf16.mxu0 0
      %2742 = vmatpush1.bf16.xpose.msra.mxu0 0
      %2743 = vmatprep.subr.bf16.mxu0 0
      %2744 = vmatpush1.bf16.xpose.msra.mxu0 0
      %2745 = vmatprep.subr.bf16.mxu0 0
      %2746 = vmatpush1.bf16.xpose.msra.mxu0 0
      %2747 = vmatprep.subr.bf16.mxu0 0
      %2748 = vmatpush1.bf16.xpose.msra.mxu0 0
      %2749 = vmatprep.subr.bf16.mxu0 0
      %2750 = vmatpush1.bf16.xpose.msra.mxu0 0
      %2751 = vmatprep.subr.bf16.mxu0 0
      %2752 = vmatpush1.bf16.xpose.msra.mxu0 0
      %2753 = vmatprep.subr.bf16.mxu0 0
      %2754 = vmatpush1.bf16.xpose.msra.mxu0 0
      %2755 = vmatprep.subr.bf16.mxu0 0
      %2756 = vmatpush1.bf16.xpose.msra.mxu0 0
      %2757 = vmatprep.subr.bf16.mxu0 0
      %2758 = vmatpush1.bf16.xpose.msra.mxu0 0
      %2759 = vmatprep.subr.bf16.mxu0 0
      %2760 = vmatpush1.bf16.xpose.msra.mxu0 0
      %2761 = vmatprep.subr.bf16.mxu0 0
      %2762 = vmatpush1.bf16.xpose.msra.mxu0 0
      %2763 = vmatprep.mubr.bf16.mxu0 0
      %2764 = vmatmul.mubr.bf16.gmra.mrb[0].mxu0 %v2726
      %v2765 = vpop.f32.mrb[0].mxu0
      %v2766 = vadd.f32 0.0, %v2765
      %v2767 = vpop.f32.mrb[0].mxu0
      %v2768 = vpop.f32.mrb[0].mxu0
      %v2769 = vpop.f32.mrb[0].mxu0
      %2770 = vdwg.mxu0
      %v2771 = vsel %vm2296, %v2766, -inf
      %2772 = vmax.xlane.f32.xlu0 %v2771
      %v2773 = vpop.xlane.xlu0 %2772
      %v2774 = vsub.f32 %v2766, %v2773
      %v2775 = vmul.f32 %v2774, 1.442695
      %v2776 = vpow.pop %v2775
      %v2777 = vsel %vm2296, %v2776, 0.0
      %2778 = vadd.xlane.f32.xlu0 %v2777
      %v2779 = vpop.xlane.xlu0 %2778
      %v2780 = vrcp.pop %v2779
      %v2781 = vmul.f32 %v2776, %v2780
      %v2782 = vpack.c.bf16 %v2781, %v2781
      %2783 = vrot.lane.b32.xlu0 %v2249, 72
      %v2784 = vpop.permute.xlu0 %2783
      %v2786 = vsel %vm1436, %v2782, 0
      %v2789 = vsel %vm1663, %v2784, 0
      %2791 = vmatprep.subr.bf16.mxu0 0
      %2792 = vmatpush1.bf16.msra.mxu0 %v2789
      %2793 = vmatprep.subr.bf16.mxu0 0
      %2794 = vmatpush1.bf16.msra.mxu0 0
      %2795 = vmatprep.subr.bf16.mxu0 0
      %2796 = vmatpush1.bf16.msra.mxu0 0
      %2797 = vmatprep.subr.bf16.mxu0 0
      %2798 = vmatpush1.bf16.msra.mxu0 0
      %2799 = vmatprep.subr.bf16.mxu0 0
      %2800 = vmatpush1.bf16.msra.mxu0 0
      %2801 = vmatprep.subr.bf16.mxu0 0
      %2802 = vmatpush1.bf16.msra.mxu0 0
      %2803 = vmatprep.subr.bf16.mxu0 0
      %2804 = vmatpush1.bf16.msra.mxu0 0
      %2805 = vmatprep.subr.bf16.mxu0 0
      %2806 = vmatpush1.bf16.msra.mxu0 0
      %2807 = vmatprep.subr.bf16.mxu0 0
      %2808 = vmatpush1.bf16.msra.mxu0 0
      %2809 = vmatprep.subr.bf16.mxu0 0
      %2810 = vmatpush1.bf16.msra.mxu0 0
      %2811 = vmatprep.subr.bf16.mxu0 0
      %2812 = vmatpush1.bf16.msra.mxu0 0
      %2813 = vmatprep.subr.bf16.mxu0 0
      %2814 = vmatpush1.bf16.msra.mxu0 0
      %2815 = vmatprep.subr.bf16.mxu0 0
      %2816 = vmatpush1.bf16.msra.mxu0 0
      %2817 = vmatprep.subr.bf16.mxu0 0
      %2818 = vmatpush1.bf16.msra.mxu0 0
      %2819 = vmatprep.subr.bf16.mxu0 0
      %2820 = vmatpush1.bf16.msra.mxu0 0
      %2821 = vmatprep.subr.bf16.mxu0 0
      %2822 = vmatpush1.bf16.msra.mxu0 0
      %2823 = vmatprep.mubr.bf16.mxu0 0
      %2824 = vmatmul.mubr.bf16.gmra.mrb[0].mxu0 %v2786
      %v2825 = vpop.f32.mrb[0].mxu0
      %v2826 = vadd.f32 0.0, %v2825
      %v2827 = vpop.f32.mrb[0].mxu0
      %v2828 = vpop.f32.mrb[0].mxu0
      %v2829 = vpop.f32.mrb[0].mxu0
      %2830 = vdwg.mxu0
      %v2831 = vpack.c.bf16 %v2826, %v2826
      %v2833 = vsel %vm1436, %v2831, 0
      %v2836 = vsel %vm1663, %v2121, 0
      %2838 = vmatprep.subr.bf16.mxu0 0
      %2839 = vmatpush1.bf16.msra.mxu0 %v2836
      %2840 = vmatprep.subr.bf16.mxu0 0
      %2841 = vmatpush1.bf16.msra.mxu0 0
      %2842 = vmatprep.subr.bf16.mxu0 0
      %2843 = vmatpush1.bf16.msra.mxu0 0
      %2844 = vmatprep.subr.bf16.mxu0 0
      %2845 = vmatpush1.bf16.msra.mxu0 0
      %2846 = vmatprep.subr.bf16.mxu0 0
      %2847 = vmatpush1.bf16.msra.mxu0 0
      %2848 = vmatprep.subr.bf16.mxu0 0
      %2849 = vmatpush1.bf16.msra.mxu0 0
      %2850 = vmatprep.subr.bf16.mxu0 0
      %2851 = vmatpush1.bf16.msra.mxu0 0
      %2852 = vmatprep.subr.bf16.mxu0 0
      %2853 = vmatpush1.bf16.msra.mxu0 0
      %2854 = vmatprep.subr.bf16.mxu0 0
      %2855 = vmatpush1.bf16.msra.mxu0 0
      %2856 = vmatprep.subr.bf16.mxu0 0
      %2857 = vmatpush1.bf16.msra.mxu0 0
      %2858 = vmatprep.subr.bf16.mxu0 0
      %2859 = vmatpush1.bf16.msra.mxu0 0
      %2860 = vmatprep.subr.bf16.mxu0 0
      %2861 = vmatpush1.bf16.msra.mxu0 0
      %2862 = vmatprep.subr.bf16.mxu0 0
      %2863 = vmatpush1.bf16.msra.mxu0 0
      %2864 = vmatprep.subr.bf16.mxu0 0
      %2865 = vmatpush1.bf16.msra.mxu0 0
      %2866 = vmatprep.subr.bf16.mxu0 0
      %2867 = vmatpush1.bf16.msra.mxu0 0
      %2868 = vmatprep.subr.bf16.mxu0 0
      %2869 = vmatpush1.bf16.msra.mxu0 0
      %2870 = vmatprep.mubr.bf16.mxu0 0
      %2871 = vmatmul.mubr.bf16.gmra.mrb[0].mxu0 %v2833
      %v2872 = vpop.f32.mrb[0].mxu0
      %v2873 = vadd.f32 0.0, %v2872
      %v2874 = vpop.f32.mrb[0].mxu0
      %v2875 = vpop.f32.mrb[0].mxu0
      %v2876 = vpop.f32.mrb[0].mxu0
      %2877 = vdwg.mxu0
      %v2878 = vadd.f32 %v2720, %v2873
      %v2880 = vlaneseq
      %v2881 = vshrl.u32 %v2880, 7
      %v2882 = vsub.s32 0, %v2881
      %v2883 = vrot.slane %v2122, %v2882
      %v2885 = vadd.f32 %v2878, %v2883
      %v2886 = vadd.f32 %v2885, %v2107
      %v2887 = vld [vmem:[%s1255] sm:$0x1]
      %v2888 = vld [vmem:[%s1258] sm:$0x1]
      %v2889 = vsel %vm2079, %v2886, 0.0
      %2890 = vadd.xlane.f32.xlu0 %v2889
      %v2891 = vpop.xlane.xlu0 %2890
      %v2892 = vmul.f32 %v2891, %v2083
      %v2893 = vsub.f32 %v2886, %v2892
      %v2894 = vmul.f32 %v2893, %v2893
      %v2895 = vsel %vm2079, %v2894, 0.0
      %2896 = vadd.xlane.f32.xlu0 %v2895
      %v2897 = vpop.xlane.xlu0 %2896
      %v2898 = vmul.f32 %v2897, %v2083
      %v2899 = vadd.f32 %v2898, 1e-05
      %v2900 = vrsqrt.pop %v2899
      %v2901 = vmul.f32 %v2893, %v2900
      %v2903 = vlaneseq
      %v2904 = vshrl.u32 %v2903, 7
      %v2905 = vsub.s32 0, %v2904
      %v2906 = vrot.slane %v2887, %v2905
      %v2908 = vmul.f32 %v2901, %v2906
      %v2910 = vlaneseq
      %v2911 = vshrl.u32 %v2910, 7
      %v2912 = vsub.s32 0, %v2911
      %v2913 = vrot.slane %v2888, %v2912
      %v2915 = vadd.f32 %v2908, %v2913
      %v2916 = vld [vmem:[%s1263] sm:$0xff]
      %v2917 = vld [vmem:[%s1263 + $0x8] sm:$0xff]
      %v2918 = vld [vmem:[%s1263 + $0x10] sm:$0xff]
      %v2919 = vld [vmem:[%s1263 + $0x18] sm:$0xff]
      %v2920 = vld [vmem:[%s1263 + $0x20] sm:$0xff]
      %v2921 = vld [vmem:[%s1263 + $0x28] sm:$0xff]
      %v2922 = vld [vmem:[%s1263 + $0x30] sm:$0xff]
      %v2923 = vld [vmem:[%s1263 + $0x38] sm:$0xff]
      %v2924 = vld [vmem:[%s1263 + $0x40] sm:$0xff]
      %v2925 = vld [vmem:[%s1263 + $0x48] sm:$0xff]
      %v2926 = vld [vmem:[%s1263 + $0x50] sm:$0xff]
      %v2927 = vld [vmem:[%s1263 + $0x58] sm:$0xff]
      %v2928 = vld [vmem:[%s1263 + $0x60] sm:$0xff]
      %v2929 = vld [vmem:[%s1263 + $0x68] sm:$0xff]
      %v2930 = vld [vmem:[%s1263 + $0x70] sm:$0xff]
      %v2931 = vld [vmem:[%s1263 + $0x78] sm:$0xff]
      %v2932 = vld [vmem:[%s1263 + $0x80] sm:$0xff]
      %v2933 = vld [vmem:[%s1263 + $0x88] sm:$0xff]
      %v2934 = vld [vmem:[%s1263 + $0x90] sm:$0xff]
      %v2935 = vld [vmem:[%s1263 + $0x98] sm:$0xff]
      %v2936 = vld [vmem:[%s1263 + $0xa0] sm:$0xff]
      %v2937 = vld [vmem:[%s1263 + $0xa8] sm:$0xff]
      %v2938 = vld [vmem:[%s1263 + $0xb0] sm:$0xff]
      %v2939 = vld [vmem:[%s1263 + $0xb8] sm:$0xff]
      %v2940 = vld [vmem:[%s1263 + $0xc0] sm:$0xff]
      %v2941 = vld [vmem:[%s1263 + $0xc8] sm:$0xff]
      %v2942 = vld [vmem:[%s1263 + $0xd0] sm:$0xff]
      %v2943 = vld [vmem:[%s1263 + $0xd8] sm:$0xff]
      %v2944 = vld [vmem:[%s1263 + $0xe0] sm:$0xff]
      %v2945 = vld [vmem:[%s1263 + $0xe8] sm:$0xff]
      %v2946 = vld [vmem:[%s1263 + $0xf0] sm:$0xff]
      %v2947 = vld [vmem:[%s1263 + $0xf8] sm:$0xff]
      %v2948 = vld [vmem:[%s1267] sm:$0xff]
      %v2949 = vld [vmem:[%s1267 + $0x8] sm:$0xff]
      %v2950 = vld [vmem:[%s1272] sm:$0xf]
      %v2951 = vld [vmem:[%s1272 + $0x4] sm:$0xf]
      %v2952 = vld [vmem:[%s1272 + $0x8] sm:$0xf]
      %v2953 = vld [vmem:[%s1272 + $0xc] sm:$0xf]
      %v2954 = vld [vmem:[%s1272 + $0x10] sm:$0xf]
      %v2955 = vld [vmem:[%s1272 + $0x14] sm:$0xf]
      %v2956 = vld [vmem:[%s1272 + $0x18] sm:$0xf]
      %v2957 = vld [vmem:[%s1272 + $0x1c] sm:$0xf]
      %v2958 = vld [vmem:[%s1272 + $0x20] sm:$0xf]
      %v2959 = vld [vmem:[%s1272 + $0x24] sm:$0xf]
      %v2960 = vld [vmem:[%s1272 + $0x28] sm:$0xf]
      %v2961 = vld [vmem:[%s1272 + $0x2c] sm:$0xf]
      %v2962 = vld [vmem:[%s1272 + $0x30] sm:$0xf]
      %v2963 = vld [vmem:[%s1272 + $0x34] sm:$0xf]
      %v2964 = vld [vmem:[%s1272 + $0x38] sm:$0xf]
      %v2965 = vld [vmem:[%s1272 + $0x3c] sm:$0xf]
      %v2966 = vld [vmem:[%s1272 + $0x40] sm:$0xf]
      %v2967 = vld [vmem:[%s1272 + $0x44] sm:$0xf]
      %v2968 = vld [vmem:[%s1272 + $0x48] sm:$0xf]
      %v2969 = vld [vmem:[%s1272 + $0x4c] sm:$0xf]
      %v2970 = vld [vmem:[%s1272 + $0x50] sm:$0xf]
      %v2971 = vld [vmem:[%s1272 + $0x54] sm:$0xf]
      %v2972 = vld [vmem:[%s1272 + $0x58] sm:$0xf]
      %v2973 = vld [vmem:[%s1272 + $0x5c] sm:$0xf]
      %v2974 = vld [vmem:[%s1272 + $0x60] sm:$0xf]
      %v2975 = vld [vmem:[%s1272 + $0x64] sm:$0xf]
      %v2976 = vld [vmem:[%s1272 + $0x68] sm:$0xf]
      %v2977 = vld [vmem:[%s1272 + $0x6c] sm:$0xf]
      %v2978 = vld [vmem:[%s1272 + $0x70] sm:$0xf]
      %v2979 = vld [vmem:[%s1272 + $0x74] sm:$0xf]
      %v2980 = vld [vmem:[%s1272 + $0x78] sm:$0xf]
      %v2981 = vld [vmem:[%s1272 + $0x7c] sm:$0xf]
      %v2982 = vld [vmem:[%s1272 + $0x80] sm:$0xf]
      %v2983 = vld [vmem:[%s1272 + $0x84] sm:$0xf]
      %v2984 = vld [vmem:[%s1272 + $0x88] sm:$0xf]
      %v2985 = vld [vmem:[%s1272 + $0x8c] sm:$0xf]
      %v2986 = vld [vmem:[%s1272 + $0x90] sm:$0xf]
      %v2987 = vld [vmem:[%s1272 + $0x94] sm:$0xf]
      %v2988 = vld [vmem:[%s1272 + $0x98] sm:$0xf]
      %v2989 = vld [vmem:[%s1272 + $0x9c] sm:$0xf]
      %v2990 = vld [vmem:[%s1272 + $0xa0] sm:$0xf]
      %v2991 = vld [vmem:[%s1272 + $0xa4] sm:$0xf]
      %v2992 = vld [vmem:[%s1272 + $0xa8] sm:$0xf]
      %v2993 = vld [vmem:[%s1272 + $0xac] sm:$0xf]
      %v2994 = vld [vmem:[%s1272 + $0xb0] sm:$0xf]
      %v2995 = vld [vmem:[%s1272 + $0xb4] sm:$0xf]
      %v2996 = vld [vmem:[%s1272 + $0xb8] sm:$0xf]
      %v2997 = vld [vmem:[%s1272 + $0xbc] sm:$0xf]
      %v2998 = vld [vmem:[%s1272 + $0xc0] sm:$0xf]
      %v2999 = vld [vmem:[%s1272 + $0xc4] sm:$0xf]
      %v3000 = vld [vmem:[%s1272 + $0xc8] sm:$0xf]
      %v3001 = vld [vmem:[%s1272 + $0xcc] sm:$0xf]
      %v3002 = vld [vmem:[%s1272 + $0xd0] sm:$0xf]
      %v3003 = vld [vmem:[%s1272 + $0xd4] sm:$0xf]
      %v3004 = vld [vmem:[%s1272 + $0xd8] sm:$0xf]
      %v3005 = vld [vmem:[%s1272 + $0xdc] sm:$0xf]
      %v3006 = vld [vmem:[%s1272 + $0xe0] sm:$0xf]
      %v3007 = vld [vmem:[%s1272 + $0xe4] sm:$0xf]
      %v3008 = vld [vmem:[%s1272 + $0xe8] sm:$0xf]
      %v3009 = vld [vmem:[%s1272 + $0xec] sm:$0xf]
      %v3010 = vld [vmem:[%s1272 + $0xf0] sm:$0xf]
      %v3011 = vld [vmem:[%s1272 + $0xf4] sm:$0xf]
      %v3012 = vld [vmem:[%s1272 + $0xf8] sm:$0xf]
      %v3013 = vld [vmem:[%s1272 + $0xfc] sm:$0xf]
      %v3014 = vld [vmem:[%s1272 + $0x100] sm:$0xf]
      %v3015 = vld [vmem:[%s1272 + $0x104] sm:$0xf]
      %v3016 = vld [vmem:[%s1272 + $0x108] sm:$0xf]
      %v3017 = vld [vmem:[%s1272 + $0x10c] sm:$0xf]
      %v3018 = vld [vmem:[%s1272 + $0x110] sm:$0xf]
      %v3019 = vld [vmem:[%s1272 + $0x114] sm:$0xf]
      %v3020 = vld [vmem:[%s1272 + $0x118] sm:$0xf]
      %v3021 = vld [vmem:[%s1272 + $0x11c] sm:$0xf]
      %v3022 = vld [vmem:[%s1272 + $0x120] sm:$0xf]
      %v3023 = vld [vmem:[%s1272 + $0x124] sm:$0xf]
      %v3024 = vld [vmem:[%s1272 + $0x128] sm:$0xf]
      %v3025 = vld [vmem:[%s1272 + $0x12c] sm:$0xf]
      %v3026 = vld [vmem:[%s1272 + $0x130] sm:$0xf]
      %v3027 = vld [vmem:[%s1272 + $0x134] sm:$0xf]
      %v3028 = vld [vmem:[%s1272 + $0x138] sm:$0xf]
      %v3029 = vld [vmem:[%s1272 + $0x13c] sm:$0xf]
      %v3030 = vld [vmem:[%s1272 + $0x140] sm:$0xf]
      %v3031 = vld [vmem:[%s1272 + $0x144] sm:$0xf]
      %v3032 = vld [vmem:[%s1272 + $0x148] sm:$0xf]
      %v3033 = vld [vmem:[%s1272 + $0x14c] sm:$0xf]
      %v3034 = vld [vmem:[%s1272 + $0x150] sm:$0xf]
      %v3035 = vld [vmem:[%s1272 + $0x154] sm:$0xf]
      %v3036 = vld [vmem:[%s1272 + $0x158] sm:$0xf]
      %v3037 = vld [vmem:[%s1272 + $0x15c] sm:$0xf]
      %v3038 = vld [vmem:[%s1272 + $0x160] sm:$0xf]
      %v3039 = vld [vmem:[%s1272 + $0x164] sm:$0xf]
      %v3040 = vld [vmem:[%s1272 + $0x168] sm:$0xf]
      %v3041 = vld [vmem:[%s1272 + $0x16c] sm:$0xf]
      %v3042 = vld [vmem:[%s1272 + $0x170] sm:$0xf]
      %v3043 = vld [vmem:[%s1272 + $0x174] sm:$0xf]
      %v3044 = vld [vmem:[%s1272 + $0x178] sm:$0xf]
      %v3045 = vld [vmem:[%s1272 + $0x17c] sm:$0xf]
      %v3046 = vld [vmem:[%s1272 + $0x180] sm:$0xf]
      %v3047 = vld [vmem:[%s1272 + $0x184] sm:$0xf]
      %v3048 = vld [vmem:[%s1272 + $0x188] sm:$0xf]
      %v3049 = vld [vmem:[%s1272 + $0x18c] sm:$0xf]
      %v3050 = vld [vmem:[%s1272 + $0x190] sm:$0xf]
      %v3051 = vld [vmem:[%s1272 + $0x194] sm:$0xf]
      %v3052 = vld [vmem:[%s1272 + $0x198] sm:$0xf]
      %v3053 = vld [vmem:[%s1272 + $0x19c] sm:$0xf]
      %v3054 = vld [vmem:[%s1272 + $0x1a0] sm:$0xf]
      %v3055 = vld [vmem:[%s1272 + $0x1a4] sm:$0xf]
      %v3056 = vld [vmem:[%s1272 + $0x1a8] sm:$0xf]
      %v3057 = vld [vmem:[%s1272 + $0x1ac] sm:$0xf]
      %v3058 = vld [vmem:[%s1272 + $0x1b0] sm:$0xf]
      %v3059 = vld [vmem:[%s1272 + $0x1b4] sm:$0xf]
      %v3060 = vld [vmem:[%s1272 + $0x1b8] sm:$0xf]
      %v3061 = vld [vmem:[%s1272 + $0x1bc] sm:$0xf]
      %v3062 = vld [vmem:[%s1272 + $0x1c0] sm:$0xf]
      %v3063 = vld [vmem:[%s1272 + $0x1c4] sm:$0xf]
      %v3064 = vld [vmem:[%s1272 + $0x1c8] sm:$0xf]
      %v3065 = vld [vmem:[%s1272 + $0x1cc] sm:$0xf]
      %v3066 = vld [vmem:[%s1272 + $0x1d0] sm:$0xf]
      %v3067 = vld [vmem:[%s1272 + $0x1d4] sm:$0xf]
      %v3068 = vld [vmem:[%s1272 + $0x1d8] sm:$0xf]
      %v3069 = vld [vmem:[%s1272 + $0x1dc] sm:$0xf]
      %v3070 = vld [vmem:[%s1272 + $0x1e0] sm:$0xf]
      %v3071 = vld [vmem:[%s1272 + $0x1e4] sm:$0xf]
      %v3072 = vld [vmem:[%s1272 + $0x1e8] sm:$0xf]
      %v3073 = vld [vmem:[%s1272 + $0x1ec] sm:$0xf]
      %v3074 = vld [vmem:[%s1272 + $0x1f0] sm:$0xf]
      %v3075 = vld [vmem:[%s1272 + $0x1f4] sm:$0xf]
      %v3076 = vld [vmem:[%s1272 + $0x1f8] sm:$0xf]
      %v3077 = vld [vmem:[%s1272 + $0x1fc] sm:$0xf]
      %v3078 = vld [vmem:[%s1272 + $0x200] sm:$0xf]
      %v3079 = vld [vmem:[%s1272 + $0x204] sm:$0xf]
      %v3080 = vld [vmem:[%s1272 + $0x208] sm:$0xf]
      %v3081 = vld [vmem:[%s1272 + $0x20c] sm:$0xf]
      %v3082 = vld [vmem:[%s1272 + $0x210] sm:$0xf]
      %v3083 = vld [vmem:[%s1272 + $0x214] sm:$0xf]
      %v3084 = vld [vmem:[%s1272 + $0x218] sm:$0xf]
      %v3085 = vld [vmem:[%s1272 + $0x21c] sm:$0xf]
      %v3086 = vld [vmem:[%s1272 + $0x220] sm:$0xf]
      %v3087 = vld [vmem:[%s1272 + $0x224] sm:$0xf]
      %v3088 = vld [vmem:[%s1272 + $0x228] sm:$0xf]
      %v3089 = vld [vmem:[%s1272 + $0x22c] sm:$0xf]
      %v3090 = vld [vmem:[%s1272 + $0x230] sm:$0xf]
      %v3091 = vld [vmem:[%s1272 + $0x234] sm:$0xf]
      %v3092 = vld [vmem:[%s1272 + $0x238] sm:$0xf]
      %v3093 = vld [vmem:[%s1272 + $0x23c] sm:$0xf]
      %v3094 = vld [vmem:[%s1272 + $0x240] sm:$0xf]
      %v3095 = vld [vmem:[%s1272 + $0x244] sm:$0xf]
      %v3096 = vld [vmem:[%s1272 + $0x248] sm:$0xf]
      %v3097 = vld [vmem:[%s1272 + $0x24c] sm:$0xf]
      %v3098 = vld [vmem:[%s1272 + $0x250] sm:$0xf]
      %v3099 = vld [vmem:[%s1272 + $0x254] sm:$0xf]
      %v3100 = vld [vmem:[%s1272 + $0x258] sm:$0xf]
      %v3101 = vld [vmem:[%s1272 + $0x25c] sm:$0xf]
      %v3102 = vld [vmem:[%s1272 + $0x260] sm:$0xf]
      %v3103 = vld [vmem:[%s1272 + $0x264] sm:$0xf]
      %v3104 = vld [vmem:[%s1272 + $0x268] sm:$0xf]
      %v3105 = vld [vmem:[%s1272 + $0x26c] sm:$0xf]
      %v3106 = vld [vmem:[%s1272 + $0x270] sm:$0xf]
      %v3107 = vld [vmem:[%s1272 + $0x274] sm:$0xf]
      %v3108 = vld [vmem:[%s1272 + $0x278] sm:$0xf]
      %v3109 = vld [vmem:[%s1272 + $0x27c] sm:$0xf]
      %v3110 = vld [vmem:[%s1272 + $0x280] sm:$0xf]
      %v3111 = vld [vmem:[%s1272 + $0x284] sm:$0xf]
      %v3112 = vld [vmem:[%s1272 + $0x288] sm:$0xf]
      %v3113 = vld [vmem:[%s1272 + $0x28c] sm:$0xf]
      %v3114 = vld [vmem:[%s1272 + $0x290] sm:$0xf]
      %v3115 = vld [vmem:[%s1272 + $0x294] sm:$0xf]
      %v3116 = vld [vmem:[%s1272 + $0x298] sm:$0xf]
      %v3117 = vld [vmem:[%s1272 + $0x29c] sm:$0xf]
      %v3118 = vld [vmem:[%s1272 + $0x2a0] sm:$0xf]
      %v3119 = vld [vmem:[%s1272 + $0x2a4] sm:$0xf]
      %v3120 = vld [vmem:[%s1272 + $0x2a8] sm:$0xf]
      %v3121 = vld [vmem:[%s1272 + $0x2ac] sm:$0xf]
      %v3122 = vld [vmem:[%s1272 + $0x2b0] sm:$0xf]
      %v3123 = vld [vmem:[%s1272 + $0x2b4] sm:$0xf]
      %v3124 = vld [vmem:[%s1272 + $0x2b8] sm:$0xf]
      %v3125 = vld [vmem:[%s1272 + $0x2bc] sm:$0xf]
      %v3126 = vld [vmem:[%s1272 + $0x2c0] sm:$0xf]
      %v3127 = vld [vmem:[%s1272 + $0x2c4] sm:$0xf]
      %v3128 = vld [vmem:[%s1272 + $0x2c8] sm:$0xf]
      %v3129 = vld [vmem:[%s1272 + $0x2cc] sm:$0xf]
      %v3130 = vld [vmem:[%s1272 + $0x2d0] sm:$0xf]
      %v3131 = vld [vmem:[%s1272 + $0x2d4] sm:$0xf]
      %v3132 = vld [vmem:[%s1272 + $0x2d8] sm:$0xf]
      %v3133 = vld [vmem:[%s1272 + $0x2dc] sm:$0xf]
      %v3134 = vld [vmem:[%s1272 + $0x2e0] sm:$0xf]
      %v3135 = vld [vmem:[%s1272 + $0x2e4] sm:$0xf]
      %v3136 = vld [vmem:[%s1272 + $0x2e8] sm:$0xf]
      %v3137 = vld [vmem:[%s1272 + $0x2ec] sm:$0xf]
      %v3138 = vld [vmem:[%s1272 + $0x2f0] sm:$0xf]
      %v3139 = vld [vmem:[%s1272 + $0x2f4] sm:$0xf]
      %v3140 = vld [vmem:[%s1272 + $0x2f8] sm:$0xf]
      %v3141 = vld [vmem:[%s1272 + $0x2fc] sm:$0xf]
      %v3142 = vld [vmem:[%s1272 + $0x300] sm:$0xf]
      %v3143 = vld [vmem:[%s1272 + $0x304] sm:$0xf]
      %v3144 = vld [vmem:[%s1272 + $0x308] sm:$0xf]
      %v3145 = vld [vmem:[%s1272 + $0x30c] sm:$0xf]
      %v3146 = vld [vmem:[%s1272 + $0x310] sm:$0xf]
      %v3147 = vld [vmem:[%s1272 + $0x314] sm:$0xf]
      %v3148 = vld [vmem:[%s1272 + $0x318] sm:$0xf]
      %v3149 = vld [vmem:[%s1272 + $0x31c] sm:$0xf]
      %v3150 = vld [vmem:[%s1272 + $0x320] sm:$0xf]
      %v3151 = vld [vmem:[%s1272 + $0x324] sm:$0xf]
      %v3152 = vld [vmem:[%s1272 + $0x328] sm:$0xf]
      %v3153 = vld [vmem:[%s1272 + $0x32c] sm:$0xf]
      %v3154 = vld [vmem:[%s1272 + $0x330] sm:$0xf]
      %v3155 = vld [vmem:[%s1272 + $0x334] sm:$0xf]
      %v3156 = vld [vmem:[%s1272 + $0x338] sm:$0xf]
      %v3157 = vld [vmem:[%s1272 + $0x33c] sm:$0xf]
      %v3158 = vld [vmem:[%s1272 + $0x340] sm:$0xf]
      %v3159 = vld [vmem:[%s1272 + $0x344] sm:$0xf]
      %v3160 = vld [vmem:[%s1272 + $0x348] sm:$0xf]
      %v3161 = vld [vmem:[%s1272 + $0x34c] sm:$0xf]
      %v3162 = vld [vmem:[%s1272 + $0x350] sm:$0xf]
      %v3163 = vld [vmem:[%s1272 + $0x354] sm:$0xf]
      %v3164 = vld [vmem:[%s1272 + $0x358] sm:$0xf]
      %v3165 = vld [vmem:[%s1272 + $0x35c] sm:$0xf]
      %v3166 = vld [vmem:[%s1272 + $0x360] sm:$0xf]
      %v3167 = vld [vmem:[%s1272 + $0x364] sm:$0xf]
      %v3168 = vld [vmem:[%s1272 + $0x368] sm:$0xf]
      %v3169 = vld [vmem:[%s1272 + $0x36c] sm:$0xf]
      %v3170 = vld [vmem:[%s1272 + $0x370] sm:$0xf]
      %v3171 = vld [vmem:[%s1272 + $0x374] sm:$0xf]
      %v3172 = vld [vmem:[%s1272 + $0x378] sm:$0xf]
      %v3173 = vld [vmem:[%s1272 + $0x37c] sm:$0xf]
      %v3174 = vld [vmem:[%s1272 + $0x380] sm:$0xf]
      %v3175 = vld [vmem:[%s1272 + $0x384] sm:$0xf]
      %v3176 = vld [vmem:[%s1272 + $0x388] sm:$0xf]
      %v3177 = vld [vmem:[%s1272 + $0x38c] sm:$0xf]
      %v3178 = vld [vmem:[%s1272 + $0x390] sm:$0xf]
      %v3179 = vld [vmem:[%s1272 + $0x394] sm:$0xf]
      %v3180 = vld [vmem:[%s1272 + $0x398] sm:$0xf]
      %v3181 = vld [vmem:[%s1272 + $0x39c] sm:$0xf]
      %v3182 = vld [vmem:[%s1272 + $0x3a0] sm:$0xf]
      %v3183 = vld [vmem:[%s1272 + $0x3a4] sm:$0xf]
      %v3184 = vld [vmem:[%s1272 + $0x3a8] sm:$0xf]
      %v3185 = vld [vmem:[%s1272 + $0x3ac] sm:$0xf]
      %v3186 = vld [vmem:[%s1272 + $0x3b0] sm:$0xf]
      %v3187 = vld [vmem:[%s1272 + $0x3b4] sm:$0xf]
      %v3188 = vld [vmem:[%s1272 + $0x3b8] sm:$0xf]
      %v3189 = vld [vmem:[%s1272 + $0x3bc] sm:$0xf]
      %v3190 = vld [vmem:[%s1272 + $0x3c0] sm:$0xf]
      %v3191 = vld [vmem:[%s1272 + $0x3c4] sm:$0xf]
      %v3192 = vld [vmem:[%s1272 + $0x3c8] sm:$0xf]
      %v3193 = vld [vmem:[%s1272 + $0x3cc] sm:$0xf]
      %v3194 = vld [vmem:[%s1272 + $0x3d0] sm:$0xf]
      %v3195 = vld [vmem:[%s1272 + $0x3d4] sm:$0xf]
      %v3196 = vld [vmem:[%s1272 + $0x3d8] sm:$0xf]
      %v3197 = vld [vmem:[%s1272 + $0x3dc] sm:$0xf]
      %v3198 = vld [vmem:[%s1272 + $0x3e0] sm:$0xf]
      %v3199 = vld [vmem:[%s1272 + $0x3e4] sm:$0xf]
      %v3200 = vld [vmem:[%s1272 + $0x3e8] sm:$0xf]
      %v3201 = vld [vmem:[%s1272 + $0x3ec] sm:$0xf]
      %v3202 = vld [vmem:[%s1272 + $0x3f0] sm:$0xf]
      %v3203 = vld [vmem:[%s1272 + $0x3f4] sm:$0xf]
      %v3204 = vld [vmem:[%s1272 + $0x3f8] sm:$0xf]
      %v3205 = vld [vmem:[%s1272 + $0x3fc] sm:$0xf]
      %v3206 = vld [vmem:[%s1275] sm:$0x1]
      %v3207 = vpack.c.bf16 %v2915, %v2915
      %v3210 = vlaneseq
      %v3211 = vshrl.u32 %v3210, 7
      %v3212 = vsub.s32 0, %v3211
      %v3213 = vrot.slane %v2948, %v3212
      %v3214 = vlaneseq
      %v3215 = vshrl.u32 %v3214, 7
      %v3216 = vsub.s32 1, %v3215
      %v3217 = vrot.slane %v2948, %v3216
      %v3218 = vlaneseq
      %v3219 = vshrl.u32 %v3218, 7
      %v3220 = vsub.s32 2, %v3219
      %v3221 = vrot.slane %v2948, %v3220
      %v3222 = vlaneseq
      %v3223 = vshrl.u32 %v3222, 7
      %v3224 = vsub.s32 3, %v3223
      %v3225 = vrot.slane %v2948, %v3224
      %v3226 = vlaneseq
      %v3227 = vshrl.u32 %v3226, 7
      %v3228 = vsub.s32 4, %v3227
      %v3229 = vrot.slane %v2948, %v3228
      %v3230 = vlaneseq
      %v3231 = vshrl.u32 %v3230, 7
      %v3232 = vsub.s32 5, %v3231
      %v3233 = vrot.slane %v2948, %v3232
      %v3234 = vlaneseq
      %v3235 = vshrl.u32 %v3234, 7
      %v3236 = vsub.s32 6, %v3235
      %v3237 = vrot.slane %v2948, %v3236
      %v3238 = vlaneseq
      %v3239 = vshrl.u32 %v3238, 7
      %v3240 = vsub.s32 7, %v3239
      %v3241 = vrot.slane %v2948, %v3240
      %v3242 = vlaneseq
      %v3243 = vshrl.u32 %v3242, 7
      %v3244 = vsub.s32 0, %v3243
      %v3245 = vrot.slane %v2949, %v3244
      %v3246 = vlaneseq
      %v3247 = vshrl.u32 %v3246, 7
      %v3248 = vsub.s32 1, %v3247
      %v3249 = vrot.slane %v2949, %v3248
      %v3250 = vlaneseq
      %v3251 = vshrl.u32 %v3250, 7
      %v3252 = vsub.s32 2, %v3251
      %v3253 = vrot.slane %v2949, %v3252
      %v3254 = vlaneseq
      %v3255 = vshrl.u32 %v3254, 7
      %v3256 = vsub.s32 3, %v3255
      %v3257 = vrot.slane %v2949, %v3256
      %v3258 = vlaneseq
      %v3259 = vshrl.u32 %v3258, 7
      %v3260 = vsub.s32 4, %v3259
      %v3261 = vrot.slane %v2949, %v3260
      %v3262 = vlaneseq
      %v3263 = vshrl.u32 %v3262, 7
      %v3264 = vsub.s32 5, %v3263
      %v3265 = vrot.slane %v2949, %v3264
      %v3266 = vlaneseq
      %v3267 = vshrl.u32 %v3266, 7
      %v3268 = vsub.s32 6, %v3267
      %v3269 = vrot.slane %v2949, %v3268
      %v3270 = vlaneseq
      %v3271 = vshrl.u32 %v3270, 7
      %v3272 = vsub.s32 7, %v3271
      %v3273 = vrot.slane %v2949, %v3272
      %v3322 = vunpack.c.l.b16 %v2916
      %v3323 = vunpack.c.h.b16 %v2916
      %v3324 = vunpack.c.l.b16 %v2917
      %v3325 = vunpack.c.h.b16 %v2917
      %v3326 = vunpack.c.l.b16 %v2918
      %v3327 = vunpack.c.h.b16 %v2918
      %v3328 = vunpack.c.l.b16 %v2919
      %v3329 = vunpack.c.h.b16 %v2919
      %v3330 = vunpack.c.l.b16 %v2920
      %v3331 = vunpack.c.h.b16 %v2920
      %v3332 = vunpack.c.l.b16 %v2921
      %v3333 = vunpack.c.h.b16 %v2921
      %v3334 = vunpack.c.l.b16 %v2922
      %v3335 = vunpack.c.h.b16 %v2922
      %v3336 = vunpack.c.l.b16 %v2923
      %v3337 = vunpack.c.h.b16 %v2923
      %v3338 = vunpack.c.l.b16 %v2924
      %v3339 = vunpack.c.h.b16 %v2924
      %v3340 = vunpack.c.l.b16 %v2925
      %v3341 = vunpack.c.h.b16 %v2925
      %v3342 = vunpack.c.l.b16 %v2926
      %v3343 = vunpack.c.h.b16 %v2926
      %v3344 = vunpack.c.l.b16 %v2927
      %v3345 = vunpack.c.h.b16 %v2927
      %v3346 = vunpack.c.l.b16 %v2928
      %v3347 = vunpack.c.h.b16 %v2928
      %v3348 = vunpack.c.l.b16 %v2929
      %v3349 = vunpack.c.h.b16 %v2929
      %v3350 = vunpack.c.l.b16 %v2930
      %v3351 = vunpack.c.h.b16 %v2930
      %v3352 = vunpack.c.l.b16 %v2931
      %v3353 = vunpack.c.h.b16 %v2931
      %v3354 = vunpack.c.l.b16 %v2932
      %v3355 = vunpack.c.h.b16 %v2932
      %v3356 = vunpack.c.l.b16 %v2933
      %v3357 = vunpack.c.h.b16 %v2933
      %v3358 = vunpack.c.l.b16 %v2934
      %v3359 = vunpack.c.h.b16 %v2934
      %v3360 = vunpack.c.l.b16 %v2935
      %v3361 = vunpack.c.h.b16 %v2935
      %v3362 = vunpack.c.l.b16 %v2936
      %v3363 = vunpack.c.h.b16 %v2936
      %v3364 = vunpack.c.l.b16 %v2937
      %v3365 = vunpack.c.h.b16 %v2937
      %v3366 = vunpack.c.l.b16 %v2938
      %v3367 = vunpack.c.h.b16 %v2938
      %v3368 = vunpack.c.l.b16 %v2939
      %v3369 = vunpack.c.h.b16 %v2939
      %v3370 = vunpack.c.l.b16 %v2940
      %v3371 = vunpack.c.h.b16 %v2940
      %v3372 = vunpack.c.l.b16 %v2941
      %v3373 = vunpack.c.h.b16 %v2941
      %v3374 = vunpack.c.l.b16 %v2942
      %v3375 = vunpack.c.h.b16 %v2942
      %v3376 = vunpack.c.l.b16 %v2943
      %v3377 = vunpack.c.h.b16 %v2943
      %v3378 = vunpack.c.l.b16 %v2944
      %v3379 = vunpack.c.h.b16 %v2944
      %v3380 = vunpack.c.l.b16 %v2945
      %v3381 = vunpack.c.h.b16 %v2945
      %v3382 = vunpack.c.l.b16 %v2946
      %v3383 = vunpack.c.h.b16 %v2946
      %v3384 = vunpack.c.l.b16 %v2947
      %v3385 = vunpack.c.h.b16 %v2947
      %v3386 = vpack.c.b16 %v3338, %v3322
      %v3387 = vpack.c.b16 %v3339, %v3323
      %v3388 = vpack.c.b16 %v3340, %v3324
      %v3389 = vpack.c.b16 %v3341, %v3325
      %v3390 = vpack.c.b16 %v3342, %v3326
      %v3391 = vpack.c.b16 %v3343, %v3327
      %v3392 = vpack.c.b16 %v3344, %v3328
      %v3393 = vpack.c.b16 %v3345, %v3329
      %v3394 = vpack.c.b16 %v3346, %v3330
      %v3395 = vpack.c.b16 %v3347, %v3331
      %v3396 = vpack.c.b16 %v3348, %v3332
      %v3397 = vpack.c.b16 %v3349, %v3333
      %v3398 = vpack.c.b16 %v3350, %v3334
      %v3399 = vpack.c.b16 %v3351, %v3335
      %v3400 = vpack.c.b16 %v3352, %v3336
      %v3401 = vpack.c.b16 %v3353, %v3337
      %v3402 = vpack.c.b16 %v3370, %v3354
      %v3403 = vpack.c.b16 %v3371, %v3355
      %v3404 = vpack.c.b16 %v3372, %v3356
      %v3405 = vpack.c.b16 %v3373, %v3357
      %v3406 = vpack.c.b16 %v3374, %v3358
      %v3407 = vpack.c.b16 %v3375, %v3359
      %v3408 = vpack.c.b16 %v3376, %v3360
      %v3409 = vpack.c.b16 %v3377, %v3361
      %v3410 = vpack.c.b16 %v3378, %v3362
      %v3411 = vpack.c.b16 %v3379, %v3363
      %v3412 = vpack.c.b16 %v3380, %v3364
      %v3413 = vpack.c.b16 %v3381, %v3365
      %v3414 = vpack.c.b16 %v3382, %v3366
      %v3415 = vpack.c.b16 %v3383, %v3367
      %v3416 = vpack.c.b16 %v3384, %v3368
      %v3417 = vpack.c.b16 %v3385, %v3369
      %v3451 = vsel %vm1331, %v3207, 0
      %3453 = vmatprep.subr.bf16.mxu0 %v3387
      %3454 = vmatpush1.bf16.msra.mxu0 %v3386
      %3455 = vmatprep.subr.bf16.mxu0 %v3403
      %3456 = vmatpush1.bf16.msra.mxu0 %v3402
      %3457 = vmatprep.subr.bf16.mxu0 0
      %3458 = vmatpush1.bf16.msra.mxu0 0
      %3459 = vmatprep.subr.bf16.mxu0 0
      %3460 = vmatpush1.bf16.msra.mxu0 0
      %3461 = vmatprep.subr.bf16.mxu0 0
      %3462 = vmatpush1.bf16.msra.mxu0 0
      %3463 = vmatprep.subr.bf16.mxu0 0
      %3464 = vmatpush1.bf16.msra.mxu0 0
      %3465 = vmatprep.subr.bf16.mxu0 0
      %3466 = vmatpush1.bf16.msra.mxu0 0
      %3467 = vmatprep.subr.bf16.mxu0 0
      %3468 = vmatpush1.bf16.msra.mxu0 0
      %3469 = vmatprep.subr.bf16.mxu0 0
      %3470 = vmatpush1.bf16.msra.mxu0 0
      %3471 = vmatprep.subr.bf16.mxu0 0
      %3472 = vmatpush1.bf16.msra.mxu0 0
      %3473 = vmatprep.subr.bf16.mxu0 0
      %3474 = vmatpush1.bf16.msra.mxu0 0
      %3475 = vmatprep.subr.bf16.mxu0 0
      %3476 = vmatpush1.bf16.msra.mxu0 0
      %3477 = vmatprep.subr.bf16.mxu0 0
      %3478 = vmatpush1.bf16.msra.mxu0 0
      %3479 = vmatprep.subr.bf16.mxu0 0
      %3480 = vmatpush1.bf16.msra.mxu0 0
      %3481 = vmatprep.subr.bf16.mxu0 0
      %3482 = vmatpush1.bf16.msra.mxu0 0
      %3483 = vmatprep.subr.bf16.mxu0 0
      %3484 = vmatpush1.bf16.msra.mxu0 0
      %3485 = vmatprep.mubr.bf16.mxu0 0
      %3486 = vmatmul.mubr.bf16.gmra.mrb[0].mxu0 %v3451
      %v3487 = vpop.f32.mrb[0].mxu0
      %v3488 = vadd.f32 %v3213, %v3487
      %v3489 = vpop.f32.mrb[0].mxu0
      %v3490 = vadd.f32 %v3217, %v3489
      %v3491 = vpop.f32.mrb[0].mxu0
      %v3492 = vpop.f32.mrb[0].mxu0
      %3493 = vdwg.mxu0
      %3494 = vmatprep.subr.bf16.mxu0 %v3389
      %3495 = vmatpush1.bf16.msra.mxu0 %v3388
      %3496 = vmatprep.subr.bf16.mxu0 %v3405
      %3497 = vmatpush1.bf16.msra.mxu0 %v3404
      %3498 = vmatprep.subr.bf16.mxu0 0
      %3499 = vmatpush1.bf16.msra.mxu0 0
      %3500 = vmatprep.subr.bf16.mxu0 0
      %3501 = vmatpush1.bf16.msra.mxu0 0
      %3502 = vmatprep.subr.bf16.mxu0 0
      %3503 = vmatpush1.bf16.msra.mxu0 0
      %3504 = vmatprep.subr.bf16.mxu0 0
      %3505 = vmatpush1.bf16.msra.mxu0 0
      %3506 = vmatprep.subr.bf16.mxu0 0
      %3507 = vmatpush1.bf16.msra.mxu0 0
      %3508 = vmatprep.subr.bf16.mxu0 0
      %3509 = vmatpush1.bf16.msra.mxu0 0
      %3510 = vmatprep.subr.bf16.mxu0 0
      %3511 = vmatpush1.bf16.msra.mxu0 0
      %3512 = vmatprep.subr.bf16.mxu0 0
      %3513 = vmatpush1.bf16.msra.mxu0 0
      %3514 = vmatprep.subr.bf16.mxu0 0
      %3515 = vmatpush1.bf16.msra.mxu0 0
      %3516 = vmatprep.subr.bf16.mxu0 0
      %3517 = vmatpush1.bf16.msra.mxu0 0
      %3518 = vmatprep.subr.bf16.mxu0 0
      %3519 = vmatpush1.bf16.msra.mxu0 0
      %3520 = vmatprep.subr.bf16.mxu0 0
      %3521 = vmatpush1.bf16.msra.mxu0 0
      %3522 = vmatprep.subr.bf16.mxu0 0
      %3523 = vmatpush1.bf16.msra.mxu0 0
      %3524 = vmatprep.subr.bf16.mxu0 0
      %3525 = vmatpush1.bf16.msra.mxu0 0
      %3526 = vmatprep.mubr.bf16.mxu0 0
      %3527 = vmatmul.mubr.bf16.gmra.mrb[0].mxu0 %v3451
      %v3528 = vpop.f32.mrb[0].mxu0
      %v3529 = vadd.f32 %v3221, %v3528
      %v3530 = vpop.f32.mrb[0].mxu0
      %v3531 = vadd.f32 %v3225, %v3530
      %v3532 = vpop.f32.mrb[0].mxu0
      %v3533 = vpop.f32.mrb[0].mxu0
      %3534 = vdwg.mxu0
      %3535 = vmatprep.subr.bf16.mxu0 %v3391
      %3536 = vmatpush1.bf16.msra.mxu0 %v3390
      %3537 = vmatprep.subr.bf16.mxu0 %v3407
      %3538 = vmatpush1.bf16.msra.mxu0 %v3406
      %3539 = vmatprep.subr.bf16.mxu0 0
      %3540 = vmatpush1.bf16.msra.mxu0 0
      %3541 = vmatprep.subr.bf16.mxu0 0
      %3542 = vmatpush1.bf16.msra.mxu0 0
      %3543 = vmatprep.subr.bf16.mxu0 0
      %3544 = vmatpush1.bf16.msra.mxu0 0
      %3545 = vmatprep.subr.bf16.mxu0 0
      %3546 = vmatpush1.bf16.msra.mxu0 0
      %3547 = vmatprep.subr.bf16.mxu0 0
      %3548 = vmatpush1.bf16.msra.mxu0 0
      %3549 = vmatprep.subr.bf16.mxu0 0
      %3550 = vmatpush1.bf16.msra.mxu0 0
      %3551 = vmatprep.subr.bf16.mxu0 0
      %3552 = vmatpush1.bf16.msra.mxu0 0
      %3553 = vmatprep.subr.bf16.mxu0 0
      %3554 = vmatpush1.bf16.msra.mxu0 0
      %3555 = vmatprep.subr.bf16.mxu0 0
      %3556 = vmatpush1.bf16.msra.mxu0 0
      %3557 = vmatprep.subr.bf16.mxu0 0
      %3558 = vmatpush1.bf16.msra.mxu0 0
      %3559 = vmatprep.subr.bf16.mxu0 0
      %3560 = vmatpush1.bf16.msra.mxu0 0
      %3561 = vmatprep.subr.bf16.mxu0 0
      %3562 = vmatpush1.bf16.msra.mxu0 0
      %3563 = vmatprep.subr.bf16.mxu0 0
      %3564 = vmatpush1.bf16.msra.mxu0 0
      %3565 = vmatprep.subr.bf16.mxu0 0
      %3566 = vmatpush1.bf16.msra.mxu0 0
      %3567 = vmatprep.mubr.bf16.mxu0 0
      %3568 = vmatmul.mubr.bf16.gmra.mrb[0].mxu0 %v3451
      %v3569 = vpop.f32.mrb[0].mxu0
      %v3570 = vadd.f32 %v3229, %v3569
      %v3571 = vpop.f32.mrb[0].mxu0
      %v3572 = vadd.f32 %v3233, %v3571
      %v3573 = vpop.f32.mrb[0].mxu0
      %v3574 = vpop.f32.mrb[0].mxu0
      %3575 = vdwg.mxu0
      %3576 = vmatprep.subr.bf16.mxu0 %v3393
      %3577 = vmatpush1.bf16.msra.mxu0 %v3392
      %3578 = vmatprep.subr.bf16.mxu0 %v3409
      %3579 = vmatpush1.bf16.msra.mxu0 %v3408
      %3580 = vmatprep.subr.bf16.mxu0 0
      %3581 = vmatpush1.bf16.msra.mxu0 0
      %3582 = vmatprep.subr.bf16.mxu0 0
      %3583 = vmatpush1.bf16.msra.mxu0 0
      %3584 = vmatprep.subr.bf16.mxu0 0
      %3585 = vmatpush1.bf16.msra.mxu0 0
      %3586 = vmatprep.subr.bf16.mxu0 0
      %3587 = vmatpush1.bf16.msra.mxu0 0
      %3588 = vmatprep.subr.bf16.mxu0 0
      %3589 = vmatpush1.bf16.msra.mxu0 0
      %3590 = vmatprep.subr.bf16.mxu0 0
      %3591 = vmatpush1.bf16.msra.mxu0 0
      %3592 = vmatprep.subr.bf16.mxu0 0
      %3593 = vmatpush1.bf16.msra.mxu0 0
      %3594 = vmatprep.subr.bf16.mxu0 0
      %3595 = vmatpush1.bf16.msra.mxu0 0
      %3596 = vmatprep.subr.bf16.mxu0 0
      %3597 = vmatpush1.bf16.msra.mxu0 0
      %3598 = vmatprep.subr.bf16.mxu0 0
      %3599 = vmatpush1.bf16.msra.mxu0 0
      %3600 = vmatprep.subr.bf16.mxu0 0
      %3601 = vmatpush1.bf16.msra.mxu0 0
      %3602 = vmatprep.subr.bf16.mxu0 0
      %3603 = vmatpush1.bf16.msra.mxu0 0
      %3604 = vmatprep.subr.bf16.mxu0 0
      %3605 = vmatpush1.bf16.msra.mxu0 0
      %3606 = vmatprep.subr.bf16.mxu0 0
      %3607 = vmatpush1.bf16.msra.mxu0 0
      %3608 = vmatprep.mubr.bf16.mxu0 0
      %3609 = vmatmul.mubr.bf16.gmra.mrb[0].mxu0 %v3451
      %v3610 = vpop.f32.mrb[0].mxu0
      %v3611 = vadd.f32 %v3237, %v3610
      %v3612 = vpop.f32.mrb[0].mxu0
      %v3613 = vadd.f32 %v3241, %v3612
      %v3614 = vpop.f32.mrb[0].mxu0
      %v3615 = vpop.f32.mrb[0].mxu0
      %3616 = vdwg.mxu0
      %3617 = vmatprep.subr.bf16.mxu0 %v3395
      %3618 = vmatpush1.bf16.msra.mxu0 %v3394
      %3619 = vmatprep.subr.bf16.mxu0 %v3411
      %3620 = vmatpush1.bf16.msra.mxu0 %v3410
      %3621 = vmatprep.subr.bf16.mxu0 0
      %3622 = vmatpush1.bf16.msra.mxu0 0
      %3623 = vmatprep.subr.bf16.mxu0 0
      %3624 = vmatpush1.bf16.msra.mxu0 0
      %3625 = vmatprep.subr.bf16.mxu0 0
      %3626 = vmatpush1.bf16.msra.mxu0 0
      %3627 = vmatprep.subr.bf16.mxu0 0
      %3628 = vmatpush1.bf16.msra.mxu0 0
      %3629 = vmatprep.subr.bf16.mxu0 0
      %3630 = vmatpush1.bf16.msra.mxu0 0
      %3631 = vmatprep.subr.bf16.mxu0 0
      %3632 = vmatpush1.bf16.msra.mxu0 0
      %3633 = vmatprep.subr.bf16.mxu0 0
      %3634 = vmatpush1.bf16.msra.mxu0 0
      %3635 = vmatprep.subr.bf16.mxu0 0
      %3636 = vmatpush1.bf16.msra.mxu0 0
      %3637 = vmatprep.subr.bf16.mxu0 0
      %3638 = vmatpush1.bf16.msra.mxu0 0
      %3639 = vmatprep.subr.bf16.mxu0 0
      %3640 = vmatpush1.bf16.msra.mxu0 0
      %3641 = vmatprep.subr.bf16.mxu0 0
      %3642 = vmatpush1.bf16.msra.mxu0 0
      %3643 = vmatprep.subr.bf16.mxu0 0
      %3644 = vmatpush1.bf16.msra.mxu0 0
      %3645 = vmatprep.subr.bf16.mxu0 0
      %3646 = vmatpush1.bf16.msra.mxu0 0
      %3647 = vmatprep.subr.bf16.mxu0 0
      %3648 = vmatpush1.bf16.msra.mxu0 0
      %3649 = vmatprep.mubr.bf16.mxu0 0
      %3650 = vmatmul.mubr.bf16.gmra.mrb[0].mxu0 %v3451
      %v3651 = vpop.f32.mrb[0].mxu0
      %v3652 = vadd.f32 %v3245, %v3651
      %v3653 = vpop.f32.mrb[0].mxu0
      %v3654 = vadd.f32 %v3249, %v3653
      %v3655 = vpop.f32.mrb[0].mxu0
      %v3656 = vpop.f32.mrb[0].mxu0
      %3657 = vdwg.mxu0
      %3658 = vmatprep.subr.bf16.mxu0 %v3397
      %3659 = vmatpush1.bf16.msra.mxu0 %v3396
      %3660 = vmatprep.subr.bf16.mxu0 %v3413
      %3661 = vmatpush1.bf16.msra.mxu0 %v3412
      %3662 = vmatprep.subr.bf16.mxu0 0
      %3663 = vmatpush1.bf16.msra.mxu0 0
      %3664 = vmatprep.subr.bf16.mxu0 0
      %3665 = vmatpush1.bf16.msra.mxu0 0
      %3666 = vmatprep.subr.bf16.mxu0 0
      %3667 = vmatpush1.bf16.msra.mxu0 0
      %3668 = vmatprep.subr.bf16.mxu0 0
      %3669 = vmatpush1.bf16.msra.mxu0 0
      %3670 = vmatprep.subr.bf16.mxu0 0
      %3671 = vmatpush1.bf16.msra.mxu0 0
      %3672 = vmatprep.subr.bf16.mxu0 0
      %3673 = vmatpush1.bf16.msra.mxu0 0
      %3674 = vmatprep.subr.bf16.mxu0 0
      %3675 = vmatpush1.bf16.msra.mxu0 0
      %3676 = vmatprep.subr.bf16.mxu0 0
      %3677 = vmatpush1.bf16.msra.mxu0 0
      %3678 = vmatprep.subr.bf16.mxu0 0
      %3679 = vmatpush1.bf16.msra.mxu0 0
      %3680 = vmatprep.subr.bf16.mxu0 0
      %3681 = vmatpush1.bf16.msra.mxu0 0
      %3682 = vmatprep.subr.bf16.mxu0 0
      %3683 = vmatpush1.bf16.msra.mxu0 0
      %3684 = vmatprep.subr.bf16.mxu0 0
      %3685 = vmatpush1.bf16.msra.mxu0 0
      %3686 = vmatprep.subr.bf16.mxu0 0
      %3687 = vmatpush1.bf16.msra.mxu0 0
      %3688 = vmatprep.subr.bf16.mxu0 0
      %3689 = vmatpush1.bf16.msra.mxu0 0
      %3690 = vmatprep.mubr.bf16.mxu0 0
      %3691 = vmatmul.mubr.bf16.gmra.mrb[0].mxu0 %v3451
      %v3692 = vpop.f32.mrb[0].mxu0
      %v3693 = vadd.f32 %v3253, %v3692
      %v3694 = vpop.f32.mrb[0].mxu0
      %v3695 = vadd.f32 %v3257, %v3694
      %v3696 = vpop.f32.mrb[0].mxu0
      %v3697 = vpop.f32.mrb[0].mxu0
      %3698 = vdwg.mxu0
      %3699 = vmatprep.subr.bf16.mxu0 %v3399
      %3700 = vmatpush1.bf16.msra.mxu0 %v3398
      %3701 = vmatprep.subr.bf16.mxu0 %v3415
      %3702 = vmatpush1.bf16.msra.mxu0 %v3414
      %3703 = vmatprep.subr.bf16.mxu0 0
      %3704 = vmatpush1.bf16.msra.mxu0 0
      %3705 = vmatprep.subr.bf16.mxu0 0
      %3706 = vmatpush1.bf16.msra.mxu0 0
      %3707 = vmatprep.subr.bf16.mxu0 0
      %3708 = vmatpush1.bf16.msra.mxu0 0
      %3709 = vmatprep.subr.bf16.mxu0 0
      %3710 = vmatpush1.bf16.msra.mxu0 0
      %3711 = vmatprep.subr.bf16.mxu0 0
      %3712 = vmatpush1.bf16.msra.mxu0 0
      %3713 = vmatprep.subr.bf16.mxu0 0
      %3714 = vmatpush1.bf16.msra.mxu0 0
      %3715 = vmatprep.subr.bf16.mxu0 0
      %3716 = vmatpush1.bf16.msra.mxu0 0
      %3717 = vmatprep.subr.bf16.mxu0 0
      %3718 = vmatpush1.bf16.msra.mxu0 0
      %3719 = vmatprep.subr.bf16.mxu0 0
      %3720 = vmatpush1.bf16.msra.mxu0 0
      %3721 = vmatprep.subr.bf16.mxu0 0
      %3722 = vmatpush1.bf16.msra.mxu0 0
      %3723 = vmatprep.subr.bf16.mxu0 0
      %3724 = vmatpush1.bf16.msra.mxu0 0
      %3725 = vmatprep.subr.bf16.mxu0 0
      %3726 = vmatpush1.bf16.msra.mxu0 0
      %3727 = vmatprep.subr.bf16.mxu0 0
      %3728 = vmatpush1.bf16.msra.mxu0 0
      %3729 = vmatprep.subr.bf16.mxu0 0
      %3730 = vmatpush1.bf16.msra.mxu0 0
      %3731 = vmatprep.mubr.bf16.mxu0 0
      %3732 = vmatmul.mubr.bf16.gmra.mrb[0].mxu0 %v3451
      %v3733 = vpop.f32.mrb[0].mxu0
      %v3734 = vadd.f32 %v3261, %v3733
      %v3735 = vpop.f32.mrb[0].mxu0
      %v3736 = vadd.f32 %v3265, %v3735
      %v3737 = vpop.f32.mrb[0].mxu0
      %v3738 = vpop.f32.mrb[0].mxu0
      %3739 = vdwg.mxu0
      %3740 = vmatprep.subr.bf16.mxu0 %v3401
      %3741 = vmatpush1.bf16.msra.mxu0 %v3400
      %3742 = vmatprep.subr.bf16.mxu0 %v3417
      %3743 = vmatpush1.bf16.msra.mxu0 %v3416
      %3744 = vmatprep.subr.bf16.mxu0 0
      %3745 = vmatpush1.bf16.msra.mxu0 0
      %3746 = vmatprep.subr.bf16.mxu0 0
      %3747 = vmatpush1.bf16.msra.mxu0 0
      %3748 = vmatprep.subr.bf16.mxu0 0
      %3749 = vmatpush1.bf16.msra.mxu0 0
      %3750 = vmatprep.subr.bf16.mxu0 0
      %3751 = vmatpush1.bf16.msra.mxu0 0
      %3752 = vmatprep.subr.bf16.mxu0 0
      %3753 = vmatpush1.bf16.msra.mxu0 0
      %3754 = vmatprep.subr.bf16.mxu0 0
      %3755 = vmatpush1.bf16.msra.mxu0 0
      %3756 = vmatprep.subr.bf16.mxu0 0
      %3757 = vmatpush1.bf16.msra.mxu0 0
      %3758 = vmatprep.subr.bf16.mxu0 0
      %3759 = vmatpush1.bf16.msra.mxu0 0
      %3760 = vmatprep.subr.bf16.mxu0 0
      %3761 = vmatpush1.bf16.msra.mxu0 0
      %3762 = vmatprep.subr.bf16.mxu0 0
      %3763 = vmatpush1.bf16.msra.mxu0 0
      %3764 = vmatprep.subr.bf16.mxu0 0
      %3765 = vmatpush1.bf16.msra.mxu0 0
      %3766 = vmatprep.subr.bf16.mxu0 0
      %3767 = vmatpush1.bf16.msra.mxu0 0
      %3768 = vmatprep.subr.bf16.mxu0 0
      %3769 = vmatpush1.bf16.msra.mxu0 0
      %3770 = vmatprep.subr.bf16.mxu0 0
      %3771 = vmatpush1.bf16.msra.mxu0 0
      %3772 = vmatprep.mubr.bf16.mxu0 0
      %3773 = vmatmul.mubr.bf16.gmra.mrb[0].mxu0 %v3451
      %v3774 = vpop.f32.mrb[0].mxu0
      %v3775 = vadd.f32 %v3269, %v3774
      %v3776 = vpop.f32.mrb[0].mxu0
      %v3777 = vadd.f32 %v3273, %v3776
      %v3778 = vpop.f32.mrb[0].mxu0
      %v3779 = vpop.f32.mrb[0].mxu0
      %3780 = vdwg.mxu0
      %v3781 = vmax.f32 %v3488, 0.0
      %v3782 = vmax.f32 %v3490, 0.0
      %v3783 = vmax.f32 %v3529, 0.0
      %v3784 = vmax.f32 %v3531, 0.0
      %v3785 = vmax.f32 %v3570, 0.0
      %v3786 = vmax.f32 %v3572, 0.0
      %v3787 = vmax.f32 %v3611, 0.0
      %v3788 = vmax.f32 %v3613, 0.0
      %v3789 = vmax.f32 %v3652, 0.0
      %v3790 = vmax.f32 %v3654, 0.0
      %v3791 = vmax.f32 %v3693, 0.0
      %v3792 = vmax.f32 %v3695, 0.0
      %v3793 = vmax.f32 %v3734, 0.0
      %v3794 = vmax.f32 %v3736, 0.0
      %v3795 = vmax.f32 %v3775, 0.0
      %v3796 = vmax.f32 %v3777, 0.0
      %v3797 = vpack.c.bf16 %v3781, %v3781
      %v3798 = vpack.c.bf16 %v3782, %v3782
      %v3799 = vpack.c.bf16 %v3783, %v3783
      %v3800 = vpack.c.bf16 %v3784, %v3784
      %v3801 = vpack.c.bf16 %v3785, %v3785
      %v3802 = vpack.c.bf16 %v3786, %v3786
      %v3803 = vpack.c.bf16 %v3787, %v3787
      %v3804 = vpack.c.bf16 %v3788, %v3788
      %v3805 = vpack.c.bf16 %v3789, %v3789
      %v3806 = vpack.c.bf16 %v3790, %v3790
      %v3807 = vpack.c.bf16 %v3791, %v3791
      %v3808 = vpack.c.bf16 %v3792, %v3792
      %v3809 = vpack.c.bf16 %v3793, %v3793
      %v3810 = vpack.c.bf16 %v3794, %v3794
      %v3811 = vpack.c.bf16 %v3795, %v3795
      %v3812 = vpack.c.bf16 %v3796, %v3796
      %v3814 = vlaneseq
      %v3815 = vshrl.u32 %v3814, 7
      %v3816 = vsub.s32 0, %v3815
      %v3817 = vrot.slane %v3206, %v3816
      %v4075 = vunpack.c.l.b16 %v2950
      %v4076 = vunpack.c.l.b16 %v2951
      %v4077 = vunpack.c.l.b16 %v2952
      %v4078 = vunpack.c.l.b16 %v2953
      %v4079 = vunpack.c.l.b16 %v2954
      %v4080 = vunpack.c.l.b16 %v2955
      %v4081 = vunpack.c.l.b16 %v2956
      %v4082 = vunpack.c.l.b16 %v2957
      %v4083 = vunpack.c.l.b16 %v2958
      %v4084 = vunpack.c.l.b16 %v2959
      %v4085 = vunpack.c.l.b16 %v2960
      %v4086 = vunpack.c.l.b16 %v2961
      %v4087 = vunpack.c.l.b16 %v2962
      %v4088 = vunpack.c.l.b16 %v2963
      %v4089 = vunpack.c.l.b16 %v2964
      %v4090 = vunpack.c.l.b16 %v2965
      %v4091 = vunpack.c.l.b16 %v2966
      %v4092 = vunpack.c.l.b16 %v2967
      %v4093 = vunpack.c.l.b16 %v2968
      %v4094 = vunpack.c.l.b16 %v2969
      %v4095 = vunpack.c.l.b16 %v2970
      %v4096 = vunpack.c.l.b16 %v2971
      %v4097 = vunpack.c.l.b16 %v2972
      %v4098 = vunpack.c.l.b16 %v2973
      %v4099 = vunpack.c.l.b16 %v2974
      %v4100 = vunpack.c.l.b16 %v2975
      %v4101 = vunpack.c.l.b16 %v2976
      %v4102 = vunpack.c.l.b16 %v2977
      %v4103 = vunpack.c.l.b16 %v2978
      %v4104 = vunpack.c.l.b16 %v2979
      %v4105 = vunpack.c.l.b16 %v2980
      %v4106 = vunpack.c.l.b16 %v2981
      %v4107 = vunpack.c.l.b16 %v2982
      %v4108 = vunpack.c.l.b16 %v2983
      %v4109 = vunpack.c.l.b16 %v2984
      %v4110 = vunpack.c.l.b16 %v2985
      %v4111 = vunpack.c.l.b16 %v2986
      %v4112 = vunpack.c.l.b16 %v2987
      %v4113 = vunpack.c.l.b16 %v2988
      %v4114 = vunpack.c.l.b16 %v2989
      %v4115 = vunpack.c.l.b16 %v2990
      %v4116 = vunpack.c.l.b16 %v2991
      %v4117 = vunpack.c.l.b16 %v2992
      %v4118 = vunpack.c.l.b16 %v2993
      %v4119 = vunpack.c.l.b16 %v2994
      %v4120 = vunpack.c.l.b16 %v2995
      %v4121 = vunpack.c.l.b16 %v2996
      %v4122 = vunpack.c.l.b16 %v2997
      %v4123 = vunpack.c.l.b16 %v2998
      %v4124 = vunpack.c.l.b16 %v2999
      %v4125 = vunpack.c.l.b16 %v3000
      %v4126 = vunpack.c.l.b16 %v3001
      %v4127 = vunpack.c.l.b16 %v3002
      %v4128 = vunpack.c.l.b16 %v3003
      %v4129 = vunpack.c.l.b16 %v3004
      %v4130 = vunpack.c.l.b16 %v3005
      %v4131 = vunpack.c.l.b16 %v3006
      %v4132 = vunpack.c.l.b16 %v3007
      %v4133 = vunpack.c.l.b16 %v3008
      %v4134 = vunpack.c.l.b16 %v3009
      %v4135 = vunpack.c.l.b16 %v3010
      %v4136 = vunpack.c.l.b16 %v3011
      %v4137 = vunpack.c.l.b16 %v3012
      %v4138 = vunpack.c.l.b16 %v3013
      %v4139 = vunpack.c.l.b16 %v3014
      %v4140 = vunpack.c.l.b16 %v3015
      %v4141 = vunpack.c.l.b16 %v3016
      %v4142 = vunpack.c.l.b16 %v3017
      %v4143 = vunpack.c.l.b16 %v3018
      %v4144 = vunpack.c.l.b16 %v3019
      %v4145 = vunpack.c.l.b16 %v3020
      %v4146 = vunpack.c.l.b16 %v3021
      %v4147 = vunpack.c.l.b16 %v3022
      %v4148 = vunpack.c.l.b16 %v3023
      %v4149 = vunpack.c.l.b16 %v3024
      %v4150 = vunpack.c.l.b16 %v3025
      %v4151 = vunpack.c.l.b16 %v3026
      %v4152 = vunpack.c.l.b16 %v3027
      %v4153 = vunpack.c.l.b16 %v3028
      %v4154 = vunpack.c.l.b16 %v3029
      %v4155 = vunpack.c.l.b16 %v3030
      %v4156 = vunpack.c.l.b16 %v3031
      %v4157 = vunpack.c.l.b16 %v3032
      %v4158 = vunpack.c.l.b16 %v3033
      %v4159 = vunpack.c.l.b16 %v3034
      %v4160 = vunpack.c.l.b16 %v3035
      %v4161 = vunpack.c.l.b16 %v3036
      %v4162 = vunpack.c.l.b16 %v3037
      %v4163 = vunpack.c.l.b16 %v3038
      %v4164 = vunpack.c.l.b16 %v3039
      %v4165 = vunpack.c.l.b16 %v3040
      %v4166 = vunpack.c.l.b16 %v3041
      %v4167 = vunpack.c.l.b16 %v3042
      %v4168 = vunpack.c.l.b16 %v3043
      %v4169 = vunpack.c.l.b16 %v3044
      %v4170 = vunpack.c.l.b16 %v3045
      %v4171 = vunpack.c.l.b16 %v3046
      %v4172 = vunpack.c.l.b16 %v3047
      %v4173 = vunpack.c.l.b16 %v3048
      %v4174 = vunpack.c.l.b16 %v3049
      %v4175 = vunpack.c.l.b16 %v3050
      %v4176 = vunpack.c.l.b16 %v3051
      %v4177 = vunpack.c.l.b16 %v3052
      %v4178 = vunpack.c.l.b16 %v3053
      %v4179 = vunpack.c.l.b16 %v3054
      %v4180 = vunpack.c.l.b16 %v3055
      %v4181 = vunpack.c.l.b16 %v3056
      %v4182 = vunpack.c.l.b16 %v3057
      %v4183 = vunpack.c.l.b16 %v3058
      %v4184 = vunpack.c.l.b16 %v3059
      %v4185 = vunpack.c.l.b16 %v3060
      %v4186 = vunpack.c.l.b16 %v3061
      %v4187 = vunpack.c.l.b16 %v3062
      %v4188 = vunpack.c.l.b16 %v3063
      %v4189 = vunpack.c.l.b16 %v3064
      %v4190 = vunpack.c.l.b16 %v3065
      %v4191 = vunpack.c.l.b16 %v3066
      %v4192 = vunpack.c.l.b16 %v3067
      %v4193 = vunpack.c.l.b16 %v3068
      %v4194 = vunpack.c.l.b16 %v3069
      %v4195 = vunpack.c.l.b16 %v3070
      %v4196 = vunpack.c.l.b16 %v3071
      %v4197 = vunpack.c.l.b16 %v3072
      %v4198 = vunpack.c.l.b16 %v3073
      %v4199 = vunpack.c.l.b16 %v3074
      %v4200 = vunpack.c.l.b16 %v3075
      %v4201 = vunpack.c.l.b16 %v3076
      %v4202 = vunpack.c.l.b16 %v3077
      %v4203 = vunpack.c.l.b16 %v3078
      %v4204 = vunpack.c.l.b16 %v3079
      %v4205 = vunpack.c.l.b16 %v3080
      %v4206 = vunpack.c.l.b16 %v3081
      %v4207 = vunpack.c.l.b16 %v3082
      %v4208 = vunpack.c.l.b16 %v3083
      %v4209 = vunpack.c.l.b16 %v3084
      %v4210 = vunpack.c.l.b16 %v3085
      %v4211 = vunpack.c.l.b16 %v3086
      %v4212 = vunpack.c.l.b16 %v3087
      %v4213 = vunpack.c.l.b16 %v3088
      %v4214 = vunpack.c.l.b16 %v3089
      %v4215 = vunpack.c.l.b16 %v3090
      %v4216 = vunpack.c.l.b16 %v3091
      %v4217 = vunpack.c.l.b16 %v3092
      %v4218 = vunpack.c.l.b16 %v3093
      %v4219 = vunpack.c.l.b16 %v3094
      %v4220 = vunpack.c.l.b16 %v3095
      %v4221 = vunpack.c.l.b16 %v3096
      %v4222 = vunpack.c.l.b16 %v3097
      %v4223 = vunpack.c.l.b16 %v3098
      %v4224 = vunpack.c.l.b16 %v3099
      %v4225 = vunpack.c.l.b16 %v3100
      %v4226 = vunpack.c.l.b16 %v3101
      %v4227 = vunpack.c.l.b16 %v3102
      %v4228 = vunpack.c.l.b16 %v3103
      %v4229 = vunpack.c.l.b16 %v3104
      %v4230 = vunpack.c.l.b16 %v3105
      %v4231 = vunpack.c.l.b16 %v3106
      %v4232 = vunpack.c.l.b16 %v3107
      %v4233 = vunpack.c.l.b16 %v3108
      %v4234 = vunpack.c.l.b16 %v3109
      %v4235 = vunpack.c.l.b16 %v3110
      %v4236 = vunpack.c.l.b16 %v3111
      %v4237 = vunpack.c.l.b16 %v3112
      %v4238 = vunpack.c.l.b16 %v3113
      %v4239 = vunpack.c.l.b16 %v3114
      %v4240 = vunpack.c.l.b16 %v3115
      %v4241 = vunpack.c.l.b16 %v3116
      %v4242 = vunpack.c.l.b16 %v3117
      %v4243 = vunpack.c.l.b16 %v3118
      %v4244 = vunpack.c.l.b16 %v3119
      %v4245 = vunpack.c.l.b16 %v3120
      %v4246 = vunpack.c.l.b16 %v3121
      %v4247 = vunpack.c.l.b16 %v3122
      %v4248 = vunpack.c.l.b16 %v3123
      %v4249 = vunpack.c.l.b16 %v3124
      %v4250 = vunpack.c.l.b16 %v3125
      %v4251 = vunpack.c.l.b16 %v3126
      %v4252 = vunpack.c.l.b16 %v3127
      %v4253 = vunpack.c.l.b16 %v3128
      %v4254 = vunpack.c.l.b16 %v3129
      %v4255 = vunpack.c.l.b16 %v3130
      %v4256 = vunpack.c.l.b16 %v3131
      %v4257 = vunpack.c.l.b16 %v3132
      %v4258 = vunpack.c.l.b16 %v3133
      %v4259 = vunpack.c.l.b16 %v3134
      %v4260 = vunpack.c.l.b16 %v3135
      %v4261 = vunpack.c.l.b16 %v3136
      %v4262 = vunpack.c.l.b16 %v3137
      %v4263 = vunpack.c.l.b16 %v3138
      %v4264 = vunpack.c.l.b16 %v3139
      %v4265 = vunpack.c.l.b16 %v3140
      %v4266 = vunpack.c.l.b16 %v3141
      %v4267 = vunpack.c.l.b16 %v3142
      %v4268 = vunpack.c.l.b16 %v3143
      %v4269 = vunpack.c.l.b16 %v3144
      %v4270 = vunpack.c.l.b16 %v3145
      %v4271 = vunpack.c.l.b16 %v3146
      %v4272 = vunpack.c.l.b16 %v3147
      %v4273 = vunpack.c.l.b16 %v3148
      %v4274 = vunpack.c.l.b16 %v3149
      %v4275 = vunpack.c.l.b16 %v3150
      %v4276 = vunpack.c.l.b16 %v3151
      %v4277 = vunpack.c.l.b16 %v3152
      %v4278 = vunpack.c.l.b16 %v3153
      %v4279 = vunpack.c.l.b16 %v3154
      %v4280 = vunpack.c.l.b16 %v3155
      %v4281 = vunpack.c.l.b16 %v3156
      %v4282 = vunpack.c.l.b16 %v3157
      %v4283 = vunpack.c.l.b16 %v3158
      %v4284 = vunpack.c.l.b16 %v3159
      %v4285 = vunpack.c.l.b16 %v3160
      %v4286 = vunpack.c.l.b16 %v3161
      %v4287 = vunpack.c.l.b16 %v3162
      %v4288 = vunpack.c.l.b16 %v3163
      %v4289 = vunpack.c.l.b16 %v3164
      %v4290 = vunpack.c.l.b16 %v3165
      %v4291 = vunpack.c.l.b16 %v3166
      %v4292 = vunpack.c.l.b16 %v3167
      %v4293 = vunpack.c.l.b16 %v3168
      %v4294 = vunpack.c.l.b16 %v3169
      %v4295 = vunpack.c.l.b16 %v3170
      %v4296 = vunpack.c.l.b16 %v3171
      %v4297 = vunpack.c.l.b16 %v3172
      %v4298 = vunpack.c.l.b16 %v3173
      %v4299 = vunpack.c.l.b16 %v3174
      %v4300 = vunpack.c.l.b16 %v3175
      %v4301 = vunpack.c.l.b16 %v3176
      %v4302 = vunpack.c.l.b16 %v3177
      %v4303 = vunpack.c.l.b16 %v3178
      %v4304 = vunpack.c.l.b16 %v3179
      %v4305 = vunpack.c.l.b16 %v3180
      %v4306 = vunpack.c.l.b16 %v3181
      %v4307 = vunpack.c.l.b16 %v3182
      %v4308 = vunpack.c.l.b16 %v3183
      %v4309 = vunpack.c.l.b16 %v3184
      %v4310 = vunpack.c.l.b16 %v3185
      %v4311 = vunpack.c.l.b16 %v3186
      %v4312 = vunpack.c.l.b16 %v3187
      %v4313 = vunpack.c.l.b16 %v3188
      %v4314 = vunpack.c.l.b16 %v3189
      %v4315 = vunpack.c.l.b16 %v3190
      %v4316 = vunpack.c.l.b16 %v3191
      %v4317 = vunpack.c.l.b16 %v3192
      %v4318 = vunpack.c.l.b16 %v3193
      %v4319 = vunpack.c.l.b16 %v3194
      %v4320 = vunpack.c.l.b16 %v3195
      %v4321 = vunpack.c.l.b16 %v3196
      %v4322 = vunpack.c.l.b16 %v3197
      %v4323 = vunpack.c.l.b16 %v3198
      %v4324 = vunpack.c.l.b16 %v3199
      %v4325 = vunpack.c.l.b16 %v3200
      %v4326 = vunpack.c.l.b16 %v3201
      %v4327 = vunpack.c.l.b16 %v3202
      %v4328 = vunpack.c.l.b16 %v3203
      %v4329 = vunpack.c.l.b16 %v3204
      %v4330 = vunpack.c.l.b16 %v3205
      %v4331 = vpack.c.b16 %v4076, %v4075
      %v4332 = vpack.c.b16 %v4078, %v4077
      %v4333 = vpack.c.b16 %v4080, %v4079
      %v4334 = vpack.c.b16 %v4082, %v4081
      %v4335 = vpack.c.b16 %v4084, %v4083
      %v4336 = vpack.c.b16 %v4086, %v4085
      %v4337 = vpack.c.b16 %v4088, %v4087
      %v4338 = vpack.c.b16 %v4090, %v4089
      %v4339 = vpack.c.b16 %v4092, %v4091
      %v4340 = vpack.c.b16 %v4094, %v4093
      %v4341 = vpack.c.b16 %v4096, %v4095
      %v4342 = vpack.c.b16 %v4098, %v4097
      %v4343 = vpack.c.b16 %v4100, %v4099
      %v4344 = vpack.c.b16 %v4102, %v4101
      %v4345 = vpack.c.b16 %v4104, %v4103
      %v4346 = vpack.c.b16 %v4106, %v4105
      %v4347 = vpack.c.b16 %v4108, %v4107
      %v4348 = vpack.c.b16 %v4110, %v4109
      %v4349 = vpack.c.b16 %v4112, %v4111
      %v4350 = vpack.c.b16 %v4114, %v4113
      %v4351 = vpack.c.b16 %v4116, %v4115
      %v4352 = vpack.c.b16 %v4118, %v4117
      %v4353 = vpack.c.b16 %v4120, %v4119
      %v4354 = vpack.c.b16 %v4122, %v4121
      %v4355 = vpack.c.b16 %v4124, %v4123
      %v4356 = vpack.c.b16 %v4126, %v4125
      %v4357 = vpack.c.b16 %v4128, %v4127
      %v4358 = vpack.c.b16 %v4130, %v4129
      %v4359 = vpack.c.b16 %v4132, %v4131
      %v4360 = vpack.c.b16 %v4134, %v4133
      %v4361 = vpack.c.b16 %v4136, %v4135
      %v4362 = vpack.c.b16 %v4138, %v4137
      %v4363 = vpack.c.b16 %v4140, %v4139
      %v4364 = vpack.c.b16 %v4142, %v4141
      %v4365 = vpack.c.b16 %v4144, %v4143
      %v4366 = vpack.c.b16 %v4146, %v4145
      %v4367 = vpack.c.b16 %v4148, %v4147
      %v4368 = vpack.c.b16 %v4150, %v4149
      %v4369 = vpack.c.b16 %v4152, %v4151
      %v4370 = vpack.c.b16 %v4154, %v4153
      %v4371 = vpack.c.b16 %v4156, %v4155
      %v4372 = vpack.c.b16 %v4158, %v4157
      %v4373 = vpack.c.b16 %v4160, %v4159
      %v4374 = vpack.c.b16 %v4162, %v4161
      %v4375 = vpack.c.b16 %v4164, %v4163
      %v4376 = vpack.c.b16 %v4166, %v4165
      %v4377 = vpack.c.b16 %v4168, %v4167
      %v4378 = vpack.c.b16 %v4170, %v4169
      %v4379 = vpack.c.b16 %v4172, %v4171
      %v4380 = vpack.c.b16 %v4174, %v4173
      %v4381 = vpack.c.b16 %v4176, %v4175
      %v4382 = vpack.c.b16 %v4178, %v4177
      %v4383 = vpack.c.b16 %v4180, %v4179
      %v4384 = vpack.c.b16 %v4182, %v4181
      %v4385 = vpack.c.b16 %v4184, %v4183
      %v4386 = vpack.c.b16 %v4186, %v4185
      %v4387 = vpack.c.b16 %v4188, %v4187
      %v4388 = vpack.c.b16 %v4190, %v4189
      %v4389 = vpack.c.b16 %v4192, %v4191
      %v4390 = vpack.c.b16 %v4194, %v4193
      %v4391 = vpack.c.b16 %v4196, %v4195
      %v4392 = vpack.c.b16 %v4198, %v4197
      %v4393 = vpack.c.b16 %v4200, %v4199
      %v4394 = vpack.c.b16 %v4202, %v4201
      %v4395 = vpack.c.b16 %v4204, %v4203
      %v4396 = vpack.c.b16 %v4206, %v4205
      %v4397 = vpack.c.b16 %v4208, %v4207
      %v4398 = vpack.c.b16 %v4210, %v4209
      %v4399 = vpack.c.b16 %v4212, %v4211
      %v4400 = vpack.c.b16 %v4214, %v4213
      %v4401 = vpack.c.b16 %v4216, %v4215
      %v4402 = vpack.c.b16 %v4218, %v4217
      %v4403 = vpack.c.b16 %v4220, %v4219
      %v4404 = vpack.c.b16 %v4222, %v4221
      %v4405 = vpack.c.b16 %v4224, %v4223
      %v4406 = vpack.c.b16 %v4226, %v4225
      %v4407 = vpack.c.b16 %v4228, %v4227
      %v4408 = vpack.c.b16 %v4230, %v4229
      %v4409 = vpack.c.b16 %v4232, %v4231
      %v4410 = vpack.c.b16 %v4234, %v4233
      %v4411 = vpack.c.b16 %v4236, %v4235
      %v4412 = vpack.c.b16 %v4238, %v4237
      %v4413 = vpack.c.b16 %v4240, %v4239
      %v4414 = vpack.c.b16 %v4242, %v4241
      %v4415 = vpack.c.b16 %v4244, %v4243
      %v4416 = vpack.c.b16 %v4246, %v4245
      %v4417 = vpack.c.b16 %v4248, %v4247
      %v4418 = vpack.c.b16 %v4250, %v4249
      %v4419 = vpack.c.b16 %v4252, %v4251
      %v4420 = vpack.c.b16 %v4254, %v4253
      %v4421 = vpack.c.b16 %v4256, %v4255
      %v4422 = vpack.c.b16 %v4258, %v4257
      %v4423 = vpack.c.b16 %v4260, %v4259
      %v4424 = vpack.c.b16 %v4262, %v4261
      %v4425 = vpack.c.b16 %v4264, %v4263
      %v4426 = vpack.c.b16 %v4266, %v4265
      %v4427 = vpack.c.b16 %v4268, %v4267
      %v4428 = vpack.c.b16 %v4270, %v4269
      %v4429 = vpack.c.b16 %v4272, %v4271
      %v4430 = vpack.c.b16 %v4274, %v4273
      %v4431 = vpack.c.b16 %v4276, %v4275
      %v4432 = vpack.c.b16 %v4278, %v4277
      %v4433 = vpack.c.b16 %v4280, %v4279
      %v4434 = vpack.c.b16 %v4282, %v4281
      %v4435 = vpack.c.b16 %v4284, %v4283
      %v4436 = vpack.c.b16 %v4286, %v4285
      %v4437 = vpack.c.b16 %v4288, %v4287
      %v4438 = vpack.c.b16 %v4290, %v4289
      %v4439 = vpack.c.b16 %v4292, %v4291
      %v4440 = vpack.c.b16 %v4294, %v4293
      %v4441 = vpack.c.b16 %v4296, %v4295
      %v4442 = vpack.c.b16 %v4298, %v4297
      %v4443 = vpack.c.b16 %v4300, %v4299
      %v4444 = vpack.c.b16 %v4302, %v4301
      %v4445 = vpack.c.b16 %v4304, %v4303
      %v4446 = vpack.c.b16 %v4306, %v4305
      %v4447 = vpack.c.b16 %v4308, %v4307
      %v4448 = vpack.c.b16 %v4310, %v4309
      %v4449 = vpack.c.b16 %v4312, %v4311
      %v4450 = vpack.c.b16 %v4314, %v4313
      %v4451 = vpack.c.b16 %v4316, %v4315
      %v4452 = vpack.c.b16 %v4318, %v4317
      %v4453 = vpack.c.b16 %v4320, %v4319
      %v4454 = vpack.c.b16 %v4322, %v4321
      %v4455 = vpack.c.b16 %v4324, %v4323
      %v4456 = vpack.c.b16 %v4326, %v4325
      %v4457 = vpack.c.b16 %v4328, %v4327
      %v4458 = vpack.c.b16 %v4330, %v4329
      %4587 = vmatprep.subr.bf16.mxu0 0
      %4588 = vmatpush1.bf16.msra.mxu0 %v4331
      %4589 = vmatprep.subr.bf16.mxu0 0
      %4590 = vmatpush1.bf16.msra.mxu0 %v4332
      %4591 = vmatprep.subr.bf16.mxu0 0
      %4592 = vmatpush1.bf16.msra.mxu0 %v4333
      %4593 = vmatprep.subr.bf16.mxu0 0
      %4594 = vmatpush1.bf16.msra.mxu0 %v4334
      %4595 = vmatprep.subr.bf16.mxu0 0
      %4596 = vmatpush1.bf16.msra.mxu0 %v4335
      %4597 = vmatprep.subr.bf16.mxu0 0
      %4598 = vmatpush1.bf16.msra.mxu0 %v4336
      %4599 = vmatprep.subr.bf16.mxu0 0
      %4600 = vmatpush1.bf16.msra.mxu0 %v4337
      %4601 = vmatprep.subr.bf16.mxu0 0
      %4602 = vmatpush1.bf16.msra.mxu0 %v4338
      %4603 = vmatprep.subr.bf16.mxu0 0
      %4604 = vmatpush1.bf16.msra.mxu0 %v4339
      %4605 = vmatprep.subr.bf16.mxu0 0
      %4606 = vmatpush1.bf16.msra.mxu0 %v4340
      %4607 = vmatprep.subr.bf16.mxu0 0
      %4608 = vmatpush1.bf16.msra.mxu0 %v4341
      %4609 = vmatprep.subr.bf16.mxu0 0
      %4610 = vmatpush1.bf16.msra.mxu0 %v4342
      %4611 = vmatprep.subr.bf16.mxu0 0
      %4612 = vmatpush1.bf16.msra.mxu0 %v4343
      %4613 = vmatprep.subr.bf16.mxu0 0
      %4614 = vmatpush1.bf16.msra.mxu0 %v4344
      %4615 = vmatprep.subr.bf16.mxu0 0
      %4616 = vmatpush1.bf16.msra.mxu0 %v4345
      %4617 = vmatprep.subr.bf16.mxu0 0
      %4618 = vmatpush1.bf16.msra.mxu0 %v4346
      %4619 = vmatprep.mubr.bf16.mxu0 %v3798
      %4620 = vmatmul.mubr.bf16.gmra.mrb[0].mxu0 %v3797
      %v4621 = vpop.f32.mrb[0].mxu0
      %v4622 = vadd.f32 %v3817, %v4621
      %v4623 = vpop.f32.mrb[0].mxu0
      %v4624 = vpop.f32.mrb[0].mxu0
      %v4625 = vpop.f32.mrb[0].mxu0
      %4626 = vdwg.mxu0
      %4627 = vmatprep.subr.bf16.mxu0 0
      %4628 = vmatpush1.bf16.msra.mxu0 %v4347
      %4629 = vmatprep.subr.bf16.mxu0 0
      %4630 = vmatpush1.bf16.msra.mxu0 %v4348
      %4631 = vmatprep.subr.bf16.mxu0 0
      %4632 = vmatpush1.bf16.msra.mxu0 %v4349
      %4633 = vmatprep.subr.bf16.mxu0 0
      %4634 = vmatpush1.bf16.msra.mxu0 %v4350
      %4635 = vmatprep.subr.bf16.mxu0 0
      %4636 = vmatpush1.bf16.msra.mxu0 %v4351
      %4637 = vmatprep.subr.bf16.mxu0 0
      %4638 = vmatpush1.bf16.msra.mxu0 %v4352
      %4639 = vmatprep.subr.bf16.mxu0 0
      %4640 = vmatpush1.bf16.msra.mxu0 %v4353
      %4641 = vmatprep.subr.bf16.mxu0 0
      %4642 = vmatpush1.bf16.msra.mxu0 %v4354
      %4643 = vmatprep.subr.bf16.mxu0 0
      %4644 = vmatpush1.bf16.msra.mxu0 %v4355
      %4645 = vmatprep.subr.bf16.mxu0 0
      %4646 = vmatpush1.bf16.msra.mxu0 %v4356
      %4647 = vmatprep.subr.bf16.mxu0 0
      %4648 = vmatpush1.bf16.msra.mxu0 %v4357
      %4649 = vmatprep.subr.bf16.mxu0 0
      %4650 = vmatpush1.bf16.msra.mxu0 %v4358
      %4651 = vmatprep.subr.bf16.mxu0 0
      %4652 = vmatpush1.bf16.msra.mxu0 %v4359
      %4653 = vmatprep.subr.bf16.mxu0 0
      %4654 = vmatpush1.bf16.msra.mxu0 %v4360
      %4655 = vmatprep.subr.bf16.mxu0 0
      %4656 = vmatpush1.bf16.msra.mxu0 %v4361
      %4657 = vmatprep.subr.bf16.mxu0 0
      %4658 = vmatpush1.bf16.msra.mxu0 %v4362
      %4659 = vmatprep.mubr.bf16.mxu0 %v3800
      %4660 = vmatmul.mubr.bf16.gmra.mrb[0].mxu0 %v3799
      %v4661 = vpop.f32.mrb[0].mxu0
      %v4662 = vadd.f32 %v4622, %v4661
      %v4663 = vpop.f32.mrb[0].mxu0
      %v4664 = vpop.f32.mrb[0].mxu0
      %v4665 = vpop.f32.mrb[0].mxu0
      %4666 = vdwg.mxu0
      %4667 = vmatprep.subr.bf16.mxu0 0
      %4668 = vmatpush1.bf16.msra.mxu0 %v4363
      %4669 = vmatprep.subr.bf16.mxu0 0
      %4670 = vmatpush1.bf16.msra.mxu0 %v4364
      %4671 = vmatprep.subr.bf16.mxu0 0
      %4672 = vmatpush1.bf16.msra.mxu0 %v4365
      %4673 = vmatprep.subr.bf16.mxu0 0
      %4674 = vmatpush1.bf16.msra.mxu0 %v4366
      %4675 = vmatprep.subr.bf16.mxu0 0
      %4676 = vmatpush1.bf16.msra.mxu0 %v4367
      %4677 = vmatprep.subr.bf16.mxu0 0
      %4678 = vmatpush1.bf16.msra.mxu0 %v4368
      %4679 = vmatprep.subr.bf16.mxu0 0
      %4680 = vmatpush1.bf16.msra.mxu0 %v4369
      %4681 = vmatprep.subr.bf16.mxu0 0
      %4682 = vmatpush1.bf16.msra.mxu0 %v4370
      %4683 = vmatprep.subr.bf16.mxu0 0
      %4684 = vmatpush1.bf16.msra.mxu0 %v4371
      %4685 = vmatprep.subr.bf16.mxu0 0
      %4686 = vmatpush1.bf16.msra.mxu0 %v4372
      %4687 = vmatprep.subr.bf16.mxu0 0
      %4688 = vmatpush1.bf16.msra.mxu0 %v4373
      %4689 = vmatprep.subr.bf16.mxu0 0
      %4690 = vmatpush1.bf16.msra.mxu0 %v4374
      %4691 = vmatprep.subr.bf16.mxu0 0
      %4692 = vmatpush1.bf16.msra.mxu0 %v4375
      %4693 = vmatprep.subr.bf16.mxu0 0
      %4694 = vmatpush1.bf16.msra.mxu0 %v4376
      %4695 = vmatprep.subr.bf16.mxu0 0
      %4696 = vmatpush1.bf16.msra.mxu0 %v4377
      %4697 = vmatprep.subr.bf16.mxu0 0
      %4698 = vmatpush1.bf16.msra.mxu0 %v4378
      %4699 = vmatprep.mubr.bf16.mxu0 %v3802
      %4700 = vmatmul.mubr.bf16.gmra.mrb[0].mxu0 %v3801
      %v4701 = vpop.f32.mrb[0].mxu0
      %v4702 = vadd.f32 %v4662, %v4701
      %v4703 = vpop.f32.mrb[0].mxu0
      %v4704 = vpop.f32.mrb[0].mxu0
      %v4705 = vpop.f32.mrb[0].mxu0
      %4706 = vdwg.mxu0
      %4707 = vmatprep.subr.bf16.mxu0 0
      %4708 = vmatpush1.bf16.msra.mxu0 %v4379
      %4709 = vmatprep.subr.bf16.mxu0 0
      %4710 = vmatpush1.bf16.msra.mxu0 %v4380
      %4711 = vmatprep.subr.bf16.mxu0 0
      %4712 = vmatpush1.bf16.msra.mxu0 %v4381
      %4713 = vmatprep.subr.bf16.mxu0 0
      %4714 = vmatpush1.bf16.msra.mxu0 %v4382
      %4715 = vmatprep.subr.bf16.mxu0 0
      %4716 = vmatpush1.bf16.msra.mxu0 %v4383
      %4717 = vmatprep.subr.bf16.mxu0 0
      %4718 = vmatpush1.bf16.msra.mxu0 %v4384
      %4719 = vmatprep.subr.bf16.mxu0 0
      %4720 = vmatpush1.bf16.msra.mxu0 %v4385
      %4721 = vmatprep.subr.bf16.mxu0 0
      %4722 = vmatpush1.bf16.msra.mxu0 %v4386
      %4723 = vmatprep.subr.bf16.mxu0 0
      %4724 = vmatpush1.bf16.msra.mxu0 %v4387
      %4725 = vmatprep.subr.bf16.mxu0 0
      %4726 = vmatpush1.bf16.msra.mxu0 %v4388
      %4727 = vmatprep.subr.bf16.mxu0 0
      %4728 = vmatpush1.bf16.msra.mxu0 %v4389
      %4729 = vmatprep.subr.bf16.mxu0 0
      %4730 = vmatpush1.bf16.msra.mxu0 %v4390
      %4731 = vmatprep.subr.bf16.mxu0 0
      %4732 = vmatpush1.bf16.msra.mxu0 %v4391
      %4733 = vmatprep.subr.bf16.mxu0 0
      %4734 = vmatpush1.bf16.msra.mxu0 %v4392
      %4735 = vmatprep.subr.bf16.mxu0 0
      %4736 = vmatpush1.bf16.msra.mxu0 %v4393
      %4737 = vmatprep.subr.bf16.mxu0 0
      %4738 = vmatpush1.bf16.msra.mxu0 %v4394
      %4739 = vmatprep.mubr.bf16.mxu0 %v3804
      %4740 = vmatmul.mubr.bf16.gmra.mrb[0].mxu0 %v3803
      %v4741 = vpop.f32.mrb[0].mxu0
      %v4742 = vadd.f32 %v4702, %v4741
      %v4743 = vpop.f32.mrb[0].mxu0
      %v4744 = vpop.f32.mrb[0].mxu0
      %v4745 = vpop.f32.mrb[0].mxu0
      %4746 = vdwg.mxu0
      %4747 = vmatprep.subr.bf16.mxu0 0
      %4748 = vmatpush1.bf16.msra.mxu0 %v4395
      %4749 = vmatprep.subr.bf16.mxu0 0
      %4750 = vmatpush1.bf16.msra.mxu0 %v4396
      %4751 = vmatprep.subr.bf16.mxu0 0
      %4752 = vmatpush1.bf16.msra.mxu0 %v4397
      %4753 = vmatprep.subr.bf16.mxu0 0
      %4754 = vmatpush1.bf16.msra.mxu0 %v4398
      %4755 = vmatprep.subr.bf16.mxu0 0
      %4756 = vmatpush1.bf16.msra.mxu0 %v4399
      %4757 = vmatprep.subr.bf16.mxu0 0
      %4758 = vmatpush1.bf16.msra.mxu0 %v4400
      %4759 = vmatprep.subr.bf16.mxu0 0
      %4760 = vmatpush1.bf16.msra.mxu0 %v4401
      %4761 = vmatprep.subr.bf16.mxu0 0
      %4762 = vmatpush1.bf16.msra.mxu0 %v4402
      %4763 = vmatprep.subr.bf16.mxu0 0
      %4764 = vmatpush1.bf16.msra.mxu0 %v4403
      %4765 = vmatprep.subr.bf16.mxu0 0
      %4766 = vmatpush1.bf16.msra.mxu0 %v4404
      %4767 = vmatprep.subr.bf16.mxu0 0
      %4768 = vmatpush1.bf16.msra.mxu0 %v4405
      %4769 = vmatprep.subr.bf16.mxu0 0
      %4770 = vmatpush1.bf16.msra.mxu0 %v4406
      %4771 = vmatprep.subr.bf16.mxu0 0
      %4772 = vmatpush1.bf16.msra.mxu0 %v4407
      %4773 = vmatprep.subr.bf16.mxu0 0
      %4774 = vmatpush1.bf16.msra.mxu0 %v4408
      %4775 = vmatprep.subr.bf16.mxu0 0
      %4776 = vmatpush1.bf16.msra.mxu0 %v4409
      %4777 = vmatprep.subr.bf16.mxu0 0
      %4778 = vmatpush1.bf16.msra.mxu0 %v4410
      %4779 = vmatprep.mubr.bf16.mxu0 %v3806
      %4780 = vmatmul.mubr.bf16.gmra.mrb[0].mxu0 %v3805
      %v4781 = vpop.f32.mrb[0].mxu0
      %v4782 = vadd.f32 %v4742, %v4781
      %v4783 = vpop.f32.mrb[0].mxu0
      %v4784 = vpop.f32.mrb[0].mxu0
      %v4785 = vpop.f32.mrb[0].mxu0
      %4786 = vdwg.mxu0
      %4787 = vmatprep.subr.bf16.mxu0 0
      %4788 = vmatpush1.bf16.msra.mxu0 %v4411
      %4789 = vmatprep.subr.bf16.mxu0 0
      %4790 = vmatpush1.bf16.msra.mxu0 %v4412
      %4791 = vmatprep.subr.bf16.mxu0 0
      %4792 = vmatpush1.bf16.msra.mxu0 %v4413
      %4793 = vmatprep.subr.bf16.mxu0 0
      %4794 = vmatpush1.bf16.msra.mxu0 %v4414
      %4795 = vmatprep.subr.bf16.mxu0 0
      %4796 = vmatpush1.bf16.msra.mxu0 %v4415
      %4797 = vmatprep.subr.bf16.mxu0 0
      %4798 = vmatpush1.bf16.msra.mxu0 %v4416
      %4799 = vmatprep.subr.bf16.mxu0 0
      %4800 = vmatpush1.bf16.msra.mxu0 %v4417
      %4801 = vmatprep.subr.bf16.mxu0 0
      %4802 = vmatpush1.bf16.msra.mxu0 %v4418
      %4803 = vmatprep.subr.bf16.mxu0 0
      %4804 = vmatpush1.bf16.msra.mxu0 %v4419
      %4805 = vmatprep.subr.bf16.mxu0 0
      %4806 = vmatpush1.bf16.msra.mxu0 %v4420
      %4807 = vmatprep.subr.bf16.mxu0 0
      %4808 = vmatpush1.bf16.msra.mxu0 %v4421
      %4809 = vmatprep.subr.bf16.mxu0 0
      %4810 = vmatpush1.bf16.msra.mxu0 %v4422
      %4811 = vmatprep.subr.bf16.mxu0 0
      %4812 = vmatpush1.bf16.msra.mxu0 %v4423
      %4813 = vmatprep.subr.bf16.mxu0 0
      %4814 = vmatpush1.bf16.msra.mxu0 %v4424
      %4815 = vmatprep.subr.bf16.mxu0 0
      %4816 = vmatpush1.bf16.msra.mxu0 %v4425
      %4817 = vmatprep.subr.bf16.mxu0 0
      %4818 = vmatpush1.bf16.msra.mxu0 %v4426
      %4819 = vmatprep.mubr.bf16.mxu0 %v3808
      %4820 = vmatmul.mubr.bf16.gmra.mrb[0].mxu0 %v3807
      %v4821 = vpop.f32.mrb[0].mxu0
      %v4822 = vadd.f32 %v4782, %v4821
      %v4823 = vpop.f32.mrb[0].mxu0
      %v4824 = vpop.f32.mrb[0].mxu0
      %v4825 = vpop.f32.mrb[0].mxu0
      %4826 = vdwg.mxu0
      %4827 = vmatprep.subr.bf16.mxu0 0
      %4828 = vmatpush1.bf16.msra.mxu0 %v4427
      %4829 = vmatprep.subr.bf16.mxu0 0
      %4830 = vmatpush1.bf16.msra.mxu0 %v4428
      %4831 = vmatprep.subr.bf16.mxu0 0
      %4832 = vmatpush1.bf16.msra.mxu0 %v4429
      %4833 = vmatprep.subr.bf16.mxu0 0
      %4834 = vmatpush1.bf16.msra.mxu0 %v4430
      %4835 = vmatprep.subr.bf16.mxu0 0
      %4836 = vmatpush1.bf16.msra.mxu0 %v4431
      %4837 = vmatprep.subr.bf16.mxu0 0
      %4838 = vmatpush1.bf16.msra.mxu0 %v4432
      %4839 = vmatprep.subr.bf16.mxu0 0
      %4840 = vmatpush1.bf16.msra.mxu0 %v4433
      %4841 = vmatprep.subr.bf16.mxu0 0
      %4842 = vmatpush1.bf16.msra.mxu0 %v4434
      %4843 = vmatprep.subr.bf16.mxu0 0
      %4844 = vmatpush1.bf16.msra.mxu0 %v4435
      %4845 = vmatprep.subr.bf16.mxu0 0
      %4846 = vmatpush1.bf16.msra.mxu0 %v4436
      %4847 = vmatprep.subr.bf16.mxu0 0
      %4848 = vmatpush1.bf16.msra.mxu0 %v4437
      %4849 = vmatprep.subr.bf16.mxu0 0
      %4850 = vmatpush1.bf16.msra.mxu0 %v4438
      %4851 = vmatprep.subr.bf16.mxu0 0
      %4852 = vmatpush1.bf16.msra.mxu0 %v4439
      %4853 = vmatprep.subr.bf16.mxu0 0
      %4854 = vmatpush1.bf16.msra.mxu0 %v4440
      %4855 = vmatprep.subr.bf16.mxu0 0
      %4856 = vmatpush1.bf16.msra.mxu0 %v4441
      %4857 = vmatprep.subr.bf16.mxu0 0
      %4858 = vmatpush1.bf16.msra.mxu0 %v4442
      %4859 = vmatprep.mubr.bf16.mxu0 %v3810
      %4860 = vmatmul.mubr.bf16.gmra.mrb[0].mxu0 %v3809
      %v4861 = vpop.f32.mrb[0].mxu0
      %v4862 = vadd.f32 %v4822, %v4861
      %v4863 = vpop.f32.mrb[0].mxu0
      %v4864 = vpop.f32.mrb[0].mxu0
      %v4865 = vpop.f32.mrb[0].mxu0
      %4866 = vdwg.mxu0
      %4867 = vmatprep.subr.bf16.mxu0 0
      %4868 = vmatpush1.bf16.msra.mxu0 %v4443
      %4869 = vmatprep.subr.bf16.mxu0 0
      %4870 = vmatpush1.bf16.msra.mxu0 %v4444
      %4871 = vmatprep.subr.bf16.mxu0 0
      %4872 = vmatpush1.bf16.msra.mxu0 %v4445
      %4873 = vmatprep.subr.bf16.mxu0 0
      %4874 = vmatpush1.bf16.msra.mxu0 %v4446
      %4875 = vmatprep.subr.bf16.mxu0 0
      %4876 = vmatpush1.bf16.msra.mxu0 %v4447
      %4877 = vmatprep.subr.bf16.mxu0 0
      %4878 = vmatpush1.bf16.msra.mxu0 %v4448
      %4879 = vmatprep.subr.bf16.mxu0 0
      %4880 = vmatpush1.bf16.msra.mxu0 %v4449
      %4881 = vmatprep.subr.bf16.mxu0 0
      %4882 = vmatpush1.bf16.msra.mxu0 %v4450
      %4883 = vmatprep.subr.bf16.mxu0 0
      %4884 = vmatpush1.bf16.msra.mxu0 %v4451
      %4885 = vmatprep.subr.bf16.mxu0 0
      %4886 = vmatpush1.bf16.msra.mxu0 %v4452
      %4887 = vmatprep.subr.bf16.mxu0 0
      %4888 = vmatpush1.bf16.msra.mxu0 %v4453
      %4889 = vmatprep.subr.bf16.mxu0 0
      %4890 = vmatpush1.bf16.msra.mxu0 %v4454
      %4891 = vmatprep.subr.bf16.mxu0 0
      %4892 = vmatpush1.bf16.msra.mxu0 %v4455
      %4893 = vmatprep.subr.bf16.mxu0 0
      %4894 = vmatpush1.bf16.msra.mxu0 %v4456
      %4895 = vmatprep.subr.bf16.mxu0 0
      %4896 = vmatpush1.bf16.msra.mxu0 %v4457
      %4897 = vmatprep.subr.bf16.mxu0 0
      %4898 = vmatpush1.bf16.msra.mxu0 %v4458
      %4899 = vmatprep.mubr.bf16.mxu0 %v3812
      %4900 = vmatmul.mubr.bf16.gmra.mrb[0].mxu0 %v3811
      %v4901 = vpop.f32.mrb[0].mxu0
      %v4902 = vadd.f32 %v4862, %v4901
      %v4903 = vpop.f32.mrb[0].mxu0
      %v4904 = vpop.f32.mrb[0].mxu0
      %v4905 = vpop.f32.mrb[0].mxu0
      %4906 = vdwg.mxu0
      %v4907 = vadd.f32 %v4902, %v2915
      %v4908 = vld [vmem:[%s1278] sm:$0x1]
      %v4909 = vld [vmem:[%s1281] sm:$0x1]
      %v4910 = vsel %vm2079, %v4907, 0.0
      %4911 = vadd.xlane.f32.xlu0 %v4910
      %v4912 = vpop.xlane.xlu0 %4911
      %v4913 = vmul.f32 %v4912, %v2083
      %v4914 = vsub.f32 %v4907, %v4913
      %v4915 = vmul.f32 %v4914, %v4914
      %v4916 = vsel %vm2079, %v4915, 0.0
      %4917 = vadd.xlane.f32.xlu0 %v4916
      %v4918 = vpop.xlane.xlu0 %4917
      %v4919 = vmul.f32 %v4918, %v2083
      %v4920 = vadd.f32 %v4919, 1e-05
      %v4921 = vrsqrt.pop %v4920
      %v4922 = vmul.f32 %v4914, %v4921
      %v4924 = vlaneseq
      %v4925 = vshrl.u32 %v4924, 7
      %v4926 = vsub.s32 0, %v4925
      %v4927 = vrot.slane %v4908, %v4926
      %v4929 = vmul.f32 %v4922, %v4927
      %v4931 = vlaneseq
      %v4932 = vshrl.u32 %v4931, 7
      %v4933 = vsub.s32 0, %v4932
      %v4934 = vrot.slane %v4909, %v4933
      %v4936 = vadd.f32 %v4929, %v4934
      %4937 = vst.msk [vmem:[#allocation2] sm:$0x3f] %vm2079, %v4936
      %p4938 = scmp.eq.s32.totalorder %s75, 1
      // Predicated region
      $region141: #{transformer_forward.3} parent=135 // pred_check
        %p4939 = pneg %p4938
      $region142: #{transformer_forward.3} parent=135 // pred_check_branch
        %4941 = sbr.rel (%p4939) target = $region144
      $region143: #{transformer_forward.3} parent=135 // pred_region
        %v4942 = vld [vmem:[%s51] sm:$0x1]
        %v4943 = vld [vmem:[%s53] sm:$0x1]
        %v4944 = vsel %vm2079, %v4936, 0.0
        %4945 = vadd.xlane.f32.xlu0 %v4944
        %v4946 = vpop.xlane.xlu0 %4945
        %v4947 = vmul.f32 %v4946, %v2083
        %v4948 = vsub.f32 %v4936, %v4947
        %v4949 = vmul.f32 %v4948, %v4948
        %v4950 = vsel %vm2079, %v4949, 0.0
        %4951 = vadd.xlane.f32.xlu0 %v4950
        %v4952 = vpop.xlane.xlu0 %4951
        %v4953 = vmul.f32 %v4952, %v2083
        %v4954 = vadd.f32 %v4953, 1e-05
        %v4955 = vrsqrt.pop %v4954
        %v4956 = vmul.f32 %v4948, %v4955
        %v4958 = vlaneseq
        %v4959 = vshrl.u32 %v4958, 7
        %v4960 = vsub.s32 0, %v4959
        %v4961 = vrot.slane %v4942, %v4960
        %v4963 = vmul.f32 %v4956, %v4961
        %v4965 = vlaneseq
        %v4966 = vshrl.u32 %v4965, 7
        %v4967 = vsub.s32 0, %v4966
        %v4968 = vrot.slane %v4943, %v4967
        %v4970 = vadd.f32 %v4963, %v4968
        %v4971 = vpack.c.bf16 %v4970, %v4970
        %v4972 = vld [vmem:[%s55] sm:$0xf]
        %v4973 = vld [vmem:[%s55 + $0x4] sm:$0xf]
        %v4974 = vld [vmem:[%s55 + $0x8] sm:$0xf]
        %v4975 = vld [vmem:[%s55 + $0xc] sm:$0xf]
        %v4976 = vld [vmem:[%s57] sm:$0x1]
        %v4978 = vlaneseq
        %v4979 = vshrl.u32 %v4978, 7
        %v4980 = vsub.s32 0, %v4979
        %v4981 = vrot.slane %v4976, %v4980
        %v4987 = vunpack.c.l.b16 %v4972
        %v4988 = vunpack.c.l.b16 %v4973
        %v4989 = vunpack.c.l.b16 %v4974
        %v4990 = vunpack.c.l.b16 %v4975
        %v4991 = vpack.c.b16 %v4988, %v4987
        %v4992 = vpack.c.b16 %v4990, %v4989
        %v4996 = vsel %vm1331, %v4971, 0
        %4998 = vmatprep.subr.bf16.mxu0 0
        %4999 = vmatpush1.bf16.msra.mxu0 %v4991
        %5000 = vmatprep.subr.bf16.mxu0 0
        %5001 = vmatpush1.bf16.msra.mxu0 %v4992
        %5002 = vmatprep.subr.bf16.mxu0 0
        %5003 = vmatpush1.bf16.msra.mxu0 0
        %5004 = vmatprep.subr.bf16.mxu0 0
        %5005 = vmatpush1.bf16.msra.mxu0 0
        %5006 = vmatprep.subr.bf16.mxu0 0
        %5007 = vmatpush1.bf16.msra.mxu0 0
        %5008 = vmatprep.subr.bf16.mxu0 0
        %5009 = vmatpush1.bf16.msra.mxu0 0
        %5010 = vmatprep.subr.bf16.mxu0 0
        %5011 = vmatpush1.bf16.msra.mxu0 0
        %5012 = vmatprep.subr.bf16.mxu0 0
        %5013 = vmatpush1.bf16.msra.mxu0 0
        %5014 = vmatprep.subr.bf16.mxu0 0
        %5015 = vmatpush1.bf16.msra.mxu0 0
        %5016 = vmatprep.subr.bf16.mxu0 0
        %5017 = vmatpush1.bf16.msra.mxu0 0
        %5018 = vmatprep.subr.bf16.mxu0 0
        %5019 = vmatpush1.bf16.msra.mxu0 0
        %5020 = vmatprep.subr.bf16.mxu0 0
        %5021 = vmatpush1.bf16.msra.mxu0 0
        %5022 = vmatprep.subr.bf16.mxu0 0
        %5023 = vmatpush1.bf16.msra.mxu0 0
        %5024 = vmatprep.subr.bf16.mxu0 0
        %5025 = vmatpush1.bf16.msra.mxu0 0
        %5026 = vmatprep.subr.bf16.mxu0 0
        %5027 = vmatpush1.bf16.msra.mxu0 0
        %5028 = vmatprep.subr.bf16.mxu0 0
        %5029 = vmatpush1.bf16.msra.mxu0 0
        %5030 = vmatprep.mubr.bf16.mxu0 0
        %5031 = vmatmul.mubr.bf16.gmra.mrb[0].mxu0 %v4996
        %v5032 = vpop.f32.mrb[0].mxu0
        %v5033 = vadd.f32 %v4981, %v5032
        %v5034 = vpop.f32.mrb[0].mxu0
        %v5035 = vpop.f32.mrb[0].mxu0
        %v5036 = vpop.f32.mrb[0].mxu0
        %5037 = vdwg.mxu0
        %5038 = vst.msk [vmem:[%s1285] sm:$0x3f] %vm2079, %v5033
      $region144: #{transformer_forward.3} parent=135 // pred_fallthru
        _
      %p5039 = scmp.lt.s32.totalorder %s74, 1
      %s5040 = scalar_select %p5039, %s74, 1
      %s5041 = smul.addr %s5040, 8
      %s5042 = scalar_lea.vmem %s59, %s5041
      // Predicated region
      $region145: #{transformer_forward.3} parent=135 // pred_check
        %p5043 = pneg %p829
      $region146: #{transformer_forward.3} parent=135 // pred_check_branch
        %5045 = sbr.rel (%p5043) target = $region148
      $region147: #{transformer_forward.3} parent=135 // pred_region
        _
      $region148: #{transformer_forward.3} parent=135 // pred_fallthru
        _
    $region136: #{transformer_forward.3} parent=5 // pred_fallthru
      _
    %p5046 = scmp.le.s32.totalorder 2, %s65
    // Predicated region
    $region149: #{transformer_forward.3} parent=5 // pred_check
      %p5047 = pneg %p5046
    $region150: #{transformer_forward.3} parent=5 // pred_check_branch
      %5049 = sbr.rel (%p5047) target = $region152
    $region151: #{transformer_forward.3} parent=5 // pred_region
      %s5050 = ssub.s32 %s65, 2
      // Predicated region
      $region153: #{transformer_forward.3} parent=151 // pred_check
        %p5051 = pneg %p835
      $region154: #{transformer_forward.3} parent=151 // pred_check_branch
        %5053 = sbr.rel (%p5051) target = $region156
      $region155: #{transformer_forward.3} parent=151 // pred_region
        %p5054 = scmp.lt.s32.totalorder %s76, 1
        %s5055 = scalar_select %p5054, %s76, 1
        %s5056 = smul.addr %s5055, 8
        %s5057 = scalar_lea.vmem %s59, %s5056
      $region156: #{transformer_forward.3} parent=151 // pred_fallthru
        _
    $region152: #{transformer_forward.3} parent=5 // pred_fallthru
      _
  $region6: #{transformer_forward.3} parent=0 // loop_footer
    %s69 = sadd.s32 1, %s65
  $region7: #{transformer_forward.3} parent=0 // loop_footer_branch
    %64 = sbr.rel target = $region3
  $region8: #{transformer_forward.3} parent=0 // loop_exit
    _

// kernel: transformer_forward.2
$region0: #{transformer_forward.2}
  #allocation0 [shape = 'u32[]', space=smem, size = 0x4, offset = 0x4, fixed_abs, tag = 'smem constant byte address 0x4 - core index']
  #allocation1 [shape = 'u32[144,128]{1,0:T(1,128)}', space=vmem, size = 0x12000, scoped, tag = 'internal scratch']
  #allocation2 [shape = 'f32[1,8,32]{2,1,0:T(8,128)}', space=vmem, size = 0x1000, scoped, tag = 'scratch operand']
  %s0 = inlined_call_operand.vmem [shape: f32[2,8,32], index: 0, kind: input, shape index: {}]
  %s1 = inlined_call_operand.vmem [shape: bf16[2,32,32], index: 1, kind: input, shape index: {}]
  %s2 = inlined_call_operand.vmem [shape: f32[2,1,32], index: 2, kind: input, shape index: {}]
  %s3 = inlined_call_operand.vmem [shape: bf16[2,32,64], index: 3, kind: input, shape index: {}]
  %s4 = inlined_call_operand.vmem [shape: f32[2,1,64], index: 4, kind: input, shape index: {}]
  %s5 = inlined_call_operand.vmem [shape: bf16[2,32,32], index: 5, kind: input, shape index: {}]
  %s6 = inlined_call_operand.vmem [shape: f32[2,1,32], index: 6, kind: input, shape index: {}]
  %s7 = inlined_call_operand.vmem [shape: f32[2,1,32], index: 7, kind: input, shape index: {}]
  %s8 = inlined_call_operand.vmem [shape: f32[2,1,32], index: 8, kind: input, shape index: {}]
  %s9 = inlined_call_operand.vmem [shape: bf16[2,32,2048], index: 9, kind: input, shape index: {}]
  %s10 = inlined_call_operand.vmem [shape: f32[2,1,2048], index: 10, kind: input, shape index: {}]
  %s11 = inlined_call_operand.vmem [shape: bf16[2,2048,32], index: 11, kind: input, shape index: {}]
  %s12 = inlined_call_operand.vmem [shape: f32[2,1,32], index: 12, kind: input, shape index: {}]
  %s13 = inlined_call_operand.vmem [shape: f32[2,1,32], index: 13, kind: input, shape index: {}]
  %s14 = inlined_call_operand.vmem [shape: f32[2,1,32], index: 14, kind: input, shape index: {}]
  %s15 = inlined_call_operand.vmem [shape: f32[1,32], index: 15, kind: input, shape index: {}]
  %s16 = inlined_call_operand.vmem [shape: f32[1,32], index: 16, kind: input, shape index: {}]
  %s17 = inlined_call_operand.vmem [shape: f32[2,8,32], index: 17, kind: output, shape index: {}]
  %s18 = sld [smem:[#allocation0]]
  $region109: #{transformer_forward.2} parent=0
    _
  %s20 = ssub.s32 1, %s18
  %s21 = scalar_select 0, %s20, %s18
  loop: start=0, step=1, limit=6
  $region2: #{transformer_forward.2} parent=0 // loop_pre_header
    _
  $region3: #{transformer_forward.2} parent=0 // loop_header
    %s23 = sphi 0, %s27
    %p24 = scmp.ge.s32.totalorder %s23, 6
    %s30 = sphi 0, %s42
    %s31 = sphi 0, %s38
    %s32 = sphi 0, %s30
    %s33 = sphi 0, %s31
    %s34 = sphi 0, %s32
    %s35 = sphi 0, %s33
    %s45 = sphi 0, %s47
    %s48 = sphi 0, %s45
    %s49 = sphi 0, %s48
    %s65 = sphi 0, %s49
    %s71 = sphi 0, %s73
    %s74 = sphi 0, %s71
    %s75 = sphi 0, %s74
    %s91 = sphi 0, %s75
    %s97 = sphi 0, %s99
    %s100 = sphi 0, %s97
    %s101 = sphi 0, %s100
    %s117 = sphi 0, %s101
    %s123 = sphi 0, %s125
    %s126 = sphi 0, %s123
    %s127 = sphi 0, %s126
    %s143 = sphi 0, %s127
    %s149 = sphi 0, %s151
    %s152 = sphi 0, %s149
    %s153 = sphi 0, %s152
    %s169 = sphi 0, %s153
    %s175 = sphi 0, %s177
    %s178 = sphi 0, %s175
    %s179 = sphi 0, %s178
    %s195 = sphi 0, %s179
    %s201 = sphi 0, %s203
    %s204 = sphi 0, %s201
    %s205 = sphi 0, %s204
    %s221 = sphi 0, %s205
    %s227 = sphi 0, %s229
    %s230 = sphi 0, %s227
    %s231 = sphi 0, %s230
    %s247 = sphi 0, %s231
    %s253 = sphi 0, %s255
    %s256 = sphi 0, %s253
    %s257 = sphi 0, %s256
    %s273 = sphi 0, %s257
    %s279 = sphi 0, %s281
    %s282 = sphi 0, %s279
    %s283 = sphi 0, %s282
    %s299 = sphi 0, %s283
    %s305 = sphi 0, %s307
    %s308 = sphi 0, %s305
    %s309 = sphi 0, %s308
    %s325 = sphi 0, %s309
    %s331 = sphi 0, %s333
    %s334 = sphi 0, %s331
    %s335 = sphi 0, %s334
    %s351 = sphi 0, %s335
    %s357 = sphi 0, %s359
    %s360 = sphi 0, %s357
    %s361 = sphi 0, %s360
    %s377 = sphi 0, %s361
    %s383 = sphi 0, %s385
    %s386 = sphi 0, %s383
    %s387 = sphi 0, %s386
    %s403 = sphi 0, %s387
    %s409 = sphi 0, %s411
    %s412 = sphi 0, %s409
    %s413 = sphi 0, %s412
    %s429 = sphi 0, %s413
    %s433 = sphi 0, %s433
    %s435 = sphi 0, %s433
    %s436 = sphi 0, %s435
    %s450 = sphi 0, %s436
    %s454 = sphi 0, %s454
    %s456 = sphi 0, %s454
    %s457 = sphi 0, %s456
    %s471 = sphi 0, %s457
    %s477 = sphi 0, %s479
    %s480 = sphi 0, %s477
    %s481 = sphi 0, %s480
    %s497 = sphi 0, %s481
  $region4: #{transformer_forward.2} parent=0 // loop_header_branch
    %26 = sbr.rel (%p24) target = $region8
  $region5: #{transformer_forward.2} parent=0 // loop_body
    %s28 = ssub.s32 %s23, 1
    %s29 = ssub.s32 %s23, 2
    %s36 = sadd.s32 1, %s31
    %p37 = scmp.ge.s32.totalorder %s36, 2
    %s38 = scalar_select %p37, 0, %s36
    %s39 = sadd.s32 1, %s30
    %s40 = scalar_select %p37, %s39, %s30
    %p41 = scmp.ge.s32.totalorder %s40, 2
    %s42 = scalar_select %p41, 0, %s40
    %s43 = ssub.s32 %s30, %s42
    %p44 = scmp.eq.s32.totalorder %s43, 0
    %s46 = sadd.s32 %s45, 1
    %s47 = scalar_select %p44, %s45, %s46
    %p50 = pneg %p44
    %p51 = scmp.eq.s32.totalorder %s23, 3
    %p52 = por %p50, %p51
    %p53 = scmp.ne.s32.totalorder %s45, %s48
    %p54 = scmp.eq.s32.totalorder %s23, 0
    %p55 = por %p53, %p54
    %p56 = scmp.ne.s32.totalorder %s45, %s48
    %p57 = scmp.eq.s32.totalorder %s28, 3
    %p58 = por %p56, %p57
    %p59 = scmp.ne.s32.totalorder %s48, %s49
    %p60 = scmp.eq.s32.totalorder %s28, 0
    %p61 = por %p59, %p60
    %p62 = scmp.ne.s32.totalorder %s48, %s49
    %p63 = scmp.eq.s32.totalorder %s29, 3
    %p64 = por %p62, %p63
    %p66 = scmp.ne.s32.totalorder %s49, %s65
    %p67 = scmp.eq.s32.totalorder %s29, 0
    %p68 = por %p66, %p67
    %s69 = ssub.s32 %s31, %s38
    %p70 = scmp.eq.s32.totalorder %s69, 0
    %s72 = sadd.s32 %s71, 1
    %s73 = scalar_select %p70, %s71, %s72
    %p76 = pneg %p70
    %p77 = scmp.eq.s32.totalorder %s23, 3
    %p78 = por %p76, %p77
    %p79 = scmp.ne.s32.totalorder %s71, %s74
    %p80 = scmp.eq.s32.totalorder %s23, 0
    %p81 = por %p79, %p80
    %p82 = scmp.ne.s32.totalorder %s71, %s74
    %p83 = scmp.eq.s32.totalorder %s28, 3
    %p84 = por %p82, %p83
    %p85 = scmp.ne.s32.totalorder %s74, %s75
    %p86 = scmp.eq.s32.totalorder %s28, 0
    %p87 = por %p85, %p86
    %p88 = scmp.ne.s32.totalorder %s74, %s75
    %p89 = scmp.eq.s32.totalorder %s29, 3
    %p90 = por %p88, %p89
    %p92 = scmp.ne.s32.totalorder %s75, %s91
    %p93 = scmp.eq.s32.totalorder %s29, 0
    %p94 = por %p92, %p93
    %s95 = ssub.s32 %s31, %s38
    %p96 = scmp.eq.s32.totalorder %s95, 0
    %s98 = sadd.s32 %s97, 1
    %s99 = scalar_select %p96, %s97, %s98
    %p102 = pneg %p96
    %p103 = scmp.eq.s32.totalorder %s23, 3
    %p104 = por %p102, %p103
    %p105 = scmp.ne.s32.totalorder %s97, %s100
    %p106 = scmp.eq.s32.totalorder %s23, 0
    %p107 = por %p105, %p106
    %p108 = scmp.ne.s32.totalorder %s97, %s100
    %p109 = scmp.eq.s32.totalorder %s28, 3
    %p110 = por %p108, %p109
    %p111 = scmp.ne.s32.totalorder %s100, %s101
    %p112 = scmp.eq.s32.totalorder %s28, 0
    %p113 = por %p111, %p112
    %p114 = scmp.ne.s32.totalorder %s100, %s101
    %p115 = scmp.eq.s32.totalorder %s29, 3
    %p116 = por %p114, %p115
    %p118 = scmp.ne.s32.totalorder %s101, %s117
    %p119 = scmp.eq.s32.totalorder %s29, 0
    %p120 = por %p118, %p119
    %s121 = ssub.s32 %s31, %s38
    %p122 = scmp.eq.s32.totalorder %s121, 0
    %s124 = sadd.s32 %s123, 1
    %s125 = scalar_select %p122, %s123, %s124
    %p128 = pneg %p122
    %p129 = scmp.eq.s32.totalorder %s23, 3
    %p130 = por %p128, %p129
    %p131 = scmp.ne.s32.totalorder %s123, %s126
    %p132 = scmp.eq.s32.totalorder %s23, 0
    %p133 = por %p131, %p132
    %p134 = scmp.ne.s32.totalorder %s123, %s126
    %p135 = scmp.eq.s32.totalorder %s28, 3
    %p136 = por %p134, %p135
    %p137 = scmp.ne.s32.totalorder %s126, %s127
    %p138 = scmp.eq.s32.totalorder %s28, 0
    %p139 = por %p137, %p138
    %p140 = scmp.ne.s32.totalorder %s126, %s127
    %p141 = scmp.eq.s32.totalorder %s29, 3
    %p142 = por %p140, %p141
    %p144 = scmp.ne.s32.totalorder %s127, %s143
    %p145 = scmp.eq.s32.totalorder %s29, 0
    %p146 = por %p144, %p145
    %s147 = ssub.s32 %s31, %s38
    %p148 = scmp.eq.s32.totalorder %s147, 0
    %s150 = sadd.s32 %s149, 1
    %s151 = scalar_select %p148, %s149, %s150
    %p154 = pneg %p148
    %p155 = scmp.eq.s32.totalorder %s23, 3
    %p156 = por %p154, %p155
    %p157 = scmp.ne.s32.totalorder %s149, %s152
    %p158 = scmp.eq.s32.totalorder %s23, 0
    %p159 = por %p157, %p158
    %p160 = scmp.ne.s32.totalorder %s149, %s152
    %p161 = scmp.eq.s32.totalorder %s28, 3
    %p162 = por %p160, %p161
    %p163 = scmp.ne.s32.totalorder %s152, %s153
    %p164 = scmp.eq.s32.totalorder %s28, 0
    %p165 = por %p163, %p164
    %p166 = scmp.ne.s32.totalorder %s152, %s153
    %p167 = scmp.eq.s32.totalorder %s29, 3
    %p168 = por %p166, %p167
    %p170 = scmp.ne.s32.totalorder %s153, %s169
    %p171 = scmp.eq.s32.totalorder %s29, 0
    %p172 = por %p170, %p171
    %s173 = ssub.s32 %s31, %s38
    %p174 = scmp.eq.s32.totalorder %s173, 0
    %s176 = sadd.s32 %s175, 1
    %s177 = scalar_select %p174, %s175, %s176
    %p180 = pneg %p174
    %p181 = scmp.eq.s32.totalorder %s23, 3
    %p182 = por %p180, %p181
    %p183 = scmp.ne.s32.totalorder %s175, %s178
    %p184 = scmp.eq.s32.totalorder %s23, 0
    %p185 = por %p183, %p184
    %p186 = scmp.ne.s32.totalorder %s175, %s178
    %p187 = scmp.eq.s32.totalorder %s28, 3
    %p188 = por %p186, %p187
    %p189 = scmp.ne.s32.totalorder %s178, %s179
    %p190 = scmp.eq.s32.totalorder %s28, 0
    %p191 = por %p189, %p190
    %p192 = scmp.ne.s32.totalorder %s178, %s179
    %p193 = scmp.eq.s32.totalorder %s29, 3
    %p194 = por %p192, %p193
    %p196 = scmp.ne.s32.totalorder %s179, %s195
    %p197 = scmp.eq.s32.totalorder %s29, 0
    %p198 = por %p196, %p197
    %s199 = ssub.s32 %s31, %s38
    %p200 = scmp.eq.s32.totalorder %s199, 0
    %s202 = sadd.s32 %s201, 1
    %s203 = scalar_select %p200, %s201, %s202
    %p206 = pneg %p200
    %p207 = scmp.eq.s32.totalorder %s23, 3
    %p208 = por %p206, %p207
    %p209 = scmp.ne.s32.totalorder %s201, %s204
    %p210 = scmp.eq.s32.totalorder %s23, 0
    %p211 = por %p209, %p210
    %p212 = scmp.ne.s32.totalorder %s201, %s204
    %p213 = scmp.eq.s32.totalorder %s28, 3
    %p214 = por %p212, %p213
    %p215 = scmp.ne.s32.totalorder %s204, %s205
    %p216 = scmp.eq.s32.totalorder %s28, 0
    %p217 = por %p215, %p216
    %p218 = scmp.ne.s32.totalorder %s204, %s205
    %p219 = scmp.eq.s32.totalorder %s29, 3
    %p220 = por %p218, %p219
    %p222 = scmp.ne.s32.totalorder %s205, %s221
    %p223 = scmp.eq.s32.totalorder %s29, 0
    %p224 = por %p222, %p223
    %s225 = ssub.s32 %s31, %s38
    %p226 = scmp.eq.s32.totalorder %s225, 0
    %s228 = sadd.s32 %s227, 1
    %s229 = scalar_select %p226, %s227, %s228
    %p232 = pneg %p226
    %p233 = scmp.eq.s32.totalorder %s23, 3
    %p234 = por %p232, %p233
    %p235 = scmp.ne.s32.totalorder %s227, %s230
    %p236 = scmp.eq.s32.totalorder %s23, 0
    %p237 = por %p235, %p236
    %p238 = scmp.ne.s32.totalorder %s227, %s230
    %p239 = scmp.eq.s32.totalorder %s28, 3
    %p240 = por %p238, %p239
    %p241 = scmp.ne.s32.totalorder %s230, %s231
    %p242 = scmp.eq.s32.totalorder %s28, 0
    %p243 = por %p241, %p242
    %p244 = scmp.ne.s32.totalorder %s230, %s231
    %p245 = scmp.eq.s32.totalorder %s29, 3
    %p246 = por %p244, %p245
    %p248 = scmp.ne.s32.totalorder %s231, %s247
    %p249 = scmp.eq.s32.totalorder %s29, 0
    %p250 = por %p248, %p249
    %s251 = ssub.s32 %s31, %s38
    %p252 = scmp.eq.s32.totalorder %s251, 0
    %s254 = sadd.s32 %s253, 1
    %s255 = scalar_select %p252, %s253, %s254
    %p258 = pneg %p252
    %p259 = scmp.eq.s32.totalorder %s23, 3
    %p260 = por %p258, %p259
    %p261 = scmp.ne.s32.totalorder %s253, %s256
    %p262 = scmp.eq.s32.totalorder %s23, 0
    %p263 = por %p261, %p262
    %p264 = scmp.ne.s32.totalorder %s253, %s256
    %p265 = scmp.eq.s32.totalorder %s28, 3
    %p266 = por %p264, %p265
    %p267 = scmp.ne.s32.totalorder %s256, %s257
    %p268 = scmp.eq.s32.totalorder %s28, 0
    %p269 = por %p267, %p268
    %p270 = scmp.ne.s32.totalorder %s256, %s257
    %p271 = scmp.eq.s32.totalorder %s29, 3
    %p272 = por %p270, %p271
    %p274 = scmp.ne.s32.totalorder %s257, %s273
    %p275 = scmp.eq.s32.totalorder %s29, 0
    %p276 = por %p274, %p275
    %s277 = ssub.s32 %s31, %s38
    %p278 = scmp.eq.s32.totalorder %s277, 0
    %s280 = sadd.s32 %s279, 1
    %s281 = scalar_select %p278, %s279, %s280
    %p284 = pneg %p278
    %p285 = scmp.eq.s32.totalorder %s23, 3
    %p286 = por %p284, %p285
    %p287 = scmp.ne.s32.totalorder %s279, %s282
    %p288 = scmp.eq.s32.totalorder %s23, 0
    %p289 = por %p287, %p288
    %p290 = scmp.ne.s32.totalorder %s279, %s282
    %p291 = scmp.eq.s32.totalorder %s28, 3
    %p292 = por %p290, %p291
    %p293 = scmp.ne.s32.totalorder %s282, %s283
    %p294 = scmp.eq.s32.totalorder %s28, 0
    %p295 = por %p293, %p294
    %p296 = scmp.ne.s32.totalorder %s282, %s283
    %p297 = scmp.eq.s32.totalorder %s29, 3
    %p298 = por %p296, %p297
    %p300 = scmp.ne.s32.totalorder %s283, %s299
    %p301 = scmp.eq.s32.totalorder %s29, 0
    %p302 = por %p300, %p301
    %s303 = ssub.s32 %s31, %s38
    %p304 = scmp.eq.s32.totalorder %s303, 0
    %s306 = sadd.s32 %s305, 1
    %s307 = scalar_select %p304, %s305, %s306
    %p310 = pneg %p304
    %p311 = scmp.eq.s32.totalorder %s23, 3
    %p312 = por %p310, %p311
    %p313 = scmp.ne.s32.totalorder %s305, %s308
    %p314 = scmp.eq.s32.totalorder %s23, 0
    %p315 = por %p313, %p314
    %p316 = scmp.ne.s32.totalorder %s305, %s308
    %p317 = scmp.eq.s32.totalorder %s28, 3
    %p318 = por %p316, %p317
    %p319 = scmp.ne.s32.totalorder %s308, %s309
    %p320 = scmp.eq.s32.totalorder %s28, 0
    %p321 = por %p319, %p320
    %p322 = scmp.ne.s32.totalorder %s308, %s309
    %p323 = scmp.eq.s32.totalorder %s29, 3
    %p324 = por %p322, %p323
    %p326 = scmp.ne.s32.totalorder %s309, %s325
    %p327 = scmp.eq.s32.totalorder %s29, 0
    %p328 = por %p326, %p327
    %s329 = ssub.s32 %s31, %s38
    %p330 = scmp.eq.s32.totalorder %s329, 0
    %s332 = sadd.s32 %s331, 1
    %s333 = scalar_select %p330, %s331, %s332
    %p336 = pneg %p330
    %p337 = scmp.eq.s32.totalorder %s23, 3
    %p338 = por %p336, %p337
    %p339 = scmp.ne.s32.totalorder %s331, %s334
    %p340 = scmp.eq.s32.totalorder %s23, 0
    %p341 = por %p339, %p340
    %p342 = scmp.ne.s32.totalorder %s331, %s334
    %p343 = scmp.eq.s32.totalorder %s28, 3
    %p344 = por %p342, %p343
    %p345 = scmp.ne.s32.totalorder %s334, %s335
    %p346 = scmp.eq.s32.totalorder %s28, 0
    %p347 = por %p345, %p346
    %p348 = scmp.ne.s32.totalorder %s334, %s335
    %p349 = scmp.eq.s32.totalorder %s29, 3
    %p350 = por %p348, %p349
    %p352 = scmp.ne.s32.totalorder %s335, %s351
    %p353 = scmp.eq.s32.totalorder %s29, 0
    %p354 = por %p352, %p353
    %s355 = ssub.s32 %s31, %s38
    %p356 = scmp.eq.s32.totalorder %s355, 0
    %s358 = sadd.s32 %s357, 1
    %s359 = scalar_select %p356, %s357, %s358
    %p362 = pneg %p356
    %p363 = scmp.eq.s32.totalorder %s23, 3
    %p364 = por %p362, %p363
    %p365 = scmp.ne.s32.totalorder %s357, %s360
    %p366 = scmp.eq.s32.totalorder %s23, 0
    %p367 = por %p365, %p366
    %p368 = scmp.ne.s32.totalorder %s357, %s360
    %p369 = scmp.eq.s32.totalorder %s28, 3
    %p370 = por %p368, %p369
    %p371 = scmp.ne.s32.totalorder %s360, %s361
    %p372 = scmp.eq.s32.totalorder %s28, 0
    %p373 = por %p371, %p372
    %p374 = scmp.ne.s32.totalorder %s360, %s361
    %p375 = scmp.eq.s32.totalorder %s29, 3
    %p376 = por %p374, %p375
    %p378 = scmp.ne.s32.totalorder %s361, %s377
    %p379 = scmp.eq.s32.totalorder %s29, 0
    %p380 = por %p378, %p379
    %s381 = ssub.s32 %s31, %s38
    %p382 = scmp.eq.s32.totalorder %s381, 0
    %s384 = sadd.s32 %s383, 1
    %s385 = scalar_select %p382, %s383, %s384
    %p388 = pneg %p382
    %p389 = scmp.eq.s32.totalorder %s23, 3
    %p390 = por %p388, %p389
    %p391 = scmp.ne.s32.totalorder %s383, %s386
    %p392 = scmp.eq.s32.totalorder %s23, 0
    %p393 = por %p391, %p392
    %p394 = scmp.ne.s32.totalorder %s383, %s386
    %p395 = scmp.eq.s32.totalorder %s28, 3
    %p396 = por %p394, %p395
    %p397 = scmp.ne.s32.totalorder %s386, %s387
    %p398 = scmp.eq.s32.totalorder %s28, 0
    %p399 = por %p397, %p398
    %p400 = scmp.ne.s32.totalorder %s386, %s387
    %p401 = scmp.eq.s32.totalorder %s29, 3
    %p402 = por %p400, %p401
    %p404 = scmp.ne.s32.totalorder %s387, %s403
    %p405 = scmp.eq.s32.totalorder %s29, 0
    %p406 = por %p404, %p405
    %s407 = ssub.s32 %s31, %s38
    %p408 = scmp.eq.s32.totalorder %s407, 0
    %s410 = sadd.s32 %s409, 1
    %s411 = scalar_select %p408, %s409, %s410
    %p414 = pneg %p408
    %p415 = scmp.eq.s32.totalorder %s23, 3
    %p416 = por %p414, %p415
    %p417 = scmp.ne.s32.totalorder %s409, %s412
    %p418 = scmp.eq.s32.totalorder %s23, 0
    %p419 = por %p417, %p418
    %p420 = scmp.ne.s32.totalorder %s409, %s412
    %p421 = scmp.eq.s32.totalorder %s28, 3
    %p422 = por %p420, %p421
    %p423 = scmp.ne.s32.totalorder %s412, %s413
    %p424 = scmp.eq.s32.totalorder %s28, 0
    %p425 = por %p423, %p424
    %p426 = scmp.ne.s32.totalorder %s412, %s413
    %p427 = scmp.eq.s32.totalorder %s29, 3
    %p428 = por %p426, %p427
    %p430 = scmp.ne.s32.totalorder %s413, %s429
    %p431 = scmp.eq.s32.totalorder %s29, 0
    %p432 = por %p430, %p431
    %s434 = sadd.s32 %s433, 1
    %p437 = scmp.eq.s32.totalorder %s23, 3
    %p438 = scmp.ne.s32.totalorder %s433, %s435
    %p439 = scmp.eq.s32.totalorder %s23, 0
    %p440 = por %p438, %p439
    %p441 = scmp.ne.s32.totalorder %s433, %s435
    %p442 = scmp.eq.s32.totalorder %s28, 3
    %p443 = por %p441, %p442
    %p444 = scmp.ne.s32.totalorder %s435, %s436
    %p445 = scmp.eq.s32.totalorder %s28, 0
    %p446 = por %p444, %p445
    %p447 = scmp.ne.s32.totalorder %s435, %s436
    %p448 = scmp.eq.s32.totalorder %s29, 3
    %p449 = por %p447, %p448
    %p451 = scmp.ne.s32.totalorder %s436, %s450
    %p452 = scmp.eq.s32.totalorder %s29, 0
    %p453 = por %p451, %p452
    %s455 = sadd.s32 %s454, 1
    %p458 = scmp.eq.s32.totalorder %s23, 3
    %p459 = scmp.ne.s32.totalorder %s454, %s456
    %p460 = scmp.eq.s32.totalorder %s23, 0
    %p461 = por %p459, %p460
    %p462 = scmp.ne.s32.totalorder %s454, %s456
    %p463 = scmp.eq.s32.totalorder %s28, 3
    %p464 = por %p462, %p463
    %p465 = scmp.ne.s32.totalorder %s456, %s457
    %p466 = scmp.eq.s32.totalorder %s28, 0
    %p467 = por %p465, %p466
    %p468 = scmp.ne.s32.totalorder %s456, %s457
    %p469 = scmp.eq.s32.totalorder %s29, 3
    %p470 = por %p468, %p469
    %p472 = scmp.ne.s32.totalorder %s457, %s471
    %p473 = scmp.eq.s32.totalorder %s29, 0
    %p474 = por %p472, %p473
    %s475 = ssub.s32 %s30, %s42
    %p476 = scmp.eq.s32.totalorder %s475, 0
    %s478 = sadd.s32 %s477, 1
    %s479 = scalar_select %p476, %s477, %s478
    %p482 = pneg %p476
    %p483 = scmp.eq.s32.totalorder %s23, 3
    %p484 = por %p482, %p483
    %p485 = scmp.ne.s32.totalorder %s477, %s480
    %p486 = scmp.eq.s32.totalorder %s23, 0
    %p487 = por %p485, %p486
    %p488 = scmp.ne.s32.totalorder %s477, %s480
    %p489 = scmp.eq.s32.totalorder %s28, 3
    %p490 = por %p488, %p489
    %p491 = scmp.ne.s32.totalorder %s480, %s481
    %p492 = scmp.eq.s32.totalorder %s28, 0
    %p493 = por %p491, %p492
    %p494 = scmp.ne.s32.totalorder %s480, %s481
    %p495 = scmp.eq.s32.totalorder %s29, 3
    %p496 = por %p494, %p495
    %p498 = scmp.ne.s32.totalorder %s481, %s497
    %p499 = scmp.eq.s32.totalorder %s29, 0
    %p500 = por %p498, %p499
    %p501 = scmp.le.s32.totalorder 1, %s23
    %p502 = scmp.lt.s32.totalorder %s23, 5
    %p503 = pnand %p501, %p502
    %p504 = pneg %p503
    // Predicated region
    $region9: #{transformer_forward.2} parent=5 // pred_check
      _
    $region10: #{transformer_forward.2} parent=5 // pred_check_branch
      %506 = sbr.rel (%p503) target = $region12
    $region11: #{transformer_forward.2} parent=5 // pred_region
      %s507 = ssub.s32 %s23, 1
      // Predicated region
      $region13: #{transformer_forward.2} parent=11 // pred_check
        %p508 = pneg %p446
      $region14: #{transformer_forward.2} parent=11 // pred_check_branch
        %510 = sbr.rel (%p508) target = $region16
      $region15: #{transformer_forward.2} parent=11 // pred_region
        _
      $region16: #{transformer_forward.2} parent=11 // pred_fallthru
        _
      // Predicated region
      $region17: #{transformer_forward.2} parent=11 // pred_check
        %p511 = pneg %p467
      $region18: #{transformer_forward.2} parent=11 // pred_check_branch
        %513 = sbr.rel (%p511) target = $region20
      $region19: #{transformer_forward.2} parent=11 // pred_region
        _
      $region20: #{transformer_forward.2} parent=11 // pred_fallthru
        _
    $region12: #{transformer_forward.2} parent=5 // pred_fallthru
      _
    %p514 = scmp.lt.s32.totalorder %s23, 4
    // Predicated region
    $region21: #{transformer_forward.2} parent=5 // pred_check
      %p515 = pneg %p514
    $region22: #{transformer_forward.2} parent=5 // pred_check_branch
      %517 = sbr.rel (%p515) target = $region24
    $region23: #{transformer_forward.2} parent=5 // pred_region
      // Predicated region
      $region25: #{transformer_forward.2} parent=23 // pred_check
        %p518 = pneg %p55
      $region26: #{transformer_forward.2} parent=23 // pred_check_branch
        %520 = sbr.rel (%p518) target = $region28
      $region27: #{transformer_forward.2} parent=23 // pred_region
        %p521 = scmp.lt.s32.totalorder %s30, 1
        %s522 = scalar_select %p521, %s30, 1
        %s523 = smul.addr %s522, 8
        %s524 = scalar_lea.vmem %s0, %s523
      $region28: #{transformer_forward.2} parent=23 // pred_fallthru
        _
      // Predicated region
      $region29: #{transformer_forward.2} parent=23 // pred_check
        %p525 = pneg %p81
      $region30: #{transformer_forward.2} parent=23 // pred_check_branch
        %527 = sbr.rel (%p525) target = $region32
      $region31: #{transformer_forward.2} parent=23 // pred_region
        %p528 = scmp.lt.s32.totalorder %s31, 1
        %s529 = scalar_select %p528, %s31, 1
        %s530 = smul.addr %s529, 4
        %s531 = smul.addr %s530, 4
        %s532 = scalar_lea.vmem %s1, %s531
      $region32: #{transformer_forward.2} parent=23 // pred_fallthru
        _
      // Predicated region
      $region33: #{transformer_forward.2} parent=23 // pred_check
        %p533 = pneg %p107
      $region34: #{transformer_forward.2} parent=23 // pred_check_branch
        %535 = sbr.rel (%p533) target = $region36
      $region35: #{transformer_forward.2} parent=23 // pred_region
        %p536 = scmp.lt.s32.totalorder %s31, 1
        %s537 = scalar_select %p536, %s31, 1
        %s538 = scalar_lea.vmem %s2, %s537
      $region36: #{transformer_forward.2} parent=23 // pred_fallthru
        _
      // Predicated region
      $region37: #{transformer_forward.2} parent=23 // pred_check
        %p539 = pneg %p133
      $region38: #{transformer_forward.2} parent=23 // pred_check_branch
        %541 = sbr.rel (%p539) target = $region40
      $region39: #{transformer_forward.2} parent=23 // pred_region
        %p542 = scmp.lt.s32.totalorder %s31, 1
        %s543 = scalar_select %p542, %s31, 1
        %s544 = smul.addr %s543, 4
        %s545 = smul.addr %s544, 4
        %s546 = scalar_lea.vmem %s3, %s545
      $region40: #{transformer_forward.2} parent=23 // pred_fallthru
        _
      // Predicated region
      $region41: #{transformer_forward.2} parent=23 // pred_check
        %p547 = pneg %p159
      $region42: #{transformer_forward.2} parent=23 // pred_check_branch
        %549 = sbr.rel (%p547) target = $region44
      $region43: #{transformer_forward.2} parent=23 // pred_region
        %p550 = scmp.lt.s32.totalorder %s31, 1
        %s551 = scalar_select %p550, %s31, 1
        %s552 = scalar_lea.vmem %s4, %s551
      $region44: #{transformer_forward.2} parent=23 // pred_fallthru
        _
      // Predicated region
      $region45: #{transformer_forward.2} parent=23 // pred_check
        %p553 = pneg %p185
      $region46: #{transformer_forward.2} parent=23 // pred_check_branch
        %555 = sbr.rel (%p553) target = $region48
      $region47: #{transformer_forward.2} parent=23 // pred_region
        %p556 = scmp.lt.s32.totalorder %s31, 1
        %s557 = scalar_select %p556, %s31, 1
        %s558 = smul.addr %s557, 4
        %s559 = smul.addr %s558, 4
        %s560 = scalar_lea.vmem %s5, %s559
      $region48: #{transformer_forward.2} parent=23 // pred_fallthru
        _
      // Predicated region
      $region49: #{transformer_forward.2} parent=23 // pred_check
        %p561 = pneg %p211
      $region50: #{transformer_forward.2} parent=23 // pred_check_branch
        %563 = sbr.rel (%p561) target = $region52
      $region51: #{transformer_forward.2} parent=23 // pred_region
        %p564 = scmp.lt.s32.totalorder %s31, 1
        %s565 = scalar_select %p564, %s31, 1
        %s566 = scalar_lea.vmem %s6, %s565
      $region52: #{transformer_forward.2} parent=23 // pred_fallthru
        _
      // Predicated region
      $region53: #{transformer_forward.2} parent=23 // pred_check
        %p567 = pneg %p237
      $region54: #{transformer_forward.2} parent=23 // pred_check_branch
        %569 = sbr.rel (%p567) target = $region56
      $region55: #{transformer_forward.2} parent=23 // pred_region
        %p570 = scmp.lt.s32.totalorder %s31, 1
        %s571 = scalar_select %p570, %s31, 1
        %s572 = scalar_lea.vmem %s7, %s571
      $region56: #{transformer_forward.2} parent=23 // pred_fallthru
        _
      // Predicated region
      $region57: #{transformer_forward.2} parent=23 // pred_check
        %p573 = pneg %p263
      $region58: #{transformer_forward.2} parent=23 // pred_check_branch
        %575 = sbr.rel (%p573) target = $region60
      $region59: #{transformer_forward.2} parent=23 // pred_region
        %p576 = scmp.lt.s32.totalorder %s31, 1
        %s577 = scalar_select %p576, %s31, 1
        %s578 = scalar_lea.vmem %s8, %s577
      $region60: #{transformer_forward.2} parent=23 // pred_fallthru
        _
      // Predicated region
      $region61: #{transformer_forward.2} parent=23 // pred_check
        %p579 = pneg %p289
      $region62: #{transformer_forward.2} parent=23 // pred_check_branch
        %581 = sbr.rel (%p579) target = $region64
      $region63: #{transformer_forward.2} parent=23 // pred_region
        %p582 = scmp.lt.s32.totalorder %s31, 1
        %s583 = scalar_select %p582, %s31, 1
        %s584 = smul.addr %s583, 64
        %s585 = smul.addr %s584, 4
        %s586 = scalar_lea.vmem %s9, %s585
      $region64: #{transformer_forward.2} parent=23 // pred_fallthru
        _
      // Predicated region
      $region65: #{transformer_forward.2} parent=23 // pred_check
        %p587 = pneg %p315
      $region66: #{transformer_forward.2} parent=23 // pred_check_branch
        %589 = sbr.rel (%p587) target = $region68
      $region67: #{transformer_forward.2} parent=23 // pred_region
        %p590 = scmp.lt.s32.totalorder %s31, 1
        %s591 = scalar_select %p590, %s31, 1
        %s592 = smul.addr %s591, 16
        %s593 = scalar_lea.vmem %s10, %s592
      $region68: #{transformer_forward.2} parent=23 // pred_fallthru
        _
      // Predicated region
      $region69: #{transformer_forward.2} parent=23 // pred_check
        %p594 = pneg %p341
      $region70: #{transformer_forward.2} parent=23 // pred_check_branch
        %596 = sbr.rel (%p594) target = $region72
      $region71: #{transformer_forward.2} parent=23 // pred_region
        %p597 = scmp.lt.s32.totalorder %s31, 1
        %s598 = scalar_select %p597, %s31, 1
        %s599 = smul.addr %s598, 256
        %s600 = smul.addr %s599, 4
        %s601 = scalar_lea.vmem %s11, %s600
      $region72: #{transformer_forward.2} parent=23 // pred_fallthru
        _
      // Predicated region
      $region73: #{transformer_forward.2} parent=23 // pred_check
        %p602 = pneg %p367
      $region74: #{transformer_forward.2} parent=23 // pred_check_branch
        %604 = sbr.rel (%p602) target = $region76
      $region75: #{transformer_forward.2} parent=23 // pred_region
        %p605 = scmp.lt.s32.totalorder %s31, 1
        %s606 = scalar_select %p605, %s31, 1
        %s607 = scalar_lea.vmem %s12, %s606
      $region76: #{transformer_forward.2} parent=23 // pred_fallthru
        _
      // Predicated region
      $region77: #{transformer_forward.2} parent=23 // pred_check
        %p608 = pneg %p393
      $region78: #{transformer_forward.2} parent=23 // pred_check_branch
        %610 = sbr.rel (%p608) target = $region80
      $region79: #{transformer_forward.2} parent=23 // pred_region
        %p611 = scmp.lt.s32.totalorder %s31, 1
        %s612 = scalar_select %p611, %s31, 1
        %s613 = scalar_lea.vmem %s13, %s612
      $region80: #{transformer_forward.2} parent=23 // pred_fallthru
        _
      // Predicated region
      $region81: #{transformer_forward.2} parent=23 // pred_check
        %p614 = pneg %p419
      $region82: #{transformer_forward.2} parent=23 // pred_check_branch
        %616 = sbr.rel (%p614) target = $region84
      $region83: #{transformer_forward.2} parent=23 // pred_region
        %p617 = scmp.lt.s32.totalorder %s31, 1
        %s618 = scalar_select %p617, %s31, 1
        %s619 = scalar_lea.vmem %s14, %s618
      $region84: #{transformer_forward.2} parent=23 // pred_fallthru
        _
    $region24: #{transformer_forward.2} parent=5 // pred_fallthru
      _
    %p620 = scmp.le.s32.totalorder 1, %s23
    %p621 = scmp.lt.s32.totalorder %s23, 5
    %p622 = pnand %p620, %p621
    %p623 = pneg %p622
    // Predicated region
    $region85: #{transformer_forward.2} parent=5 // pred_check
      _
    $region86: #{transformer_forward.2} parent=5 // pred_check_branch
      %625 = sbr.rel (%p622) target = $region88
    $region87: #{transformer_forward.2} parent=5 // pred_region
      %s626 = ssub.s32 %s23, 1
      %p627 = scmp.lt.s32.totalorder %s32, 1
      %s628 = scalar_select %p627, %s32, 1
      %s629 = smul.addr %s628, 8
      %s630 = scalar_lea.vmem %s0, %s629
      %p631 = pneg %p61
      %p632 = pneg %p58
      %p633 = scmp.lt.s32.totalorder %s33, 1
      %s634 = scalar_select %p633, %s33, 1
      %s635 = smul.addr %s634, 4
      %s636 = smul.addr %s635, 4
      %s637 = scalar_lea.vmem %s1, %s636
      %p638 = pneg %p87
      %p639 = pneg %p84
      %p640 = scmp.lt.s32.totalorder %s33, 1
      %s641 = scalar_select %p640, %s33, 1
      %s642 = scalar_lea.vmem %s2, %s641
      %p643 = pneg %p113
      %p644 = pneg %p110
      %p645 = scmp.lt.s32.totalorder %s33, 1
      %s646 = scalar_select %p645, %s33, 1
      %s647 = smul.addr %s646, 4
      %s648 = smul.addr %s647, 4
      %s649 = scalar_lea.vmem %s3, %s648
      %p650 = pneg %p139
      %p651 = pneg %p136
      %p652 = scmp.lt.s32.totalorder %s33, 1
      %s653 = scalar_select %p652, %s33, 1
      %s654 = scalar_lea.vmem %s4, %s653
      %p655 = pneg %p165
      %p656 = pneg %p162
      %p657 = scmp.lt.s32.totalorder %s33, 1
      %s658 = scalar_select %p657, %s33, 1
      %s659 = smul.addr %s658, 4
      %s660 = smul.addr %s659, 4
      %s661 = scalar_lea.vmem %s5, %s660
      %p662 = pneg %p191
      %p663 = pneg %p188
      %p664 = scmp.lt.s32.totalorder %s33, 1
      %s665 = scalar_select %p664, %s33, 1
      %s666 = scalar_lea.vmem %s6, %s665
      %p667 = pneg %p217
      %p668 = pneg %p214
      %p669 = scmp.lt.s32.totalorder %s33, 1
      %s670 = scalar_select %p669, %s33, 1
      %s671 = scalar_lea.vmem %s7, %s670
      %p672 = pneg %p243
      %p673 = pneg %p240
      %p674 = scmp.lt.s32.totalorder %s33, 1
      %s675 = scalar_select %p674, %s33, 1
      %s676 = scalar_lea.vmem %s8, %s675
      %p677 = pneg %p269
      %p678 = pneg %p266
      %p679 = scmp.lt.s32.totalorder %s33, 1
      %s680 = scalar_select %p679, %s33, 1
      %s681 = smul.addr %s680, 64
      %s682 = smul.addr %s681, 4
      %s683 = scalar_lea.vmem %s9, %s682
      %p684 = pneg %p295
      %p685 = pneg %p292
      %p686 = scmp.lt.s32.totalorder %s33, 1
      %s687 = scalar_select %p686, %s33, 1
      %s688 = smul.addr %s687, 16
      %s689 = scalar_lea.vmem %s10, %s688
      %p690 = pneg %p321
      %p691 = pneg %p318
      %p692 = scmp.lt.s32.totalorder %s33, 1
      %s693 = scalar_select %p692, %s33, 1
      %s694 = smul.addr %s693, 256
      %s695 = smul.addr %s694, 4
      %s696 = scalar_lea.vmem %s11, %s695
      %p697 = pneg %p347
      %p698 = pneg %p344
      %p699 = scmp.lt.s32.totalorder %s33, 1
      %s700 = scalar_select %p699, %s33, 1
      %s701 = scalar_lea.vmem %s12, %s700
      %p702 = pneg %p373
      %p703 = pneg %p370
      %p704 = scmp.lt.s32.totalorder %s33, 1
      %s705 = scalar_select %p704, %s33, 1
      %s706 = scalar_lea.vmem %s13, %s705
      %p707 = pneg %p399
      %p708 = pneg %p396
      %p709 = scmp.lt.s32.totalorder %s33, 1
      %s710 = scalar_select %p709, %s33, 1
      %s711 = scalar_lea.vmem %s14, %s710
      %p712 = pneg %p425
      %p713 = pneg %p422
      %p714 = pneg %p446
      %p715 = pneg %p443
      %p716 = pneg %p467
      %p717 = pneg %p464
      %p718 = pneg %p493
      %p719 = pneg %p490
      %p720 = scmp.lt.s32.totalorder %s32, 1
      %s721 = scalar_select %p720, %s32, 1
      %s722 = smul.addr %s721, 8
      %s723 = scalar_lea.vmem %s17, %s722
      %p724 = scmp.lt.s32.totalorder %s32, 1
      %s725 = scalar_select %p724, %s32, 1
      %s726 = smul.addr %s725, 8
      %s727 = scalar_lea.vmem %s0, %s726
      %p728 = scmp.lt.s32.totalorder %s33, 1
      %s729 = scalar_select %p728, %s33, 1
      %s730 = smul.addr %s729, 4
      %s731 = smul.addr %s730, 4
      %s732 = scalar_lea.vmem %s1, %s731
      %p733 = scmp.lt.s32.totalorder %s33, 1
      %s734 = scalar_select %p733, %s33, 1
      %s735 = scalar_lea.vmem %s2, %s734
      %p736 = scmp.lt.s32.totalorder %s33, 1
      %s737 = scalar_select %p736, %s33, 1
      %s738 = smul.addr %s737, 4
      %s739 = smul.addr %s738, 4
      %s740 = scalar_lea.vmem %s3, %s739
      %p741 = scmp.lt.s32.totalorder %s33, 1
      %s742 = scalar_select %p741, %s33, 1
      %s743 = scalar_lea.vmem %s4, %s742
      %p744 = scmp.lt.s32.totalorder %s33, 1
      %s745 = scalar_select %p744, %s33, 1
      %s746 = smul.addr %s745, 4
      %s747 = smul.addr %s746, 4
      %s748 = scalar_lea.vmem %s5, %s747
      %p749 = scmp.lt.s32.totalorder %s33, 1
      %s750 = scalar_select %p749, %s33, 1
      %s751 = scalar_lea.vmem %s6, %s750
      %p752 = scmp.lt.s32.totalorder %s33, 1
      %s753 = scalar_select %p752, %s33, 1
      %s754 = scalar_lea.vmem %s7, %s753
      %p755 = scmp.lt.s32.totalorder %s33, 1
      %s756 = scalar_select %p755, %s33, 1
      %s757 = scalar_lea.vmem %s8, %s756
      %p758 = scmp.lt.s32.totalorder %s33, 1
      %s759 = scalar_select %p758, %s33, 1
      %s760 = smul.addr %s759, 64
      %s761 = smul.addr %s760, 4
      %s762 = scalar_lea.vmem %s9, %s761
      %p763 = scmp.lt.s32.totalorder %s33, 1
      %s764 = scalar_select %p763, %s33, 1
      %s765 = smul.addr %s764, 16
      %s766 = scalar_lea.vmem %s10, %s765
      %p767 = scmp.lt.s32.totalorder %s33, 1
      %s768 = scalar_select %p767, %s33, 1
      %s769 = smul.addr %s768, 256
      %s770 = smul.addr %s769, 4
      %s771 = scalar_lea.vmem %s11, %s770
      %p772 = scmp.lt.s32.totalorder %s33, 1
      %s773 = scalar_select %p772, %s33, 1
      %s774 = scalar_lea.vmem %s12, %s773
      %p775 = scmp.lt.s32.totalorder %s33, 1
      %s776 = scalar_select %p775, %s33, 1
      %s777 = scalar_lea.vmem %s13, %s776
      %p778 = scmp.lt.s32.totalorder %s33, 1
      %s779 = scalar_select %p778, %s33, 1
      %s780 = scalar_lea.vmem %s14, %s779
      %p781 = scmp.lt.s32.totalorder %s32, 1
      %s782 = scalar_select %p781, %s32, 1
      %s783 = smul.addr %s782, 8
      %s784 = scalar_lea.vmem %s17, %s783
      %p786 = scmp.eq.s32.totalorder %s33, 0
      // Predicated region
      $region89: #{transformer_forward.2} parent=87 // pred_check
        %p787 = pneg %p786
      $region90: #{transformer_forward.2} parent=87 // pred_check_branch
        %789 = sbr.rel (%p787) target = $region92
      $region91: #{transformer_forward.2} parent=87 // pred_region
        %v790 = vld [vmem:[%s727] sm:$0xff]
        %vm791 = vcmask 261120
        %792 = vst.msk [vmem:[#allocation2] sm:$0xff] %vm791, %v790
      $region92: #{transformer_forward.2} parent=87 // pred_fallthru
        _
      %v793 = vld [vmem:[#allocation2] sm:$0xff]
      %v794 = vld [vmem:[%s732] sm:$0xf]
      %v795 = vld [vmem:[%s732 + $0x4] sm:$0xf]
      %v796 = vld [vmem:[%s732 + $0x8] sm:$0xf]
      %v797 = vld [vmem:[%s732 + $0xc] sm:$0xf]
      %v798 = vld [vmem:[%s735] sm:$0x1]
      %v799 = vld [vmem:[%s740] sm:$0xf]
      %v800 = vld [vmem:[%s740 + $0x4] sm:$0xf]
      %v801 = vld [vmem:[%s740 + $0x8] sm:$0xf]
      %v802 = vld [vmem:[%s740 + $0xc] sm:$0xf]
      %v803 = vld [vmem:[%s743] sm:$0x1]
      %v804 = vld [vmem:[%s748] sm:$0xf]
      %v805 = vld [vmem:[%s748 + $0x4] sm:$0xf]
      %v806 = vld [vmem:[%s748 + $0x8] sm:$0xf]
      %v807 = vld [vmem:[%s748 + $0xc] sm:$0xf]
      %v808 = vld [vmem:[%s751] sm:$0x1]
      %v809 = vpack.c.bf16 %v793, %v793
      %v811 = vlaneseq
      %v812 = vshrl.u32 %v811, 7
      %v813 = vsub.s32 0, %v812
      %v814 = vrot.slane %v798, %v813
      %v820 = vunpack.c.l.b16 %v794
      %v821 = vunpack.c.l.b16 %v795
      %v822 = vunpack.c.l.b16 %v796
      %v823 = vunpack.c.l.b16 %v797
      %v824 = vpack.c.b16 %v821, %v820
      %v825 = vpack.c.b16 %v823, %v822
      %vm828 = vcmask 261120
      %v830 = vsel %vm828, %v809, 0
      %832 = vmatprep.subr.bf16.mxu0 0
      %833 = vmatpush1.bf16.msra.mxu0 %v824
      %834 = vmatprep.subr.bf16.mxu0 0
      %835 = vmatpush1.bf16.msra.mxu0 %v825
      %836 = vmatprep.subr.bf16.mxu0 0
      %837 = vmatpush1.bf16.msra.mxu0 0
      %838 = vmatprep.subr.bf16.mxu0 0
      %839 = vmatpush1.bf16.msra.mxu0 0
      %840 = vmatprep.subr.bf16.mxu0 0
      %841 = vmatpush1.bf16.msra.mxu0 0
      %842 = vmatprep.subr.bf16.mxu0 0
      %843 = vmatpush1.bf16.msra.mxu0 0
      %844 = vmatprep.subr.bf16.mxu0 0
      %845 = vmatpush1.bf16.msra.mxu0 0
      %846 = vmatprep.subr.bf16.mxu0 0
      %847 = vmatpush1.bf16.msra.mxu0 0
      %848 = vmatprep.subr.bf16.mxu0 0
      %849 = vmatpush1.bf16.msra.mxu0 0
      %850 = vmatprep.subr.bf16.mxu0 0
      %851 = vmatpush1.bf16.msra.mxu0 0
      %852 = vmatprep.subr.bf16.mxu0 0
      %853 = vmatpush1.bf16.msra.mxu0 0
      %854 = vmatprep.subr.bf16.mxu0 0
      %855 = vmatpush1.bf16.msra.mxu0 0
      %856 = vmatprep.subr.bf16.mxu0 0
      %857 = vmatpush1.bf16.msra.mxu0 0
      %858 = vmatprep.subr.bf16.mxu0 0
      %859 = vmatpush1.bf16.msra.mxu0 0
      %860 = vmatprep.subr.bf16.mxu0 0
      %861 = vmatpush1.bf16.msra.mxu0 0
      %862 = vmatprep.subr.bf16.mxu0 0
      %863 = vmatpush1.bf16.msra.mxu0 0
      %864 = vmatprep.mubr.bf16.mxu0 0
      %865 = vmatmul.mubr.bf16.gmra.mrb[0].mxu0 %v830
      %v866 = vpop.f32.mrb[0].mxu0
      %v867 = vadd.f32 %v814, %v866
      %v868 = vpop.f32.mrb[0].mxu0
      %v869 = vpop.f32.mrb[0].mxu0
      %v870 = vpop.f32.mrb[0].mxu0
      %871 = vdwg.mxu0
      %v873 = vlaneseq
      %v874 = vshrl.u32 %v873, 7
      %v875 = vsub.s32 0, %v874
      %v876 = vrot.slane %v803, %v875
      %v882 = vunpack.c.l.b16 %v799
      %v883 = vunpack.c.l.b16 %v800
      %v884 = vunpack.c.l.b16 %v801
      %v885 = vunpack.c.l.b16 %v802
      %v886 = vpack.c.b16 %v883, %v882
      %v887 = vpack.c.b16 %v885, %v884
      %890 = vmatprep.subr.bf16.mxu0 0
      %891 = vmatpush1.bf16.msra.mxu0 %v886
      %892 = vmatprep.subr.bf16.mxu0 0
      %893 = vmatpush1.bf16.msra.mxu0 %v887
      %894 = vmatprep.subr.bf16.mxu0 0
      %895 = vmatpush1.bf16.msra.mxu0 0
      %896 = vmatprep.subr.bf16.mxu0 0
      %897 = vmatpush1.bf16.msra.mxu0 0
      %898 = vmatprep.subr.bf16.mxu0 0
      %899 = vmatpush1.bf16.msra.mxu0 0
      %900 = vmatprep.subr.bf16.mxu0 0
      %901 = vmatpush1.bf16.msra.mxu0 0
      %902 = vmatprep.subr.bf16.mxu0 0
      %903 = vmatpush1.bf16.msra.mxu0 0
      %904 = vmatprep.subr.bf16.mxu0 0
      %905 = vmatpush1.bf16.msra.mxu0 0
      %906 = vmatprep.subr.bf16.mxu0 0
      %907 = vmatpush1.bf16.msra.mxu0 0
      %908 = vmatprep.subr.bf16.mxu0 0
      %909 = vmatpush1.bf16.msra.mxu0 0
      %910 = vmatprep.subr.bf16.mxu0 0
      %911 = vmatpush1.bf16.msra.mxu0 0
      %912 = vmatprep.subr.bf16.mxu0 0
      %913 = vmatpush1.bf16.msra.mxu0 0
      %914 = vmatprep.subr.bf16.mxu0 0
      %915 = vmatpush1.bf16.msra.mxu0 0
      %916 = vmatprep.subr.bf16.mxu0 0
      %917 = vmatpush1.bf16.msra.mxu0 0
      %918 = vmatprep.subr.bf16.mxu0 0
      %919 = vmatpush1.bf16.msra.mxu0 0
      %920 = vmatprep.subr.bf16.mxu0 0
      %921 = vmatpush1.bf16.msra.mxu0 0
      %922 = vmatprep.mubr.bf16.mxu0 0
      %923 = vmatmul.mubr.bf16.gmra.mrb[0].mxu0 %v830
      %v924 = vpop.f32.mrb[0].mxu0
      %v925 = vadd.f32 %v876, %v924
      %v926 = vpop.f32.mrb[0].mxu0
      %v927 = vpop.f32.mrb[0].mxu0
      %v928 = vpop.f32.mrb[0].mxu0
      %929 = vdwg.mxu0
      %v930 = vmul.f32 %v867, 0.35355338
      %v931 = vpack.c.bf16 %v930, %v930
      %v932 = vpack.c.bf16 %v925, %v925
      %vm933 = vcmask 64512
      %v935 = vsel %vm933, %v931, 0
      %v938 = vsel %vm933, %v932, 0
      %940 = vmatprep.subr.bf16.mxu0 0
      %941 = vmatpush1.bf16.xpose.msra.mxu0 %v938
      %942 = vmatprep.subr.bf16.mxu0 0
      %943 = vmatpush1.bf16.xpose.msra.mxu0 0
      %944 = vmatprep.subr.bf16.mxu0 0
      %945 = vmatpush1.bf16.xpose.msra.mxu0 0
      %946 = vmatprep.subr.bf16.mxu0 0
      %947 = vmatpush1.bf16.xpose.msra.mxu0 0
      %948 = vmatprep.subr.bf16.mxu0 0
      %949 = vmatpush1.bf16.xpose.msra.mxu0 0
      %950 = vmatprep.subr.bf16.mxu0 0
      %951 = vmatpush1.bf16.xpose.msra.mxu0 0
      %952 = vmatprep.subr.bf16.mxu0 0
      %953 = vmatpush1.bf16.xpose.msra.mxu0 0
      %954 = vmatprep.subr.bf16.mxu0 0
      %955 = vmatpush1.bf16.xpose.msra.mxu0 0
      %956 = vmatprep.subr.bf16.mxu0 0
      %957 = vmatpush1.bf16.xpose.msra.mxu0 0
      %958 = vmatprep.subr.bf16.mxu0 0
      %959 = vmatpush1.bf16.xpose.msra.mxu0 0
      %960 = vmatprep.subr.bf16.mxu0 0
      %961 = vmatpush1.bf16.xpose.msra.mxu0 0
      %962 = vmatprep.subr.bf16.mxu0 0
      %963 = vmatpush1.bf16.xpose.msra.mxu0 0
      %964 = vmatprep.subr.bf16.mxu0 0
      %965 = vmatpush1.bf16.xpose.msra.mxu0 0
      %966 = vmatprep.subr.bf16.mxu0 0
      %967 = vmatpush1.bf16.xpose.msra.mxu0 0
      %968 = vmatprep.subr.bf16.mxu0 0
      %969 = vmatpush1.bf16.xpose.msra.mxu0 0
      %970 = vmatprep.subr.bf16.mxu0 0
      %971 = vmatpush1.bf16.xpose.msra.mxu0 0
      %972 = vmatprep.mubr.bf16.mxu0 0
      %973 = vmatmul.mubr.bf16.gmra.mrb[0].mxu0 %v935
      %v974 = vpop.f32.mrb[0].mxu0
      %v975 = vadd.f32 0.0, %v974
      %v976 = vpop.f32.mrb[0].mxu0
      %v977 = vpop.f32.mrb[0].mxu0
      %v978 = vpop.f32.mrb[0].mxu0
      %979 = vdwg.mxu0
      %v980 = vsel %vm933, %v975, -inf
      %981 = vmax.xlane.f32.xlu0 %v980
      %v982 = vpop.xlane.xlu0 %981
      %v983 = vsub.f32 %v975, %v982
      %v984 = vmul.f32 %v983, 1.442695
      %v985 = vpow.pop %v984
      %v986 = vsel %vm933, %v985, 0.0
      %987 = vadd.xlane.f32.xlu0 %v986
      %v988 = vpop.xlane.xlu0 %987
      %v989 = vrcp.pop %v988
      %v990 = vmul.f32 %v985, %v989
      %v991 = vpack.c.bf16 %v990, %v990
      %993 = vrot.lane.b32.xlu0 %v932, 96
      %v994 = vpop.permute.xlu0 %993
      %v996 = vsel %vm933, %v991, 0
      %vm998 = vcmask 1043456
      %v1000 = vsel %vm998, %v994, 0
      %1002 = vmatprep.subr.bf16.mxu0 0
      %1003 = vmatpush1.bf16.msra.mxu0 %v1000
      %1004 = vmatprep.subr.bf16.mxu0 0
      %1005 = vmatpush1.bf16.msra.mxu0 0
      %1006 = vmatprep.subr.bf16.mxu0 0
      %1007 = vmatpush1.bf16.msra.mxu0 0
      %1008 = vmatprep.subr.bf16.mxu0 0
      %1009 = vmatpush1.bf16.msra.mxu0 0
      %1010 = vmatprep.subr.bf16.mxu0 0
      %1011 = vmatpush1.bf16.msra.mxu0 0
      %1012 = vmatprep.subr.bf16.mxu0 0
      %1013 = vmatpush1.bf16.msra.mxu0 0
      %1014 = vmatprep.subr.bf16.mxu0 0
      %1015 = vmatpush1.bf16.msra.mxu0 0
      %1016 = vmatprep.subr.bf16.mxu0 0
      %1017 = vmatpush1.bf16.msra.mxu0 0
      %1018 = vmatprep.subr.bf16.mxu0 0
      %1019 = vmatpush1.bf16.msra.mxu0 0
      %1020 = vmatprep.subr.bf16.mxu0 0
      %1021 = vmatpush1.bf16.msra.mxu0 0
      %1022 = vmatprep.subr.bf16.mxu0 0
      %1023 = vmatpush1.bf16.msra.mxu0 0
      %1024 = vmatprep.subr.bf16.mxu0 0
      %1025 = vmatpush1.bf16.msra.mxu0 0
      %1026 = vmatprep.subr.bf16.mxu0 0
      %1027 = vmatpush1.bf16.msra.mxu0 0
      %1028 = vmatprep.subr.bf16.mxu0 0
      %1029 = vmatpush1.bf16.msra.mxu0 0
      %1030 = vmatprep.subr.bf16.mxu0 0
      %1031 = vmatpush1.bf16.msra.mxu0 0
      %1032 = vmatprep.subr.bf16.mxu0 0
      %1033 = vmatpush1.bf16.msra.mxu0 0
      %1034 = vmatprep.mubr.bf16.mxu0 0
      %1035 = vmatmul.mubr.bf16.gmra.mrb[0].mxu0 %v996
      %v1036 = vpop.f32.mrb[0].mxu0
      %v1037 = vadd.f32 0.0, %v1036
      %v1038 = vpop.f32.mrb[0].mxu0
      %v1039 = vpop.f32.mrb[0].mxu0
      %v1040 = vpop.f32.mrb[0].mxu0
      %1041 = vdwg.mxu0
      %v1042 = vpack.c.bf16 %v1037, %v1037
      %1044 = vrot.lane.b32.xlu0 %v931, 120
      %v1045 = vpop.permute.xlu0 %1044
      %1046 = vrot.lane.b32.xlu0 %v932, 120
      %v1047 = vpop.permute.xlu0 %1046
      %v1049 = vsel %vm933, %v1045, 0
      %v1052 = vsel %vm933, %v1047, 0
      %1054 = vmatprep.subr.bf16.mxu0 0
      %1055 = vmatpush1.bf16.xpose.msra.mxu0 %v1052
      %1056 = vmatprep.subr.bf16.mxu0 0
      %1057 = vmatpush1.bf16.xpose.msra.mxu0 0
      %1058 = vmatprep.subr.bf16.mxu0 0
      %1059 = vmatpush1.bf16.xpose.msra.mxu0 0
      %1060 = vmatprep.subr.bf16.mxu0 0
      %1061 = vmatpush1.bf16.xpose.msra.mxu0 0
      %1062 = vmatprep.subr.bf16.mxu0 0
      %1063 = vmatpush1.bf16.xpose.msra.mxu0 0
      %1064 = vmatprep.subr.bf16.mxu0 0
      %1065 = vmatpush1.bf16.xpose.msra.mxu0 0
      %1066 = vmatprep.subr.bf16.mxu0 0
      %1067 = vmatpush1.bf16.xpose.msra.mxu0 0
      %1068 = vmatprep.subr.bf16.mxu0 0
      %1069 = vmatpush1.bf16.xpose.msra.mxu0 0
      %1070 = vmatprep.subr.bf16.mxu0 0
      %1071 = vmatpush1.bf16.xpose.msra.mxu0 0
      %1072 = vmatprep.subr.bf16.mxu0 0
      %1073 = vmatpush1.bf16.xpose.msra.mxu0 0
      %1074 = vmatprep.subr.bf16.mxu0 0
      %1075 = vmatpush1.bf16.xpose.msra.mxu0 0
      %1076 = vmatprep.subr.bf16.mxu0 0
      %1077 = vmatpush1.bf16.xpose.msra.mxu0 0
      %1078 = vmatprep.subr.bf16.mxu0 0
      %1079 = vmatpush1.bf16.xpose.msra.mxu0 0
      %1080 = vmatprep.subr.bf16.mxu0 0
      %1081 = vmatpush1.bf16.xpose.msra.mxu0 0
      %1082 = vmatprep.subr.bf16.mxu0 0
      %1083 = vmatpush1.bf16.xpose.msra.mxu0 0
      %1084 = vmatprep.subr.bf16.mxu0 0
      %1085 = vmatpush1.bf16.xpose.msra.mxu0 0
      %1086 = vmatprep.mubr.bf16.mxu0 0
      %1087 = vmatmul.mubr.bf16.gmra.mrb[0].mxu0 %v1049
      %v1088 = vpop.f32.mrb[0].mxu0
      %v1089 = vadd.f32 0.0, %v1088
      %v1090 = vpop.f32.mrb[0].mxu0
      %v1091 = vpop.f32.mrb[0].mxu0
      %v1092 = vpop.f32.mrb[0].mxu0
      %1093 = vdwg.mxu0
      %v1094 = vsel %vm933, %v1089, -inf
      %1095 = vmax.xlane.f32.xlu0 %v1094
      %v1096 = vpop.xlane.xlu0 %1095
      %v1097 = vsub.f32 %v1089, %v1096
      %v1098 = vmul.f32 %v1097, 1.442695
      %v1099 = vpow.pop %v1098
      %v1100 = vsel %vm933, %v1099, 0.0
      %1101 = vadd.xlane.f32.xlu0 %v1100
      %v1102 = vpop.xlane.xlu0 %1101
      %v1103 = vrcp.pop %v1102
      %v1104 = vmul.f32 %v1099, %v1103
      %v1105 = vpack.c.bf16 %v1104, %v1104
      %1106 = vrot.lane.b32.xlu0 %v932, 88
      %v1107 = vpop.permute.xlu0 %1106
      %v1109 = vsel %vm933, %v1105, 0
      %v1112 = vsel %vm998, %v1107, 0
      %1114 = vmatprep.subr.bf16.mxu0 0
      %1115 = vmatpush1.bf16.msra.mxu0 %v1112
      %1116 = vmatprep.subr.bf16.mxu0 0
      %1117 = vmatpush1.bf16.msra.mxu0 0
      %1118 = vmatprep.subr.bf16.mxu0 0
      %1119 = vmatpush1.bf16.msra.mxu0 0
      %1120 = vmatprep.subr.bf16.mxu0 0
      %1121 = vmatpush1.bf16.msra.mxu0 0
      %1122 = vmatprep.subr.bf16.mxu0 0
      %1123 = vmatpush1.bf16.msra.mxu0 0
      %1124 = vmatprep.subr.bf16.mxu0 0
      %1125 = vmatpush1.bf16.msra.mxu0 0
      %1126 = vmatprep.subr.bf16.mxu0 0
      %1127 = vmatpush1.bf16.msra.mxu0 0
      %1128 = vmatprep.subr.bf16.mxu0 0
      %1129 = vmatpush1.bf16.msra.mxu0 0
      %1130 = vmatprep.subr.bf16.mxu0 0
      %1131 = vmatpush1.bf16.msra.mxu0 0
      %1132 = vmatprep.subr.bf16.mxu0 0
      %1133 = vmatpush1.bf16.msra.mxu0 0
      %1134 = vmatprep.subr.bf16.mxu0 0
      %1135 = vmatpush1.bf16.msra.mxu0 0
      %1136 = vmatprep.subr.bf16.mxu0 0
      %1137 = vmatpush1.bf16.msra.mxu0 0
      %1138 = vmatprep.subr.bf16.mxu0 0
      %1139 = vmatpush1.bf16.msra.mxu0 0
      %1140 = vmatprep.subr.bf16.mxu0 0
      %1141 = vmatpush1.bf16.msra.mxu0 0
      %1142 = vmatprep.subr.bf16.mxu0 0
      %1143 = vmatpush1.bf16.msra.mxu0 0
      %1144 = vmatprep.subr.bf16.mxu0 0
      %1145 = vmatpush1.bf16.msra.mxu0 0
      %1146 = vmatprep.mubr.bf16.mxu0 0
      %1147 = vmatmul.mubr.bf16.gmra.mrb[0].mxu0 %v1109
      %v1148 = vpop.f32.mrb[0].mxu0
      %v1149 = vadd.f32 0.0, %v1148
      %v1150 = vpop.f32.mrb[0].mxu0
      %v1151 = vpop.f32.mrb[0].mxu0
      %v1152 = vpop.f32.mrb[0].mxu0
      %1153 = vdwg.mxu0
      %v1154 = vpack.c.bf16 %v1149, %v1149
      %v1156 = vsel %vm933, %v1154, 0
      %v1159 = vsel %vm998, %v805, 0
      %1161 = vmatprep.subr.bf16.mxu0 0
      %1162 = vmatpush1.bf16.msra.mxu0 %v1159
      %1163 = vmatprep.subr.bf16.mxu0 0
      %1164 = vmatpush1.bf16.msra.mxu0 0
      %1165 = vmatprep.subr.bf16.mxu0 0
      %1166 = vmatpush1.bf16.msra.mxu0 0
      %1167 = vmatprep.subr.bf16.mxu0 0
      %1168 = vmatpush1.bf16.msra.mxu0 0
      %1169 = vmatprep.subr.bf16.mxu0 0
      %1170 = vmatpush1.bf16.msra.mxu0 0
      %1171 = vmatprep.subr.bf16.mxu0 0
      %1172 = vmatpush1.bf16.msra.mxu0 0
      %1173 = vmatprep.subr.bf16.mxu0 0
      %1174 = vmatpush1.bf16.msra.mxu0 0
      %1175 = vmatprep.subr.bf16.mxu0 0
      %1176 = vmatpush1.bf16.msra.mxu0 0
      %1177 = vmatprep.subr.bf16.mxu0 0
      %1178 = vmatpush1.bf16.msra.mxu0 0
      %1179 = vmatprep.subr.bf16.mxu0 0
      %1180 = vmatpush1.bf16.msra.mxu0 0
      %1181 = vmatprep.subr.bf16.mxu0 0
      %1182 = vmatpush1.bf16.msra.mxu0 0
      %1183 = vmatprep.subr.bf16.mxu0 0
      %1184 = vmatpush1.bf16.msra.mxu0 0
      %1185 = vmatprep.subr.bf16.mxu0 0
      %1186 = vmatpush1.bf16.msra.mxu0 0
      %1187 = vmatprep.subr.bf16.mxu0 0
      %1188 = vmatpush1.bf16.msra.mxu0 0
      %1189 = vmatprep.subr.bf16.mxu0 0
      %1190 = vmatpush1.bf16.msra.mxu0 0
      %1191 = vmatprep.subr.bf16.mxu0 0
      %1192 = vmatpush1.bf16.msra.mxu0 0
      %1193 = vmatprep.mubr.bf16.mxu0 0
      %1194 = vmatmul.mubr.bf16.gmra.mrb[0].mxu0 %v1156
      %v1195 = vpop.f32.mrb[0].mxu0
      %v1196 = vadd.f32 0.0, %v1195
      %v1197 = vpop.f32.mrb[0].mxu0
      %v1198 = vpop.f32.mrb[0].mxu0
      %v1199 = vpop.f32.mrb[0].mxu0
      %1200 = vdwg.mxu0
      %v1202 = vsel %vm933, %v1042, 0
      %v1205 = vsel %vm998, %v804, 0
      %1207 = vmatprep.subr.bf16.mxu0 0
      %1208 = vmatpush1.bf16.msra.mxu0 %v1205
      %1209 = vmatprep.subr.bf16.mxu0 0
      %1210 = vmatpush1.bf16.msra.mxu0 0
      %1211 = vmatprep.subr.bf16.mxu0 0
      %1212 = vmatpush1.bf16.msra.mxu0 0
      %1213 = vmatprep.subr.bf16.mxu0 0
      %1214 = vmatpush1.bf16.msra.mxu0 0
      %1215 = vmatprep.subr.bf16.mxu0 0
      %1216 = vmatpush1.bf16.msra.mxu0 0
      %1217 = vmatprep.subr.bf16.mxu0 0
      %1218 = vmatpush1.bf16.msra.mxu0 0
      %1219 = vmatprep.subr.bf16.mxu0 0
      %1220 = vmatpush1.bf16.msra.mxu0 0
      %1221 = vmatprep.subr.bf16.mxu0 0
      %1222 = vmatpush1.bf16.msra.mxu0 0
      %1223 = vmatprep.subr.bf16.mxu0 0
      %1224 = vmatpush1.bf16.msra.mxu0 0
      %1225 = vmatprep.subr.bf16.mxu0 0
      %1226 = vmatpush1.bf16.msra.mxu0 0
      %1227 = vmatprep.subr.bf16.mxu0 0
      %1228 = vmatpush1.bf16.msra.mxu0 0
      %1229 = vmatprep.subr.bf16.mxu0 0
      %1230 = vmatpush1.bf16.msra.mxu0 0
      %1231 = vmatprep.subr.bf16.mxu0 0
      %1232 = vmatpush1.bf16.msra.mxu0 0
      %1233 = vmatprep.subr.bf16.mxu0 0
      %1234 = vmatpush1.bf16.msra.mxu0 0
      %1235 = vmatprep.subr.bf16.mxu0 0
      %1236 = vmatpush1.bf16.msra.mxu0 0
      %1237 = vmatprep.subr.bf16.mxu0 0
      %1238 = vmatpush1.bf16.msra.mxu0 0
      %1239 = vmatprep.mubr.bf16.mxu0 0
      %1240 = vmatmul.mubr.bf16.gmra.mrb[0].mxu0 %v1202
      %v1241 = vpop.f32.mrb[0].mxu0
      %v1242 = vadd.f32 %v1196, %v1241
      %v1243 = vpop.f32.mrb[0].mxu0
      %v1244 = vpop.f32.mrb[0].mxu0
      %v1245 = vpop.f32.mrb[0].mxu0
      %1246 = vdwg.mxu0
      %1247 = vrot.lane.b32.xlu0 %v931, 112
      %v1248 = vpop.permute.xlu0 %1247
      %1249 = vrot.lane.b32.xlu0 %v932, 112
      %v1250 = vpop.permute.xlu0 %1249
      %v1252 = vsel %vm933, %v1248, 0
      %v1255 = vsel %vm933, %v1250, 0
      %1257 = vmatprep.subr.bf16.mxu0 0
      %1258 = vmatpush1.bf16.xpose.msra.mxu0 %v1255
      %1259 = vmatprep.subr.bf16.mxu0 0
      %1260 = vmatpush1.bf16.xpose.msra.mxu0 0
      %1261 = vmatprep.subr.bf16.mxu0 0
      %1262 = vmatpush1.bf16.xpose.msra.mxu0 0
      %1263 = vmatprep.subr.bf16.mxu0 0
      %1264 = vmatpush1.bf16.xpose.msra.mxu0 0
      %1265 = vmatprep.subr.bf16.mxu0 0
      %1266 = vmatpush1.bf16.xpose.msra.mxu0 0
      %1267 = vmatprep.subr.bf16.mxu0 0
      %1268 = vmatpush1.bf16.xpose.msra.mxu0 0
      %1269 = vmatprep.subr.bf16.mxu0 0
      %1270 = vmatpush1.bf16.xpose.msra.mxu0 0
      %1271 = vmatprep.subr.bf16.mxu0 0
      %1272 = vmatpush1.bf16.xpose.msra.mxu0 0
      %1273 = vmatprep.subr.bf16.mxu0 0
      %1274 = vmatpush1.bf16.xpose.msra.mxu0 0
      %1275 = vmatprep.subr.bf16.mxu0 0
      %1276 = vmatpush1.bf16.xpose.msra.mxu0 0
      %1277 = vmatprep.subr.bf16.mxu0 0
      %1278 = vmatpush1.bf16.xpose.msra.mxu0 0
      %1279 = vmatprep.subr.bf16.mxu0 0
      %1280 = vmatpush1.bf16.xpose.msra.mxu0 0
      %1281 = vmatprep.subr.bf16.mxu0 0
      %1282 = vmatpush1.bf16.xpose.msra.mxu0 0
      %1283 = vmatprep.subr.bf16.mxu0 0
      %1284 = vmatpush1.bf16.xpose.msra.mxu0 0
      %1285 = vmatprep.subr.bf16.mxu0 0
      %1286 = vmatpush1.bf16.xpose.msra.mxu0 0
      %1287 = vmatprep.subr.bf16.mxu0 0
      %1288 = vmatpush1.bf16.xpose.msra.mxu0 0
      %1289 = vmatprep.mubr.bf16.mxu0 0
      %1290 = vmatmul.mubr.bf16.gmra.mrb[0].mxu0 %v1252
      %v1291 = vpop.f32.mrb[0].mxu0
      %v1292 = vadd.f32 0.0, %v1291
      %v1293 = vpop.f32.mrb[0].mxu0
      %v1294 = vpop.f32.mrb[0].mxu0
      %v1295 = vpop.f32.mrb[0].mxu0
      %1296 = vdwg.mxu0
      %v1297 = vsel %vm933, %v1292, -inf
      %1298 = vmax.xlane.f32.xlu0 %v1297
      %v1299 = vpop.xlane.xlu0 %1298
      %v1300 = vsub.f32 %v1292, %v1299
      %v1301 = vmul.f32 %v1300, 1.442695
      %v1302 = vpow.pop %v1301
      %v1303 = vsel %vm933, %v1302, 0.0
      %1304 = vadd.xlane.f32.xlu0 %v1303
      %v1305 = vpop.xlane.xlu0 %1304
      %v1306 = vrcp.pop %v1305
      %v1307 = vmul.f32 %v1302, %v1306
      %v1308 = vpack.c.bf16 %v1307, %v1307
      %1309 = vrot.lane.b32.xlu0 %v932, 80
      %v1310 = vpop.permute.xlu0 %1309
      %v1312 = vsel %vm933, %v1308, 0
      %v1315 = vsel %vm998, %v1310, 0
      %1317 = vmatprep.subr.bf16.mxu0 0
      %1318 = vmatpush1.bf16.msra.mxu0 %v1315
      %1319 = vmatprep.subr.bf16.mxu0 0
      %1320 = vmatpush1.bf16.msra.mxu0 0
      %1321 = vmatprep.subr.bf16.mxu0 0
      %1322 = vmatpush1.bf16.msra.mxu0 0
      %1323 = vmatprep.subr.bf16.mxu0 0
      %1324 = vmatpush1.bf16.msra.mxu0 0
      %1325 = vmatprep.subr.bf16.mxu0 0
      %1326 = vmatpush1.bf16.msra.mxu0 0
      %1327 = vmatprep.subr.bf16.mxu0 0
      %1328 = vmatpush1.bf16.msra.mxu0 0
      %1329 = vmatprep.subr.bf16.mxu0 0
      %1330 = vmatpush1.bf16.msra.mxu0 0
      %1331 = vmatprep.subr.bf16.mxu0 0
      %1332 = vmatpush1.bf16.msra.mxu0 0
      %1333 = vmatprep.subr.bf16.mxu0 0
      %1334 = vmatpush1.bf16.msra.mxu0 0
      %1335 = vmatprep.subr.bf16.mxu0 0
      %1336 = vmatpush1.bf16.msra.mxu0 0
      %1337 = vmatprep.subr.bf16.mxu0 0
      %1338 = vmatpush1.bf16.msra.mxu0 0
      %1339 = vmatprep.subr.bf16.mxu0 0
      %1340 = vmatpush1.bf16.msra.mxu0 0
      %1341 = vmatprep.subr.bf16.mxu0 0
      %1342 = vmatpush1.bf16.msra.mxu0 0
      %1343 = vmatprep.subr.bf16.mxu0 0
      %1344 = vmatpush1.bf16.msra.mxu0 0
      %1345 = vmatprep.subr.bf16.mxu0 0
      %1346 = vmatpush1.bf16.msra.mxu0 0
      %1347 = vmatprep.subr.bf16.mxu0 0
      %1348 = vmatpush1.bf16.msra.mxu0 0
      %1349 = vmatprep.mubr.bf16.mxu0 0
      %1350 = vmatmul.mubr.bf16.gmra.mrb[0].mxu0 %v1312
      %v1351 = vpop.f32.mrb[0].mxu0
      %v1352 = vadd.f32 0.0, %v1351
      %v1353 = vpop.f32.mrb[0].mxu0
      %v1354 = vpop.f32.mrb[0].mxu0
      %v1355 = vpop.f32.mrb[0].mxu0
      %1356 = vdwg.mxu0
      %v1357 = vpack.c.bf16 %v1352, %v1352
      %v1359 = vsel %vm933, %v1357, 0
      %v1362 = vsel %vm998, %v806, 0
      %1364 = vmatprep.subr.bf16.mxu0 0
      %1365 = vmatpush1.bf16.msra.mxu0 %v1362
      %1366 = vmatprep.subr.bf16.mxu0 0
      %1367 = vmatpush1.bf16.msra.mxu0 0
      %1368 = vmatprep.subr.bf16.mxu0 0
      %1369 = vmatpush1.bf16.msra.mxu0 0
      %1370 = vmatprep.subr.bf16.mxu0 0
      %1371 = vmatpush1.bf16.msra.mxu0 0
      %1372 = vmatprep.subr.bf16.mxu0 0
      %1373 = vmatpush1.bf16.msra.mxu0 0
      %1374 = vmatprep.subr.bf16.mxu0 0
      %1375 = vmatpush1.bf16.msra.mxu0 0
      %1376 = vmatprep.subr.bf16.mxu0 0
      %1377 = vmatpush1.bf16.msra.mxu0 0
      %1378 = vmatprep.subr.bf16.mxu0 0
      %1379 = vmatpush1.bf16.msra.mxu0 0
      %1380 = vmatprep.subr.bf16.mxu0 0
      %1381 = vmatpush1.bf16.msra.mxu0 0
      %1382 = vmatprep.subr.bf16.mxu0 0
      %1383 = vmatpush1.bf16.msra.mxu0 0
      %1384 = vmatprep.subr.bf16.mxu0 0
      %1385 = vmatpush1.bf16.msra.mxu0 0
      %1386 = vmatprep.subr.bf16.mxu0 0
      %1387 = vmatpush1.bf16.msra.mxu0 0
      %1388 = vmatprep.subr.bf16.mxu0 0
      %1389 = vmatpush1.bf16.msra.mxu0 0
      %1390 = vmatprep.subr.bf16.mxu0 0
      %1391 = vmatpush1.bf16.msra.mxu0 0
      %1392 = vmatprep.subr.bf16.mxu0 0
      %1393 = vmatpush1.bf16.msra.mxu0 0
      %1394 = vmatprep.subr.bf16.mxu0 0
      %1395 = vmatpush1.bf16.msra.mxu0 0
      %1396 = vmatprep.mubr.bf16.mxu0 0
      %1397 = vmatmul.mubr.bf16.gmra.mrb[0].mxu0 %v1359
      %v1398 = vpop.f32.mrb[0].mxu0
      %v1399 = vadd.f32 0.0, %v1398
      %v1400 = vpop.f32.mrb[0].mxu0
      %v1401 = vpop.f32.mrb[0].mxu0
      %v1402 = vpop.f32.mrb[0].mxu0
      %1403 = vdwg.mxu0
      %v1404 = vadd.f32 %v1242, %v1399
      %1405 = vrot.lane.b32.xlu0 %v931, 104
      %v1406 = vpop.permute.xlu0 %1405
      %1407 = vrot.lane.b32.xlu0 %v932, 104
      %v1408 = vpop.permute.xlu0 %1407
      %v1410 = vsel %vm933, %v1406, 0
      %v1413 = vsel %vm933, %v1408, 0
      %1415 = vmatprep.subr.bf16.mxu0 0
      %1416 = vmatpush1.bf16.xpose.msra.mxu0 %v1413
      %1417 = vmatprep.subr.bf16.mxu0 0
      %1418 = vmatpush1.bf16.xpose.msra.mxu0 0
      %1419 = vmatprep.subr.bf16.mxu0 0
      %1420 = vmatpush1.bf16.xpose.msra.mxu0 0
      %1421 = vmatprep.subr.bf16.mxu0 0
      %1422 = vmatpush1.bf16.xpose.msra.mxu0 0
      %1423 = vmatprep.subr.bf16.mxu0 0
      %1424 = vmatpush1.bf16.xpose.msra.mxu0 0
      %1425 = vmatprep.subr.bf16.mxu0 0
      %1426 = vmatpush1.bf16.xpose.msra.mxu0 0
      %1427 = vmatprep.subr.bf16.mxu0 0
      %1428 = vmatpush1.bf16.xpose.msra.mxu0 0
      %1429 = vmatprep.subr.bf16.mxu0 0
      %1430 = vmatpush1.bf16.xpose.msra.mxu0 0
      %1431 = vmatprep.subr.bf16.mxu0 0
      %1432 = vmatpush1.bf16.xpose.msra.mxu0 0
      %1433 = vmatprep.subr.bf16.mxu0 0
      %1434 = vmatpush1.bf16.xpose.msra.mxu0 0
      %1435 = vmatprep.subr.bf16.mxu0 0
      %1436 = vmatpush1.bf16.xpose.msra.mxu0 0
      %1437 = vmatprep.subr.bf16.mxu0 0
      %1438 = vmatpush1.bf16.xpose.msra.mxu0 0
      %1439 = vmatprep.subr.bf16.mxu0 0
      %1440 = vmatpush1.bf16.xpose.msra.mxu0 0
      %1441 = vmatprep.subr.bf16.mxu0 0
      %1442 = vmatpush1.bf16.xpose.msra.mxu0 0
      %1443 = vmatprep.subr.bf16.mxu0 0
      %1444 = vmatpush1.bf16.xpose.msra.mxu0 0
      %1445 = vmatprep.subr.bf16.mxu0 0
      %1446 = vmatpush1.bf16.xpose.msra.mxu0 0
      %1447 = vmatprep.mubr.bf16.mxu0 0
      %1448 = vmatmul.mubr.bf16.gmra.mrb[0].mxu0 %v1410
      %v1449 = vpop.f32.mrb[0].mxu0
      %v1450 = vadd.f32 0.0, %v1449
      %v1451 = vpop.f32.mrb[0].mxu0
      %v1452 = vpop.f32.mrb[0].mxu0
      %v1453 = vpop.f32.mrb[0].mxu0
      %1454 = vdwg.mxu0
      %v1455 = vsel %vm933, %v1450, -inf
      %1456 = vmax.xlane.f32.xlu0 %v1455
      %v1457 = vpop.xlane.xlu0 %1456
      %v1458 = vsub.f32 %v1450, %v1457
      %v1459 = vmul.f32 %v1458, 1.442695
      %v1460 = vpow.pop %v1459
      %v1461 = vsel %vm933, %v1460, 0.0
      %1462 = vadd.xlane.f32.xlu0 %v1461
      %v1463 = vpop.xlane.xlu0 %1462
      %v1464 = vrcp.pop %v1463
      %v1465 = vmul.f32 %v1460, %v1464
      %v1466 = vpack.c.bf16 %v1465, %v1465
      %1467 = vrot.lane.b32.xlu0 %v932, 72
      %v1468 = vpop.permute.xlu0 %1467
      %v1470 = vsel %vm933, %v1466, 0
      %v1473 = vsel %vm998, %v1468, 0
      %1475 = vmatprep.subr.bf16.mxu0 0
      %1476 = vmatpush1.bf16.msra.mxu0 %v1473
      %1477 = vmatprep.subr.bf16.mxu0 0
      %1478 = vmatpush1.bf16.msra.mxu0 0
      %1479 = vmatprep.subr.bf16.mxu0 0
      %1480 = vmatpush1.bf16.msra.mxu0 0
      %1481 = vmatprep.subr.bf16.mxu0 0
      %1482 = vmatpush1.bf16.msra.mxu0 0
      %1483 = vmatprep.subr.bf16.mxu0 0
      %1484 = vmatpush1.bf16.msra.mxu0 0
      %1485 = vmatprep.subr.bf16.mxu0 0
      %1486 = vmatpush1.bf16.msra.mxu0 0
      %1487 = vmatprep.subr.bf16.mxu0 0
      %1488 = vmatpush1.bf16.msra.mxu0 0
      %1489 = vmatprep.subr.bf16.mxu0 0
      %1490 = vmatpush1.bf16.msra.mxu0 0
      %1491 = vmatprep.subr.bf16.mxu0 0
      %1492 = vmatpush1.bf16.msra.mxu0 0
      %1493 = vmatprep.subr.bf16.mxu0 0
      %1494 = vmatpush1.bf16.msra.mxu0 0
      %1495 = vmatprep.subr.bf16.mxu0 0
      %1496 = vmatpush1.bf16.msra.mxu0 0
      %1497 = vmatprep.subr.bf16.mxu0 0
      %1498 = vmatpush1.bf16.msra.mxu0 0
      %1499 = vmatprep.subr.bf16.mxu0 0
      %1500 = vmatpush1.bf16.msra.mxu0 0
      %1501 = vmatprep.subr.bf16.mxu0 0
      %1502 = vmatpush1.bf16.msra.mxu0 0
      %1503 = vmatprep.subr.bf16.mxu0 0
      %1504 = vmatpush1.bf16.msra.mxu0 0
      %1505 = vmatprep.subr.bf16.mxu0 0
      %1506 = vmatpush1.bf16.msra.mxu0 0
      %1507 = vmatprep.mubr.bf16.mxu0 0
      %1508 = vmatmul.mubr.bf16.gmra.mrb[0].mxu0 %v1470
      %v1509 = vpop.f32.mrb[0].mxu0
      %v1510 = vadd.f32 0.0, %v1509
      %v1511 = vpop.f32.mrb[0].mxu0
      %v1512 = vpop.f32.mrb[0].mxu0
      %v1513 = vpop.f32.mrb[0].mxu0
      %1514 = vdwg.mxu0
      %v1515 = vpack.c.bf16 %v1510, %v1510
      %v1517 = vsel %vm933, %v1515, 0
      %v1520 = vsel %vm998, %v807, 0
      %1522 = vmatprep.subr.bf16.mxu0 0
      %1523 = vmatpush1.bf16.msra.mxu0 %v1520
      %1524 = vmatprep.subr.bf16.mxu0 0
      %1525 = vmatpush1.bf16.msra.mxu0 0
      %1526 = vmatprep.subr.bf16.mxu0 0
      %1527 = vmatpush1.bf16.msra.mxu0 0
      %1528 = vmatprep.subr.bf16.mxu0 0
      %1529 = vmatpush1.bf16.msra.mxu0 0
      %1530 = vmatprep.subr.bf16.mxu0 0
      %1531 = vmatpush1.bf16.msra.mxu0 0
      %1532 = vmatprep.subr.bf16.mxu0 0
      %1533 = vmatpush1.bf16.msra.mxu0 0
      %1534 = vmatprep.subr.bf16.mxu0 0
      %1535 = vmatpush1.bf16.msra.mxu0 0
      %1536 = vmatprep.subr.bf16.mxu0 0
      %1537 = vmatpush1.bf16.msra.mxu0 0
      %1538 = vmatprep.subr.bf16.mxu0 0
      %1539 = vmatpush1.bf16.msra.mxu0 0
      %1540 = vmatprep.subr.bf16.mxu0 0
      %1541 = vmatpush1.bf16.msra.mxu0 0
      %1542 = vmatprep.subr.bf16.mxu0 0
      %1543 = vmatpush1.bf16.msra.mxu0 0
      %1544 = vmatprep.subr.bf16.mxu0 0
      %1545 = vmatpush1.bf16.msra.mxu0 0
      %1546 = vmatprep.subr.bf16.mxu0 0
      %1547 = vmatpush1.bf16.msra.mxu0 0
      %1548 = vmatprep.subr.bf16.mxu0 0
      %1549 = vmatpush1.bf16.msra.mxu0 0
      %1550 = vmatprep.subr.bf16.mxu0 0
      %1551 = vmatpush1.bf16.msra.mxu0 0
      %1552 = vmatprep.subr.bf16.mxu0 0
      %1553 = vmatpush1.bf16.msra.mxu0 0
      %1554 = vmatprep.mubr.bf16.mxu0 0
      %1555 = vmatmul.mubr.bf16.gmra.mrb[0].mxu0 %v1517
      %v1556 = vpop.f32.mrb[0].mxu0
      %v1557 = vadd.f32 0.0, %v1556
      %v1558 = vpop.f32.mrb[0].mxu0
      %v1559 = vpop.f32.mrb[0].mxu0
      %v1560 = vpop.f32.mrb[0].mxu0
      %1561 = vdwg.mxu0
      %v1562 = vadd.f32 %v1404, %v1557
      %v1564 = vlaneseq
      %v1565 = vshrl.u32 %v1564, 7
      %v1566 = vsub.s32 0, %v1565
      %v1567 = vrot.slane %v808, %v1566
      %v1569 = vadd.f32 %v1562, %v1567
      %v1570 = vadd.f32 %v1569, %v793
      %v1571 = vld [vmem:[%s754] sm:$0x1]
      %v1572 = vld [vmem:[%s757] sm:$0x1]
      %v1573 = vsel %vm828, %v1570, 0.0
      %1574 = vadd.xlane.f32.xlu0 %v1573
      %v1575 = vpop.xlane.xlu0 %1574
      %v1576 = vrcp.pop 32.0
      %v1577 = vmul.f32 %v1575, %v1576
      %v1578 = vsub.f32 %v1570, %v1577
      %v1579 = vmul.f32 %v1578, %v1578
      %v1580 = vsel %vm828, %v1579, 0.0
      %1581 = vadd.xlane.f32.xlu0 %v1580
      %v1582 = vpop.xlane.xlu0 %1581
      %v1583 = vmul.f32 %v1582, %v1576
      %v1584 = vadd.f32 %v1583, 1e-05
      %v1585 = vrsqrt.pop %v1584
      %v1586 = vmul.f32 %v1578, %v1585
      %v1588 = vlaneseq
      %v1589 = vshrl.u32 %v1588, 7
      %v1590 = vsub.s32 0, %v1589
      %v1591 = vrot.slane %v1571, %v1590
      %v1593 = vmul.f32 %v1586, %v1591
      %v1595 = vlaneseq
      %v1596 = vshrl.u32 %v1595, 7
      %v1597 = vsub.s32 0, %v1596
      %v1598 = vrot.slane %v1572, %v1597
      %v1600 = vadd.f32 %v1593, %v1598
      %v1601 = vld [vmem:[%s762] sm:$0xff]
      %v1602 = vld [vmem:[%s762 + $0x8] sm:$0xff]
      %v1603 = vld [vmem:[%s762 + $0x10] sm:$0xff]
      %v1604 = vld [vmem:[%s762 + $0x18] sm:$0xff]
      %v1605 = vld [vmem:[%s762 + $0x20] sm:$0xff]
      %v1606 = vld [vmem:[%s762 + $0x28] sm:$0xff]
      %v1607 = vld [vmem:[%s762 + $0x30] sm:$0xff]
      %v1608 = vld [vmem:[%s762 + $0x38] sm:$0xff]
      %v1609 = vld [vmem:[%s762 + $0x40] sm:$0xff]
      %v1610 = vld [vmem:[%s762 + $0x48] sm:$0xff]
      %v1611 = vld [vmem:[%s762 + $0x50] sm:$0xff]
      %v1612 = vld [vmem:[%s762 + $0x58] sm:$0xff]
      %v1613 = vld [vmem:[%s762 + $0x60] sm:$0xff]
      %v1614 = vld [vmem:[%s762 + $0x68] sm:$0xff]
      %v1615 = vld [vmem:[%s762 + $0x70] sm:$0xff]
      %v1616 = vld [vmem:[%s762 + $0x78] sm:$0xff]
      %v1617 = vld [vmem:[%s762 + $0x80] sm:$0xff]
      %v1618 = vld [vmem:[%s762 + $0x88] sm:$0xff]
      %v1619 = vld [vmem:[%s762 + $0x90] sm:$0xff]
      %v1620 = vld [vmem:[%s762 + $0x98] sm:$0xff]
      %v1621 = vld [vmem:[%s762 + $0xa0] sm:$0xff]
      %v1622 = vld [vmem:[%s762 + $0xa8] sm:$0xff]
      %v1623 = vld [vmem:[%s762 + $0xb0] sm:$0xff]
      %v1624 = vld [vmem:[%s762 + $0xb8] sm:$0xff]
      %v1625 = vld [vmem:[%s762 + $0xc0] sm:$0xff]
      %v1626 = vld [vmem:[%s762 + $0xc8] sm:$0xff]
      %v1627 = vld [vmem:[%s762 + $0xd0] sm:$0xff]
      %v1628 = vld [vmem:[%s762 + $0xd8] sm:$0xff]
      %v1629 = vld [vmem:[%s762 + $0xe0] sm:$0xff]
      %v1630 = vld [vmem:[%s762 + $0xe8] sm:$0xff]
      %v1631 = vld [vmem:[%s762 + $0xf0] sm:$0xff]
      %v1632 = vld [vmem:[%s762 + $0xf8] sm:$0xff]
      %v1633 = vld [vmem:[%s766] sm:$0xff]
      %v1634 = vld [vmem:[%s766 + $0x8] sm:$0xff]
      %v1635 = vld [vmem:[%s771] sm:$0xf]
      %v1636 = vld [vmem:[%s771 + $0x4] sm:$0xf]
      %v1637 = vld [vmem:[%s771 + $0x8] sm:$0xf]
      %v1638 = vld [vmem:[%s771 + $0xc] sm:$0xf]
      %v1639 = vld [vmem:[%s771 + $0x10] sm:$0xf]
      %v1640 = vld [vmem:[%s771 + $0x14] sm:$0xf]
      %v1641 = vld [vmem:[%s771 + $0x18] sm:$0xf]
      %v1642 = vld [vmem:[%s771 + $0x1c] sm:$0xf]
      %v1643 = vld [vmem:[%s771 + $0x20] sm:$0xf]
      %v1644 = vld [vmem:[%s771 + $0x24] sm:$0xf]
      %v1645 = vld [vmem:[%s771 + $0x28] sm:$0xf]
      %v1646 = vld [vmem:[%s771 + $0x2c] sm:$0xf]
      %v1647 = vld [vmem:[%s771 + $0x30] sm:$0xf]
      %v1648 = vld [vmem:[%s771 + $0x34] sm:$0xf]
      %v1649 = vld [vmem:[%s771 + $0x38] sm:$0xf]
      %v1650 = vld [vmem:[%s771 + $0x3c] sm:$0xf]
      %v1651 = vld [vmem:[%s771 + $0x40] sm:$0xf]
      %v1652 = vld [vmem:[%s771 + $0x44] sm:$0xf]
      %v1653 = vld [vmem:[%s771 + $0x48] sm:$0xf]
      %v1654 = vld [vmem:[%s771 + $0x4c] sm:$0xf]
      %v1655 = vld [vmem:[%s771 + $0x50] sm:$0xf]
      %v1656 = vld [vmem:[%s771 + $0x54] sm:$0xf]
      %v1657 = vld [vmem:[%s771 + $0x58] sm:$0xf]
      %v1658 = vld [vmem:[%s771 + $0x5c] sm:$0xf]
      %v1659 = vld [vmem:[%s771 + $0x60] sm:$0xf]
      %v1660 = vld [vmem:[%s771 + $0x64] sm:$0xf]
      %v1661 = vld [vmem:[%s771 + $0x68] sm:$0xf]
      %v1662 = vld [vmem:[%s771 + $0x6c] sm:$0xf]
      %v1663 = vld [vmem:[%s771 + $0x70] sm:$0xf]
      %v1664 = vld [vmem:[%s771 + $0x74] sm:$0xf]
      %v1665 = vld [vmem:[%s771 + $0x78] sm:$0xf]
      %v1666 = vld [vmem:[%s771 + $0x7c] sm:$0xf]
      %v1667 = vld [vmem:[%s771 + $0x80] sm:$0xf]
      %v1668 = vld [vmem:[%s771 + $0x84] sm:$0xf]
      %v1669 = vld [vmem:[%s771 + $0x88] sm:$0xf]
      %v1670 = vld [vmem:[%s771 + $0x8c] sm:$0xf]
      %v1671 = vld [vmem:[%s771 + $0x90] sm:$0xf]
      %v1672 = vld [vmem:[%s771 + $0x94] sm:$0xf]
      %v1673 = vld [vmem:[%s771 + $0x98] sm:$0xf]
      %v1674 = vld [vmem:[%s771 + $0x9c] sm:$0xf]
      %v1675 = vld [vmem:[%s771 + $0xa0] sm:$0xf]
      %v1676 = vld [vmem:[%s771 + $0xa4] sm:$0xf]
      %v1677 = vld [vmem:[%s771 + $0xa8] sm:$0xf]
      %v1678 = vld [vmem:[%s771 + $0xac] sm:$0xf]
      %v1679 = vld [vmem:[%s771 + $0xb0] sm:$0xf]
      %v1680 = vld [vmem:[%s771 + $0xb4] sm:$0xf]
      %v1681 = vld [vmem:[%s771 + $0xb8] sm:$0xf]
      %v1682 = vld [vmem:[%s771 + $0xbc] sm:$0xf]
      %v1683 = vld [vmem:[%s771 + $0xc0] sm:$0xf]
      %v1684 = vld [vmem:[%s771 + $0xc4] sm:$0xf]
      %v1685 = vld [vmem:[%s771 + $0xc8] sm:$0xf]
      %v1686 = vld [vmem:[%s771 + $0xcc] sm:$0xf]
      %v1687 = vld [vmem:[%s771 + $0xd0] sm:$0xf]
      %v1688 = vld [vmem:[%s771 + $0xd4] sm:$0xf]
      %v1689 = vld [vmem:[%s771 + $0xd8] sm:$0xf]
      %v1690 = vld [vmem:[%s771 + $0xdc] sm:$0xf]
      %v1691 = vld [vmem:[%s771 + $0xe0] sm:$0xf]
      %v1692 = vld [vmem:[%s771 + $0xe4] sm:$0xf]
      %v1693 = vld [vmem:[%s771 + $0xe8] sm:$0xf]
      %v1694 = vld [vmem:[%s771 + $0xec] sm:$0xf]
      %v1695 = vld [vmem:[%s771 + $0xf0] sm:$0xf]
      %v1696 = vld [vmem:[%s771 + $0xf4] sm:$0xf]
      %v1697 = vld [vmem:[%s771 + $0xf8] sm:$0xf]
      %v1698 = vld [vmem:[%s771 + $0xfc] sm:$0xf]
      %v1699 = vld [vmem:[%s771 + $0x100] sm:$0xf]
      %v1700 = vld [vmem:[%s771 + $0x104] sm:$0xf]
      %v1701 = vld [vmem:[%s771 + $0x108] sm:$0xf]
      %v1702 = vld [vmem:[%s771 + $0x10c] sm:$0xf]
      %v1703 = vld [vmem:[%s771 + $0x110] sm:$0xf]
      %v1704 = vld [vmem:[%s771 + $0x114] sm:$0xf]
      %v1705 = vld [vmem:[%s771 + $0x118] sm:$0xf]
      %v1706 = vld [vmem:[%s771 + $0x11c] sm:$0xf]
      %v1707 = vld [vmem:[%s771 + $0x120] sm:$0xf]
      %v1708 = vld [vmem:[%s771 + $0x124] sm:$0xf]
      %v1709 = vld [vmem:[%s771 + $0x128] sm:$0xf]
      %v1710 = vld [vmem:[%s771 + $0x12c] sm:$0xf]
      %v1711 = vld [vmem:[%s771 + $0x130] sm:$0xf]
      %v1712 = vld [vmem:[%s771 + $0x134] sm:$0xf]
      %v1713 = vld [vmem:[%s771 + $0x138] sm:$0xf]
      %v1714 = vld [vmem:[%s771 + $0x13c] sm:$0xf]
      %v1715 = vld [vmem:[%s771 + $0x140] sm:$0xf]
      %v1716 = vld [vmem:[%s771 + $0x144] sm:$0xf]
      %v1717 = vld [vmem:[%s771 + $0x148] sm:$0xf]
      %v1718 = vld [vmem:[%s771 + $0x14c] sm:$0xf]
      %v1719 = vld [vmem:[%s771 + $0x150] sm:$0xf]
      %v1720 = vld [vmem:[%s771 + $0x154] sm:$0xf]
      %v1721 = vld [vmem:[%s771 + $0x158] sm:$0xf]
      %v1722 = vld [vmem:[%s771 + $0x15c] sm:$0xf]
      %v1723 = vld [vmem:[%s771 + $0x160] sm:$0xf]
      %v1724 = vld [vmem:[%s771 + $0x164] sm:$0xf]
      %v1725 = vld [vmem:[%s771 + $0x168] sm:$0xf]
      %v1726 = vld [vmem:[%s771 + $0x16c] sm:$0xf]
      %v1727 = vld [vmem:[%s771 + $0x170] sm:$0xf]
      %v1728 = vld [vmem:[%s771 + $0x174] sm:$0xf]
      %v1729 = vld [vmem:[%s771 + $0x178] sm:$0xf]
      %v1730 = vld [vmem:[%s771 + $0x17c] sm:$0xf]
      %v1731 = vld [vmem:[%s771 + $0x180] sm:$0xf]
      %v1732 = vld [vmem:[%s771 + $0x184] sm:$0xf]
      %v1733 = vld [vmem:[%s771 + $0x188] sm:$0xf]
      %v1734 = vld [vmem:[%s771 + $0x18c] sm:$0xf]
      %v1735 = vld [vmem:[%s771 + $0x190] sm:$0xf]
      %v1736 = vld [vmem:[%s771 + $0x194] sm:$0xf]
      %v1737 = vld [vmem:[%s771 + $0x198] sm:$0xf]
      %v1738 = vld [vmem:[%s771 + $0x19c] sm:$0xf]
      %v1739 = vld [vmem:[%s771 + $0x1a0] sm:$0xf]
      %v1740 = vld [vmem:[%s771 + $0x1a4] sm:$0xf]
      %v1741 = vld [vmem:[%s771 + $0x1a8] sm:$0xf]
      %v1742 = vld [vmem:[%s771 + $0x1ac] sm:$0xf]
      %v1743 = vld [vmem:[%s771 + $0x1b0] sm:$0xf]
      %v1744 = vld [vmem:[%s771 + $0x1b4] sm:$0xf]
      %v1745 = vld [vmem:[%s771 + $0x1b8] sm:$0xf]
      %v1746 = vld [vmem:[%s771 + $0x1bc] sm:$0xf]
      %v1747 = vld [vmem:[%s771 + $0x1c0] sm:$0xf]
      %v1748 = vld [vmem:[%s771 + $0x1c4] sm:$0xf]
      %v1749 = vld [vmem:[%s771 + $0x1c8] sm:$0xf]
      %v1750 = vld [vmem:[%s771 + $0x1cc] sm:$0xf]
      %v1751 = vld [vmem:[%s771 + $0x1d0] sm:$0xf]
      %v1752 = vld [vmem:[%s771 + $0x1d4] sm:$0xf]
      %v1753 = vld [vmem:[%s771 + $0x1d8] sm:$0xf]
      %v1754 = vld [vmem:[%s771 + $0x1dc] sm:$0xf]
      %v1755 = vld [vmem:[%s771 + $0x1e0] sm:$0xf]
      %v1756 = vld [vmem:[%s771 + $0x1e4] sm:$0xf]
      %v1757 = vld [vmem:[%s771 + $0x1e8] sm:$0xf]
      %v1758 = vld [vmem:[%s771 + $0x1ec] sm:$0xf]
      %v1759 = vld [vmem:[%s771 + $0x1f0] sm:$0xf]
      %v1760 = vld [vmem:[%s771 + $0x1f4] sm:$0xf]
      %v1761 = vld [vmem:[%s771 + $0x1f8] sm:$0xf]
      %v1762 = vld [vmem:[%s771 + $0x1fc] sm:$0xf]
      %v1763 = vld [vmem:[%s771 + $0x200] sm:$0xf]
      %v1764 = vld [vmem:[%s771 + $0x204] sm:$0xf]
      %v1765 = vld [vmem:[%s771 + $0x208] sm:$0xf]
      %v1766 = vld [vmem:[%s771 + $0x20c] sm:$0xf]
      %v1767 = vld [vmem:[%s771 + $0x210] sm:$0xf]
      %v1768 = vld [vmem:[%s771 + $0x214] sm:$0xf]
      %v1769 = vld [vmem:[%s771 + $0x218] sm:$0xf]
      %v1770 = vld [vmem:[%s771 + $0x21c] sm:$0xf]
      %v1771 = vld [vmem:[%s771 + $0x220] sm:$0xf]
      %v1772 = vld [vmem:[%s771 + $0x224] sm:$0xf]
      %v1773 = vld [vmem:[%s771 + $0x228] sm:$0xf]
      %v1774 = vld [vmem:[%s771 + $0x22c] sm:$0xf]
      %v1775 = vld [vmem:[%s771 + $0x230] sm:$0xf]
      %v1776 = vld [vmem:[%s771 + $0x234] sm:$0xf]
      %v1777 = vld [vmem:[%s771 + $0x238] sm:$0xf]
      %v1778 = vld [vmem:[%s771 + $0x23c] sm:$0xf]
      %v1779 = vld [vmem:[%s771 + $0x240] sm:$0xf]
      %v1780 = vld [vmem:[%s771 + $0x244] sm:$0xf]
      %v1781 = vld [vmem:[%s771 + $0x248] sm:$0xf]
      %v1782 = vld [vmem:[%s771 + $0x24c] sm:$0xf]
      %v1783 = vld [vmem:[%s771 + $0x250] sm:$0xf]
      %v1784 = vld [vmem:[%s771 + $0x254] sm:$0xf]
      %v1785 = vld [vmem:[%s771 + $0x258] sm:$0xf]
      %v1786 = vld [vmem:[%s771 + $0x25c] sm:$0xf]
      %v1787 = vld [vmem:[%s771 + $0x260] sm:$0xf]
      %v1788 = vld [vmem:[%s771 + $0x264] sm:$0xf]
      %v1789 = vld [vmem:[%s771 + $0x268] sm:$0xf]
      %v1790 = vld [vmem:[%s771 + $0x26c] sm:$0xf]
      %v1791 = vld [vmem:[%s771 + $0x270] sm:$0xf]
      %v1792 = vld [vmem:[%s771 + $0x274] sm:$0xf]
      %v1793 = vld [vmem:[%s771 + $0x278] sm:$0xf]
      %v1794 = vld [vmem:[%s771 + $0x27c] sm:$0xf]
      %v1795 = vld [vmem:[%s771 + $0x280] sm:$0xf]
      %v1796 = vld [vmem:[%s771 + $0x284] sm:$0xf]
      %v1797 = vld [vmem:[%s771 + $0x288] sm:$0xf]
      %v1798 = vld [vmem:[%s771 + $0x28c] sm:$0xf]
      %v1799 = vld [vmem:[%s771 + $0x290] sm:$0xf]
      %v1800 = vld [vmem:[%s771 + $0x294] sm:$0xf]
      %v1801 = vld [vmem:[%s771 + $0x298] sm:$0xf]
      %v1802 = vld [vmem:[%s771 + $0x29c] sm:$0xf]
      %v1803 = vld [vmem:[%s771 + $0x2a0] sm:$0xf]
      %v1804 = vld [vmem:[%s771 + $0x2a4] sm:$0xf]
      %v1805 = vld [vmem:[%s771 + $0x2a8] sm:$0xf]
      %v1806 = vld [vmem:[%s771 + $0x2ac] sm:$0xf]
      %v1807 = vld [vmem:[%s771 + $0x2b0] sm:$0xf]
      %v1808 = vld [vmem:[%s771 + $0x2b4] sm:$0xf]
      %v1809 = vld [vmem:[%s771 + $0x2b8] sm:$0xf]
      %v1810 = vld [vmem:[%s771 + $0x2bc] sm:$0xf]
      %v1811 = vld [vmem:[%s771 + $0x2c0] sm:$0xf]
      %v1812 = vld [vmem:[%s771 + $0x2c4] sm:$0xf]
      %v1813 = vld [vmem:[%s771 + $0x2c8] sm:$0xf]
      %v1814 = vld [vmem:[%s771 + $0x2cc] sm:$0xf]
      %v1815 = vld [vmem:[%s771 + $0x2d0] sm:$0xf]
      %v1816 = vld [vmem:[%s771 + $0x2d4] sm:$0xf]
      %v1817 = vld [vmem:[%s771 + $0x2d8] sm:$0xf]
      %v1818 = vld [vmem:[%s771 + $0x2dc] sm:$0xf]
      %v1819 = vld [vmem:[%s771 + $0x2e0] sm:$0xf]
      %v1820 = vld [vmem:[%s771 + $0x2e4] sm:$0xf]
      %v1821 = vld [vmem:[%s771 + $0x2e8] sm:$0xf]
      %v1822 = vld [vmem:[%s771 + $0x2ec] sm:$0xf]
      %v1823 = vld [vmem:[%s771 + $0x2f0] sm:$0xf]
      %v1824 = vld [vmem:[%s771 + $0x2f4] sm:$0xf]
      %v1825 = vld [vmem:[%s771 + $0x2f8] sm:$0xf]
      %v1826 = vld [vmem:[%s771 + $0x2fc] sm:$0xf]
      %v1827 = vld [vmem:[%s771 + $0x300] sm:$0xf]
      %v1828 = vld [vmem:[%s771 + $0x304] sm:$0xf]
      %v1829 = vld [vmem:[%s771 + $0x308] sm:$0xf]
      %v1830 = vld [vmem:[%s771 + $0x30c] sm:$0xf]
      %v1831 = vld [vmem:[%s771 + $0x310] sm:$0xf]
      %v1832 = vld [vmem:[%s771 + $0x314] sm:$0xf]
      %v1833 = vld [vmem:[%s771 + $0x318] sm:$0xf]
      %v1834 = vld [vmem:[%s771 + $0x31c] sm:$0xf]
      %v1835 = vld [vmem:[%s771 + $0x320] sm:$0xf]
      %v1836 = vld [vmem:[%s771 + $0x324] sm:$0xf]
      %v1837 = vld [vmem:[%s771 + $0x328] sm:$0xf]
      %v1838 = vld [vmem:[%s771 + $0x32c] sm:$0xf]
      %v1839 = vld [vmem:[%s771 + $0x330] sm:$0xf]
      %v1840 = vld [vmem:[%s771 + $0x334] sm:$0xf]
      %v1841 = vld [vmem:[%s771 + $0x338] sm:$0xf]
      %v1842 = vld [vmem:[%s771 + $0x33c] sm:$0xf]
      %v1843 = vld [vmem:[%s771 + $0x340] sm:$0xf]
      %v1844 = vld [vmem:[%s771 + $0x344] sm:$0xf]
      %v1845 = vld [vmem:[%s771 + $0x348] sm:$0xf]
      %v1846 = vld [vmem:[%s771 + $0x34c] sm:$0xf]
      %v1847 = vld [vmem:[%s771 + $0x350] sm:$0xf]
      %v1848 = vld [vmem:[%s771 + $0x354] sm:$0xf]
      %v1849 = vld [vmem:[%s771 + $0x358] sm:$0xf]
      %v1850 = vld [vmem:[%s771 + $0x35c] sm:$0xf]
      %v1851 = vld [vmem:[%s771 + $0x360] sm:$0xf]
      %v1852 = vld [vmem:[%s771 + $0x364] sm:$0xf]
      %v1853 = vld [vmem:[%s771 + $0x368] sm:$0xf]
      %v1854 = vld [vmem:[%s771 + $0x36c] sm:$0xf]
      %v1855 = vld [vmem:[%s771 + $0x370] sm:$0xf]
      %v1856 = vld [vmem:[%s771 + $0x374] sm:$0xf]
      %v1857 = vld [vmem:[%s771 + $0x378] sm:$0xf]
      %v1858 = vld [vmem:[%s771 + $0x37c] sm:$0xf]
      %v1859 = vld [vmem:[%s771 + $0x380] sm:$0xf]
      %v1860 = vld [vmem:[%s771 + $0x384] sm:$0xf]
      %v1861 = vld [vmem:[%s771 + $0x388] sm:$0xf]
      %v1862 = vld [vmem:[%s771 + $0x38c] sm:$0xf]
      %v1863 = vld [vmem:[%s771 + $0x390] sm:$0xf]
      %v1864 = vld [vmem:[%s771 + $0x394] sm:$0xf]
      %v1865 = vld [vmem:[%s771 + $0x398] sm:$0xf]
      %v1866 = vld [vmem:[%s771 + $0x39c] sm:$0xf]
      %v1867 = vld [vmem:[%s771 + $0x3a0] sm:$0xf]
      %v1868 = vld [vmem:[%s771 + $0x3a4] sm:$0xf]
      %v1869 = vld [vmem:[%s771 + $0x3a8] sm:$0xf]
      %v1870 = vld [vmem:[%s771 + $0x3ac] sm:$0xf]
      %v1871 = vld [vmem:[%s771 + $0x3b0] sm:$0xf]
      %v1872 = vld [vmem:[%s771 + $0x3b4] sm:$0xf]
      %v1873 = vld [vmem:[%s771 + $0x3b8] sm:$0xf]
      %v1874 = vld [vmem:[%s771 + $0x3bc] sm:$0xf]
      %v1875 = vld [vmem:[%s771 + $0x3c0] sm:$0xf]
      %v1876 = vld [vmem:[%s771 + $0x3c4] sm:$0xf]
      %v1877 = vld [vmem:[%s771 + $0x3c8] sm:$0xf]
      %v1878 = vld [vmem:[%s771 + $0x3cc] sm:$0xf]
      %v1879 = vld [vmem:[%s771 + $0x3d0] sm:$0xf]
      %v1880 = vld [vmem:[%s771 + $0x3d4] sm:$0xf]
      %v1881 = vld [vmem:[%s771 + $0x3d8] sm:$0xf]
      %v1882 = vld [vmem:[%s771 + $0x3dc] sm:$0xf]
      %v1883 = vld [vmem:[%s771 + $0x3e0] sm:$0xf]
      %v1884 = vld [vmem:[%s771 + $0x3e4] sm:$0xf]
      %v1885 = vld [vmem:[%s771 + $0x3e8] sm:$0xf]
      %v1886 = vld [vmem:[%s771 + $0x3ec] sm:$0xf]
      %v1887 = vld [vmem:[%s771 + $0x3f0] sm:$0xf]
      %v1888 = vld [vmem:[%s771 + $0x3f4] sm:$0xf]
      %v1889 = vld [vmem:[%s771 + $0x3f8] sm:$0xf]
      %v1890 = vld [vmem:[%s771 + $0x3fc] sm:$0xf]
      %v1891 = vld [vmem:[%s774] sm:$0x1]
      %v1892 = vpack.c.bf16 %v1600, %v1600
      %v1895 = vlaneseq
      %v1896 = vshrl.u32 %v1895, 7
      %v1897 = vsub.s32 0, %v1896
      %v1898 = vrot.slane %v1633, %v1897
      %v1899 = vlaneseq
      %v1900 = vshrl.u32 %v1899, 7
      %v1901 = vsub.s32 1, %v1900
      %v1902 = vrot.slane %v1633, %v1901
      %v1903 = vlaneseq
      %v1904 = vshrl.u32 %v1903, 7
      %v1905 = vsub.s32 2, %v1904
      %v1906 = vrot.slane %v1633, %v1905
      %v1907 = vlaneseq
      %v1908 = vshrl.u32 %v1907, 7
      %v1909 = vsub.s32 3, %v1908
      %v1910 = vrot.slane %v1633, %v1909
      %v1911 = vlaneseq
      %v1912 = vshrl.u32 %v1911, 7
      %v1913 = vsub.s32 4, %v1912
      %v1914 = vrot.slane %v1633, %v1913
      %v1915 = vlaneseq
      %v1916 = vshrl.u32 %v1915, 7
      %v1917 = vsub.s32 5, %v1916
      %v1918 = vrot.slane %v1633, %v1917
      %v1919 = vlaneseq
      %v1920 = vshrl.u32 %v1919, 7
      %v1921 = vsub.s32 6, %v1920
      %v1922 = vrot.slane %v1633, %v1921
      %v1923 = vlaneseq
      %v1924 = vshrl.u32 %v1923, 7
      %v1925 = vsub.s32 7, %v1924
      %v1926 = vrot.slane %v1633, %v1925
      %v1927 = vlaneseq
      %v1928 = vshrl.u32 %v1927, 7
      %v1929 = vsub.s32 0, %v1928
      %v1930 = vrot.slane %v1634, %v1929
      %v1931 = vlaneseq
      %v1932 = vshrl.u32 %v1931, 7
      %v1933 = vsub.s32 1, %v1932
      %v1934 = vrot.slane %v1634, %v1933
      %v1935 = vlaneseq
      %v1936 = vshrl.u32 %v1935, 7
      %v1937 = vsub.s32 2, %v1936
      %v1938 = vrot.slane %v1634, %v1937
      %v1939 = vlaneseq
      %v1940 = vshrl.u32 %v1939, 7
      %v1941 = vsub.s32 3, %v1940
      %v1942 = vrot.slane %v1634, %v1941
      %v1943 = vlaneseq
      %v1944 = vshrl.u32 %v1943, 7
      %v1945 = vsub.s32 4, %v1944
      %v1946 = vrot.slane %v1634, %v1945
      %v1947 = vlaneseq
      %v1948 = vshrl.u32 %v1947, 7
      %v1949 = vsub.s32 5, %v1948
      %v1950 = vrot.slane %v1634, %v1949
      %v1951 = vlaneseq
      %v1952 = vshrl.u32 %v1951, 7
      %v1953 = vsub.s32 6, %v1952
      %v1954 = vrot.slane %v1634, %v1953
      %v1955 = vlaneseq
      %v1956 = vshrl.u32 %v1955, 7
      %v1957 = vsub.s32 7, %v1956
      %v1958 = vrot.slane %v1634, %v1957
      %v2007 = vunpack.c.l.b16 %v1601
      %v2008 = vunpack.c.h.b16 %v1601
      %v2009 = vunpack.c.l.b16 %v1602
      %v2010 = vunpack.c.h.b16 %v1602
      %v2011 = vunpack.c.l.b16 %v1603
      %v2012 = vunpack.c.h.b16 %v1603
      %v2013 = vunpack.c.l.b16 %v1604
      %v2014 = vunpack.c.h.b16 %v1604
      %v2015 = vunpack.c.l.b16 %v1605
      %v2016 = vunpack.c.h.b16 %v1605
      %v2017 = vunpack.c.l.b16 %v1606
      %v2018 = vunpack.c.h.b16 %v1606
      %v2019 = vunpack.c.l.b16 %v1607
      %v2020 = vunpack.c.h.b16 %v1607
      %v2021 = vunpack.c.l.b16 %v1608
      %v2022 = vunpack.c.h.b16 %v1608
      %v2023 = vunpack.c.l.b16 %v1609
      %v2024 = vunpack.c.h.b16 %v1609
      %v2025 = vunpack.c.l.b16 %v1610
      %v2026 = vunpack.c.h.b16 %v1610
      %v2027 = vunpack.c.l.b16 %v1611
      %v2028 = vunpack.c.h.b16 %v1611
      %v2029 = vunpack.c.l.b16 %v1612
      %v2030 = vunpack.c.h.b16 %v1612
      %v2031 = vunpack.c.l.b16 %v1613
      %v2032 = vunpack.c.h.b16 %v1613
      %v2033 = vunpack.c.l.b16 %v1614
      %v2034 = vunpack.c.h.b16 %v1614
      %v2035 = vunpack.c.l.b16 %v1615
      %v2036 = vunpack.c.h.b16 %v1615
      %v2037 = vunpack.c.l.b16 %v1616
      %v2038 = vunpack.c.h.b16 %v1616
      %v2039 = vunpack.c.l.b16 %v1617
      %v2040 = vunpack.c.h.b16 %v1617
      %v2041 = vunpack.c.l.b16 %v1618
      %v2042 = vunpack.c.h.b16 %v1618
      %v2043 = vunpack.c.l.b16 %v1619
      %v2044 = vunpack.c.h.b16 %v1619
      %v2045 = vunpack.c.l.b16 %v1620
      %v2046 = vunpack.c.h.b16 %v1620
      %v2047 = vunpack.c.l.b16 %v1621
      %v2048 = vunpack.c.h.b16 %v1621
      %v2049 = vunpack.c.l.b16 %v1622
      %v2050 = vunpack.c.h.b16 %v1622
      %v2051 = vunpack.c.l.b16 %v1623
      %v2052 = vunpack.c.h.b16 %v1623
      %v2053 = vunpack.c.l.b16 %v1624
      %v2054 = vunpack.c.h.b16 %v1624
      %v2055 = vunpack.c.l.b16 %v1625
      %v2056 = vunpack.c.h.b16 %v1625
      %v2057 = vunpack.c.l.b16 %v1626
      %v2058 = vunpack.c.h.b16 %v1626
      %v2059 = vunpack.c.l.b16 %v1627
      %v2060 = vunpack.c.h.b16 %v1627
      %v2061 = vunpack.c.l.b16 %v1628
      %v2062 = vunpack.c.h.b16 %v1628
      %v2063 = vunpack.c.l.b16 %v1629
      %v2064 = vunpack.c.h.b16 %v1629
      %v2065 = vunpack.c.l.b16 %v1630
      %v2066 = vunpack.c.h.b16 %v1630
      %v2067 = vunpack.c.l.b16 %v1631
      %v2068 = vunpack.c.h.b16 %v1631
      %v2069 = vunpack.c.l.b16 %v1632
      %v2070 = vunpack.c.h.b16 %v1632
      %v2071 = vpack.c.b16 %v2023, %v2007
      %v2072 = vpack.c.b16 %v2024, %v2008
      %v2073 = vpack.c.b16 %v2025, %v2009
      %v2074 = vpack.c.b16 %v2026, %v2010
      %v2075 = vpack.c.b16 %v2027, %v2011
      %v2076 = vpack.c.b16 %v2028, %v2012
      %v2077 = vpack.c.b16 %v2029, %v2013
      %v2078 = vpack.c.b16 %v2030, %v2014
      %v2079 = vpack.c.b16 %v2031, %v2015
      %v2080 = vpack.c.b16 %v2032, %v2016
      %v2081 = vpack.c.b16 %v2033, %v2017
      %v2082 = vpack.c.b16 %v2034, %v2018
      %v2083 = vpack.c.b16 %v2035, %v2019
      %v2084 = vpack.c.b16 %v2036, %v2020
      %v2085 = vpack.c.b16 %v2037, %v2021
      %v2086 = vpack.c.b16 %v2038, %v2022
      %v2087 = vpack.c.b16 %v2055, %v2039
      %v2088 = vpack.c.b16 %v2056, %v2040
      %v2089 = vpack.c.b16 %v2057, %v2041
      %v2090 = vpack.c.b16 %v2058, %v2042
      %v2091 = vpack.c.b16 %v2059, %v2043
      %v2092 = vpack.c.b16 %v2060, %v2044
      %v2093 = vpack.c.b16 %v2061, %v2045
      %v2094 = vpack.c.b16 %v2062, %v2046
      %v2095 = vpack.c.b16 %v2063, %v2047
      %v2096 = vpack.c.b16 %v2064, %v2048
      %v2097 = vpack.c.b16 %v2065, %v2049
      %v2098 = vpack.c.b16 %v2066, %v2050
      %v2099 = vpack.c.b16 %v2067, %v2051
      %v2100 = vpack.c.b16 %v2068, %v2052
      %v2101 = vpack.c.b16 %v2069, %v2053
      %v2102 = vpack.c.b16 %v2070, %v2054
      %v2136 = vsel %vm828, %v1892, 0
      %2138 = vmatprep.subr.bf16.mxu0 %v2072
      %2139 = vmatpush1.bf16.msra.mxu0 %v2071
      %2140 = vmatprep.subr.bf16.mxu0 %v2088
      %2141 = vmatpush1.bf16.msra.mxu0 %v2087
      %2142 = vmatprep.subr.bf16.mxu0 0
      %2143 = vmatpush1.bf16.msra.mxu0 0
      %2144 = vmatprep.subr.bf16.mxu0 0
      %2145 = vmatpush1.bf16.msra.mxu0 0
      %2146 = vmatprep.subr.bf16.mxu0 0
      %2147 = vmatpush1.bf16.msra.mxu0 0
      %2148 = vmatprep.subr.bf16.mxu0 0
      %2149 = vmatpush1.bf16.msra.mxu0 0
      %2150 = vmatprep.subr.bf16.mxu0 0
      %2151 = vmatpush1.bf16.msra.mxu0 0
      %2152 = vmatprep.subr.bf16.mxu0 0
      %2153 = vmatpush1.bf16.msra.mxu0 0
      %2154 = vmatprep.subr.bf16.mxu0 0
      %2155 = vmatpush1.bf16.msra.mxu0 0
      %2156 = vmatprep.subr.bf16.mxu0 0
      %2157 = vmatpush1.bf16.msra.mxu0 0
      %2158 = vmatprep.subr.bf16.mxu0 0
      %2159 = vmatpush1.bf16.msra.mxu0 0
      %2160 = vmatprep.subr.bf16.mxu0 0
      %2161 = vmatpush1.bf16.msra.mxu0 0
      %2162 = vmatprep.subr.bf16.mxu0 0
      %2163 = vmatpush1.bf16.msra.mxu0 0
      %2164 = vmatprep.subr.bf16.mxu0 0
      %2165 = vmatpush1.bf16.msra.mxu0 0
      %2166 = vmatprep.subr.bf16.mxu0 0
      %2167 = vmatpush1.bf16.msra.mxu0 0
      %2168 = vmatprep.subr.bf16.mxu0 0
      %2169 = vmatpush1.bf16.msra.mxu0 0
      %2170 = vmatprep.mubr.bf16.mxu0 0
      %2171 = vmatmul.mubr.bf16.gmra.mrb[0].mxu0 %v2136
      %v2172 = vpop.f32.mrb[0].mxu0
      %v2173 = vadd.f32 %v1898, %v2172
      %v2174 = vpop.f32.mrb[0].mxu0
      %v2175 = vadd.f32 %v1902, %v2174
      %v2176 = vpop.f32.mrb[0].mxu0
      %v2177 = vpop.f32.mrb[0].mxu0
      %2178 = vdwg.mxu0
      %2179 = vmatprep.subr.bf16.mxu0 %v2074
      %2180 = vmatpush1.bf16.msra.mxu0 %v2073
      %2181 = vmatprep.subr.bf16.mxu0 %v2090
      %2182 = vmatpush1.bf16.msra.mxu0 %v2089
      %2183 = vmatprep.subr.bf16.mxu0 0
      %2184 = vmatpush1.bf16.msra.mxu0 0
      %2185 = vmatprep.subr.bf16.mxu0 0
      %2186 = vmatpush1.bf16.msra.mxu0 0
      %2187 = vmatprep.subr.bf16.mxu0 0
      %2188 = vmatpush1.bf16.msra.mxu0 0
      %2189 = vmatprep.subr.bf16.mxu0 0
      %2190 = vmatpush1.bf16.msra.mxu0 0
      %2191 = vmatprep.subr.bf16.mxu0 0
      %2192 = vmatpush1.bf16.msra.mxu0 0
      %2193 = vmatprep.subr.bf16.mxu0 0
      %2194 = vmatpush1.bf16.msra.mxu0 0
      %2195 = vmatprep.subr.bf16.mxu0 0
      %2196 = vmatpush1.bf16.msra.mxu0 0
      %2197 = vmatprep.subr.bf16.mxu0 0
      %2198 = vmatpush1.bf16.msra.mxu0 0
      %2199 = vmatprep.subr.bf16.mxu0 0
      %2200 = vmatpush1.bf16.msra.mxu0 0
      %2201 = vmatprep.subr.bf16.mxu0 0
      %2202 = vmatpush1.bf16.msra.mxu0 0
      %2203 = vmatprep.subr.bf16.mxu0 0
      %2204 = vmatpush1.bf16.msra.mxu0 0
      %2205 = vmatprep.subr.bf16.mxu0 0
      %2206 = vmatpush1.bf16.msra.mxu0 0
      %2207 = vmatprep.subr.bf16.mxu0 0
      %2208 = vmatpush1.bf16.msra.mxu0 0
      %2209 = vmatprep.subr.bf16.mxu0 0
      %2210 = vmatpush1.bf16.msra.mxu0 0
      %2211 = vmatprep.mubr.bf16.mxu0 0
      %2212 = vmatmul.mubr.bf16.gmra.mrb[0].mxu0 %v2136
      %v2213 = vpop.f32.mrb[0].mxu0
      %v2214 = vadd.f32 %v1906, %v2213
      %v2215 = vpop.f32.mrb[0].mxu0
      %v2216 = vadd.f32 %v1910, %v2215
      %v2217 = vpop.f32.mrb[0].mxu0
      %v2218 = vpop.f32.mrb[0].mxu0
      %2219 = vdwg.mxu0
      %2220 = vmatprep.subr.bf16.mxu0 %v2076
      %2221 = vmatpush1.bf16.msra.mxu0 %v2075
      %2222 = vmatprep.subr.bf16.mxu0 %v2092
      %2223 = vmatpush1.bf16.msra.mxu0 %v2091
      %2224 = vmatprep.subr.bf16.mxu0 0
      %2225 = vmatpush1.bf16.msra.mxu0 0
      %2226 = vmatprep.subr.bf16.mxu0 0
      %2227 = vmatpush1.bf16.msra.mxu0 0
      %2228 = vmatprep.subr.bf16.mxu0 0
      %2229 = vmatpush1.bf16.msra.mxu0 0
      %2230 = vmatprep.subr.bf16.mxu0 0
      %2231 = vmatpush1.bf16.msra.mxu0 0
      %2232 = vmatprep.subr.bf16.mxu0 0
      %2233 = vmatpush1.bf16.msra.mxu0 0
      %2234 = vmatprep.subr.bf16.mxu0 0
      %2235 = vmatpush1.bf16.msra.mxu0 0
      %2236 = vmatprep.subr.bf16.mxu0 0
      %2237 = vmatpush1.bf16.msra.mxu0 0
      %2238 = vmatprep.subr.bf16.mxu0 0
      %2239 = vmatpush1.bf16.msra.mxu0 0
      %2240 = vmatprep.subr.bf16.mxu0 0
      %2241 = vmatpush1.bf16.msra.mxu0 0
      %2242 = vmatprep.subr.bf16.mxu0 0
      %2243 = vmatpush1.bf16.msra.mxu0 0
      %2244 = vmatprep.subr.bf16.mxu0 0
      %2245 = vmatpush1.bf16.msra.mxu0 0
      %2246 = vmatprep.subr.bf16.mxu0 0
      %2247 = vmatpush1.bf16.msra.mxu0 0
      %2248 = vmatprep.subr.bf16.mxu0 0
      %2249 = vmatpush1.bf16.msra.mxu0 0
      %2250 = vmatprep.subr.bf16.mxu0 0
      %2251 = vmatpush1.bf16.msra.mxu0 0
      %2252 = vmatprep.mubr.bf16.mxu0 0
      %2253 = vmatmul.mubr.bf16.gmra.mrb[0].mxu0 %v2136
      %v2254 = vpop.f32.mrb[0].mxu0
      %v2255 = vadd.f32 %v1914, %v2254
      %v2256 = vpop.f32.mrb[0].mxu0
      %v2257 = vadd.f32 %v1918, %v2256
      %v2258 = vpop.f32.mrb[0].mxu0
      %v2259 = vpop.f32.mrb[0].mxu0
      %2260 = vdwg.mxu0
      %2261 = vmatprep.subr.bf16.mxu0 %v2078
      %2262 = vmatpush1.bf16.msra.mxu0 %v2077
      %2263 = vmatprep.subr.bf16.mxu0 %v2094
      %2264 = vmatpush1.bf16.msra.mxu0 %v2093
      %2265 = vmatprep.subr.bf16.mxu0 0
      %2266 = vmatpush1.bf16.msra.mxu0 0
      %2267 = vmatprep.subr.bf16.mxu0 0
      %2268 = vmatpush1.bf16.msra.mxu0 0
      %2269 = vmatprep.subr.bf16.mxu0 0
      %2270 = vmatpush1.bf16.msra.mxu0 0
      %2271 = vmatprep.subr.bf16.mxu0 0
      %2272 = vmatpush1.bf16.msra.mxu0 0
      %2273 = vmatprep.subr.bf16.mxu0 0
      %2274 = vmatpush1.bf16.msra.mxu0 0
      %2275 = vmatprep.subr.bf16.mxu0 0
      %2276 = vmatpush1.bf16.msra.mxu0 0
      %2277 = vmatprep.subr.bf16.mxu0 0
      %2278 = vmatpush1.bf16.msra.mxu0 0
      %2279 = vmatprep.subr.bf16.mxu0 0
      %2280 = vmatpush1.bf16.msra.mxu0 0
      %2281 = vmatprep.subr.bf16.mxu0 0
      %2282 = vmatpush1.bf16.msra.mxu0 0
      %2283 = vmatprep.subr.bf16.mxu0 0
      %2284 = vmatpush1.bf16.msra.mxu0 0
      %2285 = vmatprep.subr.bf16.mxu0 0
      %2286 = vmatpush1.bf16.msra.mxu0 0
      %2287 = vmatprep.subr.bf16.mxu0 0
      %2288 = vmatpush1.bf16.msra.mxu0 0
      %2289 = vmatprep.subr.bf16.mxu0 0
      %2290 = vmatpush1.bf16.msra.mxu0 0
      %2291 = vmatprep.subr.bf16.mxu0 0
      %2292 = vmatpush1.bf16.msra.mxu0 0
      %2293 = vmatprep.mubr.bf16.mxu0 0
      %2294 = vmatmul.mubr.bf16.gmra.mrb[0].mxu0 %v2136
      %v2295 = vpop.f32.mrb[0].mxu0
      %v2296 = vadd.f32 %v1922, %v2295
      %v2297 = vpop.f32.mrb[0].mxu0
      %v2298 = vadd.f32 %v1926, %v2297
      %v2299 = vpop.f32.mrb[0].mxu0
      %v2300 = vpop.f32.mrb[0].mxu0
      %2301 = vdwg.mxu0
      %2302 = vmatprep.subr.bf16.mxu0 %v2080
      %2303 = vmatpush1.bf16.msra.mxu0 %v2079
      %2304 = vmatprep.subr.bf16.mxu0 %v2096
      %2305 = vmatpush1.bf16.msra.mxu0 %v2095
      %2306 = vmatprep.subr.bf16.mxu0 0
      %2307 = vmatpush1.bf16.msra.mxu0 0
      %2308 = vmatprep.subr.bf16.mxu0 0
      %2309 = vmatpush1.bf16.msra.mxu0 0
      %2310 = vmatprep.subr.bf16.mxu0 0
      %2311 = vmatpush1.bf16.msra.mxu0 0
      %2312 = vmatprep.subr.bf16.mxu0 0
      %2313 = vmatpush1.bf16.msra.mxu0 0
      %2314 = vmatprep.subr.bf16.mxu0 0
      %2315 = vmatpush1.bf16.msra.mxu0 0
      %2316 = vmatprep.subr.bf16.mxu0 0
      %2317 = vmatpush1.bf16.msra.mxu0 0
      %2318 = vmatprep.subr.bf16.mxu0 0
      %2319 = vmatpush1.bf16.msra.mxu0 0
      %2320 = vmatprep.subr.bf16.mxu0 0
      %2321 = vmatpush1.bf16.msra.mxu0 0
      %2322 = vmatprep.subr.bf16.mxu0 0
      %2323 = vmatpush1.bf16.msra.mxu0 0
      %2324 = vmatprep.subr.bf16.mxu0 0
      %2325 = vmatpush1.bf16.msra.mxu0 0
      %2326 = vmatprep.subr.bf16.mxu0 0
      %2327 = vmatpush1.bf16.msra.mxu0 0
      %2328 = vmatprep.subr.bf16.mxu0 0
      %2329 = vmatpush1.bf16.msra.mxu0 0
      %2330 = vmatprep.subr.bf16.mxu0 0
      %2331 = vmatpush1.bf16.msra.mxu0 0
      %2332 = vmatprep.subr.bf16.mxu0 0
      %2333 = vmatpush1.bf16.msra.mxu0 0
      %2334 = vmatprep.mubr.bf16.mxu0 0
      %2335 = vmatmul.mubr.bf16.gmra.mrb[0].mxu0 %v2136
      %v2336 = vpop.f32.mrb[0].mxu0
      %v2337 = vadd.f32 %v1930, %v2336
      %v2338 = vpop.f32.mrb[0].mxu0
      %v2339 = vadd.f32 %v1934, %v2338
      %v2340 = vpop.f32.mrb[0].mxu0
      %v2341 = vpop.f32.mrb[0].mxu0
      %2342 = vdwg.mxu0
      %2343 = vmatprep.subr.bf16.mxu0 %v2082
      %2344 = vmatpush1.bf16.msra.mxu0 %v2081
      %2345 = vmatprep.subr.bf16.mxu0 %v2098
      %2346 = vmatpush1.bf16.msra.mxu0 %v2097
      %2347 = vmatprep.subr.bf16.mxu0 0
      %2348 = vmatpush1.bf16.msra.mxu0 0
      %2349 = vmatprep.subr.bf16.mxu0 0
      %2350 = vmatpush1.bf16.msra.mxu0 0
      %2351 = vmatprep.subr.bf16.mxu0 0
      %2352 = vmatpush1.bf16.msra.mxu0 0
      %2353 = vmatprep.subr.bf16.mxu0 0
      %2354 = vmatpush1.bf16.msra.mxu0 0
      %2355 = vmatprep.subr.bf16.mxu0 0
      %2356 = vmatpush1.bf16.msra.mxu0 0
      %2357 = vmatprep.subr.bf16.mxu0 0
      %2358 = vmatpush1.bf16.msra.mxu0 0
      %2359 = vmatprep.subr.bf16.mxu0 0
      %2360 = vmatpush1.bf16.msra.mxu0 0
      %2361 = vmatprep.subr.bf16.mxu0 0
      %2362 = vmatpush1.bf16.msra.mxu0 0
      %2363 = vmatprep.subr.bf16.mxu0 0
      %2364 = vmatpush1.bf16.msra.mxu0 0
      %2365 = vmatprep.subr.bf16.mxu0 0
      %2366 = vmatpush1.bf16.msra.mxu0 0
      %2367 = vmatprep.subr.bf16.mxu0 0
      %2368 = vmatpush1.bf16.msra.mxu0 0
      %2369 = vmatprep.subr.bf16.mxu0 0
      %2370 = vmatpush1.bf16.msra.mxu0 0
      %2371 = vmatprep.subr.bf16.mxu0 0
      %2372 = vmatpush1.bf16.msra.mxu0 0
      %2373 = vmatprep.subr.bf16.mxu0 0
      %2374 = vmatpush1.bf16.msra.mxu0 0
      %2375 = vmatprep.mubr.bf16.mxu0 0
      %2376 = vmatmul.mubr.bf16.gmra.mrb[0].mxu0 %v2136
      %v2377 = vpop.f32.mrb[0].mxu0
      %v2378 = vadd.f32 %v1938, %v2377
      %v2379 = vpop.f32.mrb[0].mxu0
      %v2380 = vadd.f32 %v1942, %v2379
      %v2381 = vpop.f32.mrb[0].mxu0
      %v2382 = vpop.f32.mrb[0].mxu0
      %2383 = vdwg.mxu0
      %2384 = vmatprep.subr.bf16.mxu0 %v2084
      %2385 = vmatpush1.bf16.msra.mxu0 %v2083
      %2386 = vmatprep.subr.bf16.mxu0 %v2100
      %2387 = vmatpush1.bf16.msra.mxu0 %v2099
      %2388 = vmatprep.subr.bf16.mxu0 0
      %2389 = vmatpush1.bf16.msra.mxu0 0
      %2390 = vmatprep.subr.bf16.mxu0 0
      %2391 = vmatpush1.bf16.msra.mxu0 0
      %2392 = vmatprep.subr.bf16.mxu0 0
      %2393 = vmatpush1.bf16.msra.mxu0 0
      %2394 = vmatprep.subr.bf16.mxu0 0
      %2395 = vmatpush1.bf16.msra.mxu0 0
      %2396 = vmatprep.subr.bf16.mxu0 0
      %2397 = vmatpush1.bf16.msra.mxu0 0
      %2398 = vmatprep.subr.bf16.mxu0 0
      %2399 = vmatpush1.bf16.msra.mxu0 0
      %2400 = vmatprep.subr.bf16.mxu0 0
      %2401 = vmatpush1.bf16.msra.mxu0 0
      %2402 = vmatprep.subr.bf16.mxu0 0
      %2403 = vmatpush1.bf16.msra.mxu0 0
      %2404 = vmatprep.subr.bf16.mxu0 0
      %2405 = vmatpush1.bf16.msra.mxu0 0
      %2406 = vmatprep.subr.bf16.mxu0 0
      %2407 = vmatpush1.bf16.msra.mxu0 0
      %2408 = vmatprep.subr.bf16.mxu0 0
      %2409 = vmatpush1.bf16.msra.mxu0 0
      %2410 = vmatprep.subr.bf16.mxu0 0
      %2411 = vmatpush1.bf16.msra.mxu0 0
      %2412 = vmatprep.subr.bf16.mxu0 0
      %2413 = vmatpush1.bf16.msra.mxu0 0
      %2414 = vmatprep.subr.bf16.mxu0 0
      %2415 = vmatpush1.bf16.msra.mxu0 0
      %2416 = vmatprep.mubr.bf16.mxu0 0
      %2417 = vmatmul.mubr.bf16.gmra.mrb[0].mxu0 %v2136
      %v2418 = vpop.f32.mrb[0].mxu0
      %v2419 = vadd.f32 %v1946, %v2418
      %v2420 = vpop.f32.mrb[0].mxu0
      %v2421 = vadd.f32 %v1950, %v2420
      %v2422 = vpop.f32.mrb[0].mxu0
      %v2423 = vpop.f32.mrb[0].mxu0
      %2424 = vdwg.mxu0
      %2425 = vmatprep.subr.bf16.mxu0 %v2086
      %2426 = vmatpush1.bf16.msra.mxu0 %v2085
      %2427 = vmatprep.subr.bf16.mxu0 %v2102
      %2428 = vmatpush1.bf16.msra.mxu0 %v2101
      %2429 = vmatprep.subr.bf16.mxu0 0
      %2430 = vmatpush1.bf16.msra.mxu0 0
      %2431 = vmatprep.subr.bf16.mxu0 0
      %2432 = vmatpush1.bf16.msra.mxu0 0
      %2433 = vmatprep.subr.bf16.mxu0 0
      %2434 = vmatpush1.bf16.msra.mxu0 0
      %2435 = vmatprep.subr.bf16.mxu0 0
      %2436 = vmatpush1.bf16.msra.mxu0 0
      %2437 = vmatprep.subr.bf16.mxu0 0
      %2438 = vmatpush1.bf16.msra.mxu0 0
      %2439 = vmatprep.subr.bf16.mxu0 0
      %2440 = vmatpush1.bf16.msra.mxu0 0
      %2441 = vmatprep.subr.bf16.mxu0 0
      %2442 = vmatpush1.bf16.msra.mxu0 0
      %2443 = vmatprep.subr.bf16.mxu0 0
      %2444 = vmatpush1.bf16.msra.mxu0 0
      %2445 = vmatprep.subr.bf16.mxu0 0
      %2446 = vmatpush1.bf16.msra.mxu0 0
      %2447 = vmatprep.subr.bf16.mxu0 0
      %2448 = vmatpush1.bf16.msra.mxu0 0
      %2449 = vmatprep.subr.bf16.mxu0 0
      %2450 = vmatpush1.bf16.msra.mxu0 0
      %2451 = vmatprep.subr.bf16.mxu0 0
      %2452 = vmatpush1.bf16.msra.mxu0 0
      %2453 = vmatprep.subr.bf16.mxu0 0
      %2454 = vmatpush1.bf16.msra.mxu0 0
      %2455 = vmatprep.subr.bf16.mxu0 0
      %2456 = vmatpush1.bf16.msra.mxu0 0
      %2457 = vmatprep.mubr.bf16.mxu0 0
      %2458 = vmatmul.mubr.bf16.gmra.mrb[0].mxu0 %v2136
      %v2459 = vpop.f32.mrb[0].mxu0
      %v2460 = vadd.f32 %v1954, %v2459
      %v2461 = vpop.f32.mrb[0].mxu0
      %v2462 = vadd.f32 %v1958, %v2461
      %v2463 = vpop.f32.mrb[0].mxu0
      %v2464 = vpop.f32.mrb[0].mxu0
      %2465 = vdwg.mxu0
      %v2466 = vmax.f32 %v2173, 0.0
      %v2467 = vmax.f32 %v2175, 0.0
      %v2468 = vmax.f32 %v2214, 0.0
      %v2469 = vmax.f32 %v2216, 0.0
      %v2470 = vmax.f32 %v2255, 0.0
      %v2471 = vmax.f32 %v2257, 0.0
      %v2472 = vmax.f32 %v2296, 0.0
      %v2473 = vmax.f32 %v2298, 0.0
      %v2474 = vmax.f32 %v2337, 0.0
      %v2475 = vmax.f32 %v2339, 0.0
      %v2476 = vmax.f32 %v2378, 0.0
      %v2477 = vmax.f32 %v2380, 0.0
      %v2478 = vmax.f32 %v2419, 0.0
      %v2479 = vmax.f32 %v2421, 0.0
      %v2480 = vmax.f32 %v2460, 0.0
      %v2481 = vmax.f32 %v2462, 0.0
      %v2482 = vpack.c.bf16 %v2466, %v2466
      %v2483 = vpack.c.bf16 %v2467, %v2467
      %v2484 = vpack.c.bf16 %v2468, %v2468
      %v2485 = vpack.c.bf16 %v2469, %v2469
      %v2486 = vpack.c.bf16 %v2470, %v2470
      %v2487 = vpack.c.bf16 %v2471, %v2471
      %v2488 = vpack.c.bf16 %v2472, %v2472
      %v2489 = vpack.c.bf16 %v2473, %v2473
      %v2490 = vpack.c.bf16 %v2474, %v2474
      %v2491 = vpack.c.bf16 %v2475, %v2475
      %v2492 = vpack.c.bf16 %v2476, %v2476
      %v2493 = vpack.c.bf16 %v2477, %v2477
      %v2494 = vpack.c.bf16 %v2478, %v2478
      %v2495 = vpack.c.bf16 %v2479, %v2479
      %v2496 = vpack.c.bf16 %v2480, %v2480
      %v2497 = vpack.c.bf16 %v2481, %v2481
      %v2499 = vlaneseq
      %v2500 = vshrl.u32 %v2499, 7
      %v2501 = vsub.s32 0, %v2500
      %v2502 = vrot.slane %v1891, %v2501
      %v2760 = vunpack.c.l.b16 %v1635
      %v2761 = vunpack.c.l.b16 %v1636
      %v2762 = vunpack.c.l.b16 %v1637
      %v2763 = vunpack.c.l.b16 %v1638
      %v2764 = vunpack.c.l.b16 %v1639
      %v2765 = vunpack.c.l.b16 %v1640
      %v2766 = vunpack.c.l.b16 %v1641
      %v2767 = vunpack.c.l.b16 %v1642
      %v2768 = vunpack.c.l.b16 %v1643
      %v2769 = vunpack.c.l.b16 %v1644
      %v2770 = vunpack.c.l.b16 %v1645
      %v2771 = vunpack.c.l.b16 %v1646
      %v2772 = vunpack.c.l.b16 %v1647
      %v2773 = vunpack.c.l.b16 %v1648
      %v2774 = vunpack.c.l.b16 %v1649
      %v2775 = vunpack.c.l.b16 %v1650
      %v2776 = vunpack.c.l.b16 %v1651
      %v2777 = vunpack.c.l.b16 %v1652
      %v2778 = vunpack.c.l.b16 %v1653
      %v2779 = vunpack.c.l.b16 %v1654
      %v2780 = vunpack.c.l.b16 %v1655
      %v2781 = vunpack.c.l.b16 %v1656
      %v2782 = vunpack.c.l.b16 %v1657
      %v2783 = vunpack.c.l.b16 %v1658
      %v2784 = vunpack.c.l.b16 %v1659
      %v2785 = vunpack.c.l.b16 %v1660
      %v2786 = vunpack.c.l.b16 %v1661
      %v2787 = vunpack.c.l.b16 %v1662
      %v2788 = vunpack.c.l.b16 %v1663
      %v2789 = vunpack.c.l.b16 %v1664
      %v2790 = vunpack.c.l.b16 %v1665
      %v2791 = vunpack.c.l.b16 %v1666
      %v2792 = vunpack.c.l.b16 %v1667
      %v2793 = vunpack.c.l.b16 %v1668
      %v2794 = vunpack.c.l.b16 %v1669
      %v2795 = vunpack.c.l.b16 %v1670
      %v2796 = vunpack.c.l.b16 %v1671
      %v2797 = vunpack.c.l.b16 %v1672
      %v2798 = vunpack.c.l.b16 %v1673
      %v2799 = vunpack.c.l.b16 %v1674
      %v2800 = vunpack.c.l.b16 %v1675
      %v2801 = vunpack.c.l.b16 %v1676
      %v2802 = vunpack.c.l.b16 %v1677
      %v2803 = vunpack.c.l.b16 %v1678
      %v2804 = vunpack.c.l.b16 %v1679
      %v2805 = vunpack.c.l.b16 %v1680
      %v2806 = vunpack.c.l.b16 %v1681
      %v2807 = vunpack.c.l.b16 %v1682
      %v2808 = vunpack.c.l.b16 %v1683
      %v2809 = vunpack.c.l.b16 %v1684
      %v2810 = vunpack.c.l.b16 %v1685
      %v2811 = vunpack.c.l.b16 %v1686
      %v2812 = vunpack.c.l.b16 %v1687
      %v2813 = vunpack.c.l.b16 %v1688
      %v2814 = vunpack.c.l.b16 %v1689
      %v2815 = vunpack.c.l.b16 %v1690
      %v2816 = vunpack.c.l.b16 %v1691
      %v2817 = vunpack.c.l.b16 %v1692
      %v2818 = vunpack.c.l.b16 %v1693
      %v2819 = vunpack.c.l.b16 %v1694
      %v2820 = vunpack.c.l.b16 %v1695
      %v2821 = vunpack.c.l.b16 %v1696
      %v2822 = vunpack.c.l.b16 %v1697
      %v2823 = vunpack.c.l.b16 %v1698
      %v2824 = vunpack.c.l.b16 %v1699
      %v2825 = vunpack.c.l.b16 %v1700
      %v2826 = vunpack.c.l.b16 %v1701
      %v2827 = vunpack.c.l.b16 %v1702
      %v2828 = vunpack.c.l.b16 %v1703
      %v2829 = vunpack.c.l.b16 %v1704
      %v2830 = vunpack.c.l.b16 %v1705
      %v2831 = vunpack.c.l.b16 %v1706
      %v2832 = vunpack.c.l.b16 %v1707
      %v2833 = vunpack.c.l.b16 %v1708
      %v2834 = vunpack.c.l.b16 %v1709
      %v2835 = vunpack.c.l.b16 %v1710
      %v2836 = vunpack.c.l.b16 %v1711
      %v2837 = vunpack.c.l.b16 %v1712
      %v2838 = vunpack.c.l.b16 %v1713
      %v2839 = vunpack.c.l.b16 %v1714
      %v2840 = vunpack.c.l.b16 %v1715
      %v2841 = vunpack.c.l.b16 %v1716
      %v2842 = vunpack.c.l.b16 %v1717
      %v2843 = vunpack.c.l.b16 %v1718
      %v2844 = vunpack.c.l.b16 %v1719
      %v2845 = vunpack.c.l.b16 %v1720
      %v2846 = vunpack.c.l.b16 %v1721
      %v2847 = vunpack.c.l.b16 %v1722
      %v2848 = vunpack.c.l.b16 %v1723
      %v2849 = vunpack.c.l.b16 %v1724
      %v2850 = vunpack.c.l.b16 %v1725
      %v2851 = vunpack.c.l.b16 %v1726
      %v2852 = vunpack.c.l.b16 %v1727
      %v2853 = vunpack.c.l.b16 %v1728
      %v2854 = vunpack.c.l.b16 %v1729
      %v2855 = vunpack.c.l.b16 %v1730
      %v2856 = vunpack.c.l.b16 %v1731
      %v2857 = vunpack.c.l.b16 %v1732
      %v2858 = vunpack.c.l.b16 %v1733
      %v2859 = vunpack.c.l.b16 %v1734
      %v2860 = vunpack.c.l.b16 %v1735
      %v2861 = vunpack.c.l.b16 %v1736
      %v2862 = vunpack.c.l.b16 %v1737
      %v2863 = vunpack.c.l.b16 %v1738
      %v2864 = vunpack.c.l.b16 %v1739
      %v2865 = vunpack.c.l.b16 %v1740
      %v2866 = vunpack.c.l.b16 %v1741
      %v2867 = vunpack.c.l.b16 %v1742
      %v2868 = vunpack.c.l.b16 %v1743
      %v2869 = vunpack.c.l.b16 %v1744
      %v2870 = vunpack.c.l.b16 %v1745
      %v2871 = vunpack.c.l.b16 %v1746
      %v2872 = vunpack.c.l.b16 %v1747
      %v2873 = vunpack.c.l.b16 %v1748
      %v2874 = vunpack.c.l.b16 %v1749
      %v2875 = vunpack.c.l.b16 %v1750
      %v2876 = vunpack.c.l.b16 %v1751
      %v2877 = vunpack.c.l.b16 %v1752
      %v2878 = vunpack.c.l.b16 %v1753
      %v2879 = vunpack.c.l.b16 %v1754
      %v2880 = vunpack.c.l.b16 %v1755
      %v2881 = vunpack.c.l.b16 %v1756
      %v2882 = vunpack.c.l.b16 %v1757
      %v2883 = vunpack.c.l.b16 %v1758
      %v2884 = vunpack.c.l.b16 %v1759
      %v2885 = vunpack.c.l.b16 %v1760
      %v2886 = vunpack.c.l.b16 %v1761
      %v2887 = vunpack.c.l.b16 %v1762
      %v2888 = vunpack.c.l.b16 %v1763
      %v2889 = vunpack.c.l.b16 %v1764
      %v2890 = vunpack.c.l.b16 %v1765
      %v2891 = vunpack.c.l.b16 %v1766
      %v2892 = vunpack.c.l.b16 %v1767
      %v2893 = vunpack.c.l.b16 %v1768
      %v2894 = vunpack.c.l.b16 %v1769
      %v2895 = vunpack.c.l.b16 %v1770
      %v2896 = vunpack.c.l.b16 %v1771
      %v2897 = vunpack.c.l.b16 %v1772
      %v2898 = vunpack.c.l.b16 %v1773
      %v2899 = vunpack.c.l.b16 %v1774
      %v2900 = vunpack.c.l.b16 %v1775
      %v2901 = vunpack.c.l.b16 %v1776
      %v2902 = vunpack.c.l.b16 %v1777
      %v2903 = vunpack.c.l.b16 %v1778
      %v2904 = vunpack.c.l.b16 %v1779
      %v2905 = vunpack.c.l.b16 %v1780
      %v2906 = vunpack.c.l.b16 %v1781
      %v2907 = vunpack.c.l.b16 %v1782
      %v2908 = vunpack.c.l.b16 %v1783
      %v2909 = vunpack.c.l.b16 %v1784
      %v2910 = vunpack.c.l.b16 %v1785
      %v2911 = vunpack.c.l.b16 %v1786
      %v2912 = vunpack.c.l.b16 %v1787
      %v2913 = vunpack.c.l.b16 %v1788
      %v2914 = vunpack.c.l.b16 %v1789
      %v2915 = vunpack.c.l.b16 %v1790
      %v2916 = vunpack.c.l.b16 %v1791
      %v2917 = vunpack.c.l.b16 %v1792
      %v2918 = vunpack.c.l.b16 %v1793
      %v2919 = vunpack.c.l.b16 %v1794
      %v2920 = vunpack.c.l.b16 %v1795
      %v2921 = vunpack.c.l.b16 %v1796
      %v2922 = vunpack.c.l.b16 %v1797
      %v2923 = vunpack.c.l.b16 %v1798
      %v2924 = vunpack.c.l.b16 %v1799
      %v2925 = vunpack.c.l.b16 %v1800
      %v2926 = vunpack.c.l.b16 %v1801
      %v2927 = vunpack.c.l.b16 %v1802
      %v2928 = vunpack.c.l.b16 %v1803
      %v2929 = vunpack.c.l.b16 %v1804
      %v2930 = vunpack.c.l.b16 %v1805
      %v2931 = vunpack.c.l.b16 %v1806
      %v2932 = vunpack.c.l.b16 %v1807
      %v2933 = vunpack.c.l.b16 %v1808
      %v2934 = vunpack.c.l.b16 %v1809
      %v2935 = vunpack.c.l.b16 %v1810
      %v2936 = vunpack.c.l.b16 %v1811
      %v2937 = vunpack.c.l.b16 %v1812
      %v2938 = vunpack.c.l.b16 %v1813
      %v2939 = vunpack.c.l.b16 %v1814
      %v2940 = vunpack.c.l.b16 %v1815
      %v2941 = vunpack.c.l.b16 %v1816
      %v2942 = vunpack.c.l.b16 %v1817
      %v2943 = vunpack.c.l.b16 %v1818
      %v2944 = vunpack.c.l.b16 %v1819
      %v2945 = vunpack.c.l.b16 %v1820
      %v2946 = vunpack.c.l.b16 %v1821
      %v2947 = vunpack.c.l.b16 %v1822
      %v2948 = vunpack.c.l.b16 %v1823
      %v2949 = vunpack.c.l.b16 %v1824
      %v2950 = vunpack.c.l.b16 %v1825
      %v2951 = vunpack.c.l.b16 %v1826
      %v2952 = vunpack.c.l.b16 %v1827
      %v2953 = vunpack.c.l.b16 %v1828
      %v2954 = vunpack.c.l.b16 %v1829
      %v2955 = vunpack.c.l.b16 %v1830
      %v2956 = vunpack.c.l.b16 %v1831
      %v2957 = vunpack.c.l.b16 %v1832
      %v2958 = vunpack.c.l.b16 %v1833
      %v2959 = vunpack.c.l.b16 %v1834
      %v2960 = vunpack.c.l.b16 %v1835
      %v2961 = vunpack.c.l.b16 %v1836
      %v2962 = vunpack.c.l.b16 %v1837
      %v2963 = vunpack.c.l.b16 %v1838
      %v2964 = vunpack.c.l.b16 %v1839
      %v2965 = vunpack.c.l.b16 %v1840
      %v2966 = vunpack.c.l.b16 %v1841
      %v2967 = vunpack.c.l.b16 %v1842
      %v2968 = vunpack.c.l.b16 %v1843
      %v2969 = vunpack.c.l.b16 %v1844
      %v2970 = vunpack.c.l.b16 %v1845
      %v2971 = vunpack.c.l.b16 %v1846
      %v2972 = vunpack.c.l.b16 %v1847
      %v2973 = vunpack.c.l.b16 %v1848
      %v2974 = vunpack.c.l.b16 %v1849
      %v2975 = vunpack.c.l.b16 %v1850
      %v2976 = vunpack.c.l.b16 %v1851
      %v2977 = vunpack.c.l.b16 %v1852
      %v2978 = vunpack.c.l.b16 %v1853
      %v2979 = vunpack.c.l.b16 %v1854
      %v2980 = vunpack.c.l.b16 %v1855
      %v2981 = vunpack.c.l.b16 %v1856
      %v2982 = vunpack.c.l.b16 %v1857
      %v2983 = vunpack.c.l.b16 %v1858
      %v2984 = vunpack.c.l.b16 %v1859
      %v2985 = vunpack.c.l.b16 %v1860
      %v2986 = vunpack.c.l.b16 %v1861
      %v2987 = vunpack.c.l.b16 %v1862
      %v2988 = vunpack.c.l.b16 %v1863
      %v2989 = vunpack.c.l.b16 %v1864
      %v2990 = vunpack.c.l.b16 %v1865
      %v2991 = vunpack.c.l.b16 %v1866
      %v2992 = vunpack.c.l.b16 %v1867
      %v2993 = vunpack.c.l.b16 %v1868
      %v2994 = vunpack.c.l.b16 %v1869
      %v2995 = vunpack.c.l.b16 %v1870
      %v2996 = vunpack.c.l.b16 %v1871
      %v2997 = vunpack.c.l.b16 %v1872
      %v2998 = vunpack.c.l.b16 %v1873
      %v2999 = vunpack.c.l.b16 %v1874
      %v3000 = vunpack.c.l.b16 %v1875
      %v3001 = vunpack.c.l.b16 %v1876
      %v3002 = vunpack.c.l.b16 %v1877
      %v3003 = vunpack.c.l.b16 %v1878
      %v3004 = vunpack.c.l.b16 %v1879
      %v3005 = vunpack.c.l.b16 %v1880
      %v3006 = vunpack.c.l.b16 %v1881
      %v3007 = vunpack.c.l.b16 %v1882
      %v3008 = vunpack.c.l.b16 %v1883
      %v3009 = vunpack.c.l.b16 %v1884
      %v3010 = vunpack.c.l.b16 %v1885
      %v3011 = vunpack.c.l.b16 %v1886
      %v3012 = vunpack.c.l.b16 %v1887
      %v3013 = vunpack.c.l.b16 %v1888
      %v3014 = vunpack.c.l.b16 %v1889
      %v3015 = vunpack.c.l.b16 %v1890
      %v3016 = vpack.c.b16 %v2761, %v2760
      %v3017 = vpack.c.b16 %v2763, %v2762
      %v3018 = vpack.c.b16 %v2765, %v2764
      %v3019 = vpack.c.b16 %v2767, %v2766
      %v3020 = vpack.c.b16 %v2769, %v2768
      %v3021 = vpack.c.b16 %v2771, %v2770
      %v3022 = vpack.c.b16 %v2773, %v2772
      %v3023 = vpack.c.b16 %v2775, %v2774
      %v3024 = vpack.c.b16 %v2777, %v2776
      %v3025 = vpack.c.b16 %v2779, %v2778
      %v3026 = vpack.c.b16 %v2781, %v2780
      %v3027 = vpack.c.b16 %v2783, %v2782
      %v3028 = vpack.c.b16 %v2785, %v2784
      %v3029 = vpack.c.b16 %v2787, %v2786
      %v3030 = vpack.c.b16 %v2789, %v2788
      %v3031 = vpack.c.b16 %v2791, %v2790
      %v3032 = vpack.c.b16 %v2793, %v2792
      %v3033 = vpack.c.b16 %v2795, %v2794
      %v3034 = vpack.c.b16 %v2797, %v2796
      %v3035 = vpack.c.b16 %v2799, %v2798
      %v3036 = vpack.c.b16 %v2801, %v2800
      %v3037 = vpack.c.b16 %v2803, %v2802
      %v3038 = vpack.c.b16 %v2805, %v2804
      %v3039 = vpack.c.b16 %v2807, %v2806
      %v3040 = vpack.c.b16 %v2809, %v2808
      %v3041 = vpack.c.b16 %v2811, %v2810
      %v3042 = vpack.c.b16 %v2813, %v2812
      %v3043 = vpack.c.b16 %v2815, %v2814
      %v3044 = vpack.c.b16 %v2817, %v2816
      %v3045 = vpack.c.b16 %v2819, %v2818
      %v3046 = vpack.c.b16 %v2821, %v2820
      %v3047 = vpack.c.b16 %v2823, %v2822
      %v3048 = vpack.c.b16 %v2825, %v2824
      %v3049 = vpack.c.b16 %v2827, %v2826
      %v3050 = vpack.c.b16 %v2829, %v2828
      %v3051 = vpack.c.b16 %v2831, %v2830
      %v3052 = vpack.c.b16 %v2833, %v2832
      %v3053 = vpack.c.b16 %v2835, %v2834
      %v3054 = vpack.c.b16 %v2837, %v2836
      %v3055 = vpack.c.b16 %v2839, %v2838
      %v3056 = vpack.c.b16 %v2841, %v2840
      %v3057 = vpack.c.b16 %v2843, %v2842
      %v3058 = vpack.c.b16 %v2845, %v2844
      %v3059 = vpack.c.b16 %v2847, %v2846
      %v3060 = vpack.c.b16 %v2849, %v2848
      %v3061 = vpack.c.b16 %v2851, %v2850
      %v3062 = vpack.c.b16 %v2853, %v2852
      %v3063 = vpack.c.b16 %v2855, %v2854
      %v3064 = vpack.c.b16 %v2857, %v2856
      %v3065 = vpack.c.b16 %v2859, %v2858
      %v3066 = vpack.c.b16 %v2861, %v2860
      %v3067 = vpack.c.b16 %v2863, %v2862
      %v3068 = vpack.c.b16 %v2865, %v2864
      %v3069 = vpack.c.b16 %v2867, %v2866
      %v3070 = vpack.c.b16 %v2869, %v2868
      %v3071 = vpack.c.b16 %v2871, %v2870
      %v3072 = vpack.c.b16 %v2873, %v2872
      %v3073 = vpack.c.b16 %v2875, %v2874
      %v3074 = vpack.c.b16 %v2877, %v2876
      %v3075 = vpack.c.b16 %v2879, %v2878
      %v3076 = vpack.c.b16 %v2881, %v2880
      %v3077 = vpack.c.b16 %v2883, %v2882
      %v3078 = vpack.c.b16 %v2885, %v2884
      %v3079 = vpack.c.b16 %v2887, %v2886
      %v3080 = vpack.c.b16 %v2889, %v2888
      %v3081 = vpack.c.b16 %v2891, %v2890
      %v3082 = vpack.c.b16 %v2893, %v2892
      %v3083 = vpack.c.b16 %v2895, %v2894
      %v3084 = vpack.c.b16 %v2897, %v2896
      %v3085 = vpack.c.b16 %v2899, %v2898
      %v3086 = vpack.c.b16 %v2901, %v2900
      %v3087 = vpack.c.b16 %v2903, %v2902
      %v3088 = vpack.c.b16 %v2905, %v2904
      %v3089 = vpack.c.b16 %v2907, %v2906
      %v3090 = vpack.c.b16 %v2909, %v2908
      %v3091 = vpack.c.b16 %v2911, %v2910
      %v3092 = vpack.c.b16 %v2913, %v2912
      %v3093 = vpack.c.b16 %v2915, %v2914
      %v3094 = vpack.c.b16 %v2917, %v2916
      %v3095 = vpack.c.b16 %v2919, %v2918
      %v3096 = vpack.c.b16 %v2921, %v2920
      %v3097 = vpack.c.b16 %v2923, %v2922
      %v3098 = vpack.c.b16 %v2925, %v2924
      %v3099 = vpack.c.b16 %v2927, %v2926
      %v3100 = vpack.c.b16 %v2929, %v2928
      %v3101 = vpack.c.b16 %v2931, %v2930
      %v3102 = vpack.c.b16 %v2933, %v2932
      %v3103 = vpack.c.b16 %v2935, %v2934
      %v3104 = vpack.c.b16 %v2937, %v2936
      %v3105 = vpack.c.b16 %v2939, %v2938
      %v3106 = vpack.c.b16 %v2941, %v2940
      %v3107 = vpack.c.b16 %v2943, %v2942
      %v3108 = vpack.c.b16 %v2945, %v2944
      %v3109 = vpack.c.b16 %v2947, %v2946
      %v3110 = vpack.c.b16 %v2949, %v2948
      %v3111 = vpack.c.b16 %v2951, %v2950
      %v3112 = vpack.c.b16 %v2953, %v2952
      %v3113 = vpack.c.b16 %v2955, %v2954
      %v3114 = vpack.c.b16 %v2957, %v2956
      %v3115 = vpack.c.b16 %v2959, %v2958
      %v3116 = vpack.c.b16 %v2961, %v2960
      %v3117 = vpack.c.b16 %v2963, %v2962
      %v3118 = vpack.c.b16 %v2965, %v2964
      %v3119 = vpack.c.b16 %v2967, %v2966
      %v3120 = vpack.c.b16 %v2969, %v2968
      %v3121 = vpack.c.b16 %v2971, %v2970
      %v3122 = vpack.c.b16 %v2973, %v2972
      %v3123 = vpack.c.b16 %v2975, %v2974
      %v3124 = vpack.c.b16 %v2977, %v2976
      %v3125 = vpack.c.b16 %v2979, %v2978
      %v3126 = vpack.c.b16 %v2981, %v2980
      %v3127 = vpack.c.b16 %v2983, %v2982
      %v3128 = vpack.c.b16 %v2985, %v2984
      %v3129 = vpack.c.b16 %v2987, %v2986
      %v3130 = vpack.c.b16 %v2989, %v2988
      %v3131 = vpack.c.b16 %v2991, %v2990
      %v3132 = vpack.c.b16 %v2993, %v2992
      %v3133 = vpack.c.b16 %v2995, %v2994
      %v3134 = vpack.c.b16 %v2997, %v2996
      %v3135 = vpack.c.b16 %v2999, %v2998
      %v3136 = vpack.c.b16 %v3001, %v3000
      %v3137 = vpack.c.b16 %v3003, %v3002
      %v3138 = vpack.c.b16 %v3005, %v3004
      %v3139 = vpack.c.b16 %v3007, %v3006
      %v3140 = vpack.c.b16 %v3009, %v3008
      %v3141 = vpack.c.b16 %v3011, %v3010
      %v3142 = vpack.c.b16 %v3013, %v3012
      %v3143 = vpack.c.b16 %v3015, %v3014
      %3272 = vmatprep.subr.bf16.mxu0 0
      %3273 = vmatpush1.bf16.msra.mxu0 %v3016
      %3274 = vmatprep.subr.bf16.mxu0 0
      %3275 = vmatpush1.bf16.msra.mxu0 %v3017
      %3276 = vmatprep.subr.bf16.mxu0 0
      %3277 = vmatpush1.bf16.msra.mxu0 %v3018
      %3278 = vmatprep.subr.bf16.mxu0 0
      %3279 = vmatpush1.bf16.msra.mxu0 %v3019
      %3280 = vmatprep.subr.bf16.mxu0 0
      %3281 = vmatpush1.bf16.msra.mxu0 %v3020
      %3282 = vmatprep.subr.bf16.mxu0 0
      %3283 = vmatpush1.bf16.msra.mxu0 %v3021
      %3284 = vmatprep.subr.bf16.mxu0 0
      %3285 = vmatpush1.bf16.msra.mxu0 %v3022
      %3286 = vmatprep.subr.bf16.mxu0 0
      %3287 = vmatpush1.bf16.msra.mxu0 %v3023
      %3288 = vmatprep.subr.bf16.mxu0 0
      %3289 = vmatpush1.bf16.msra.mxu0 %v3024
      %3290 = vmatprep.subr.bf16.mxu0 0
      %3291 = vmatpush1.bf16.msra.mxu0 %v3025
      %3292 = vmatprep.subr.bf16.mxu0 0
      %3293 = vmatpush1.bf16.msra.mxu0 %v3026
      %3294 = vmatprep.subr.bf16.mxu0 0
      %3295 = vmatpush1.bf16.msra.mxu0 %v3027
      %3296 = vmatprep.subr.bf16.mxu0 0
      %3297 = vmatpush1.bf16.msra.mxu0 %v3028
      %3298 = vmatprep.subr.bf16.mxu0 0
      %3299 = vmatpush1.bf16.msra.mxu0 %v3029
      %3300 = vmatprep.subr.bf16.mxu0 0
      %3301 = vmatpush1.bf16.msra.mxu0 %v3030
      %3302 = vmatprep.subr.bf16.mxu0 0
      %3303 = vmatpush1.bf16.msra.mxu0 %v3031
      %3304 = vmatprep.mubr.bf16.mxu0 %v2483
      %3305 = vmatmul.mubr.bf16.gmra.mrb[0].mxu0 %v2482
      %v3306 = vpop.f32.mrb[0].mxu0
      %v3307 = vadd.f32 %v2502, %v3306
      %v3308 = vpop.f32.mrb[0].mxu0
      %v3309 = vpop.f32.mrb[0].mxu0
      %v3310 = vpop.f32.mrb[0].mxu0
      %3311 = vdwg.mxu0
      %3312 = vmatprep.subr.bf16.mxu0 0
      %3313 = vmatpush1.bf16.msra.mxu0 %v3032
      %3314 = vmatprep.subr.bf16.mxu0 0
      %3315 = vmatpush1.bf16.msra.mxu0 %v3033
      %3316 = vmatprep.subr.bf16.mxu0 0
      %3317 = vmatpush1.bf16.msra.mxu0 %v3034
      %3318 = vmatprep.subr.bf16.mxu0 0
      %3319 = vmatpush1.bf16.msra.mxu0 %v3035
      %3320 = vmatprep.subr.bf16.mxu0 0
      %3321 = vmatpush1.bf16.msra.mxu0 %v3036
      %3322 = vmatprep.subr.bf16.mxu0 0
      %3323 = vmatpush1.bf16.msra.mxu0 %v3037
      %3324 = vmatprep.subr.bf16.mxu0 0
      %3325 = vmatpush1.bf16.msra.mxu0 %v3038
      %3326 = vmatprep.subr.bf16.mxu0 0
      %3327 = vmatpush1.bf16.msra.mxu0 %v3039
      %3328 = vmatprep.subr.bf16.mxu0 0
      %3329 = vmatpush1.bf16.msra.mxu0 %v3040
      %3330 = vmatprep.subr.bf16.mxu0 0
      %3331 = vmatpush1.bf16.msra.mxu0 %v3041
      %3332 = vmatprep.subr.bf16.mxu0 0
      %3333 = vmatpush1.bf16.msra.mxu0 %v3042
      %3334 = vmatprep.subr.bf16.mxu0 0
      %3335 = vmatpush1.bf16.msra.mxu0 %v3043
      %3336 = vmatprep.subr.bf16.mxu0 0
      %3337 = vmatpush1.bf16.msra.mxu0 %v3044
      %3338 = vmatprep.subr.bf16.mxu0 0
      %3339 = vmatpush1.bf16.msra.mxu0 %v3045
      %3340 = vmatprep.subr.bf16.mxu0 0
      %3341 = vmatpush1.bf16.msra.mxu0 %v3046
      %3342 = vmatprep.subr.bf16.mxu0 0
      %3343 = vmatpush1.bf16.msra.mxu0 %v3047
      %3344 = vmatprep.mubr.bf16.mxu0 %v2485
      %3345 = vmatmul.mubr.bf16.gmra.mrb[0].mxu0 %v2484
      %v3346 = vpop.f32.mrb[0].mxu0
      %v3347 = vadd.f32 %v3307, %v3346
      %v3348 = vpop.f32.mrb[0].mxu0
      %v3349 = vpop.f32.mrb[0].mxu0
      %v3350 = vpop.f32.mrb[0].mxu0
      %3351 = vdwg.mxu0
      %3352 = vmatprep.subr.bf16.mxu0 0
      %3353 = vmatpush1.bf16.msra.mxu0 %v3048
      %3354 = vmatprep.subr.bf16.mxu0 0
      %3355 = vmatpush1.bf16.msra.mxu0 %v3049
      %3356 = vmatprep.subr.bf16.mxu0 0
      %3357 = vmatpush1.bf16.msra.mxu0 %v3050
      %3358 = vmatprep.subr.bf16.mxu0 0
      %3359 = vmatpush1.bf16.msra.mxu0 %v3051
      %3360 = vmatprep.subr.bf16.mxu0 0
      %3361 = vmatpush1.bf16.msra.mxu0 %v3052
      %3362 = vmatprep.subr.bf16.mxu0 0
      %3363 = vmatpush1.bf16.msra.mxu0 %v3053
      %3364 = vmatprep.subr.bf16.mxu0 0
      %3365 = vmatpush1.bf16.msra.mxu0 %v3054
      %3366 = vmatprep.subr.bf16.mxu0 0
      %3367 = vmatpush1.bf16.msra.mxu0 %v3055
      %3368 = vmatprep.subr.bf16.mxu0 0
      %3369 = vmatpush1.bf16.msra.mxu0 %v3056
      %3370 = vmatprep.subr.bf16.mxu0 0
      %3371 = vmatpush1.bf16.msra.mxu0 %v3057
      %3372 = vmatprep.subr.bf16.mxu0 0
      %3373 = vmatpush1.bf16.msra.mxu0 %v3058
      %3374 = vmatprep.subr.bf16.mxu0 0
      %3375 = vmatpush1.bf16.msra.mxu0 %v3059
      %3376 = vmatprep.subr.bf16.mxu0 0
      %3377 = vmatpush1.bf16.msra.mxu0 %v3060
      %3378 = vmatprep.subr.bf16.mxu0 0
      %3379 = vmatpush1.bf16.msra.mxu0 %v3061
      %3380 = vmatprep.subr.bf16.mxu0 0
      %3381 = vmatpush1.bf16.msra.mxu0 %v3062
      %3382 = vmatprep.subr.bf16.mxu0 0
      %3383 = vmatpush1.bf16.msra.mxu0 %v3063
      %3384 = vmatprep.mubr.bf16.mxu0 %v2487
      %3385 = vmatmul.mubr.bf16.gmra.mrb[0].mxu0 %v2486
      %v3386 = vpop.f32.mrb[0].mxu0
      %v3387 = vadd.f32 %v3347, %v3386
      %v3388 = vpop.f32.mrb[0].mxu0
      %v3389 = vpop.f32.mrb[0].mxu0
      %v3390 = vpop.f32.mrb[0].mxu0
      %3391 = vdwg.mxu0
      %3392 = vmatprep.subr.bf16.mxu0 0
      %3393 = vmatpush1.bf16.msra.mxu0 %v3064
      %3394 = vmatprep.subr.bf16.mxu0 0
      %3395 = vmatpush1.bf16.msra.mxu0 %v3065
      %3396 = vmatprep.subr.bf16.mxu0 0
      %3397 = vmatpush1.bf16.msra.mxu0 %v3066
      %3398 = vmatprep.subr.bf16.mxu0 0
      %3399 = vmatpush1.bf16.msra.mxu0 %v3067
      %3400 = vmatprep.subr.bf16.mxu0 0
      %3401 = vmatpush1.bf16.msra.mxu0 %v3068
      %3402 = vmatprep.subr.bf16.mxu0 0
      %3403 = vmatpush1.bf16.msra.mxu0 %v3069
      %3404 = vmatprep.subr.bf16.mxu0 0
      %3405 = vmatpush1.bf16.msra.mxu0 %v3070
      %3406 = vmatprep.subr.bf16.mxu0 0
      %3407 = vmatpush1.bf16.msra.mxu0 %v3071
      %3408 = vmatprep.subr.bf16.mxu0 0
      %3409 = vmatpush1.bf16.msra.mxu0 %v3072
      %3410 = vmatprep.subr.bf16.mxu0 0
      %3411 = vmatpush1.bf16.msra.mxu0 %v3073
      %3412 = vmatprep.subr.bf16.mxu0 0
      %3413 = vmatpush1.bf16.msra.mxu0 %v3074
      %3414 = vmatprep.subr.bf16.mxu0 0
      %3415 = vmatpush1.bf16.msra.mxu0 %v3075
      %3416 = vmatprep.subr.bf16.mxu0 0
      %3417 = vmatpush1.bf16.msra.mxu0 %v3076
      %3418 = vmatprep.subr.bf16.mxu0 0
      %3419 = vmatpush1.bf16.msra.mxu0 %v3077
      %3420 = vmatprep.subr.bf16.mxu0 0
      %3421 = vmatpush1.bf16.msra.mxu0 %v3078
      %3422 = vmatprep.subr.bf16.mxu0 0
      %3423 = vmatpush1.bf16.msra.mxu0 %v3079
      %3424 = vmatprep.mubr.bf16.mxu0 %v2489
      %3425 = vmatmul.mubr.bf16.gmra.mrb[0].mxu0 %v2488
      %v3426 = vpop.f32.mrb[0].mxu0
      %v3427 = vadd.f32 %v3387, %v3426
      %v3428 = vpop.f32.mrb[0].mxu0
      %v3429 = vpop.f32.mrb[0].mxu0
      %v3430 = vpop.f32.mrb[0].mxu0
      %3431 = vdwg.mxu0
      %3432 = vmatprep.subr.bf16.mxu0 0
      %3433 = vmatpush1.bf16.msra.mxu0 %v3080
      %3434 = vmatprep.subr.bf16.mxu0 0
      %3435 = vmatpush1.bf16.msra.mxu0 %v3081
      %3436 = vmatprep.subr.bf16.mxu0 0
      %3437 = vmatpush1.bf16.msra.mxu0 %v3082
      %3438 = vmatprep.subr.bf16.mxu0 0
      %3439 = vmatpush1.bf16.msra.mxu0 %v3083
      %3440 = vmatprep.subr.bf16.mxu0 0
      %3441 = vmatpush1.bf16.msra.mxu0 %v3084
      %3442 = vmatprep.subr.bf16.mxu0 0
      %3443 = vmatpush1.bf16.msra.mxu0 %v3085
      %3444 = vmatprep.subr.bf16.mxu0 0
      %3445 = vmatpush1.bf16.msra.mxu0 %v3086
      %3446 = vmatprep.subr.bf16.mxu0 0
      %3447 = vmatpush1.bf16.msra.mxu0 %v3087
      %3448 = vmatprep.subr.bf16.mxu0 0
      %3449 = vmatpush1.bf16.msra.mxu0 %v3088
      %3450 = vmatprep.subr.bf16.mxu0 0
      %3451 = vmatpush1.bf16.msra.mxu0 %v3089
      %3452 = vmatprep.subr.bf16.mxu0 0
      %3453 = vmatpush1.bf16.msra.mxu0 %v3090
      %3454 = vmatprep.subr.bf16.mxu0 0
      %3455 = vmatpush1.bf16.msra.mxu0 %v3091
      %3456 = vmatprep.subr.bf16.mxu0 0
      %3457 = vmatpush1.bf16.msra.mxu0 %v3092
      %3458 = vmatprep.subr.bf16.mxu0 0
      %3459 = vmatpush1.bf16.msra.mxu0 %v3093
      %3460 = vmatprep.subr.bf16.mxu0 0
      %3461 = vmatpush1.bf16.msra.mxu0 %v3094
      %3462 = vmatprep.subr.bf16.mxu0 0
      %3463 = vmatpush1.bf16.msra.mxu0 %v3095
      %3464 = vmatprep.mubr.bf16.mxu0 %v2491
      %3465 = vmatmul.mubr.bf16.gmra.mrb[0].mxu0 %v2490
      %v3466 = vpop.f32.mrb[0].mxu0
      %v3467 = vadd.f32 %v3427, %v3466
      %v3468 = vpop.f32.mrb[0].mxu0
      %v3469 = vpop.f32.mrb[0].mxu0
      %v3470 = vpop.f32.mrb[0].mxu0
      %3471 = vdwg.mxu0
      %3472 = vmatprep.subr.bf16.mxu0 0
      %3473 = vmatpush1.bf16.msra.mxu0 %v3096
      %3474 = vmatprep.subr.bf16.mxu0 0
      %3475 = vmatpush1.bf16.msra.mxu0 %v3097
      %3476 = vmatprep.subr.bf16.mxu0 0
      %3477 = vmatpush1.bf16.msra.mxu0 %v3098
      %3478 = vmatprep.subr.bf16.mxu0 0
      %3479 = vmatpush1.bf16.msra.mxu0 %v3099
      %3480 = vmatprep.subr.bf16.mxu0 0
      %3481 = vmatpush1.bf16.msra.mxu0 %v3100
      %3482 = vmatprep.subr.bf16.mxu0 0
      %3483 = vmatpush1.bf16.msra.mxu0 %v3101
      %3484 = vmatprep.subr.bf16.mxu0 0
      %3485 = vmatpush1.bf16.msra.mxu0 %v3102
      %3486 = vmatprep.subr.bf16.mxu0 0
      %3487 = vmatpush1.bf16.msra.mxu0 %v3103
      %3488 = vmatprep.subr.bf16.mxu0 0
      %3489 = vmatpush1.bf16.msra.mxu0 %v3104
      %3490 = vmatprep.subr.bf16.mxu0 0
      %3491 = vmatpush1.bf16.msra.mxu0 %v3105
      %3492 = vmatprep.subr.bf16.mxu0 0
      %3493 = vmatpush1.bf16.msra.mxu0 %v3106
      %3494 = vmatprep.subr.bf16.mxu0 0
      %3495 = vmatpush1.bf16.msra.mxu0 %v3107
      %3496 = vmatprep.subr.bf16.mxu0 0
      %3497 = vmatpush1.bf16.msra.mxu0 %v3108
      %3498 = vmatprep.subr.bf16.mxu0 0
      %3499 = vmatpush1.bf16.msra.mxu0 %v3109
      %3500 = vmatprep.subr.bf16.mxu0 0
      %3501 = vmatpush1.bf16.msra.mxu0 %v3110
      %3502 = vmatprep.subr.bf16.mxu0 0
      %3503 = vmatpush1.bf16.msra.mxu0 %v3111
      %3504 = vmatprep.mubr.bf16.mxu0 %v2493
      %3505 = vmatmul.mubr.bf16.gmra.mrb[0].mxu0 %v2492
      %v3506 = vpop.f32.mrb[0].mxu0
      %v3507 = vadd.f32 %v3467, %v3506
      %v3508 = vpop.f32.mrb[0].mxu0
      %v3509 = vpop.f32.mrb[0].mxu0
      %v3510 = vpop.f32.mrb[0].mxu0
      %3511 = vdwg.mxu0
      %3512 = vmatprep.subr.bf16.mxu0 0
      %3513 = vmatpush1.bf16.msra.mxu0 %v3112
      %3514 = vmatprep.subr.bf16.mxu0 0
      %3515 = vmatpush1.bf16.msra.mxu0 %v3113
      %3516 = vmatprep.subr.bf16.mxu0 0
      %3517 = vmatpush1.bf16.msra.mxu0 %v3114
      %3518 = vmatprep.subr.bf16.mxu0 0
      %3519 = vmatpush1.bf16.msra.mxu0 %v3115
      %3520 = vmatprep.subr.bf16.mxu0 0
      %3521 = vmatpush1.bf16.msra.mxu0 %v3116
      %3522 = vmatprep.subr.bf16.mxu0 0
      %3523 = vmatpush1.bf16.msra.mxu0 %v3117
      %3524 = vmatprep.subr.bf16.mxu0 0
      %3525 = vmatpush1.bf16.msra.mxu0 %v3118
      %3526 = vmatprep.subr.bf16.mxu0 0
      %3527 = vmatpush1.bf16.msra.mxu0 %v3119
      %3528 = vmatprep.subr.bf16.mxu0 0
      %3529 = vmatpush1.bf16.msra.mxu0 %v3120
      %3530 = vmatprep.subr.bf16.mxu0 0
      %3531 = vmatpush1.bf16.msra.mxu0 %v3121
      %3532 = vmatprep.subr.bf16.mxu0 0
      %3533 = vmatpush1.bf16.msra.mxu0 %v3122
      %3534 = vmatprep.subr.bf16.mxu0 0
      %3535 = vmatpush1.bf16.msra.mxu0 %v3123
      %3536 = vmatprep.subr.bf16.mxu0 0
      %3537 = vmatpush1.bf16.msra.mxu0 %v3124
      %3538 = vmatprep.subr.bf16.mxu0 0
      %3539 = vmatpush1.bf16.msra.mxu0 %v3125
      %3540 = vmatprep.subr.bf16.mxu0 0
      %3541 = vmatpush1.bf16.msra.mxu0 %v3126
      %3542 = vmatprep.subr.bf16.mxu0 0
      %3543 = vmatpush1.bf16.msra.mxu0 %v3127
      %3544 = vmatprep.mubr.bf16.mxu0 %v2495
      %3545 = vmatmul.mubr.bf16.gmra.mrb[0].mxu0 %v2494
      %v3546 = vpop.f32.mrb[0].mxu0
      %v3547 = vadd.f32 %v3507, %v3546
      %v3548 = vpop.f32.mrb[0].mxu0
      %v3549 = vpop.f32.mrb[0].mxu0
      %v3550 = vpop.f32.mrb[0].mxu0
      %3551 = vdwg.mxu0
      %3552 = vmatprep.subr.bf16.mxu0 0
      %3553 = vmatpush1.bf16.msra.mxu0 %v3128
      %3554 = vmatprep.subr.bf16.mxu0 0
      %3555 = vmatpush1.bf16.msra.mxu0 %v3129
      %3556 = vmatprep.subr.bf16.mxu0 0
      %3557 = vmatpush1.bf16.msra.mxu0 %v3130
      %3558 = vmatprep.subr.bf16.mxu0 0
      %3559 = vmatpush1.bf16.msra.mxu0 %v3131
      %3560 = vmatprep.subr.bf16.mxu0 0
      %3561 = vmatpush1.bf16.msra.mxu0 %v3132
      %3562 = vmatprep.subr.bf16.mxu0 0
      %3563 = vmatpush1.bf16.msra.mxu0 %v3133
      %3564 = vmatprep.subr.bf16.mxu0 0
      %3565 = vmatpush1.bf16.msra.mxu0 %v3134
      %3566 = vmatprep.subr.bf16.mxu0 0
      %3567 = vmatpush1.bf16.msra.mxu0 %v3135
      %3568 = vmatprep.subr.bf16.mxu0 0
      %3569 = vmatpush1.bf16.msra.mxu0 %v3136
      %3570 = vmatprep.subr.bf16.mxu0 0
      %3571 = vmatpush1.bf16.msra.mxu0 %v3137
      %3572 = vmatprep.subr.bf16.mxu0 0
      %3573 = vmatpush1.bf16.msra.mxu0 %v3138
      %3574 = vmatprep.subr.bf16.mxu0 0
      %3575 = vmatpush1.bf16.msra.mxu0 %v3139
      %3576 = vmatprep.subr.bf16.mxu0 0
      %3577 = vmatpush1.bf16.msra.mxu0 %v3140
      %3578 = vmatprep.subr.bf16.mxu0 0
      %3579 = vmatpush1.bf16.msra.mxu0 %v3141
      %3580 = vmatprep.subr.bf16.mxu0 0
      %3581 = vmatpush1.bf16.msra.mxu0 %v3142
      %3582 = vmatprep.subr.bf16.mxu0 0
      %3583 = vmatpush1.bf16.msra.mxu0 %v3143
      %3584 = vmatprep.mubr.bf16.mxu0 %v2497
      %3585 = vmatmul.mubr.bf16.gmra.mrb[0].mxu0 %v2496
      %v3586 = vpop.f32.mrb[0].mxu0
      %v3587 = vadd.f32 %v3547, %v3586
      %v3588 = vpop.f32.mrb[0].mxu0
      %v3589 = vpop.f32.mrb[0].mxu0
      %v3590 = vpop.f32.mrb[0].mxu0
      %3591 = vdwg.mxu0
      %v3592 = vadd.f32 %v3587, %v1600
      %v3593 = vld [vmem:[%s777] sm:$0x1]
      %v3594 = vld [vmem:[%s780] sm:$0x1]
      %v3595 = vsel %vm828, %v3592, 0.0
      %3596 = vadd.xlane.f32.xlu0 %v3595
      %v3597 = vpop.xlane.xlu0 %3596
      %v3598 = vmul.f32 %v3597, %v1576
      %v3599 = vsub.f32 %v3592, %v3598
      %v3600 = vmul.f32 %v3599, %v3599
      %v3601 = vsel %vm828, %v3600, 0.0
      %3602 = vadd.xlane.f32.xlu0 %v3601
      %v3603 = vpop.xlane.xlu0 %3602
      %v3604 = vmul.f32 %v3603, %v1576
      %v3605 = vadd.f32 %v3604, 1e-05
      %v3606 = vrsqrt.pop %v3605
      %v3607 = vmul.f32 %v3599, %v3606
      %v3609 = vlaneseq
      %v3610 = vshrl.u32 %v3609, 7
      %v3611 = vsub.s32 0, %v3610
      %v3612 = vrot.slane %v3593, %v3611
      %v3614 = vmul.f32 %v3607, %v3612
      %v3616 = vlaneseq
      %v3617 = vshrl.u32 %v3616, 7
      %v3618 = vsub.s32 0, %v3617
      %v3619 = vrot.slane %v3594, %v3618
      %v3621 = vadd.f32 %v3614, %v3619
      %3622 = vst.msk [vmem:[#allocation2] sm:$0xff] %vm828, %v3621
      %p3623 = scmp.eq.s32.totalorder %s33, 1
      // Predicated region
      $region93: #{transformer_forward.2} parent=87 // pred_check
        %p3624 = pneg %p3623
      $region94: #{transformer_forward.2} parent=87 // pred_check_branch
        %3626 = sbr.rel (%p3624) target = $region96
      $region95: #{transformer_forward.2} parent=87 // pred_region
        %v3627 = vld [vmem:[%s15] sm:$0x1]
        %v3628 = vld [vmem:[%s16] sm:$0x1]
        %v3629 = vsel %vm828, %v3621, 0.0
        %3630 = vadd.xlane.f32.xlu0 %v3629
        %v3631 = vpop.xlane.xlu0 %3630
        %v3632 = vmul.f32 %v3631, %v1576
        %v3633 = vsub.f32 %v3621, %v3632
        %v3634 = vmul.f32 %v3633, %v3633
        %v3635 = vsel %vm828, %v3634, 0.0
        %3636 = vadd.xlane.f32.xlu0 %v3635
        %v3637 = vpop.xlane.xlu0 %3636
        %v3638 = vmul.f32 %v3637, %v1576
        %v3639 = vadd.f32 %v3638, 1e-05
        %v3640 = vrsqrt.pop %v3639
        %v3641 = vmul.f32 %v3633, %v3640
        %v3643 = vlaneseq
        %v3644 = vshrl.u32 %v3643, 7
        %v3645 = vsub.s32 0, %v3644
        %v3646 = vrot.slane %v3627, %v3645
        %v3648 = vmul.f32 %v3641, %v3646
        %v3650 = vlaneseq
        %v3651 = vshrl.u32 %v3650, 7
        %v3652 = vsub.s32 0, %v3651
        %v3653 = vrot.slane %v3628, %v3652
        %v3655 = vadd.f32 %v3648, %v3653
        %3656 = vst.msk [vmem:[%s784] sm:$0xff] %vm828, %v3655
      $region96: #{transformer_forward.2} parent=87 // pred_fallthru
        _
      %p3657 = scmp.lt.s32.totalorder %s32, 1
      %s3658 = scalar_select %p3657, %s32, 1
      %s3659 = smul.addr %s3658, 8
      %s3660 = scalar_lea.vmem %s17, %s3659
      // Predicated region
      $region97: #{transformer_forward.2} parent=87 // pred_check
        %p3661 = pneg %p490
      $region98: #{transformer_forward.2} parent=87 // pred_check_branch
        %3663 = sbr.rel (%p3661) target = $region100
      $region99: #{transformer_forward.2} parent=87 // pred_region
        _
      $region100: #{transformer_forward.2} parent=87 // pred_fallthru
        _
    $region88: #{transformer_forward.2} parent=5 // pred_fallthru
      _
    %p3664 = scmp.le.s32.totalorder 2, %s23
    // Predicated region
    $region101: #{transformer_forward.2} parent=5 // pred_check
      %p3665 = pneg %p3664
    $region102: #{transformer_forward.2} parent=5 // pred_check_branch
      %3667 = sbr.rel (%p3665) target = $region104
    $region103: #{transformer_forward.2} parent=5 // pred_region
      %s3668 = ssub.s32 %s23, 2
      // Predicated region
      $region105: #{transformer_forward.2} parent=103 // pred_check
        %p3669 = pneg %p496
      $region106: #{transformer_forward.2} parent=103 // pred_check_branch
        %3671 = sbr.rel (%p3669) target = $region108
      $region107: #{transformer_forward.2} parent=103 // pred_region
        %p3672 = scmp.lt.s32.totalorder %s34, 1
        %s3673 = scalar_select %p3672, %s34, 1
        %s3674 = smul.addr %s3673, 8
        %s3675 = scalar_lea.vmem %s17, %s3674
      $region108: #{transformer_forward.2} parent=103 // pred_fallthru
        _
    $region104: #{transformer_forward.2} parent=5 // pred_fallthru
      _
  $region6: #{transformer_forward.2} parent=0 // loop_footer
    %s27 = sadd.s32 1, %s23
  $region7: #{transformer_forward.2} parent=0 // loop_footer_branch
    %22 = sbr.rel target = $region3
  $region8: #{transformer_forward.2} parent=0 // loop_exit
    _

</llo_original>
